<compile_context>
chip_gen: v6e
topology: v6e:2x2x1
jax: 0.10.0
libtpu: 0.0.40
codegen_flags: <defaults>
</compile_context>

<pallas_src>
import functools
import math

import jax
import jax.numpy as jnp
from jax import lax
from jax.experimental import pallas as pl
from jax.experimental.pallas import tpu as pltpu


def cnn1d_kernel(x_ref, vp_ref, vn_ref, w1_ref, b1_ref, w2_ref, b2_ref,
                 w3_ref, b3_ref, o_ref, *, L):
    # Per batch tile of Bt sequences, R = Bt * L lanes (batch-major, pos-minor):
    #   x:  (1, R)    vp/vn: (1, R) 0/1 masks (0 where l==0 / l==L-1)
    #   w1: (16, 3)   b1: (16, 1)
    #   w2: (32, 48)  b2: (32, 1)      (column = k*16 + c_in)
    #   w3: (1, 32)   b3: (1, 1)
    #   o:  (1, R)    lane b*L holds sigmoid(logit) of sequence b
    x = x_ref[...]
    R = x.shape[-1]
    vp = vp_ref[...]
    vn = vn_ref[...]

    def taps(a):
        # a[:, r-1] / a[:, r+1] with zeros at sequence edges: one lane roll
        # (XLU) + one mask multiply (VPU) each.  The circular wrap-around
        # lane lands on an l==0 / l==L-1 position, which the mask zeroes.
        prev = pltpu.roll(a, 1, 1) * vp         # a[:, r-1]
        nxt = pltpu.roll(a, R - 1, 1) * vn      # a[:, r+1]
        return prev, nxt

    # ---- Conv1d(1 -> 16, k=3, pad=1) + ReLU : one im2col matmul ----
    xm1, xp1 = taps(x)
    x_col = jnp.concatenate([xm1, x, xp1], axis=0)                    # (3, R)
    h1 = jnp.dot(w1_ref[...], x_col, preferred_element_type=jnp.float32,
                 precision=lax.Precision.HIGHEST)
    h1 = jnp.maximum(h1 + b1_ref[...], 0.0)                           # (16, R)

    # ---- Conv1d(16 -> 32, k=3, pad=1) + ReLU : one im2col matmul ----
    hm1, hp1 = taps(h1)
    h1_col = jnp.concatenate([hm1, h1, hp1], axis=0)                  # (48, R)
    h2 = jnp.dot(w2_ref[...], h1_col, preferred_element_type=jnp.float32,
                 precision=lax.Precision.HIGHEST)
    h2 = jnp.maximum(h2 + b2_ref[...], 0.0)                           # (32, R)

    # ---- Linear(32 -> 1) ahead of the mean (they commute) ----
    scores = jnp.dot(w3_ref[...], h2, preferred_element_type=jnp.float32,
                     precision=lax.Precision.HIGHEST)                 # (1, R)

    # ---- AdaptiveAvgPool1d(1): per-sequence mean as a length-L windowed sum
    #      built from log2(L) lane rolls.  The window starting at lane b*L
    #      covers exactly sequence b, so that lane ends up with its sum. ----
    win_sums = {1: scores}
    win = 1
    while win * 2 <= L:
        s = win_sums[win]
        win_sums[win * 2] = s + pltpu.roll(s, R - win, 1)
        win *= 2
    total = None
    off, rem, p = 0, L, win
    while rem > 0:
        if rem >= p:
            part = win_sums[p]
            if off:
                part = pltpu.roll(part, R - off, 1)
            total = part if total is None else total + part
            off += p
            rem -= p
        p //= 2

    logits = total * (1.0 / L) + b3_ref[...]                          # (1, R)
    # ---- Sigmoid (EUP exp + exact reciprocal keeps 1e-5-level accuracy) ----
    o_ref[...] = pl.reciprocal(1.0 + jnp.exp(-logits), approx=False)


@jax.jit
def cnn1d_forward(x, w1k, b1c, w2f, b2c, w3m, b3c):
    """x: (B, L) float32.  Returns (B, 1), matching CNN1D.forward on 2-D input."""
    B, L = x.shape

    # Tile geometry: whole sequences per tile, tile lane extent % 128 == 0.
    align = 128 // math.gcd(L, 128)             # sequences per 128-lane multiple
    b_pad = align * pl.cdiv(B, align)
    block_b = min(b_pad, 512)                   # 512 is a multiple of any pow-2 align
    b_pad = block_b * pl.cdiv(b_pad, block_b)   # whole tiles only (padded seqs = 0)
    rb = block_b * L                            # lanes per tile (multiple of 128)
    grid = (b_pad // block_b,)

    # Wrapper-side layout plumbing (plain JAX, done once).
    x_flat = jnp.pad(x.reshape(1, B * L), ((0, 0), (0, (b_pad - B) * L)))
    pos = jnp.arange(rb, dtype=jnp.int32) % L
    not_first = (pos != 0).astype(jnp.float32).reshape(1, rb)      # 0 at l == 0
    not_last = (pos != L - 1).astype(jnp.float32).reshape(1, rb)   # 0 at l == L-1

    out = pl.pallas_call(
        functools.partial(cnn1d_kernel, L=L),
        out_shape=jax.ShapeDtypeStruct((1, b_pad * L), jnp.float32),
        grid=grid,
        in_specs=[
            pl.BlockSpec((1, rb), lambda i: (0, i)),        # x lanes of this tile
            pl.BlockSpec((1, rb), lambda i: (0, 0)),        # not_first mask
            pl.BlockSpec((1, rb), lambda i: (0, 0)),        # not_last mask
            pl.BlockSpec((16, 3), lambda i: (0, 0)),        # w1 (16,3)
            pl.BlockSpec((16, 1), lambda i: (0, 0)),        # b1
            pl.BlockSpec((32, 48), lambda i: (0, 0)),       # w2 (32,48)
            pl.BlockSpec((32, 1), lambda i: (0, 0)),        # b2
            pl.BlockSpec((1, 32), lambda i: (0, 0)),        # w3 (1,32)
            pl.BlockSpec((1, 1), lambda i: (0, 0)),         # b3
        ],
        out_specs=pl.BlockSpec((1, rb), lambda i: (0, i)),
        compiler_params=pltpu.CompilerParams(
            dimension_semantics=("parallel",)),
    )(x_flat, not_first, not_last, w1k, b1c, w2f, b2c, w3m, b3c)

    # Lane b*L of the flat output row holds sequence b's probability.
    return out.reshape(b_pad, L)[:B, 0:1]


def ref_forward(x, w1, b1, w2, b2, w3, b3):
    """Pure-JAX reference mirroring the PyTorch module (NCL layout)."""
    xc = x[:, None, :]                                             # (B, 1, L)
    h1 = lax.conv_general_dilated(xc, w1, (1,), [(1, 1)],
                                  dimension_numbers=('NCH', 'OIH', 'NCH'),
                                  precision=lax.Precision.HIGHEST)
    h1 = jax.nn.relu(h1 + b1[None, :, None])
    h2 = lax.conv_general_dilated(h1, w2, (1,), [(1, 1)],
                                  dimension_numbers=('NCH', 'OIH', 'NCH'),
                                  precision=lax.Precision.HIGHEST)
    h2 = jax.nn.relu(h2 + b2[None, :, None])
    pooled = jnp.mean(h2, axis=2)                                  # (B, 32)
    logits = jnp.dot(pooled, w3.T, precision=lax.Precision.HIGHEST) + b3[None, :]
    return jax.nn.sigmoid(logits)


if __name__ == "__main__":
    B, L = 4, 14  # input_dim=14 per the module default

    key = jax.random.PRNGKey(0)
    k_x, k_w1, k_b1, k_w2, k_b2, k_w3, k_b3 = jax.random.split(key, 7)

    # PyTorch parameter shapes
    w1 = 0.3 * jax.random.normal(k_w1, (16, 1, 3), jnp.float32)   # Conv1d(1,16,3)
    b1 = 0.1 * jax.random.normal(k_b1, (16,), jnp.float32)
    w2 = 0.2 * jax.random.normal(k_w2, (32, 16, 3), jnp.float32)  # Conv1d(16,32,3)
    b2 = 0.1 * jax.random.normal(k_b2, (32,), jnp.float32)
    w3 = 0.2 * jax.random.normal(k_w3, (1, 32), jnp.float32)      # Linear(32,1)
    b3 = 0.1 * jax.random.normal(k_b3, (1,), jnp.float32)

    x = jax.random.normal(k_x, (B, L), jnp.float32)               # 2-D input path

    # Kernel-friendly parameter layouts (plain-JAX glue, done once)
    w1k = w1[:, 0, :]                                   # (16, 3)   col = tap k
    w2f = jnp.transpose(w2, (0, 2, 1)).reshape(32, 48)  # (32, 48)  col = k*16 + c_in
    b1c = b1.reshape(16, 1)
    b2c = b2.reshape(32, 1)
    w3m = w3                                            # (1, 32)
    b3c = b3.reshape(1, 1)

    out = cnn1d_forward(x, w1k, b1c, w2f, b2c, w3m, b3c)
    out = jax.block_until_ready(out)

    ref = ref_forward(x, w1, b1, w2, b2, w3, b3)
    assert out.shape == (B, 1), out.shape
    assert jnp.allclose(out, ref, atol=1e-4, rtol=1e-4), (out, ref)

    print("KERNEL_OK")
</pallas_src>

<mosaic_0001>
module attributes {stable_mosaic.version = 11 : i64} {
  func.func @cnn1d_kernel(%arg0: i32, %arg1: memref<1x896xf32, #tpu.memory_space<vmem>>, %arg2: memref<1x896xf32, #tpu.memory_space<vmem>>, %arg3: memref<1x896xf32, #tpu.memory_space<vmem>>, %arg4: memref<16x3xf32, #tpu.memory_space<vmem>>, %arg5: memref<16x1xf32, #tpu.memory_space<vmem>>, %arg6: memref<32x48xf32, #tpu.memory_space<vmem>>, %arg7: memref<32x1xf32, #tpu.memory_space<vmem>>, %arg8: memref<1x32xf32, #tpu.memory_space<vmem>>, %arg9: memref<1x1xf32, #tpu.memory_space<vmem>>, %arg10: memref<1x896xf32, #tpu.memory_space<vmem>>) attributes {dimension_semantics = [#tpu.dimension_semantics<parallel>], iteration_bounds = array<i64: 1>, scalar_prefetch = 0 : i64, scratch_operands = 0 : i64, tpu.core_type = #tpu.core_type<tc>, window_params = [{transform_indices = @transform_0, window_bounds = array<i64: 1, 896>}, {pipeline_mode = #tpu.pipeline_mode<synchronous>, transform_indices = @transform_1, window_bounds = array<i64: 1, 896>}, {pipeline_mode = #tpu.pipeline_mode<synchronous>, transform_indices = @transform_2, window_bounds = array<i64: 1, 896>}, {pipeline_mode = #tpu.pipeline_mode<synchronous>, transform_indices = @transform_3, window_bounds = array<i64: 16, 3>}, {pipeline_mode = #tpu.pipeline_mode<synchronous>, transform_indices = @transform_4, window_bounds = array<i64: 16, 1>}, {pipeline_mode = #tpu.pipeline_mode<synchronous>, transform_indices = @transform_5, window_bounds = array<i64: 32, 48>}, {pipeline_mode = #tpu.pipeline_mode<synchronous>, transform_indices = @transform_6, window_bounds = array<i64: 32, 1>}, {pipeline_mode = #tpu.pipeline_mode<synchronous>, transform_indices = @transform_7, window_bounds = array<i64: 1, 32>}, {pipeline_mode = #tpu.pipeline_mode<synchronous>, transform_indices = @transform_8, window_bounds = array<i64: 1, 1>}, {transform_indices = @transform_9, window_bounds = array<i64: 1, 896>}]} {
    %c0 = arith.constant 0 : index
    %c0_0 = arith.constant 0 : index
    %0 = vector.load %arg1[%c0, %c0_0] : memref<1x896xf32, #tpu.memory_space<vmem>>, vector<1x896xf32>
    %c0_1 = arith.constant 0 : index
    %c0_2 = arith.constant 0 : index
    %1 = vector.load %arg2[%c0_1, %c0_2] : memref<1x896xf32, #tpu.memory_space<vmem>>, vector<1x896xf32>
    %c0_3 = arith.constant 0 : index
    %c0_4 = arith.constant 0 : index
    %2 = vector.load %arg3[%c0_3, %c0_4] : memref<1x896xf32, #tpu.memory_space<vmem>>, vector<1x896xf32>
    %c1_i32 = arith.constant 1 : i32
    %3 = tpu.dynamic_rotate %0 by %c1_i32 dim 1 : vector<1x896xf32>, i32 -> vector<1x896xf32>
    %4 = arith.mulf %3, %1 : vector<1x896xf32>
    %c895_i32 = arith.constant 895 : i32
    %5 = tpu.dynamic_rotate %0 by %c895_i32 dim 1 : vector<1x896xf32>, i32 -> vector<1x896xf32>
    %6 = arith.mulf %5, %2 : vector<1x896xf32>
    %7 = tpu.concatenate %4, %0, %6 in 0 : vector<1x896xf32>, vector<1x896xf32>, vector<1x896xf32> -> vector<3x896xf32>
    %c0_5 = arith.constant 0 : index
    %c0_6 = arith.constant 0 : index
    %8 = vector.load %arg4[%c0_5, %c0_6] : memref<16x3xf32, #tpu.memory_space<vmem>>, vector<16x3xf32>
    %cst = arith.constant dense<0.000000e+00> : vector<16x896xf32>
    %9 = tpu.matmul %8, %7, %cst {dimension_numbers = #tpu.dot_dimension_numbers<[1], [0], [0], [1], [0, 0, 1, 1], [], []>, precision = #tpu.contract_precision<fp32>} : vector<16x3xf32>, vector<3x896xf32>, vector<16x896xf32> -> vector<16x896xf32>
    %c0_7 = arith.constant 0 : index
    %c0_8 = arith.constant 0 : index
    %10 = vector.load %arg5[%c0_7, %c0_8] : memref<16x1xf32, #tpu.memory_space<vmem>>, vector<16x1xf32>
    %11 = vector.broadcast %10 : vector<16x1xf32> to vector<16x896xf32>
    %12 = arith.addf %9, %11 : vector<16x896xf32>
    %cst_9 = arith.constant 0.000000e+00 : f32
    %13 = vector.broadcast %cst_9 : f32 to vector<16x896xf32>
    %14 = arith.maximumf %12, %13 : vector<16x896xf32>
    %c1_i32_10 = arith.constant 1 : i32
    %15 = tpu.dynamic_rotate %14 by %c1_i32_10 dim 1 : vector<16x896xf32>, i32 -> vector<16x896xf32>
    %16 = vector.broadcast %1 : vector<1x896xf32> to vector<16x896xf32>
    %17 = arith.mulf %15, %16 : vector<16x896xf32>
    %c895_i32_11 = arith.constant 895 : i32
    %18 = tpu.dynamic_rotate %14 by %c895_i32_11 dim 1 : vector<16x896xf32>, i32 -> vector<16x896xf32>
    %19 = vector.broadcast %2 : vector<1x896xf32> to vector<16x896xf32>
    %20 = arith.mulf %18, %19 : vector<16x896xf32>
    %21 = tpu.concatenate %17, %14, %20 in 0 : vector<16x896xf32>, vector<16x896xf32>, vector<16x896xf32> -> vector<48x896xf32>
    %c0_12 = arith.constant 0 : index
    %c0_13 = arith.constant 0 : index
    %22 = vector.load %arg6[%c0_12, %c0_13] : memref<32x48xf32, #tpu.memory_space<vmem>>, vector<32x48xf32>
    %cst_14 = arith.constant dense<0.000000e+00> : vector<32x896xf32>
    %23 = tpu.matmul %22, %21, %cst_14 {dimension_numbers = #tpu.dot_dimension_numbers<[1], [0], [0], [1], [0, 0, 1, 1], [], []>, precision = #tpu.contract_precision<fp32>} : vector<32x48xf32>, vector<48x896xf32>, vector<32x896xf32> -> vector<32x896xf32>
    %c0_15 = arith.constant 0 : index
    %c0_16 = arith.constant 0 : index
    %24 = vector.load %arg7[%c0_15, %c0_16] : memref<32x1xf32, #tpu.memory_space<vmem>>, vector<32x1xf32>
    %25 = vector.broadcast %24 : vector<32x1xf32> to vector<32x896xf32>
    %26 = arith.addf %23, %25 : vector<32x896xf32>
    %cst_17 = arith.constant 0.000000e+00 : f32
    %27 = vector.broadcast %cst_17 : f32 to vector<32x896xf32>
    %28 = arith.maximumf %26, %27 : vector<32x896xf32>
    %c0_18 = arith.constant 0 : index
    %c0_19 = arith.constant 0 : index
    %29 = vector.load %arg8[%c0_18, %c0_19] : memref<1x32xf32, #tpu.memory_space<vmem>>, vector<1x32xf32>
    %cst_20 = arith.constant dense<0.000000e+00> : vector<1x896xf32>
    %30 = tpu.matmul %29, %28, %cst_20 {dimension_numbers = #tpu.dot_dimension_numbers<[1], [0], [0], [1], [0, 0, 1, 1], [], []>, precision = #tpu.contract_precision<fp32>} : vector<1x32xf32>, vector<32x896xf32>, vector<1x896xf32> -> vector<1x896xf32>
    %c895_i32_21 = arith.constant 895 : i32
    %31 = tpu.dynamic_rotate %30 by %c895_i32_21 dim 1 : vector<1x896xf32>, i32 -> vector<1x896xf32>
    %32 = arith.addf %30, %31 : vector<1x896xf32>
    %c894_i32 = arith.constant 894 : i32
    %33 = tpu.dynamic_rotate %32 by %c894_i32 dim 1 : vector<1x896xf32>, i32 -> vector<1x896xf32>
    %34 = arith.addf %32, %33 : vector<1x896xf32>
    %c892_i32 = arith.constant 892 : i32
    %35 = tpu.dynamic_rotate %34 by %c892_i32 dim 1 : vector<1x896xf32>, i32 -> vector<1x896xf32>
    %36 = arith.addf %34, %35 : vector<1x896xf32>
    %c888_i32 = arith.constant 888 : i32
    %37 = tpu.dynamic_rotate %34 by %c888_i32 dim 1 : vector<1x896xf32>, i32 -> vector<1x896xf32>
    %38 = arith.addf %36, %37 : vector<1x896xf32>
    %c884_i32 = arith.constant 884 : i32
    %39 = tpu.dynamic_rotate %32 by %c884_i32 dim 1 : vector<1x896xf32>, i32 -> vector<1x896xf32>
    %40 = arith.addf %38, %39 : vector<1x896xf32>
    %cst_22 = arith.constant 0.0714285746 : f32
    %41 = vector.broadcast %cst_22 : f32 to vector<1x896xf32>
    %42 = arith.mulf %40, %41 : vector<1x896xf32>
    %c0_23 = arith.constant 0 : index
    %c0_24 = arith.constant 0 : index
    %43 = vector.load %arg9[%c0_23, %c0_24] : memref<1x1xf32, #tpu.memory_space<vmem>>, vector<1x1xf32>
    %44 = vector.broadcast %43 : vector<1x1xf32> to vector<1x896xf32>
    %45 = arith.addf %42, %44 : vector<1x896xf32>
    %cst_25 = arith.constant 0.000000e+00 : f32
    %46 = vector.broadcast %cst_25 : f32 to vector<1x896xf32>
    %47 = arith.subf %46, %45 : vector<1x896xf32>
    %48 = math.exp %47 : vector<1x896xf32>
    %cst_26 = arith.constant 1.000000e+00 : f32
    %49 = vector.broadcast %cst_26 : f32 to vector<1x896xf32>
    %50 = arith.addf %49, %48 : vector<1x896xf32>
    %51 = tpu.reciprocal %50 : vector<1x896xf32> -> vector<1x896xf32>
    %c0_27 = arith.constant 0 : index
    %c0_28 = arith.constant 0 : index
    %52 = vector.load %arg10[%c0_27, %c0_28] : memref<1x896xf32, #tpu.memory_space<vmem>>, vector<1x896xf32>
    tpu.vector_store %arg10[%c0_27, %c0_28], %51 {strides = array<i32>} : memref<1x896xf32, #tpu.memory_space<vmem>>, vector<1x896xf32>,
    return
  }
  func.func @transform_0(%arg0: i32) -> (i32, i32) {
    %c0_i32 = arith.constant 0 : i32
    %c0_i32_0 = arith.constant 0 : i32
    return %c0_i32, %arg0 : i32, i32
  }
  func.func @transform_1(%arg0: i32) -> (i32, i32) {
    %c0_i32 = arith.constant 0 : i32
    %c0_i32_0 = arith.constant 0 : i32
    %c0_i32_1 = arith.constant 0 : i32
    return %c0_i32, %c0_i32_0 : i32, i32
  }
  func.func @transform_2(%arg0: i32) -> (i32, i32) {
    %c0_i32 = arith.constant 0 : i32
    %c0_i32_0 = arith.constant 0 : i32
    %c0_i32_1 = arith.constant 0 : i32
    return %c0_i32, %c0_i32_0 : i32, i32
  }
  func.func @transform_3(%arg0: i32) -> (i32, i32) {
    %c0_i32 = arith.constant 0 : i32
    %c0_i32_0 = arith.constant 0 : i32
    %c0_i32_1 = arith.constant 0 : i32
    return %c0_i32, %c0_i32_0 : i32, i32
  }
  func.func @transform_4(%arg0: i32) -> (i32, i32) {
    %c0_i32 = arith.constant 0 : i32
    %c0_i32_0 = arith.constant 0 : i32
    %c0_i32_1 = arith.constant 0 : i32
    return %c0_i32, %c0_i32_0 : i32, i32
  }
  func.func @transform_5(%arg0: i32) -> (i32, i32) {
    %c0_i32 = arith.constant 0 : i32
    %c0_i32_0 = arith.constant 0 : i32
    %c0_i32_1 = arith.constant 0 : i32
    return %c0_i32, %c0_i32_0 : i32, i32
  }
  func.func @transform_6(%arg0: i32) -> (i32, i32) {
    %c0_i32 = arith.constant 0 : i32
    %c0_i32_0 = arith.constant 0 : i32
    %c0_i32_1 = arith.constant 0 : i32
    return %c0_i32, %c0_i32_0 : i32, i32
  }
  func.func @transform_7(%arg0: i32) -> (i32, i32) {
    %c0_i32 = arith.constant 0 : i32
    %c0_i32_0 = arith.constant 0 : i32
    %c0_i32_1 = arith.constant 0 : i32
    return %c0_i32, %c0_i32_0 : i32, i32
  }
  func.func @transform_8(%arg0: i32) -> (i32, i32) {
    %c0_i32 = arith.constant 0 : i32
    %c0_i32_0 = arith.constant 0 : i32
    %c0_i32_1 = arith.constant 0 : i32
    return %c0_i32, %c0_i32_0 : i32, i32
  }
  func.func @transform_9(%arg0: i32) -> (i32, i32) {
    %c0_i32 = arith.constant 0 : i32
    %c0_i32_0 = arith.constant 0 : i32
    return %c0_i32, %arg0 : i32, i32
  }
}

</mosaic_0001>

<llo_original>
// kernel: cnn1d_forward.1
$region0: #{cnn1d_forward.1}
  #allocation0 [shape = 'u32[]', space=smem, size = 0x4, offset = 0x4, fixed_abs, tag = 'smem constant byte address 0x4 - core index']
  #allocation1 [shape = 'u32[144,128]{1,0:T(1,128)}', space=vmem, size = 0x12000, scoped, tag = 'internal scratch']
  #allocation2 [shape = 'f32[1,1]{1,0:T(1,128)S(1)}', space=vmem, size = 0x200, scoped, tag = 'scoped memory for cnn1d_forward.1']
  %s0 = inlined_call_operand.vmem [shape: f32[1,896], index: 0, kind: input, shape index: {}]
  %s1 = inlined_call_operand.vmem [shape: f32[1,896], index: 1, kind: input, shape index: {}]
  %s2 = inlined_call_operand.vmem [shape: f32[1,896], index: 2, kind: input, shape index: {}]
  %s3 = inlined_call_operand.vmem [shape: f32[16,3], index: 3, kind: input, shape index: {}]
  %s4 = inlined_call_operand.vmem [shape: f32[16,1], index: 4, kind: input, shape index: {}]
  %s5 = inlined_call_operand.vmem [shape: f32[32,48], index: 5, kind: input, shape index: {}]
  %s6 = inlined_call_operand.vmem [shape: f32[32,1], index: 6, kind: input, shape index: {}]
  %s7 = inlined_call_operand.vmem [shape: f32[1,32], index: 7, kind: input, shape index: {}]
  %s8 = inlined_call_operand.<no memory space> [shape: f32[1,1], index: 8, kind: input, shape index: {}]
  %s9 = inlined_call_operand.vmem [shape: f32[1,896], index: 9, kind: output, shape index: {}]
  %s10 = sld [smem:[#allocation0]]
  $region46: #{cnn1d_forward.1} parent=0
    _
  %s12 = ssub.s32 1, %s10
  %s13 = scalar_select 0, %s12, %s10
  %v14 = vstv %s8
  %15 = vst [vmem:[#allocation2] sm:$0x1] %v14
  // Predicated region
  $region2: #{cnn1d_forward.1} parent=0 // pred_check
    _
  $region3: #{cnn1d_forward.1} parent=0 // pred_check_branch
    %17 = sbr.rel (0) target = $region5
  $region4: #{cnn1d_forward.1} parent=0 // pred_region
    _
  $region5: #{cnn1d_forward.1} parent=0 // pred_fallthru
    _
  // Predicated region
  $region6: #{cnn1d_forward.1} parent=0 // pred_check
    _
  $region7: #{cnn1d_forward.1} parent=0 // pred_check_branch
    %19 = sbr.rel (0) target = $region9
  $region8: #{cnn1d_forward.1} parent=0 // pred_region
    _
  $region9: #{cnn1d_forward.1} parent=0 // pred_fallthru
    _
  // Predicated region
  $region10: #{cnn1d_forward.1} parent=0 // pred_check
    _
  $region11: #{cnn1d_forward.1} parent=0 // pred_check_branch
    %21 = sbr.rel (0) target = $region13
  $region12: #{cnn1d_forward.1} parent=0 // pred_region
    _
  $region13: #{cnn1d_forward.1} parent=0 // pred_fallthru
    _
  // Predicated region
  $region14: #{cnn1d_forward.1} parent=0 // pred_check
    _
  $region15: #{cnn1d_forward.1} parent=0 // pred_check_branch
    %23 = sbr.rel (0) target = $region17
  $region16: #{cnn1d_forward.1} parent=0 // pred_region
    _
  $region17: #{cnn1d_forward.1} parent=0 // pred_fallthru
    _
  // Predicated region
  $region18: #{cnn1d_forward.1} parent=0 // pred_check
    _
  $region19: #{cnn1d_forward.1} parent=0 // pred_check_branch
    %25 = sbr.rel (0) target = $region21
  $region20: #{cnn1d_forward.1} parent=0 // pred_region
    _
  $region21: #{cnn1d_forward.1} parent=0 // pred_fallthru
    _
  // Predicated region
  $region22: #{cnn1d_forward.1} parent=0 // pred_check
    _
  $region23: #{cnn1d_forward.1} parent=0 // pred_check_branch
    %27 = sbr.rel (0) target = $region25
  $region24: #{cnn1d_forward.1} parent=0 // pred_region
    _
  $region25: #{cnn1d_forward.1} parent=0 // pred_fallthru
    _
  // Predicated region
  $region26: #{cnn1d_forward.1} parent=0 // pred_check
    _
  $region27: #{cnn1d_forward.1} parent=0 // pred_check_branch
    %29 = sbr.rel (0) target = $region29
  $region28: #{cnn1d_forward.1} parent=0 // pred_region
    _
  $region29: #{cnn1d_forward.1} parent=0 // pred_fallthru
    _
  // Predicated region
  $region30: #{cnn1d_forward.1} parent=0 // pred_check
    _
  $region31: #{cnn1d_forward.1} parent=0 // pred_check_branch
    %31 = sbr.rel (0) target = $region33
  $region32: #{cnn1d_forward.1} parent=0 // pred_region
    _
  $region33: #{cnn1d_forward.1} parent=0 // pred_fallthru
    _
  // Predicated region
  $region34: #{cnn1d_forward.1} parent=0 // pred_check
    _
  $region35: #{cnn1d_forward.1} parent=0 // pred_check_branch
    %33 = sbr.rel (0) target = $region37
  $region36: #{cnn1d_forward.1} parent=0 // pred_region
    _
  $region37: #{cnn1d_forward.1} parent=0 // pred_fallthru
    _
  %v34 = vld [vmem:[%s0] sm:$0xff]
  %v35 = vld [vmem:[%s1] sm:$0xff]
  %v36 = vld [vmem:[%s2] sm:$0xff]
  %v38 = vlaneseq
  %v39 = vshrl.u32 %v38, 7
  %v40 = vsub.s32 0, %v39
  %v41 = vrot.slane %v34, %v40
  %v42 = vlaneseq
  %v43 = vshrl.u32 %v42, 7
  %v44 = vsub.s32 1, %v43
  %v45 = vrot.slane %v34, %v44
  %v46 = vlaneseq
  %v47 = vshrl.u32 %v46, 7
  %v48 = vsub.s32 2, %v47
  %v49 = vrot.slane %v34, %v48
  %v50 = vlaneseq
  %v51 = vshrl.u32 %v50, 7
  %v52 = vsub.s32 3, %v51
  %v53 = vrot.slane %v34, %v52
  %v54 = vlaneseq
  %v55 = vshrl.u32 %v54, 7
  %v56 = vsub.s32 4, %v55
  %v57 = vrot.slane %v34, %v56
  %v58 = vlaneseq
  %v59 = vshrl.u32 %v58, 7
  %v60 = vsub.s32 5, %v59
  %v61 = vrot.slane %v34, %v60
  %v62 = vlaneseq
  %v63 = vshrl.u32 %v62, 7
  %v64 = vsub.s32 6, %v63
  %v65 = vrot.slane %v34, %v64
  %73 = vrot.lane.b32.xlu0 %v41, 1
  %v74 = vpop.permute.xlu0 %73
  %75 = vrot.lane.b32.xlu0 %v45, 1
  %v76 = vpop.permute.xlu0 %75
  %77 = vrot.lane.b32.xlu0 %v49, 1
  %v78 = vpop.permute.xlu0 %77
  %79 = vrot.lane.b32.xlu0 %v53, 1
  %v80 = vpop.permute.xlu0 %79
  %81 = vrot.lane.b32.xlu0 %v57, 1
  %v82 = vpop.permute.xlu0 %81
  %83 = vrot.lane.b32.xlu0 %v61, 1
  %v84 = vpop.permute.xlu0 %83
  %85 = vrot.lane.b32.xlu0 %v65, 1
  %v86 = vpop.permute.xlu0 %85
  %v87 = vlaneseq
  %v88 = vand.u32 %v87, 127
  %vm89 = vcmp.lt.s32.totalorder %v88, 1
  %v90 = vsel %vm89, %v84, %v86
  %v91 = vsel %vm89, %v82, %v84
  %v92 = vsel %vm89, %v80, %v82
  %v93 = vsel %vm89, %v78, %v80
  %v94 = vsel %vm89, %v76, %v78
  %v95 = vsel %vm89, %v74, %v76
  %v96 = vsel %vm89, %v86, %v74
  %v98 = vlaneseq
  %v99 = vshrl.u32 %v98, 7
  %v100 = vsub.s32 0, %v99
  %v101 = vrot.slane %v35, %v100
  %v102 = vlaneseq
  %v103 = vshrl.u32 %v102, 7
  %v104 = vsub.s32 1, %v103
  %v105 = vrot.slane %v35, %v104
  %v106 = vlaneseq
  %v107 = vshrl.u32 %v106, 7
  %v108 = vsub.s32 2, %v107
  %v109 = vrot.slane %v35, %v108
  %v110 = vlaneseq
  %v111 = vshrl.u32 %v110, 7
  %v112 = vsub.s32 3, %v111
  %v113 = vrot.slane %v35, %v112
  %v114 = vlaneseq
  %v115 = vshrl.u32 %v114, 7
  %v116 = vsub.s32 4, %v115
  %v117 = vrot.slane %v35, %v116
  %v118 = vlaneseq
  %v119 = vshrl.u32 %v118, 7
  %v120 = vsub.s32 5, %v119
  %v121 = vrot.slane %v35, %v120
  %v122 = vlaneseq
  %v123 = vshrl.u32 %v122, 7
  %v124 = vsub.s32 6, %v123
  %v125 = vrot.slane %v35, %v124
  %v133 = vmul.f32 %v96, %v101
  %v134 = vmul.f32 %v95, %v105
  %v135 = vmul.f32 %v94, %v109
  %v136 = vmul.f32 %v93, %v113
  %v137 = vmul.f32 %v92, %v117
  %v138 = vmul.f32 %v91, %v121
  %v139 = vmul.f32 %v90, %v125
  %140 = vrot.lane.b32.xlu0 %v41, 127
  %v141 = vpop.permute.xlu0 %140
  %142 = vrot.lane.b32.xlu0 %v45, 127
  %v143 = vpop.permute.xlu0 %142
  %144 = vrot.lane.b32.xlu0 %v49, 127
  %v145 = vpop.permute.xlu0 %144
  %146 = vrot.lane.b32.xlu0 %v53, 127
  %v147 = vpop.permute.xlu0 %146
  %148 = vrot.lane.b32.xlu0 %v57, 127
  %v149 = vpop.permute.xlu0 %148
  %150 = vrot.lane.b32.xlu0 %v61, 127
  %v151 = vpop.permute.xlu0 %150
  %152 = vrot.lane.b32.xlu0 %v65, 127
  %v153 = vpop.permute.xlu0 %152
  %vm154 = vcmp.lt.s32.totalorder %v88, 127
  %v155 = vsel %vm154, %v151, %v153
  %v156 = vsel %vm154, %v149, %v151
  %v157 = vsel %vm154, %v147, %v149
  %v158 = vsel %vm154, %v145, %v147
  %v159 = vsel %vm154, %v143, %v145
  %v160 = vsel %vm154, %v141, %v143
  %v161 = vsel %vm154, %v153, %v141
  %v163 = vlaneseq
  %v164 = vshrl.u32 %v163, 7
  %v165 = vsub.s32 0, %v164
  %v166 = vrot.slane %v36, %v165
  %v167 = vlaneseq
  %v168 = vshrl.u32 %v167, 7
  %v169 = vsub.s32 1, %v168
  %v170 = vrot.slane %v36, %v169
  %v171 = vlaneseq
  %v172 = vshrl.u32 %v171, 7
  %v173 = vsub.s32 2, %v172
  %v174 = vrot.slane %v36, %v173
  %v175 = vlaneseq
  %v176 = vshrl.u32 %v175, 7
  %v177 = vsub.s32 3, %v176
  %v178 = vrot.slane %v36, %v177
  %v179 = vlaneseq
  %v180 = vshrl.u32 %v179, 7
  %v181 = vsub.s32 4, %v180
  %v182 = vrot.slane %v36, %v181
  %v183 = vlaneseq
  %v184 = vshrl.u32 %v183, 7
  %v185 = vsub.s32 5, %v184
  %v186 = vrot.slane %v36, %v185
  %v187 = vlaneseq
  %v188 = vshrl.u32 %v187, 7
  %v189 = vsub.s32 6, %v188
  %v190 = vrot.slane %v36, %v189
  %v198 = vmul.f32 %v160, %v166
  %v199 = vmul.f32 %v159, %v170
  %v200 = vmul.f32 %v158, %v174
  %v201 = vmul.f32 %v157, %v178
  %v202 = vmul.f32 %v156, %v182
  %v203 = vmul.f32 %v155, %v186
  %v204 = vmul.f32 %v161, %v190
  %v212 = vrot.slane %v198, 6
  %v213 = vrot.slane %v199, 6
  %v214 = vrot.slane %v200, 6
  %v215 = vrot.slane %v201, 6
  %v216 = vrot.slane %v202, 6
  %v217 = vrot.slane %v203, 6
  %v218 = vrot.slane %v204, 6
  %vm226 = vcmask 1040384
  %v227 = vsel %vm226, %v133, %v41
  %v228 = vsel %vm226, %v134, %v45
  %v229 = vsel %vm226, %v135, %v49
  %v230 = vsel %vm226, %v136, %v53
  %v231 = vsel %vm226, %v137, %v57
  %v232 = vsel %vm226, %v138, %v61
  %v233 = vsel %vm226, %v139, %v65
  %vm234 = vcmask 1041408
  %v235 = vsel %vm234, %v227, %v212
  %v236 = vsel %vm234, %v228, %v213
  %v237 = vsel %vm234, %v229, %v214
  %v238 = vsel %vm234, %v230, %v215
  %v239 = vsel %vm234, %v231, %v216
  %v240 = vsel %vm234, %v232, %v217
  %v241 = vsel %vm234, %v233, %v218
  %v242 = vld [vmem:[%s3] sm:$0xff]
  %v243 = vld [vmem:[%s3 + $0x8] sm:$0xff]
  %v244 = vld [vmem:[%s4] sm:$0xff]
  %v245 = vld [vmem:[%s4 + $0x8] sm:$0xff]
  %247 = vset.pattern.permute.xlu0 0
  %248 = vperm.xlu0 %247, %v244
  %v249 = vpop.permute.xlu0 %248
  %252 = vset.pattern.permute.xlu0 0
  %253 = vperm.xlu0 %252, %v245
  %v254 = vpop.permute.xlu0 %253
  %vm256 = vcmask 23552
  %v258 = vsel %vm256, %v242, 0
  %v261 = vsel %vm256, %v243, 0
  %vm263 = vcmask 1042432
  %v265 = vsel %vm263, %v235, 0
  %v268 = vsel %vm263, %v236, 0
  %v271 = vsel %vm263, %v237, 0
  %v274 = vsel %vm263, %v238, 0
  %v277 = vsel %vm263, %v239, 0
  %v280 = vsel %vm263, %v240, 0
  %v283 = vsel %vm263, %v241, 0
  %285 = vmatprep.subr.mxu0 0.0
  %286 = vmatpush1.msra.mxu0 0.0
  %287 = vmatprep.subr.mxu0 0.0
  %288 = vmatpush1.msra.mxu0 0.0
  %289 = vmatprep.subr.mxu0 0.0
  %290 = vmatpush1.msra.mxu0 0.0
  %291 = vmatprep.subr.mxu0 0.0
  %292 = vmatpush1.msra.mxu0 0.0
  %293 = vmatprep.subr.mxu0 0.0
  %294 = vmatpush1.msra.mxu0 0.0
  %295 = vmatprep.subr.mxu0 0.0
  %296 = vmatpush1.msra.mxu0 0.0
  %297 = vmatprep.subr.mxu0 0.0
  %298 = vmatpush1.msra.mxu0 0.0
  %299 = vmatprep.subr.mxu0 0.0
  %300 = vmatpush1.msra.mxu0 0.0
  %301 = vmatprep.subr.mxu0 0.0
  %302 = vmatpush1.msra.mxu0 0.0
  %303 = vmatprep.subr.mxu0 0.0
  %304 = vmatpush1.msra.mxu0 0.0
  %305 = vmatprep.subr.mxu0 0.0
  %306 = vmatpush1.msra.mxu0 0.0
  %307 = vmatprep.subr.mxu0 0.0
  %308 = vmatpush1.msra.mxu0 0.0
  %309 = vmatprep.subr.mxu0 0.0
  %310 = vmatpush1.msra.mxu0 0.0
  %311 = vmatprep.subr.mxu0 0.0
  %312 = vmatpush1.msra.mxu0 0.0
  %313 = vmatprep.subr.mxu0 0.0
  %314 = vmatpush1.msra.mxu0 0.0
  %v315 = vand.u32 %v268, 4294901760
  %316 = vmatprep.subr.mxu0 %v315
  %v317 = vand.u32 %v265, 4294901760
  %318 = vmatpush1.msra.mxu0 %v317
  %319 = vmatprep.subr.mxu0 0.0
  %320 = vmatpush2.msra.mxu0 0.0
  %321 = vmatprep.subr.mxu0 0.0
  %322 = vmatpush2.msra.mxu0 0.0
  %323 = vmatprep.subr.mxu0 0.0
  %324 = vmatpush2.msra.mxu0 0.0
  %325 = vmatprep.subr.mxu0 0.0
  %326 = vmatpush2.msra.mxu0 0.0
  %327 = vmatprep.subr.mxu0 0.0
  %328 = vmatpush2.msra.mxu0 0.0
  %329 = vmatprep.subr.mxu0 0.0
  %330 = vmatpush2.msra.mxu0 0.0
  %331 = vmatprep.subr.mxu0 0.0
  %332 = vmatpush2.msra.mxu0 0.0
  %333 = vmatprep.subr.mxu0 0.0
  %334 = vmatpush2.msra.mxu0 0.0
  %335 = vmatprep.subr.mxu0 0.0
  %336 = vmatpush2.msra.mxu0 0.0
  %337 = vmatprep.subr.mxu0 0.0
  %338 = vmatpush2.msra.mxu0 0.0
  %339 = vmatprep.subr.mxu0 0.0
  %340 = vmatpush2.msra.mxu0 0.0
  %341 = vmatprep.subr.mxu0 0.0
  %342 = vmatpush2.msra.mxu0 0.0
  %343 = vmatprep.subr.mxu0 0.0
  %344 = vmatpush2.msra.mxu0 0.0
  %345 = vmatprep.subr.mxu0 0.0
  %346 = vmatpush2.msra.mxu0 0.0
  %347 = vmatprep.subr.mxu0 0.0
  %348 = vmatpush2.msra.mxu0 0.0
  %349 = vmatprep.subr.mxu0 0.0
  %350 = vmatpush2.msra.mxu0 0.0
  %351 = vmatprep.mubr.f32.mxu0 0.0
  %v352 = vand.u32 %v258, 4294901760
  %v353 = vsub.f32 %v258, %v352
  %v354 = vand.u32 %v353, 4294901760
  %v355 = vsub.f32 %v353, %v354
  %v356 = vand.u32 %v355, 4294901760
  %357 = vmatmul.mubr.f32.gmra.mxu0 %v356
  %v358 = vpop.f32.mrf.mxu0
  %v359 = vadd.f32 %v249, %v358
  %v360 = vpop.f32.mrf.mxu0
  %v361 = vadd.f32 %v249, %v360
  %362 = vmatprep.mubr.f32.mxu0 0.0
  %v363 = vand.u32 %v261, 4294901760
  %v364 = vsub.f32 %v261, %v363
  %v365 = vand.u32 %v364, 4294901760
  %v366 = vsub.f32 %v364, %v365
  %v367 = vand.u32 %v366, 4294901760
  %368 = vmatmul.mubr.f32.gmra.mxu0 %v367
  %v369 = vpop.f32.mrf.mxu0
  %v370 = vadd.f32 %v254, %v369
  %v371 = vpop.f32.mrf.mxu0
  %v372 = vadd.f32 %v254, %v371
  %373 = vdwg.mxu0
  %374 = vmatprep.subr.mxu0 0.0
  %375 = vmatpush1.msra.mxu0 0.0
  %376 = vmatprep.subr.mxu0 0.0
  %377 = vmatpush1.msra.mxu0 0.0
  %378 = vmatprep.subr.mxu0 0.0
  %379 = vmatpush1.msra.mxu0 0.0
  %380 = vmatprep.subr.mxu0 0.0
  %381 = vmatpush1.msra.mxu0 0.0
  %382 = vmatprep.subr.mxu0 0.0
  %383 = vmatpush1.msra.mxu0 0.0
  %384 = vmatprep.subr.mxu0 0.0
  %385 = vmatpush1.msra.mxu0 0.0
  %386 = vmatprep.subr.mxu0 0.0
  %387 = vmatpush1.msra.mxu0 0.0
  %388 = vmatprep.subr.mxu0 0.0
  %389 = vmatpush1.msra.mxu0 0.0
  %390 = vmatprep.subr.mxu0 0.0
  %391 = vmatpush1.msra.mxu0 0.0
  %392 = vmatprep.subr.mxu0 0.0
  %393 = vmatpush1.msra.mxu0 0.0
  %394 = vmatprep.subr.mxu0 0.0
  %395 = vmatpush1.msra.mxu0 0.0
  %396 = vmatprep.subr.mxu0 0.0
  %397 = vmatpush1.msra.mxu0 0.0
  %398 = vmatprep.subr.mxu0 0.0
  %399 = vmatpush1.msra.mxu0 0.0
  %400 = vmatprep.subr.mxu0 0.0
  %401 = vmatpush1.msra.mxu0 0.0
  %402 = vmatprep.subr.mxu0 0.0
  %403 = vmatpush1.msra.mxu0 0.0
  %v404 = vand.u32 %v268, 4294901760
  %v405 = vsub.f32 %v268, %v404
  %v406 = vand.u32 %v405, 4294901760
  %v407 = vsub.f32 %v405, %v406
  %v408 = vand.u32 %v407, 4294901760
  %409 = vmatprep.subr.mxu0 %v408
  %v410 = vand.u32 %v265, 4294901760
  %v411 = vsub.f32 %v265, %v410
  %v412 = vand.u32 %v411, 4294901760
  %v413 = vsub.f32 %v411, %v412
  %v414 = vand.u32 %v413, 4294901760
  %415 = vmatpush1.msra.mxu0 %v414
  %416 = vmatprep.subr.mxu0 0.0
  %417 = vmatpush2.msra.mxu0 0.0
  %418 = vmatprep.subr.mxu0 0.0
  %419 = vmatpush2.msra.mxu0 0.0
  %420 = vmatprep.subr.mxu0 0.0
  %421 = vmatpush2.msra.mxu0 0.0
  %422 = vmatprep.subr.mxu0 0.0
  %423 = vmatpush2.msra.mxu0 0.0
  %424 = vmatprep.subr.mxu0 0.0
  %425 = vmatpush2.msra.mxu0 0.0
  %426 = vmatprep.subr.mxu0 0.0
  %427 = vmatpush2.msra.mxu0 0.0
  %428 = vmatprep.subr.mxu0 0.0
  %429 = vmatpush2.msra.mxu0 0.0
  %430 = vmatprep.subr.mxu0 0.0
  %431 = vmatpush2.msra.mxu0 0.0
  %432 = vmatprep.subr.mxu0 0.0
  %433 = vmatpush2.msra.mxu0 0.0
  %434 = vmatprep.subr.mxu0 0.0
  %435 = vmatpush2.msra.mxu0 0.0
  %436 = vmatprep.subr.mxu0 0.0
  %437 = vmatpush2.msra.mxu0 0.0
  %438 = vmatprep.subr.mxu0 0.0
  %439 = vmatpush2.msra.mxu0 0.0
  %440 = vmatprep.subr.mxu0 0.0
  %441 = vmatpush2.msra.mxu0 0.0
  %442 = vmatprep.subr.mxu0 0.0
  %443 = vmatpush2.msra.mxu0 0.0
  %444 = vmatprep.subr.mxu0 0.0
  %445 = vmatpush2.msra.mxu0 0.0
  %446 = vmatprep.subr.mxu0 0.0
  %447 = vmatpush2.msra.mxu0 0.0
  %448 = vmatprep.mubr.f32.mxu0 0.0
  %v449 = vand.u32 %v258, 4294901760
  %450 = vmatmul.mubr.f32.gmra.mxu0 %v449
  %v451 = vpop.f32.mrf.mxu0
  %v452 = vadd.f32 %v359, %v451
  %v453 = vpop.f32.mrf.mxu0
  %v454 = vadd.f32 %v361, %v453
  %455 = vmatprep.mubr.f32.mxu0 0.0
  %v456 = vand.u32 %v261, 4294901760
  %457 = vmatmul.mubr.f32.gmra.mxu0 %v456
  %v458 = vpop.f32.mrf.mxu0
  %v459 = vadd.f32 %v370, %v458
  %v460 = vpop.f32.mrf.mxu0
  %v461 = vadd.f32 %v372, %v460
  %462 = vdwg.mxu0
  %463 = vmatprep.subr.mxu0 0.0
  %464 = vmatpush1.msra.mxu0 0.0
  %465 = vmatprep.subr.mxu0 0.0
  %466 = vmatpush1.msra.mxu0 0.0
  %467 = vmatprep.subr.mxu0 0.0
  %468 = vmatpush1.msra.mxu0 0.0
  %469 = vmatprep.subr.mxu0 0.0
  %470 = vmatpush1.msra.mxu0 0.0
  %471 = vmatprep.subr.mxu0 0.0
  %472 = vmatpush1.msra.mxu0 0.0
  %473 = vmatprep.subr.mxu0 0.0
  %474 = vmatpush1.msra.mxu0 0.0
  %475 = vmatprep.subr.mxu0 0.0
  %476 = vmatpush1.msra.mxu0 0.0
  %477 = vmatprep.subr.mxu0 0.0
  %478 = vmatpush1.msra.mxu0 0.0
  %479 = vmatprep.subr.mxu0 0.0
  %480 = vmatpush1.msra.mxu0 0.0
  %481 = vmatprep.subr.mxu0 0.0
  %482 = vmatpush1.msra.mxu0 0.0
  %483 = vmatprep.subr.mxu0 0.0
  %484 = vmatpush1.msra.mxu0 0.0
  %485 = vmatprep.subr.mxu0 0.0
  %486 = vmatpush1.msra.mxu0 0.0
  %487 = vmatprep.subr.mxu0 0.0
  %488 = vmatpush1.msra.mxu0 0.0
  %489 = vmatprep.subr.mxu0 0.0
  %490 = vmatpush1.msra.mxu0 0.0
  %491 = vmatprep.subr.mxu0 0.0
  %492 = vmatpush1.msra.mxu0 0.0
  %v493 = vand.u32 %v268, 4294901760
  %v494 = vsub.f32 %v268, %v493
  %495 = vmatprep.subr.mxu0 %v494
  %v496 = vand.u32 %v265, 4294901760
  %v497 = vsub.f32 %v265, %v496
  %498 = vmatpush1.msra.mxu0 %v497
  %499 = vmatprep.subr.mxu0 0.0
  %500 = vmatpush2.msra.mxu0 0.0
  %501 = vmatprep.subr.mxu0 0.0
  %502 = vmatpush2.msra.mxu0 0.0
  %503 = vmatprep.subr.mxu0 0.0
  %504 = vmatpush2.msra.mxu0 0.0
  %505 = vmatprep.subr.mxu0 0.0
  %506 = vmatpush2.msra.mxu0 0.0
  %507 = vmatprep.subr.mxu0 0.0
  %508 = vmatpush2.msra.mxu0 0.0
  %509 = vmatprep.subr.mxu0 0.0
  %510 = vmatpush2.msra.mxu0 0.0
  %511 = vmatprep.subr.mxu0 0.0
  %512 = vmatpush2.msra.mxu0 0.0
  %513 = vmatprep.subr.mxu0 0.0
  %514 = vmatpush2.msra.mxu0 0.0
  %515 = vmatprep.subr.mxu0 0.0
  %516 = vmatpush2.msra.mxu0 0.0
  %517 = vmatprep.subr.mxu0 0.0
  %518 = vmatpush2.msra.mxu0 0.0
  %519 = vmatprep.subr.mxu0 0.0
  %520 = vmatpush2.msra.mxu0 0.0
  %521 = vmatprep.subr.mxu0 0.0
  %522 = vmatpush2.msra.mxu0 0.0
  %523 = vmatprep.subr.mxu0 0.0
  %524 = vmatpush2.msra.mxu0 0.0
  %525 = vmatprep.subr.mxu0 0.0
  %526 = vmatpush2.msra.mxu0 0.0
  %527 = vmatprep.subr.mxu0 0.0
  %528 = vmatpush2.msra.mxu0 0.0
  %529 = vmatprep.subr.mxu0 0.0
  %530 = vmatpush2.msra.mxu0 0.0
  %531 = vmatprep.mubr.f32.mxu0 0.0
  %v532 = vand.u32 %v258, 4294901760
  %v533 = vsub.f32 %v258, %v532
  %534 = vmatmul.mubr.f32.gmra.mxu0 %v533
  %v535 = vpop.f32.mrf.mxu0
  %v536 = vadd.f32 %v452, %v535
  %v537 = vpop.f32.mrf.mxu0
  %v538 = vadd.f32 %v454, %v537
  %539 = vmatprep.mubr.f32.mxu0 0.0
  %v540 = vand.u32 %v261, 4294901760
  %v541 = vsub.f32 %v261, %v540
  %542 = vmatmul.mubr.f32.gmra.mxu0 %v541
  %v543 = vpop.f32.mrf.mxu0
  %v544 = vadd.f32 %v459, %v543
  %v545 = vpop.f32.mrf.mxu0
  %v546 = vadd.f32 %v461, %v545
  %547 = vdwg.mxu0
  %548 = vmatprep.subr.mxu0 0.0
  %549 = vmatpush1.msra.mxu0 0.0
  %550 = vmatprep.subr.mxu0 0.0
  %551 = vmatpush1.msra.mxu0 0.0
  %552 = vmatprep.subr.mxu0 0.0
  %553 = vmatpush1.msra.mxu0 0.0
  %554 = vmatprep.subr.mxu0 0.0
  %555 = vmatpush1.msra.mxu0 0.0
  %556 = vmatprep.subr.mxu0 0.0
  %557 = vmatpush1.msra.mxu0 0.0
  %558 = vmatprep.subr.mxu0 0.0
  %559 = vmatpush1.msra.mxu0 0.0
  %560 = vmatprep.subr.mxu0 0.0
  %561 = vmatpush1.msra.mxu0 0.0
  %562 = vmatprep.subr.mxu0 0.0
  %563 = vmatpush1.msra.mxu0 0.0
  %564 = vmatprep.subr.mxu0 0.0
  %565 = vmatpush1.msra.mxu0 0.0
  %566 = vmatprep.subr.mxu0 0.0
  %567 = vmatpush1.msra.mxu0 0.0
  %568 = vmatprep.subr.mxu0 0.0
  %569 = vmatpush1.msra.mxu0 0.0
  %570 = vmatprep.subr.mxu0 0.0
  %571 = vmatpush1.msra.mxu0 0.0
  %572 = vmatprep.subr.mxu0 0.0
  %573 = vmatpush1.msra.mxu0 0.0
  %574 = vmatprep.subr.mxu0 0.0
  %575 = vmatpush1.msra.mxu0 0.0
  %576 = vmatprep.subr.mxu0 0.0
  %577 = vmatpush1.msra.mxu0 0.0
  %v578 = vand.u32 %v268, 4294901760
  %579 = vmatprep.subr.mxu0 %v578
  %v580 = vand.u32 %v265, 4294901760
  %581 = vmatpush1.msra.mxu0 %v580
  %582 = vmatprep.subr.mxu0 0.0
  %583 = vmatpush2.msra.mxu0 0.0
  %584 = vmatprep.subr.mxu0 0.0
  %585 = vmatpush2.msra.mxu0 0.0
  %586 = vmatprep.subr.mxu0 0.0
  %587 = vmatpush2.msra.mxu0 0.0
  %588 = vmatprep.subr.mxu0 0.0
  %589 = vmatpush2.msra.mxu0 0.0
  %590 = vmatprep.subr.mxu0 0.0
  %591 = vmatpush2.msra.mxu0 0.0
  %592 = vmatprep.subr.mxu0 0.0
  %593 = vmatpush2.msra.mxu0 0.0
  %594 = vmatprep.subr.mxu0 0.0
  %595 = vmatpush2.msra.mxu0 0.0
  %596 = vmatprep.subr.mxu0 0.0
  %597 = vmatpush2.msra.mxu0 0.0
  %598 = vmatprep.subr.mxu0 0.0
  %599 = vmatpush2.msra.mxu0 0.0
  %600 = vmatprep.subr.mxu0 0.0
  %601 = vmatpush2.msra.mxu0 0.0
  %602 = vmatprep.subr.mxu0 0.0
  %603 = vmatpush2.msra.mxu0 0.0
  %604 = vmatprep.subr.mxu0 0.0
  %605 = vmatpush2.msra.mxu0 0.0
  %606 = vmatprep.subr.mxu0 0.0
  %607 = vmatpush2.msra.mxu0 0.0
  %608 = vmatprep.subr.mxu0 0.0
  %609 = vmatpush2.msra.mxu0 0.0
  %610 = vmatprep.subr.mxu0 0.0
  %611 = vmatpush2.msra.mxu0 0.0
  %612 = vmatprep.subr.mxu0 0.0
  %613 = vmatpush2.msra.mxu0 0.0
  %614 = vmatprep.mubr.f32.mxu0 0.0
  %v615 = vand.u32 %v258, 4294901760
  %v616 = vsub.f32 %v258, %v615
  %v617 = vand.u32 %v616, 4294901760
  %618 = vmatmul.mubr.f32.gmra.mxu0 %v617
  %v619 = vpop.f32.mrf.mxu0
  %v620 = vadd.f32 %v536, %v619
  %v621 = vpop.f32.mrf.mxu0
  %v622 = vadd.f32 %v538, %v621
  %623 = vmatprep.mubr.f32.mxu0 0.0
  %v624 = vand.u32 %v261, 4294901760
  %v625 = vsub.f32 %v261, %v624
  %v626 = vand.u32 %v625, 4294901760
  %627 = vmatmul.mubr.f32.gmra.mxu0 %v626
  %v628 = vpop.f32.mrf.mxu0
  %v629 = vadd.f32 %v544, %v628
  %v630 = vpop.f32.mrf.mxu0
  %v631 = vadd.f32 %v546, %v630
  %632 = vdwg.mxu0
  %633 = vmatprep.subr.mxu0 0.0
  %634 = vmatpush1.msra.mxu0 0.0
  %635 = vmatprep.subr.mxu0 0.0
  %636 = vmatpush1.msra.mxu0 0.0
  %637 = vmatprep.subr.mxu0 0.0
  %638 = vmatpush1.msra.mxu0 0.0
  %639 = vmatprep.subr.mxu0 0.0
  %640 = vmatpush1.msra.mxu0 0.0
  %641 = vmatprep.subr.mxu0 0.0
  %642 = vmatpush1.msra.mxu0 0.0
  %643 = vmatprep.subr.mxu0 0.0
  %644 = vmatpush1.msra.mxu0 0.0
  %645 = vmatprep.subr.mxu0 0.0
  %646 = vmatpush1.msra.mxu0 0.0
  %647 = vmatprep.subr.mxu0 0.0
  %648 = vmatpush1.msra.mxu0 0.0
  %649 = vmatprep.subr.mxu0 0.0
  %650 = vmatpush1.msra.mxu0 0.0
  %651 = vmatprep.subr.mxu0 0.0
  %652 = vmatpush1.msra.mxu0 0.0
  %653 = vmatprep.subr.mxu0 0.0
  %654 = vmatpush1.msra.mxu0 0.0
  %655 = vmatprep.subr.mxu0 0.0
  %656 = vmatpush1.msra.mxu0 0.0
  %657 = vmatprep.subr.mxu0 0.0
  %658 = vmatpush1.msra.mxu0 0.0
  %659 = vmatprep.subr.mxu0 0.0
  %660 = vmatpush1.msra.mxu0 0.0
  %661 = vmatprep.subr.mxu0 0.0
  %662 = vmatpush1.msra.mxu0 0.0
  %v663 = vand.u32 %v268, 4294901760
  %v664 = vsub.f32 %v268, %v663
  %v665 = vand.u32 %v664, 4294901760
  %666 = vmatprep.subr.mxu0 %v665
  %v667 = vand.u32 %v265, 4294901760
  %v668 = vsub.f32 %v265, %v667
  %v669 = vand.u32 %v668, 4294901760
  %670 = vmatpush1.msra.mxu0 %v669
  %671 = vmatprep.subr.mxu0 0.0
  %672 = vmatpush2.msra.mxu0 0.0
  %673 = vmatprep.subr.mxu0 0.0
  %674 = vmatpush2.msra.mxu0 0.0
  %675 = vmatprep.subr.mxu0 0.0
  %676 = vmatpush2.msra.mxu0 0.0
  %677 = vmatprep.subr.mxu0 0.0
  %678 = vmatpush2.msra.mxu0 0.0
  %679 = vmatprep.subr.mxu0 0.0
  %680 = vmatpush2.msra.mxu0 0.0
  %681 = vmatprep.subr.mxu0 0.0
  %682 = vmatpush2.msra.mxu0 0.0
  %683 = vmatprep.subr.mxu0 0.0
  %684 = vmatpush2.msra.mxu0 0.0
  %685 = vmatprep.subr.mxu0 0.0
  %686 = vmatpush2.msra.mxu0 0.0
  %687 = vmatprep.subr.mxu0 0.0
  %688 = vmatpush2.msra.mxu0 0.0
  %689 = vmatprep.subr.mxu0 0.0
  %690 = vmatpush2.msra.mxu0 0.0
  %691 = vmatprep.subr.mxu0 0.0
  %692 = vmatpush2.msra.mxu0 0.0
  %693 = vmatprep.subr.mxu0 0.0
  %694 = vmatpush2.msra.mxu0 0.0
  %695 = vmatprep.subr.mxu0 0.0
  %696 = vmatpush2.msra.mxu0 0.0
  %697 = vmatprep.subr.mxu0 0.0
  %698 = vmatpush2.msra.mxu0 0.0
  %699 = vmatprep.subr.mxu0 0.0
  %700 = vmatpush2.msra.mxu0 0.0
  %701 = vmatprep.subr.mxu0 0.0
  %702 = vmatpush2.msra.mxu0 0.0
  %703 = vmatprep.mubr.f32.mxu0 0.0
  %v704 = vand.u32 %v258, 4294901760
  %705 = vmatmul.mubr.f32.gmra.mxu0 %v704
  %v706 = vpop.f32.mrf.mxu0
  %v707 = vadd.f32 %v620, %v706
  %v708 = vpop.f32.mrf.mxu0
  %v709 = vadd.f32 %v622, %v708
  %710 = vmatprep.mubr.f32.mxu0 0.0
  %v711 = vand.u32 %v261, 4294901760
  %712 = vmatmul.mubr.f32.gmra.mxu0 %v711
  %v713 = vpop.f32.mrf.mxu0
  %v714 = vadd.f32 %v629, %v713
  %v715 = vpop.f32.mrf.mxu0
  %v716 = vadd.f32 %v631, %v715
  %717 = vdwg.mxu0
  %718 = vmatprep.subr.mxu0 0.0
  %719 = vmatpush1.msra.mxu0 0.0
  %720 = vmatprep.subr.mxu0 0.0
  %721 = vmatpush1.msra.mxu0 0.0
  %722 = vmatprep.subr.mxu0 0.0
  %723 = vmatpush1.msra.mxu0 0.0
  %724 = vmatprep.subr.mxu0 0.0
  %725 = vmatpush1.msra.mxu0 0.0
  %726 = vmatprep.subr.mxu0 0.0
  %727 = vmatpush1.msra.mxu0 0.0
  %728 = vmatprep.subr.mxu0 0.0
  %729 = vmatpush1.msra.mxu0 0.0
  %730 = vmatprep.subr.mxu0 0.0
  %731 = vmatpush1.msra.mxu0 0.0
  %732 = vmatprep.subr.mxu0 0.0
  %733 = vmatpush1.msra.mxu0 0.0
  %734 = vmatprep.subr.mxu0 0.0
  %735 = vmatpush1.msra.mxu0 0.0
  %736 = vmatprep.subr.mxu0 0.0
  %737 = vmatpush1.msra.mxu0 0.0
  %738 = vmatprep.subr.mxu0 0.0
  %739 = vmatpush1.msra.mxu0 0.0
  %740 = vmatprep.subr.mxu0 0.0
  %741 = vmatpush1.msra.mxu0 0.0
  %742 = vmatprep.subr.mxu0 0.0
  %743 = vmatpush1.msra.mxu0 0.0
  %744 = vmatprep.subr.mxu0 0.0
  %745 = vmatpush1.msra.mxu0 0.0
  %746 = vmatprep.subr.mxu0 0.0
  %747 = vmatpush1.msra.mxu0 0.0
  %v748 = vand.u32 %v268, 4294901760
  %749 = vmatprep.subr.mxu0 %v748
  %v750 = vand.u32 %v265, 4294901760
  %751 = vmatpush1.msra.mxu0 %v750
  %752 = vmatprep.subr.mxu0 0.0
  %753 = vmatpush2.msra.mxu0 0.0
  %754 = vmatprep.subr.mxu0 0.0
  %755 = vmatpush2.msra.mxu0 0.0
  %756 = vmatprep.subr.mxu0 0.0
  %757 = vmatpush2.msra.mxu0 0.0
  %758 = vmatprep.subr.mxu0 0.0
  %759 = vmatpush2.msra.mxu0 0.0
  %760 = vmatprep.subr.mxu0 0.0
  %761 = vmatpush2.msra.mxu0 0.0
  %762 = vmatprep.subr.mxu0 0.0
  %763 = vmatpush2.msra.mxu0 0.0
  %764 = vmatprep.subr.mxu0 0.0
  %765 = vmatpush2.msra.mxu0 0.0
  %766 = vmatprep.subr.mxu0 0.0
  %767 = vmatpush2.msra.mxu0 0.0
  %768 = vmatprep.subr.mxu0 0.0
  %769 = vmatpush2.msra.mxu0 0.0
  %770 = vmatprep.subr.mxu0 0.0
  %771 = vmatpush2.msra.mxu0 0.0
  %772 = vmatprep.subr.mxu0 0.0
  %773 = vmatpush2.msra.mxu0 0.0
  %774 = vmatprep.subr.mxu0 0.0
  %775 = vmatpush2.msra.mxu0 0.0
  %776 = vmatprep.subr.mxu0 0.0
  %777 = vmatpush2.msra.mxu0 0.0
  %778 = vmatprep.subr.mxu0 0.0
  %779 = vmatpush2.msra.mxu0 0.0
  %780 = vmatprep.subr.mxu0 0.0
  %781 = vmatpush2.msra.mxu0 0.0
  %782 = vmatprep.subr.mxu0 0.0
  %783 = vmatpush2.msra.mxu0 0.0
  %784 = vmatprep.mubr.f32.mxu0 0.0
  %v785 = vand.u32 %v258, 4294901760
  %786 = vmatmul.mubr.f32.gmra.mxu0 %v785
  %v787 = vpop.f32.mrf.mxu0
  %v788 = vadd.f32 %v707, %v787
  %v789 = vpop.f32.mrf.mxu0
  %v790 = vadd.f32 %v709, %v789
  %791 = vmatprep.mubr.f32.mxu0 0.0
  %v792 = vand.u32 %v261, 4294901760
  %793 = vmatmul.mubr.f32.gmra.mxu0 %v792
  %v794 = vpop.f32.mrf.mxu0
  %v795 = vadd.f32 %v714, %v794
  %v796 = vpop.f32.mrf.mxu0
  %v797 = vadd.f32 %v716, %v796
  %798 = vdwg.mxu0
  %799 = vmatprep.subr.mxu0 0.0
  %800 = vmatpush1.msra.mxu0 0.0
  %801 = vmatprep.subr.mxu0 0.0
  %802 = vmatpush1.msra.mxu0 0.0
  %803 = vmatprep.subr.mxu0 0.0
  %804 = vmatpush1.msra.mxu0 0.0
  %805 = vmatprep.subr.mxu0 0.0
  %806 = vmatpush1.msra.mxu0 0.0
  %807 = vmatprep.subr.mxu0 0.0
  %808 = vmatpush1.msra.mxu0 0.0
  %809 = vmatprep.subr.mxu0 0.0
  %810 = vmatpush1.msra.mxu0 0.0
  %811 = vmatprep.subr.mxu0 0.0
  %812 = vmatpush1.msra.mxu0 0.0
  %813 = vmatprep.subr.mxu0 0.0
  %814 = vmatpush1.msra.mxu0 0.0
  %815 = vmatprep.subr.mxu0 0.0
  %816 = vmatpush1.msra.mxu0 0.0
  %817 = vmatprep.subr.mxu0 0.0
  %818 = vmatpush1.msra.mxu0 0.0
  %819 = vmatprep.subr.mxu0 0.0
  %820 = vmatpush1.msra.mxu0 0.0
  %821 = vmatprep.subr.mxu0 0.0
  %822 = vmatpush1.msra.mxu0 0.0
  %823 = vmatprep.subr.mxu0 0.0
  %824 = vmatpush1.msra.mxu0 0.0
  %825 = vmatprep.subr.mxu0 0.0
  %826 = vmatpush1.msra.mxu0 0.0
  %827 = vmatprep.subr.mxu0 0.0
  %828 = vmatpush1.msra.mxu0 0.0
  %v829 = vand.u32 %v274, 4294901760
  %830 = vmatprep.subr.mxu0 %v829
  %v831 = vand.u32 %v271, 4294901760
  %832 = vmatpush1.msra.mxu0 %v831
  %833 = vmatprep.subr.mxu0 0.0
  %834 = vmatpush2.msra.mxu0 0.0
  %835 = vmatprep.subr.mxu0 0.0
  %836 = vmatpush2.msra.mxu0 0.0
  %837 = vmatprep.subr.mxu0 0.0
  %838 = vmatpush2.msra.mxu0 0.0
  %839 = vmatprep.subr.mxu0 0.0
  %840 = vmatpush2.msra.mxu0 0.0
  %841 = vmatprep.subr.mxu0 0.0
  %842 = vmatpush2.msra.mxu0 0.0
  %843 = vmatprep.subr.mxu0 0.0
  %844 = vmatpush2.msra.mxu0 0.0
  %845 = vmatprep.subr.mxu0 0.0
  %846 = vmatpush2.msra.mxu0 0.0
  %847 = vmatprep.subr.mxu0 0.0
  %848 = vmatpush2.msra.mxu0 0.0
  %849 = vmatprep.subr.mxu0 0.0
  %850 = vmatpush2.msra.mxu0 0.0
  %851 = vmatprep.subr.mxu0 0.0
  %852 = vmatpush2.msra.mxu0 0.0
  %853 = vmatprep.subr.mxu0 0.0
  %854 = vmatpush2.msra.mxu0 0.0
  %855 = vmatprep.subr.mxu0 0.0
  %856 = vmatpush2.msra.mxu0 0.0
  %857 = vmatprep.subr.mxu0 0.0
  %858 = vmatpush2.msra.mxu0 0.0
  %859 = vmatprep.subr.mxu0 0.0
  %860 = vmatpush2.msra.mxu0 0.0
  %861 = vmatprep.subr.mxu0 0.0
  %862 = vmatpush2.msra.mxu0 0.0
  %863 = vmatprep.subr.mxu0 0.0
  %864 = vmatpush2.msra.mxu0 0.0
  %865 = vmatprep.mubr.f32.mxu0 0.0
  %v866 = vand.u32 %v258, 4294901760
  %v867 = vsub.f32 %v258, %v866
  %v868 = vand.u32 %v867, 4294901760
  %v869 = vsub.f32 %v867, %v868
  %v870 = vand.u32 %v869, 4294901760
  %871 = vmatmul.mubr.f32.gmra.mxu0 %v870
  %v872 = vpop.f32.mrf.mxu0
  %v873 = vadd.f32 %v249, %v872
  %v874 = vpop.f32.mrf.mxu0
  %v875 = vadd.f32 %v249, %v874
  %876 = vmatprep.mubr.f32.mxu0 0.0
  %v877 = vand.u32 %v261, 4294901760
  %v878 = vsub.f32 %v261, %v877
  %v879 = vand.u32 %v878, 4294901760
  %v880 = vsub.f32 %v878, %v879
  %v881 = vand.u32 %v880, 4294901760
  %882 = vmatmul.mubr.f32.gmra.mxu0 %v881
  %v883 = vpop.f32.mrf.mxu0
  %v884 = vadd.f32 %v254, %v883
  %v885 = vpop.f32.mrf.mxu0
  %v886 = vadd.f32 %v254, %v885
  %887 = vdwg.mxu0
  %888 = vmatprep.subr.mxu0 0.0
  %889 = vmatpush1.msra.mxu0 0.0
  %890 = vmatprep.subr.mxu0 0.0
  %891 = vmatpush1.msra.mxu0 0.0
  %892 = vmatprep.subr.mxu0 0.0
  %893 = vmatpush1.msra.mxu0 0.0
  %894 = vmatprep.subr.mxu0 0.0
  %895 = vmatpush1.msra.mxu0 0.0
  %896 = vmatprep.subr.mxu0 0.0
  %897 = vmatpush1.msra.mxu0 0.0
  %898 = vmatprep.subr.mxu0 0.0
  %899 = vmatpush1.msra.mxu0 0.0
  %900 = vmatprep.subr.mxu0 0.0
  %901 = vmatpush1.msra.mxu0 0.0
  %902 = vmatprep.subr.mxu0 0.0
  %903 = vmatpush1.msra.mxu0 0.0
  %904 = vmatprep.subr.mxu0 0.0
  %905 = vmatpush1.msra.mxu0 0.0
  %906 = vmatprep.subr.mxu0 0.0
  %907 = vmatpush1.msra.mxu0 0.0
  %908 = vmatprep.subr.mxu0 0.0
  %909 = vmatpush1.msra.mxu0 0.0
  %910 = vmatprep.subr.mxu0 0.0
  %911 = vmatpush1.msra.mxu0 0.0
  %912 = vmatprep.subr.mxu0 0.0
  %913 = vmatpush1.msra.mxu0 0.0
  %914 = vmatprep.subr.mxu0 0.0
  %915 = vmatpush1.msra.mxu0 0.0
  %916 = vmatprep.subr.mxu0 0.0
  %917 = vmatpush1.msra.mxu0 0.0
  %v918 = vand.u32 %v274, 4294901760
  %v919 = vsub.f32 %v274, %v918
  %v920 = vand.u32 %v919, 4294901760
  %v921 = vsub.f32 %v919, %v920
  %v922 = vand.u32 %v921, 4294901760
  %923 = vmatprep.subr.mxu0 %v922
  %v924 = vand.u32 %v271, 4294901760
  %v925 = vsub.f32 %v271, %v924
  %v926 = vand.u32 %v925, 4294901760
  %v927 = vsub.f32 %v925, %v926
  %v928 = vand.u32 %v927, 4294901760
  %929 = vmatpush1.msra.mxu0 %v928
  %930 = vmatprep.subr.mxu0 0.0
  %931 = vmatpush2.msra.mxu0 0.0
  %932 = vmatprep.subr.mxu0 0.0
  %933 = vmatpush2.msra.mxu0 0.0
  %934 = vmatprep.subr.mxu0 0.0
  %935 = vmatpush2.msra.mxu0 0.0
  %936 = vmatprep.subr.mxu0 0.0
  %937 = vmatpush2.msra.mxu0 0.0
  %938 = vmatprep.subr.mxu0 0.0
  %939 = vmatpush2.msra.mxu0 0.0
  %940 = vmatprep.subr.mxu0 0.0
  %941 = vmatpush2.msra.mxu0 0.0
  %942 = vmatprep.subr.mxu0 0.0
  %943 = vmatpush2.msra.mxu0 0.0
  %944 = vmatprep.subr.mxu0 0.0
  %945 = vmatpush2.msra.mxu0 0.0
  %946 = vmatprep.subr.mxu0 0.0
  %947 = vmatpush2.msra.mxu0 0.0
  %948 = vmatprep.subr.mxu0 0.0
  %949 = vmatpush2.msra.mxu0 0.0
  %950 = vmatprep.subr.mxu0 0.0
  %951 = vmatpush2.msra.mxu0 0.0
  %952 = vmatprep.subr.mxu0 0.0
  %953 = vmatpush2.msra.mxu0 0.0
  %954 = vmatprep.subr.mxu0 0.0
  %955 = vmatpush2.msra.mxu0 0.0
  %956 = vmatprep.subr.mxu0 0.0
  %957 = vmatpush2.msra.mxu0 0.0
  %958 = vmatprep.subr.mxu0 0.0
  %959 = vmatpush2.msra.mxu0 0.0
  %960 = vmatprep.subr.mxu0 0.0
  %961 = vmatpush2.msra.mxu0 0.0
  %962 = vmatprep.mubr.f32.mxu0 0.0
  %v963 = vand.u32 %v258, 4294901760
  %964 = vmatmul.mubr.f32.gmra.mxu0 %v963
  %v965 = vpop.f32.mrf.mxu0
  %v966 = vadd.f32 %v873, %v965
  %v967 = vpop.f32.mrf.mxu0
  %v968 = vadd.f32 %v875, %v967
  %969 = vmatprep.mubr.f32.mxu0 0.0
  %v970 = vand.u32 %v261, 4294901760
  %971 = vmatmul.mubr.f32.gmra.mxu0 %v970
  %v972 = vpop.f32.mrf.mxu0
  %v973 = vadd.f32 %v884, %v972
  %v974 = vpop.f32.mrf.mxu0
  %v975 = vadd.f32 %v886, %v974
  %976 = vdwg.mxu0
  %977 = vmatprep.subr.mxu0 0.0
  %978 = vmatpush1.msra.mxu0 0.0
  %979 = vmatprep.subr.mxu0 0.0
  %980 = vmatpush1.msra.mxu0 0.0
  %981 = vmatprep.subr.mxu0 0.0
  %982 = vmatpush1.msra.mxu0 0.0
  %983 = vmatprep.subr.mxu0 0.0
  %984 = vmatpush1.msra.mxu0 0.0
  %985 = vmatprep.subr.mxu0 0.0
  %986 = vmatpush1.msra.mxu0 0.0
  %987 = vmatprep.subr.mxu0 0.0
  %988 = vmatpush1.msra.mxu0 0.0
  %989 = vmatprep.subr.mxu0 0.0
  %990 = vmatpush1.msra.mxu0 0.0
  %991 = vmatprep.subr.mxu0 0.0
  %992 = vmatpush1.msra.mxu0 0.0
  %993 = vmatprep.subr.mxu0 0.0
  %994 = vmatpush1.msra.mxu0 0.0
  %995 = vmatprep.subr.mxu0 0.0
  %996 = vmatpush1.msra.mxu0 0.0
  %997 = vmatprep.subr.mxu0 0.0
  %998 = vmatpush1.msra.mxu0 0.0
  %999 = vmatprep.subr.mxu0 0.0
  %1000 = vmatpush1.msra.mxu0 0.0
  %1001 = vmatprep.subr.mxu0 0.0
  %1002 = vmatpush1.msra.mxu0 0.0
  %1003 = vmatprep.subr.mxu0 0.0
  %1004 = vmatpush1.msra.mxu0 0.0
  %1005 = vmatprep.subr.mxu0 0.0
  %1006 = vmatpush1.msra.mxu0 0.0
  %v1007 = vand.u32 %v274, 4294901760
  %v1008 = vsub.f32 %v274, %v1007
  %1009 = vmatprep.subr.mxu0 %v1008
  %v1010 = vand.u32 %v271, 4294901760
  %v1011 = vsub.f32 %v271, %v1010
  %1012 = vmatpush1.msra.mxu0 %v1011
  %1013 = vmatprep.subr.mxu0 0.0
  %1014 = vmatpush2.msra.mxu0 0.0
  %1015 = vmatprep.subr.mxu0 0.0
  %1016 = vmatpush2.msra.mxu0 0.0
  %1017 = vmatprep.subr.mxu0 0.0
  %1018 = vmatpush2.msra.mxu0 0.0
  %1019 = vmatprep.subr.mxu0 0.0
  %1020 = vmatpush2.msra.mxu0 0.0
  %1021 = vmatprep.subr.mxu0 0.0
  %1022 = vmatpush2.msra.mxu0 0.0
  %1023 = vmatprep.subr.mxu0 0.0
  %1024 = vmatpush2.msra.mxu0 0.0
  %1025 = vmatprep.subr.mxu0 0.0
  %1026 = vmatpush2.msra.mxu0 0.0
  %1027 = vmatprep.subr.mxu0 0.0
  %1028 = vmatpush2.msra.mxu0 0.0
  %1029 = vmatprep.subr.mxu0 0.0
  %1030 = vmatpush2.msra.mxu0 0.0
  %1031 = vmatprep.subr.mxu0 0.0
  %1032 = vmatpush2.msra.mxu0 0.0
  %1033 = vmatprep.subr.mxu0 0.0
  %1034 = vmatpush2.msra.mxu0 0.0
  %1035 = vmatprep.subr.mxu0 0.0
  %1036 = vmatpush2.msra.mxu0 0.0
  %1037 = vmatprep.subr.mxu0 0.0
  %1038 = vmatpush2.msra.mxu0 0.0
  %1039 = vmatprep.subr.mxu0 0.0
  %1040 = vmatpush2.msra.mxu0 0.0
  %1041 = vmatprep.subr.mxu0 0.0
  %1042 = vmatpush2.msra.mxu0 0.0
  %1043 = vmatprep.subr.mxu0 0.0
  %1044 = vmatpush2.msra.mxu0 0.0
  %1045 = vmatprep.mubr.f32.mxu0 0.0
  %v1046 = vand.u32 %v258, 4294901760
  %v1047 = vsub.f32 %v258, %v1046
  %1048 = vmatmul.mubr.f32.gmra.mxu0 %v1047
  %v1049 = vpop.f32.mrf.mxu0
  %v1050 = vadd.f32 %v966, %v1049
  %v1051 = vpop.f32.mrf.mxu0
  %v1052 = vadd.f32 %v968, %v1051
  %1053 = vmatprep.mubr.f32.mxu0 0.0
  %v1054 = vand.u32 %v261, 4294901760
  %v1055 = vsub.f32 %v261, %v1054
  %1056 = vmatmul.mubr.f32.gmra.mxu0 %v1055
  %v1057 = vpop.f32.mrf.mxu0
  %v1058 = vadd.f32 %v973, %v1057
  %v1059 = vpop.f32.mrf.mxu0
  %v1060 = vadd.f32 %v975, %v1059
  %1061 = vdwg.mxu0
  %1062 = vmatprep.subr.mxu0 0.0
  %1063 = vmatpush1.msra.mxu0 0.0
  %1064 = vmatprep.subr.mxu0 0.0
  %1065 = vmatpush1.msra.mxu0 0.0
  %1066 = vmatprep.subr.mxu0 0.0
  %1067 = vmatpush1.msra.mxu0 0.0
  %1068 = vmatprep.subr.mxu0 0.0
  %1069 = vmatpush1.msra.mxu0 0.0
  %1070 = vmatprep.subr.mxu0 0.0
  %1071 = vmatpush1.msra.mxu0 0.0
  %1072 = vmatprep.subr.mxu0 0.0
  %1073 = vmatpush1.msra.mxu0 0.0
  %1074 = vmatprep.subr.mxu0 0.0
  %1075 = vmatpush1.msra.mxu0 0.0
  %1076 = vmatprep.subr.mxu0 0.0
  %1077 = vmatpush1.msra.mxu0 0.0
  %1078 = vmatprep.subr.mxu0 0.0
  %1079 = vmatpush1.msra.mxu0 0.0
  %1080 = vmatprep.subr.mxu0 0.0
  %1081 = vmatpush1.msra.mxu0 0.0
  %1082 = vmatprep.subr.mxu0 0.0
  %1083 = vmatpush1.msra.mxu0 0.0
  %1084 = vmatprep.subr.mxu0 0.0
  %1085 = vmatpush1.msra.mxu0 0.0
  %1086 = vmatprep.subr.mxu0 0.0
  %1087 = vmatpush1.msra.mxu0 0.0
  %1088 = vmatprep.subr.mxu0 0.0
  %1089 = vmatpush1.msra.mxu0 0.0
  %1090 = vmatprep.subr.mxu0 0.0
  %1091 = vmatpush1.msra.mxu0 0.0
  %v1092 = vand.u32 %v274, 4294901760
  %1093 = vmatprep.subr.mxu0 %v1092
  %v1094 = vand.u32 %v271, 4294901760
  %1095 = vmatpush1.msra.mxu0 %v1094
  %1096 = vmatprep.subr.mxu0 0.0
  %1097 = vmatpush2.msra.mxu0 0.0
  %1098 = vmatprep.subr.mxu0 0.0
  %1099 = vmatpush2.msra.mxu0 0.0
  %1100 = vmatprep.subr.mxu0 0.0
  %1101 = vmatpush2.msra.mxu0 0.0
  %1102 = vmatprep.subr.mxu0 0.0
  %1103 = vmatpush2.msra.mxu0 0.0
  %1104 = vmatprep.subr.mxu0 0.0
  %1105 = vmatpush2.msra.mxu0 0.0
  %1106 = vmatprep.subr.mxu0 0.0
  %1107 = vmatpush2.msra.mxu0 0.0
  %1108 = vmatprep.subr.mxu0 0.0
  %1109 = vmatpush2.msra.mxu0 0.0
  %1110 = vmatprep.subr.mxu0 0.0
  %1111 = vmatpush2.msra.mxu0 0.0
  %1112 = vmatprep.subr.mxu0 0.0
  %1113 = vmatpush2.msra.mxu0 0.0
  %1114 = vmatprep.subr.mxu0 0.0
  %1115 = vmatpush2.msra.mxu0 0.0
  %1116 = vmatprep.subr.mxu0 0.0
  %1117 = vmatpush2.msra.mxu0 0.0
  %1118 = vmatprep.subr.mxu0 0.0
  %1119 = vmatpush2.msra.mxu0 0.0
  %1120 = vmatprep.subr.mxu0 0.0
  %1121 = vmatpush2.msra.mxu0 0.0
  %1122 = vmatprep.subr.mxu0 0.0
  %1123 = vmatpush2.msra.mxu0 0.0
  %1124 = vmatprep.subr.mxu0 0.0
  %1125 = vmatpush2.msra.mxu0 0.0
  %1126 = vmatprep.subr.mxu0 0.0
  %1127 = vmatpush2.msra.mxu0 0.0
  %1128 = vmatprep.mubr.f32.mxu0 0.0
  %v1129 = vand.u32 %v258, 4294901760
  %v1130 = vsub.f32 %v258, %v1129
  %v1131 = vand.u32 %v1130, 4294901760
  %1132 = vmatmul.mubr.f32.gmra.mxu0 %v1131
  %v1133 = vpop.f32.mrf.mxu0
  %v1134 = vadd.f32 %v1050, %v1133
  %v1135 = vpop.f32.mrf.mxu0
  %v1136 = vadd.f32 %v1052, %v1135
  %1137 = vmatprep.mubr.f32.mxu0 0.0
  %v1138 = vand.u32 %v261, 4294901760
  %v1139 = vsub.f32 %v261, %v1138
  %v1140 = vand.u32 %v1139, 4294901760
  %1141 = vmatmul.mubr.f32.gmra.mxu0 %v1140
  %v1142 = vpop.f32.mrf.mxu0
  %v1143 = vadd.f32 %v1058, %v1142
  %v1144 = vpop.f32.mrf.mxu0
  %v1145 = vadd.f32 %v1060, %v1144
  %1146 = vdwg.mxu0
  %1147 = vmatprep.subr.mxu0 0.0
  %1148 = vmatpush1.msra.mxu0 0.0
  %1149 = vmatprep.subr.mxu0 0.0
  %1150 = vmatpush1.msra.mxu0 0.0
  %1151 = vmatprep.subr.mxu0 0.0
  %1152 = vmatpush1.msra.mxu0 0.0
  %1153 = vmatprep.subr.mxu0 0.0
  %1154 = vmatpush1.msra.mxu0 0.0
  %1155 = vmatprep.subr.mxu0 0.0
  %1156 = vmatpush1.msra.mxu0 0.0
  %1157 = vmatprep.subr.mxu0 0.0
  %1158 = vmatpush1.msra.mxu0 0.0
  %1159 = vmatprep.subr.mxu0 0.0
  %1160 = vmatpush1.msra.mxu0 0.0
  %1161 = vmatprep.subr.mxu0 0.0
  %1162 = vmatpush1.msra.mxu0 0.0
  %1163 = vmatprep.subr.mxu0 0.0
  %1164 = vmatpush1.msra.mxu0 0.0
  %1165 = vmatprep.subr.mxu0 0.0
  %1166 = vmatpush1.msra.mxu0 0.0
  %1167 = vmatprep.subr.mxu0 0.0
  %1168 = vmatpush1.msra.mxu0 0.0
  %1169 = vmatprep.subr.mxu0 0.0
  %1170 = vmatpush1.msra.mxu0 0.0
  %1171 = vmatprep.subr.mxu0 0.0
  %1172 = vmatpush1.msra.mxu0 0.0
  %1173 = vmatprep.subr.mxu0 0.0
  %1174 = vmatpush1.msra.mxu0 0.0
  %1175 = vmatprep.subr.mxu0 0.0
  %1176 = vmatpush1.msra.mxu0 0.0
  %v1177 = vand.u32 %v274, 4294901760
  %v1178 = vsub.f32 %v274, %v1177
  %v1179 = vand.u32 %v1178, 4294901760
  %1180 = vmatprep.subr.mxu0 %v1179
  %v1181 = vand.u32 %v271, 4294901760
  %v1182 = vsub.f32 %v271, %v1181
  %v1183 = vand.u32 %v1182, 4294901760
  %1184 = vmatpush1.msra.mxu0 %v1183
  %1185 = vmatprep.subr.mxu0 0.0
  %1186 = vmatpush2.msra.mxu0 0.0
  %1187 = vmatprep.subr.mxu0 0.0
  %1188 = vmatpush2.msra.mxu0 0.0
  %1189 = vmatprep.subr.mxu0 0.0
  %1190 = vmatpush2.msra.mxu0 0.0
  %1191 = vmatprep.subr.mxu0 0.0
  %1192 = vmatpush2.msra.mxu0 0.0
  %1193 = vmatprep.subr.mxu0 0.0
  %1194 = vmatpush2.msra.mxu0 0.0
  %1195 = vmatprep.subr.mxu0 0.0
  %1196 = vmatpush2.msra.mxu0 0.0
  %1197 = vmatprep.subr.mxu0 0.0
  %1198 = vmatpush2.msra.mxu0 0.0
  %1199 = vmatprep.subr.mxu0 0.0
  %1200 = vmatpush2.msra.mxu0 0.0
  %1201 = vmatprep.subr.mxu0 0.0
  %1202 = vmatpush2.msra.mxu0 0.0
  %1203 = vmatprep.subr.mxu0 0.0
  %1204 = vmatpush2.msra.mxu0 0.0
  %1205 = vmatprep.subr.mxu0 0.0
  %1206 = vmatpush2.msra.mxu0 0.0
  %1207 = vmatprep.subr.mxu0 0.0
  %1208 = vmatpush2.msra.mxu0 0.0
  %1209 = vmatprep.subr.mxu0 0.0
  %1210 = vmatpush2.msra.mxu0 0.0
  %1211 = vmatprep.subr.mxu0 0.0
  %1212 = vmatpush2.msra.mxu0 0.0
  %1213 = vmatprep.subr.mxu0 0.0
  %1214 = vmatpush2.msra.mxu0 0.0
  %1215 = vmatprep.subr.mxu0 0.0
  %1216 = vmatpush2.msra.mxu0 0.0
  %1217 = vmatprep.mubr.f32.mxu0 0.0
  %v1218 = vand.u32 %v258, 4294901760
  %1219 = vmatmul.mubr.f32.gmra.mxu0 %v1218
  %v1220 = vpop.f32.mrf.mxu0
  %v1221 = vadd.f32 %v1134, %v1220
  %v1222 = vpop.f32.mrf.mxu0
  %v1223 = vadd.f32 %v1136, %v1222
  %1224 = vmatprep.mubr.f32.mxu0 0.0
  %v1225 = vand.u32 %v261, 4294901760
  %1226 = vmatmul.mubr.f32.gmra.mxu0 %v1225
  %v1227 = vpop.f32.mrf.mxu0
  %v1228 = vadd.f32 %v1143, %v1227
  %v1229 = vpop.f32.mrf.mxu0
  %v1230 = vadd.f32 %v1145, %v1229
  %1231 = vdwg.mxu0
  %1232 = vmatprep.subr.mxu0 0.0
  %1233 = vmatpush1.msra.mxu0 0.0
  %1234 = vmatprep.subr.mxu0 0.0
  %1235 = vmatpush1.msra.mxu0 0.0
  %1236 = vmatprep.subr.mxu0 0.0
  %1237 = vmatpush1.msra.mxu0 0.0
  %1238 = vmatprep.subr.mxu0 0.0
  %1239 = vmatpush1.msra.mxu0 0.0
  %1240 = vmatprep.subr.mxu0 0.0
  %1241 = vmatpush1.msra.mxu0 0.0
  %1242 = vmatprep.subr.mxu0 0.0
  %1243 = vmatpush1.msra.mxu0 0.0
  %1244 = vmatprep.subr.mxu0 0.0
  %1245 = vmatpush1.msra.mxu0 0.0
  %1246 = vmatprep.subr.mxu0 0.0
  %1247 = vmatpush1.msra.mxu0 0.0
  %1248 = vmatprep.subr.mxu0 0.0
  %1249 = vmatpush1.msra.mxu0 0.0
  %1250 = vmatprep.subr.mxu0 0.0
  %1251 = vmatpush1.msra.mxu0 0.0
  %1252 = vmatprep.subr.mxu0 0.0
  %1253 = vmatpush1.msra.mxu0 0.0
  %1254 = vmatprep.subr.mxu0 0.0
  %1255 = vmatpush1.msra.mxu0 0.0
  %1256 = vmatprep.subr.mxu0 0.0
  %1257 = vmatpush1.msra.mxu0 0.0
  %1258 = vmatprep.subr.mxu0 0.0
  %1259 = vmatpush1.msra.mxu0 0.0
  %1260 = vmatprep.subr.mxu0 0.0
  %1261 = vmatpush1.msra.mxu0 0.0
  %v1262 = vand.u32 %v274, 4294901760
  %1263 = vmatprep.subr.mxu0 %v1262
  %v1264 = vand.u32 %v271, 4294901760
  %1265 = vmatpush1.msra.mxu0 %v1264
  %1266 = vmatprep.subr.mxu0 0.0
  %1267 = vmatpush2.msra.mxu0 0.0
  %1268 = vmatprep.subr.mxu0 0.0
  %1269 = vmatpush2.msra.mxu0 0.0
  %1270 = vmatprep.subr.mxu0 0.0
  %1271 = vmatpush2.msra.mxu0 0.0
  %1272 = vmatprep.subr.mxu0 0.0
  %1273 = vmatpush2.msra.mxu0 0.0
  %1274 = vmatprep.subr.mxu0 0.0
  %1275 = vmatpush2.msra.mxu0 0.0
  %1276 = vmatprep.subr.mxu0 0.0
  %1277 = vmatpush2.msra.mxu0 0.0
  %1278 = vmatprep.subr.mxu0 0.0
  %1279 = vmatpush2.msra.mxu0 0.0
  %1280 = vmatprep.subr.mxu0 0.0
  %1281 = vmatpush2.msra.mxu0 0.0
  %1282 = vmatprep.subr.mxu0 0.0
  %1283 = vmatpush2.msra.mxu0 0.0
  %1284 = vmatprep.subr.mxu0 0.0
  %1285 = vmatpush2.msra.mxu0 0.0
  %1286 = vmatprep.subr.mxu0 0.0
  %1287 = vmatpush2.msra.mxu0 0.0
  %1288 = vmatprep.subr.mxu0 0.0
  %1289 = vmatpush2.msra.mxu0 0.0
  %1290 = vmatprep.subr.mxu0 0.0
  %1291 = vmatpush2.msra.mxu0 0.0
  %1292 = vmatprep.subr.mxu0 0.0
  %1293 = vmatpush2.msra.mxu0 0.0
  %1294 = vmatprep.subr.mxu0 0.0
  %1295 = vmatpush2.msra.mxu0 0.0
  %1296 = vmatprep.subr.mxu0 0.0
  %1297 = vmatpush2.msra.mxu0 0.0
  %1298 = vmatprep.mubr.f32.mxu0 0.0
  %v1299 = vand.u32 %v258, 4294901760
  %1300 = vmatmul.mubr.f32.gmra.mxu0 %v1299
  %v1301 = vpop.f32.mrf.mxu0
  %v1302 = vadd.f32 %v1221, %v1301
  %v1303 = vpop.f32.mrf.mxu0
  %v1304 = vadd.f32 %v1223, %v1303
  %1305 = vmatprep.mubr.f32.mxu0 0.0
  %v1306 = vand.u32 %v261, 4294901760
  %1307 = vmatmul.mubr.f32.gmra.mxu0 %v1306
  %v1308 = vpop.f32.mrf.mxu0
  %v1309 = vadd.f32 %v1228, %v1308
  %v1310 = vpop.f32.mrf.mxu0
  %v1311 = vadd.f32 %v1230, %v1310
  %1312 = vdwg.mxu0
  %1313 = vmatprep.subr.mxu0 0.0
  %1314 = vmatpush1.msra.mxu0 0.0
  %1315 = vmatprep.subr.mxu0 0.0
  %1316 = vmatpush1.msra.mxu0 0.0
  %1317 = vmatprep.subr.mxu0 0.0
  %1318 = vmatpush1.msra.mxu0 0.0
  %1319 = vmatprep.subr.mxu0 0.0
  %1320 = vmatpush1.msra.mxu0 0.0
  %1321 = vmatprep.subr.mxu0 0.0
  %1322 = vmatpush1.msra.mxu0 0.0
  %1323 = vmatprep.subr.mxu0 0.0
  %1324 = vmatpush1.msra.mxu0 0.0
  %1325 = vmatprep.subr.mxu0 0.0
  %1326 = vmatpush1.msra.mxu0 0.0
  %1327 = vmatprep.subr.mxu0 0.0
  %1328 = vmatpush1.msra.mxu0 0.0
  %1329 = vmatprep.subr.mxu0 0.0
  %1330 = vmatpush1.msra.mxu0 0.0
  %1331 = vmatprep.subr.mxu0 0.0
  %1332 = vmatpush1.msra.mxu0 0.0
  %1333 = vmatprep.subr.mxu0 0.0
  %1334 = vmatpush1.msra.mxu0 0.0
  %1335 = vmatprep.subr.mxu0 0.0
  %1336 = vmatpush1.msra.mxu0 0.0
  %1337 = vmatprep.subr.mxu0 0.0
  %1338 = vmatpush1.msra.mxu0 0.0
  %1339 = vmatprep.subr.mxu0 0.0
  %1340 = vmatpush1.msra.mxu0 0.0
  %1341 = vmatprep.subr.mxu0 0.0
  %1342 = vmatpush1.msra.mxu0 0.0
  %v1343 = vand.u32 %v280, 4294901760
  %1344 = vmatprep.subr.mxu0 %v1343
  %v1345 = vand.u32 %v277, 4294901760
  %1346 = vmatpush1.msra.mxu0 %v1345
  %1347 = vmatprep.subr.mxu0 0.0
  %1348 = vmatpush2.msra.mxu0 0.0
  %1349 = vmatprep.subr.mxu0 0.0
  %1350 = vmatpush2.msra.mxu0 0.0
  %1351 = vmatprep.subr.mxu0 0.0
  %1352 = vmatpush2.msra.mxu0 0.0
  %1353 = vmatprep.subr.mxu0 0.0
  %1354 = vmatpush2.msra.mxu0 0.0
  %1355 = vmatprep.subr.mxu0 0.0
  %1356 = vmatpush2.msra.mxu0 0.0
  %1357 = vmatprep.subr.mxu0 0.0
  %1358 = vmatpush2.msra.mxu0 0.0
  %1359 = vmatprep.subr.mxu0 0.0
  %1360 = vmatpush2.msra.mxu0 0.0
  %1361 = vmatprep.subr.mxu0 0.0
  %1362 = vmatpush2.msra.mxu0 0.0
  %1363 = vmatprep.subr.mxu0 0.0
  %1364 = vmatpush2.msra.mxu0 0.0
  %1365 = vmatprep.subr.mxu0 0.0
  %1366 = vmatpush2.msra.mxu0 0.0
  %1367 = vmatprep.subr.mxu0 0.0
  %1368 = vmatpush2.msra.mxu0 0.0
  %1369 = vmatprep.subr.mxu0 0.0
  %1370 = vmatpush2.msra.mxu0 0.0
  %1371 = vmatprep.subr.mxu0 0.0
  %1372 = vmatpush2.msra.mxu0 0.0
  %1373 = vmatprep.subr.mxu0 0.0
  %1374 = vmatpush2.msra.mxu0 0.0
  %1375 = vmatprep.subr.mxu0 0.0
  %1376 = vmatpush2.msra.mxu0 0.0
  %1377 = vmatprep.subr.mxu0 0.0
  %1378 = vmatpush2.msra.mxu0 0.0
  %1379 = vmatprep.mubr.f32.mxu0 0.0
  %v1380 = vand.u32 %v258, 4294901760
  %v1381 = vsub.f32 %v258, %v1380
  %v1382 = vand.u32 %v1381, 4294901760
  %v1383 = vsub.f32 %v1381, %v1382
  %v1384 = vand.u32 %v1383, 4294901760
  %1385 = vmatmul.mubr.f32.gmra.mxu0 %v1384
  %v1386 = vpop.f32.mrf.mxu0
  %v1387 = vadd.f32 %v249, %v1386
  %v1388 = vpop.f32.mrf.mxu0
  %v1389 = vadd.f32 %v249, %v1388
  %1390 = vmatprep.mubr.f32.mxu0 0.0
  %v1391 = vand.u32 %v261, 4294901760
  %v1392 = vsub.f32 %v261, %v1391
  %v1393 = vand.u32 %v1392, 4294901760
  %v1394 = vsub.f32 %v1392, %v1393
  %v1395 = vand.u32 %v1394, 4294901760
  %1396 = vmatmul.mubr.f32.gmra.mxu0 %v1395
  %v1397 = vpop.f32.mrf.mxu0
  %v1398 = vadd.f32 %v254, %v1397
  %v1399 = vpop.f32.mrf.mxu0
  %v1400 = vadd.f32 %v254, %v1399
  %1401 = vdwg.mxu0
  %1402 = vmatprep.subr.mxu0 0.0
  %1403 = vmatpush1.msra.mxu0 0.0
  %1404 = vmatprep.subr.mxu0 0.0
  %1405 = vmatpush1.msra.mxu0 0.0
  %1406 = vmatprep.subr.mxu0 0.0
  %1407 = vmatpush1.msra.mxu0 0.0
  %1408 = vmatprep.subr.mxu0 0.0
  %1409 = vmatpush1.msra.mxu0 0.0
  %1410 = vmatprep.subr.mxu0 0.0
  %1411 = vmatpush1.msra.mxu0 0.0
  %1412 = vmatprep.subr.mxu0 0.0
  %1413 = vmatpush1.msra.mxu0 0.0
  %1414 = vmatprep.subr.mxu0 0.0
  %1415 = vmatpush1.msra.mxu0 0.0
  %1416 = vmatprep.subr.mxu0 0.0
  %1417 = vmatpush1.msra.mxu0 0.0
  %1418 = vmatprep.subr.mxu0 0.0
  %1419 = vmatpush1.msra.mxu0 0.0
  %1420 = vmatprep.subr.mxu0 0.0
  %1421 = vmatpush1.msra.mxu0 0.0
  %1422 = vmatprep.subr.mxu0 0.0
  %1423 = vmatpush1.msra.mxu0 0.0
  %1424 = vmatprep.subr.mxu0 0.0
  %1425 = vmatpush1.msra.mxu0 0.0
  %1426 = vmatprep.subr.mxu0 0.0
  %1427 = vmatpush1.msra.mxu0 0.0
  %1428 = vmatprep.subr.mxu0 0.0
  %1429 = vmatpush1.msra.mxu0 0.0
  %1430 = vmatprep.subr.mxu0 0.0
  %1431 = vmatpush1.msra.mxu0 0.0
  %v1432 = vand.u32 %v280, 4294901760
  %v1433 = vsub.f32 %v280, %v1432
  %v1434 = vand.u32 %v1433, 4294901760
  %v1435 = vsub.f32 %v1433, %v1434
  %v1436 = vand.u32 %v1435, 4294901760
  %1437 = vmatprep.subr.mxu0 %v1436
  %v1438 = vand.u32 %v277, 4294901760
  %v1439 = vsub.f32 %v277, %v1438
  %v1440 = vand.u32 %v1439, 4294901760
  %v1441 = vsub.f32 %v1439, %v1440
  %v1442 = vand.u32 %v1441, 4294901760
  %1443 = vmatpush1.msra.mxu0 %v1442
  %1444 = vmatprep.subr.mxu0 0.0
  %1445 = vmatpush2.msra.mxu0 0.0
  %1446 = vmatprep.subr.mxu0 0.0
  %1447 = vmatpush2.msra.mxu0 0.0
  %1448 = vmatprep.subr.mxu0 0.0
  %1449 = vmatpush2.msra.mxu0 0.0
  %1450 = vmatprep.subr.mxu0 0.0
  %1451 = vmatpush2.msra.mxu0 0.0
  %1452 = vmatprep.subr.mxu0 0.0
  %1453 = vmatpush2.msra.mxu0 0.0
  %1454 = vmatprep.subr.mxu0 0.0
  %1455 = vmatpush2.msra.mxu0 0.0
  %1456 = vmatprep.subr.mxu0 0.0
  %1457 = vmatpush2.msra.mxu0 0.0
  %1458 = vmatprep.subr.mxu0 0.0
  %1459 = vmatpush2.msra.mxu0 0.0
  %1460 = vmatprep.subr.mxu0 0.0
  %1461 = vmatpush2.msra.mxu0 0.0
  %1462 = vmatprep.subr.mxu0 0.0
  %1463 = vmatpush2.msra.mxu0 0.0
  %1464 = vmatprep.subr.mxu0 0.0
  %1465 = vmatpush2.msra.mxu0 0.0
  %1466 = vmatprep.subr.mxu0 0.0
  %1467 = vmatpush2.msra.mxu0 0.0
  %1468 = vmatprep.subr.mxu0 0.0
  %1469 = vmatpush2.msra.mxu0 0.0
  %1470 = vmatprep.subr.mxu0 0.0
  %1471 = vmatpush2.msra.mxu0 0.0
  %1472 = vmatprep.subr.mxu0 0.0
  %1473 = vmatpush2.msra.mxu0 0.0
  %1474 = vmatprep.subr.mxu0 0.0
  %1475 = vmatpush2.msra.mxu0 0.0
  %1476 = vmatprep.mubr.f32.mxu0 0.0
  %v1477 = vand.u32 %v258, 4294901760
  %1478 = vmatmul.mubr.f32.gmra.mxu0 %v1477
  %v1479 = vpop.f32.mrf.mxu0
  %v1480 = vadd.f32 %v1387, %v1479
  %v1481 = vpop.f32.mrf.mxu0
  %v1482 = vadd.f32 %v1389, %v1481
  %1483 = vmatprep.mubr.f32.mxu0 0.0
  %v1484 = vand.u32 %v261, 4294901760
  %1485 = vmatmul.mubr.f32.gmra.mxu0 %v1484
  %v1486 = vpop.f32.mrf.mxu0
  %v1487 = vadd.f32 %v1398, %v1486
  %v1488 = vpop.f32.mrf.mxu0
  %v1489 = vadd.f32 %v1400, %v1488
  %1490 = vdwg.mxu0
  %1491 = vmatprep.subr.mxu0 0.0
  %1492 = vmatpush1.msra.mxu0 0.0
  %1493 = vmatprep.subr.mxu0 0.0
  %1494 = vmatpush1.msra.mxu0 0.0
  %1495 = vmatprep.subr.mxu0 0.0
  %1496 = vmatpush1.msra.mxu0 0.0
  %1497 = vmatprep.subr.mxu0 0.0
  %1498 = vmatpush1.msra.mxu0 0.0
  %1499 = vmatprep.subr.mxu0 0.0
  %1500 = vmatpush1.msra.mxu0 0.0
  %1501 = vmatprep.subr.mxu0 0.0
  %1502 = vmatpush1.msra.mxu0 0.0
  %1503 = vmatprep.subr.mxu0 0.0
  %1504 = vmatpush1.msra.mxu0 0.0
  %1505 = vmatprep.subr.mxu0 0.0
  %1506 = vmatpush1.msra.mxu0 0.0
  %1507 = vmatprep.subr.mxu0 0.0
  %1508 = vmatpush1.msra.mxu0 0.0
  %1509 = vmatprep.subr.mxu0 0.0
  %1510 = vmatpush1.msra.mxu0 0.0
  %1511 = vmatprep.subr.mxu0 0.0
  %1512 = vmatpush1.msra.mxu0 0.0
  %1513 = vmatprep.subr.mxu0 0.0
  %1514 = vmatpush1.msra.mxu0 0.0
  %1515 = vmatprep.subr.mxu0 0.0
  %1516 = vmatpush1.msra.mxu0 0.0
  %1517 = vmatprep.subr.mxu0 0.0
  %1518 = vmatpush1.msra.mxu0 0.0
  %1519 = vmatprep.subr.mxu0 0.0
  %1520 = vmatpush1.msra.mxu0 0.0
  %v1521 = vand.u32 %v280, 4294901760
  %v1522 = vsub.f32 %v280, %v1521
  %1523 = vmatprep.subr.mxu0 %v1522
  %v1524 = vand.u32 %v277, 4294901760
  %v1525 = vsub.f32 %v277, %v1524
  %1526 = vmatpush1.msra.mxu0 %v1525
  %1527 = vmatprep.subr.mxu0 0.0
  %1528 = vmatpush2.msra.mxu0 0.0
  %1529 = vmatprep.subr.mxu0 0.0
  %1530 = vmatpush2.msra.mxu0 0.0
  %1531 = vmatprep.subr.mxu0 0.0
  %1532 = vmatpush2.msra.mxu0 0.0
  %1533 = vmatprep.subr.mxu0 0.0
  %1534 = vmatpush2.msra.mxu0 0.0
  %1535 = vmatprep.subr.mxu0 0.0
  %1536 = vmatpush2.msra.mxu0 0.0
  %1537 = vmatprep.subr.mxu0 0.0
  %1538 = vmatpush2.msra.mxu0 0.0
  %1539 = vmatprep.subr.mxu0 0.0
  %1540 = vmatpush2.msra.mxu0 0.0
  %1541 = vmatprep.subr.mxu0 0.0
  %1542 = vmatpush2.msra.mxu0 0.0
  %1543 = vmatprep.subr.mxu0 0.0
  %1544 = vmatpush2.msra.mxu0 0.0
  %1545 = vmatprep.subr.mxu0 0.0
  %1546 = vmatpush2.msra.mxu0 0.0
  %1547 = vmatprep.subr.mxu0 0.0
  %1548 = vmatpush2.msra.mxu0 0.0
  %1549 = vmatprep.subr.mxu0 0.0
  %1550 = vmatpush2.msra.mxu0 0.0
  %1551 = vmatprep.subr.mxu0 0.0
  %1552 = vmatpush2.msra.mxu0 0.0
  %1553 = vmatprep.subr.mxu0 0.0
  %1554 = vmatpush2.msra.mxu0 0.0
  %1555 = vmatprep.subr.mxu0 0.0
  %1556 = vmatpush2.msra.mxu0 0.0
  %1557 = vmatprep.subr.mxu0 0.0
  %1558 = vmatpush2.msra.mxu0 0.0
  %1559 = vmatprep.mubr.f32.mxu0 0.0
  %v1560 = vand.u32 %v258, 4294901760
  %v1561 = vsub.f32 %v258, %v1560
  %1562 = vmatmul.mubr.f32.gmra.mxu0 %v1561
  %v1563 = vpop.f32.mrf.mxu0
  %v1564 = vadd.f32 %v1480, %v1563
  %v1565 = vpop.f32.mrf.mxu0
  %v1566 = vadd.f32 %v1482, %v1565
  %1567 = vmatprep.mubr.f32.mxu0 0.0
  %v1568 = vand.u32 %v261, 4294901760
  %v1569 = vsub.f32 %v261, %v1568
  %1570 = vmatmul.mubr.f32.gmra.mxu0 %v1569
  %v1571 = vpop.f32.mrf.mxu0
  %v1572 = vadd.f32 %v1487, %v1571
  %v1573 = vpop.f32.mrf.mxu0
  %v1574 = vadd.f32 %v1489, %v1573
  %1575 = vdwg.mxu0
  %1576 = vmatprep.subr.mxu0 0.0
  %1577 = vmatpush1.msra.mxu0 0.0
  %1578 = vmatprep.subr.mxu0 0.0
  %1579 = vmatpush1.msra.mxu0 0.0
  %1580 = vmatprep.subr.mxu0 0.0
  %1581 = vmatpush1.msra.mxu0 0.0
  %1582 = vmatprep.subr.mxu0 0.0
  %1583 = vmatpush1.msra.mxu0 0.0
  %1584 = vmatprep.subr.mxu0 0.0
  %1585 = vmatpush1.msra.mxu0 0.0
  %1586 = vmatprep.subr.mxu0 0.0
  %1587 = vmatpush1.msra.mxu0 0.0
  %1588 = vmatprep.subr.mxu0 0.0
  %1589 = vmatpush1.msra.mxu0 0.0
  %1590 = vmatprep.subr.mxu0 0.0
  %1591 = vmatpush1.msra.mxu0 0.0
  %1592 = vmatprep.subr.mxu0 0.0
  %1593 = vmatpush1.msra.mxu0 0.0
  %1594 = vmatprep.subr.mxu0 0.0
  %1595 = vmatpush1.msra.mxu0 0.0
  %1596 = vmatprep.subr.mxu0 0.0
  %1597 = vmatpush1.msra.mxu0 0.0
  %1598 = vmatprep.subr.mxu0 0.0
  %1599 = vmatpush1.msra.mxu0 0.0
  %1600 = vmatprep.subr.mxu0 0.0
  %1601 = vmatpush1.msra.mxu0 0.0
  %1602 = vmatprep.subr.mxu0 0.0
  %1603 = vmatpush1.msra.mxu0 0.0
  %1604 = vmatprep.subr.mxu0 0.0
  %1605 = vmatpush1.msra.mxu0 0.0
  %v1606 = vand.u32 %v280, 4294901760
  %1607 = vmatprep.subr.mxu0 %v1606
  %v1608 = vand.u32 %v277, 4294901760
  %1609 = vmatpush1.msra.mxu0 %v1608
  %1610 = vmatprep.subr.mxu0 0.0
  %1611 = vmatpush2.msra.mxu0 0.0
  %1612 = vmatprep.subr.mxu0 0.0
  %1613 = vmatpush2.msra.mxu0 0.0
  %1614 = vmatprep.subr.mxu0 0.0
  %1615 = vmatpush2.msra.mxu0 0.0
  %1616 = vmatprep.subr.mxu0 0.0
  %1617 = vmatpush2.msra.mxu0 0.0
  %1618 = vmatprep.subr.mxu0 0.0
  %1619 = vmatpush2.msra.mxu0 0.0
  %1620 = vmatprep.subr.mxu0 0.0
  %1621 = vmatpush2.msra.mxu0 0.0
  %1622 = vmatprep.subr.mxu0 0.0
  %1623 = vmatpush2.msra.mxu0 0.0
  %1624 = vmatprep.subr.mxu0 0.0
  %1625 = vmatpush2.msra.mxu0 0.0
  %1626 = vmatprep.subr.mxu0 0.0
  %1627 = vmatpush2.msra.mxu0 0.0
  %1628 = vmatprep.subr.mxu0 0.0
  %1629 = vmatpush2.msra.mxu0 0.0
  %1630 = vmatprep.subr.mxu0 0.0
  %1631 = vmatpush2.msra.mxu0 0.0
  %1632 = vmatprep.subr.mxu0 0.0
  %1633 = vmatpush2.msra.mxu0 0.0
  %1634 = vmatprep.subr.mxu0 0.0
  %1635 = vmatpush2.msra.mxu0 0.0
  %1636 = vmatprep.subr.mxu0 0.0
  %1637 = vmatpush2.msra.mxu0 0.0
  %1638 = vmatprep.subr.mxu0 0.0
  %1639 = vmatpush2.msra.mxu0 0.0
  %1640 = vmatprep.subr.mxu0 0.0
  %1641 = vmatpush2.msra.mxu0 0.0
  %1642 = vmatprep.mubr.f32.mxu0 0.0
  %v1643 = vand.u32 %v258, 4294901760
  %v1644 = vsub.f32 %v258, %v1643
  %v1645 = vand.u32 %v1644, 4294901760
  %1646 = vmatmul.mubr.f32.gmra.mxu0 %v1645
  %v1647 = vpop.f32.mrf.mxu0
  %v1648 = vadd.f32 %v1564, %v1647
  %v1649 = vpop.f32.mrf.mxu0
  %v1650 = vadd.f32 %v1566, %v1649
  %1651 = vmatprep.mubr.f32.mxu0 0.0
  %v1652 = vand.u32 %v261, 4294901760
  %v1653 = vsub.f32 %v261, %v1652
  %v1654 = vand.u32 %v1653, 4294901760
  %1655 = vmatmul.mubr.f32.gmra.mxu0 %v1654
  %v1656 = vpop.f32.mrf.mxu0
  %v1657 = vadd.f32 %v1572, %v1656
  %v1658 = vpop.f32.mrf.mxu0
  %v1659 = vadd.f32 %v1574, %v1658
  %1660 = vdwg.mxu0
  %1661 = vmatprep.subr.mxu0 0.0
  %1662 = vmatpush1.msra.mxu0 0.0
  %1663 = vmatprep.subr.mxu0 0.0
  %1664 = vmatpush1.msra.mxu0 0.0
  %1665 = vmatprep.subr.mxu0 0.0
  %1666 = vmatpush1.msra.mxu0 0.0
  %1667 = vmatprep.subr.mxu0 0.0
  %1668 = vmatpush1.msra.mxu0 0.0
  %1669 = vmatprep.subr.mxu0 0.0
  %1670 = vmatpush1.msra.mxu0 0.0
  %1671 = vmatprep.subr.mxu0 0.0
  %1672 = vmatpush1.msra.mxu0 0.0
  %1673 = vmatprep.subr.mxu0 0.0
  %1674 = vmatpush1.msra.mxu0 0.0
  %1675 = vmatprep.subr.mxu0 0.0
  %1676 = vmatpush1.msra.mxu0 0.0
  %1677 = vmatprep.subr.mxu0 0.0
  %1678 = vmatpush1.msra.mxu0 0.0
  %1679 = vmatprep.subr.mxu0 0.0
  %1680 = vmatpush1.msra.mxu0 0.0
  %1681 = vmatprep.subr.mxu0 0.0
  %1682 = vmatpush1.msra.mxu0 0.0
  %1683 = vmatprep.subr.mxu0 0.0
  %1684 = vmatpush1.msra.mxu0 0.0
  %1685 = vmatprep.subr.mxu0 0.0
  %1686 = vmatpush1.msra.mxu0 0.0
  %1687 = vmatprep.subr.mxu0 0.0
  %1688 = vmatpush1.msra.mxu0 0.0
  %1689 = vmatprep.subr.mxu0 0.0
  %1690 = vmatpush1.msra.mxu0 0.0
  %v1691 = vand.u32 %v280, 4294901760
  %v1692 = vsub.f32 %v280, %v1691
  %v1693 = vand.u32 %v1692, 4294901760
  %1694 = vmatprep.subr.mxu0 %v1693
  %v1695 = vand.u32 %v277, 4294901760
  %v1696 = vsub.f32 %v277, %v1695
  %v1697 = vand.u32 %v1696, 4294901760
  %1698 = vmatpush1.msra.mxu0 %v1697
  %1699 = vmatprep.subr.mxu0 0.0
  %1700 = vmatpush2.msra.mxu0 0.0
  %1701 = vmatprep.subr.mxu0 0.0
  %1702 = vmatpush2.msra.mxu0 0.0
  %1703 = vmatprep.subr.mxu0 0.0
  %1704 = vmatpush2.msra.mxu0 0.0
  %1705 = vmatprep.subr.mxu0 0.0
  %1706 = vmatpush2.msra.mxu0 0.0
  %1707 = vmatprep.subr.mxu0 0.0
  %1708 = vmatpush2.msra.mxu0 0.0
  %1709 = vmatprep.subr.mxu0 0.0
  %1710 = vmatpush2.msra.mxu0 0.0
  %1711 = vmatprep.subr.mxu0 0.0
  %1712 = vmatpush2.msra.mxu0 0.0
  %1713 = vmatprep.subr.mxu0 0.0
  %1714 = vmatpush2.msra.mxu0 0.0
  %1715 = vmatprep.subr.mxu0 0.0
  %1716 = vmatpush2.msra.mxu0 0.0
  %1717 = vmatprep.subr.mxu0 0.0
  %1718 = vmatpush2.msra.mxu0 0.0
  %1719 = vmatprep.subr.mxu0 0.0
  %1720 = vmatpush2.msra.mxu0 0.0
  %1721 = vmatprep.subr.mxu0 0.0
  %1722 = vmatpush2.msra.mxu0 0.0
  %1723 = vmatprep.subr.mxu0 0.0
  %1724 = vmatpush2.msra.mxu0 0.0
  %1725 = vmatprep.subr.mxu0 0.0
  %1726 = vmatpush2.msra.mxu0 0.0
  %1727 = vmatprep.subr.mxu0 0.0
  %1728 = vmatpush2.msra.mxu0 0.0
  %1729 = vmatprep.subr.mxu0 0.0
  %1730 = vmatpush2.msra.mxu0 0.0
  %1731 = vmatprep.mubr.f32.mxu0 0.0
  %v1732 = vand.u32 %v258, 4294901760
  %1733 = vmatmul.mubr.f32.gmra.mxu0 %v1732
  %v1734 = vpop.f32.mrf.mxu0
  %v1735 = vadd.f32 %v1648, %v1734
  %v1736 = vpop.f32.mrf.mxu0
  %v1737 = vadd.f32 %v1650, %v1736
  %1738 = vmatprep.mubr.f32.mxu0 0.0
  %v1739 = vand.u32 %v261, 4294901760
  %1740 = vmatmul.mubr.f32.gmra.mxu0 %v1739
  %v1741 = vpop.f32.mrf.mxu0
  %v1742 = vadd.f32 %v1657, %v1741
  %v1743 = vpop.f32.mrf.mxu0
  %v1744 = vadd.f32 %v1659, %v1743
  %1745 = vdwg.mxu0
  %1746 = vmatprep.subr.mxu0 0.0
  %1747 = vmatpush1.msra.mxu0 0.0
  %1748 = vmatprep.subr.mxu0 0.0
  %1749 = vmatpush1.msra.mxu0 0.0
  %1750 = vmatprep.subr.mxu0 0.0
  %1751 = vmatpush1.msra.mxu0 0.0
  %1752 = vmatprep.subr.mxu0 0.0
  %1753 = vmatpush1.msra.mxu0 0.0
  %1754 = vmatprep.subr.mxu0 0.0
  %1755 = vmatpush1.msra.mxu0 0.0
  %1756 = vmatprep.subr.mxu0 0.0
  %1757 = vmatpush1.msra.mxu0 0.0
  %1758 = vmatprep.subr.mxu0 0.0
  %1759 = vmatpush1.msra.mxu0 0.0
  %1760 = vmatprep.subr.mxu0 0.0
  %1761 = vmatpush1.msra.mxu0 0.0
  %1762 = vmatprep.subr.mxu0 0.0
  %1763 = vmatpush1.msra.mxu0 0.0
  %1764 = vmatprep.subr.mxu0 0.0
  %1765 = vmatpush1.msra.mxu0 0.0
  %1766 = vmatprep.subr.mxu0 0.0
  %1767 = vmatpush1.msra.mxu0 0.0
  %1768 = vmatprep.subr.mxu0 0.0
  %1769 = vmatpush1.msra.mxu0 0.0
  %1770 = vmatprep.subr.mxu0 0.0
  %1771 = vmatpush1.msra.mxu0 0.0
  %1772 = vmatprep.subr.mxu0 0.0
  %1773 = vmatpush1.msra.mxu0 0.0
  %1774 = vmatprep.subr.mxu0 0.0
  %1775 = vmatpush1.msra.mxu0 0.0
  %v1776 = vand.u32 %v280, 4294901760
  %1777 = vmatprep.subr.mxu0 %v1776
  %v1778 = vand.u32 %v277, 4294901760
  %1779 = vmatpush1.msra.mxu0 %v1778
  %1780 = vmatprep.subr.mxu0 0.0
  %1781 = vmatpush2.msra.mxu0 0.0
  %1782 = vmatprep.subr.mxu0 0.0
  %1783 = vmatpush2.msra.mxu0 0.0
  %1784 = vmatprep.subr.mxu0 0.0
  %1785 = vmatpush2.msra.mxu0 0.0
  %1786 = vmatprep.subr.mxu0 0.0
  %1787 = vmatpush2.msra.mxu0 0.0
  %1788 = vmatprep.subr.mxu0 0.0
  %1789 = vmatpush2.msra.mxu0 0.0
  %1790 = vmatprep.subr.mxu0 0.0
  %1791 = vmatpush2.msra.mxu0 0.0
  %1792 = vmatprep.subr.mxu0 0.0
  %1793 = vmatpush2.msra.mxu0 0.0
  %1794 = vmatprep.subr.mxu0 0.0
  %1795 = vmatpush2.msra.mxu0 0.0
  %1796 = vmatprep.subr.mxu0 0.0
  %1797 = vmatpush2.msra.mxu0 0.0
  %1798 = vmatprep.subr.mxu0 0.0
  %1799 = vmatpush2.msra.mxu0 0.0
  %1800 = vmatprep.subr.mxu0 0.0
  %1801 = vmatpush2.msra.mxu0 0.0
  %1802 = vmatprep.subr.mxu0 0.0
  %1803 = vmatpush2.msra.mxu0 0.0
  %1804 = vmatprep.subr.mxu0 0.0
  %1805 = vmatpush2.msra.mxu0 0.0
  %1806 = vmatprep.subr.mxu0 0.0
  %1807 = vmatpush2.msra.mxu0 0.0
  %1808 = vmatprep.subr.mxu0 0.0
  %1809 = vmatpush2.msra.mxu0 0.0
  %1810 = vmatprep.subr.mxu0 0.0
  %1811 = vmatpush2.msra.mxu0 0.0
  %1812 = vmatprep.mubr.f32.mxu0 0.0
  %v1813 = vand.u32 %v258, 4294901760
  %1814 = vmatmul.mubr.f32.gmra.mxu0 %v1813
  %v1815 = vpop.f32.mrf.mxu0
  %v1816 = vadd.f32 %v1735, %v1815
  %v1817 = vpop.f32.mrf.mxu0
  %v1818 = vadd.f32 %v1737, %v1817
  %1819 = vmatprep.mubr.f32.mxu0 0.0
  %v1820 = vand.u32 %v261, 4294901760
  %1821 = vmatmul.mubr.f32.gmra.mxu0 %v1820
  %v1822 = vpop.f32.mrf.mxu0
  %v1823 = vadd.f32 %v1742, %v1822
  %v1824 = vpop.f32.mrf.mxu0
  %v1825 = vadd.f32 %v1744, %v1824
  %1826 = vdwg.mxu0
  %1827 = vmatprep.subr.mxu0 0.0
  %1828 = vmatpush1.msra.mxu0 0.0
  %1829 = vmatprep.subr.mxu0 0.0
  %1830 = vmatpush1.msra.mxu0 0.0
  %1831 = vmatprep.subr.mxu0 0.0
  %1832 = vmatpush1.msra.mxu0 0.0
  %1833 = vmatprep.subr.mxu0 0.0
  %1834 = vmatpush1.msra.mxu0 0.0
  %1835 = vmatprep.subr.mxu0 0.0
  %1836 = vmatpush1.msra.mxu0 0.0
  %1837 = vmatprep.subr.mxu0 0.0
  %1838 = vmatpush1.msra.mxu0 0.0
  %1839 = vmatprep.subr.mxu0 0.0
  %1840 = vmatpush1.msra.mxu0 0.0
  %1841 = vmatprep.subr.mxu0 0.0
  %1842 = vmatpush1.msra.mxu0 0.0
  %1843 = vmatprep.subr.mxu0 0.0
  %1844 = vmatpush1.msra.mxu0 0.0
  %1845 = vmatprep.subr.mxu0 0.0
  %1846 = vmatpush1.msra.mxu0 0.0
  %1847 = vmatprep.subr.mxu0 0.0
  %1848 = vmatpush1.msra.mxu0 0.0
  %1849 = vmatprep.subr.mxu0 0.0
  %1850 = vmatpush1.msra.mxu0 0.0
  %1851 = vmatprep.subr.mxu0 0.0
  %1852 = vmatpush1.msra.mxu0 0.0
  %1853 = vmatprep.subr.mxu0 0.0
  %1854 = vmatpush1.msra.mxu0 0.0
  %1855 = vmatprep.subr.mxu0 0.0
  %1856 = vmatpush1.msra.mxu0 0.0
  %1857 = vmatprep.subr.mxu0 0.0
  %v1858 = vand.u32 %v283, 4294901760
  %1859 = vmatpush1.msra.mxu0 %v1858
  %1860 = vmatprep.subr.mxu0 0.0
  %1861 = vmatpush2.msra.mxu0 0.0
  %1862 = vmatprep.subr.mxu0 0.0
  %1863 = vmatpush2.msra.mxu0 0.0
  %1864 = vmatprep.subr.mxu0 0.0
  %1865 = vmatpush2.msra.mxu0 0.0
  %1866 = vmatprep.subr.mxu0 0.0
  %1867 = vmatpush2.msra.mxu0 0.0
  %1868 = vmatprep.subr.mxu0 0.0
  %1869 = vmatpush2.msra.mxu0 0.0
  %1870 = vmatprep.subr.mxu0 0.0
  %1871 = vmatpush2.msra.mxu0 0.0
  %1872 = vmatprep.subr.mxu0 0.0
  %1873 = vmatpush2.msra.mxu0 0.0
  %1874 = vmatprep.subr.mxu0 0.0
  %1875 = vmatpush2.msra.mxu0 0.0
  %1876 = vmatprep.subr.mxu0 0.0
  %1877 = vmatpush2.msra.mxu0 0.0
  %1878 = vmatprep.subr.mxu0 0.0
  %1879 = vmatpush2.msra.mxu0 0.0
  %1880 = vmatprep.subr.mxu0 0.0
  %1881 = vmatpush2.msra.mxu0 0.0
  %1882 = vmatprep.subr.mxu0 0.0
  %1883 = vmatpush2.msra.mxu0 0.0
  %1884 = vmatprep.subr.mxu0 0.0
  %1885 = vmatpush2.msra.mxu0 0.0
  %1886 = vmatprep.subr.mxu0 0.0
  %1887 = vmatpush2.msra.mxu0 0.0
  %1888 = vmatprep.subr.mxu0 0.0
  %1889 = vmatpush2.msra.mxu0 0.0
  %1890 = vmatprep.subr.mxu0 0.0
  %1891 = vmatpush2.msra.mxu0 0.0
  %1892 = vmatprep.mubr.f32.mxu0 0.0
  %v1893 = vand.u32 %v258, 4294901760
  %v1894 = vsub.f32 %v258, %v1893
  %v1895 = vand.u32 %v1894, 4294901760
  %v1896 = vsub.f32 %v1894, %v1895
  %v1897 = vand.u32 %v1896, 4294901760
  %1898 = vmatmul.mubr.f32.gmra.mxu0 %v1897
  %v1899 = vpop.f32.mrf.mxu0
  %v1900 = vadd.f32 %v249, %v1899
  %v1901 = vpop.f32.mrf.mxu0
  %1902 = vmatprep.mubr.f32.mxu0 0.0
  %v1903 = vand.u32 %v261, 4294901760
  %v1904 = vsub.f32 %v261, %v1903
  %v1905 = vand.u32 %v1904, 4294901760
  %v1906 = vsub.f32 %v1904, %v1905
  %v1907 = vand.u32 %v1906, 4294901760
  %1908 = vmatmul.mubr.f32.gmra.mxu0 %v1907
  %v1909 = vpop.f32.mrf.mxu0
  %v1910 = vadd.f32 %v254, %v1909
  %v1911 = vpop.f32.mrf.mxu0
  %1912 = vdwg.mxu0
  %1913 = vmatprep.subr.mxu0 0.0
  %1914 = vmatpush1.msra.mxu0 0.0
  %1915 = vmatprep.subr.mxu0 0.0
  %1916 = vmatpush1.msra.mxu0 0.0
  %1917 = vmatprep.subr.mxu0 0.0
  %1918 = vmatpush1.msra.mxu0 0.0
  %1919 = vmatprep.subr.mxu0 0.0
  %1920 = vmatpush1.msra.mxu0 0.0
  %1921 = vmatprep.subr.mxu0 0.0
  %1922 = vmatpush1.msra.mxu0 0.0
  %1923 = vmatprep.subr.mxu0 0.0
  %1924 = vmatpush1.msra.mxu0 0.0
  %1925 = vmatprep.subr.mxu0 0.0
  %1926 = vmatpush1.msra.mxu0 0.0
  %1927 = vmatprep.subr.mxu0 0.0
  %1928 = vmatpush1.msra.mxu0 0.0
  %1929 = vmatprep.subr.mxu0 0.0
  %1930 = vmatpush1.msra.mxu0 0.0
  %1931 = vmatprep.subr.mxu0 0.0
  %1932 = vmatpush1.msra.mxu0 0.0
  %1933 = vmatprep.subr.mxu0 0.0
  %1934 = vmatpush1.msra.mxu0 0.0
  %1935 = vmatprep.subr.mxu0 0.0
  %1936 = vmatpush1.msra.mxu0 0.0
  %1937 = vmatprep.subr.mxu0 0.0
  %1938 = vmatpush1.msra.mxu0 0.0
  %1939 = vmatprep.subr.mxu0 0.0
  %1940 = vmatpush1.msra.mxu0 0.0
  %1941 = vmatprep.subr.mxu0 0.0
  %1942 = vmatpush1.msra.mxu0 0.0
  %1943 = vmatprep.subr.mxu0 0.0
  %v1944 = vand.u32 %v283, 4294901760
  %v1945 = vsub.f32 %v283, %v1944
  %v1946 = vand.u32 %v1945, 4294901760
  %v1947 = vsub.f32 %v1945, %v1946
  %v1948 = vand.u32 %v1947, 4294901760
  %1949 = vmatpush1.msra.mxu0 %v1948
  %1950 = vmatprep.subr.mxu0 0.0
  %1951 = vmatpush2.msra.mxu0 0.0
  %1952 = vmatprep.subr.mxu0 0.0
  %1953 = vmatpush2.msra.mxu0 0.0
  %1954 = vmatprep.subr.mxu0 0.0
  %1955 = vmatpush2.msra.mxu0 0.0
  %1956 = vmatprep.subr.mxu0 0.0
  %1957 = vmatpush2.msra.mxu0 0.0
  %1958 = vmatprep.subr.mxu0 0.0
  %1959 = vmatpush2.msra.mxu0 0.0
  %1960 = vmatprep.subr.mxu0 0.0
  %1961 = vmatpush2.msra.mxu0 0.0
  %1962 = vmatprep.subr.mxu0 0.0
  %1963 = vmatpush2.msra.mxu0 0.0
  %1964 = vmatprep.subr.mxu0 0.0
  %1965 = vmatpush2.msra.mxu0 0.0
  %1966 = vmatprep.subr.mxu0 0.0
  %1967 = vmatpush2.msra.mxu0 0.0
  %1968 = vmatprep.subr.mxu0 0.0
  %1969 = vmatpush2.msra.mxu0 0.0
  %1970 = vmatprep.subr.mxu0 0.0
  %1971 = vmatpush2.msra.mxu0 0.0
  %1972 = vmatprep.subr.mxu0 0.0
  %1973 = vmatpush2.msra.mxu0 0.0
  %1974 = vmatprep.subr.mxu0 0.0
  %1975 = vmatpush2.msra.mxu0 0.0
  %1976 = vmatprep.subr.mxu0 0.0
  %1977 = vmatpush2.msra.mxu0 0.0
  %1978 = vmatprep.subr.mxu0 0.0
  %1979 = vmatpush2.msra.mxu0 0.0
  %1980 = vmatprep.subr.mxu0 0.0
  %1981 = vmatpush2.msra.mxu0 0.0
  %1982 = vmatprep.mubr.f32.mxu0 0.0
  %v1983 = vand.u32 %v258, 4294901760
  %1984 = vmatmul.mubr.f32.gmra.mxu0 %v1983
  %v1985 = vpop.f32.mrf.mxu0
  %v1986 = vadd.f32 %v1900, %v1985
  %v1987 = vpop.f32.mrf.mxu0
  %1988 = vmatprep.mubr.f32.mxu0 0.0
  %v1989 = vand.u32 %v261, 4294901760
  %1990 = vmatmul.mubr.f32.gmra.mxu0 %v1989
  %v1991 = vpop.f32.mrf.mxu0
  %v1992 = vadd.f32 %v1910, %v1991
  %v1993 = vpop.f32.mrf.mxu0
  %1994 = vdwg.mxu0
  %1995 = vmatprep.subr.mxu0 0.0
  %1996 = vmatpush1.msra.mxu0 0.0
  %1997 = vmatprep.subr.mxu0 0.0
  %1998 = vmatpush1.msra.mxu0 0.0
  %1999 = vmatprep.subr.mxu0 0.0
  %2000 = vmatpush1.msra.mxu0 0.0
  %2001 = vmatprep.subr.mxu0 0.0
  %2002 = vmatpush1.msra.mxu0 0.0
  %2003 = vmatprep.subr.mxu0 0.0
  %2004 = vmatpush1.msra.mxu0 0.0
  %2005 = vmatprep.subr.mxu0 0.0
  %2006 = vmatpush1.msra.mxu0 0.0
  %2007 = vmatprep.subr.mxu0 0.0
  %2008 = vmatpush1.msra.mxu0 0.0
  %2009 = vmatprep.subr.mxu0 0.0
  %2010 = vmatpush1.msra.mxu0 0.0
  %2011 = vmatprep.subr.mxu0 0.0
  %2012 = vmatpush1.msra.mxu0 0.0
  %2013 = vmatprep.subr.mxu0 0.0
  %2014 = vmatpush1.msra.mxu0 0.0
  %2015 = vmatprep.subr.mxu0 0.0
  %2016 = vmatpush1.msra.mxu0 0.0
  %2017 = vmatprep.subr.mxu0 0.0
  %2018 = vmatpush1.msra.mxu0 0.0
  %2019 = vmatprep.subr.mxu0 0.0
  %2020 = vmatpush1.msra.mxu0 0.0
  %2021 = vmatprep.subr.mxu0 0.0
  %2022 = vmatpush1.msra.mxu0 0.0
  %2023 = vmatprep.subr.mxu0 0.0
  %2024 = vmatpush1.msra.mxu0 0.0
  %2025 = vmatprep.subr.mxu0 0.0
  %v2026 = vand.u32 %v283, 4294901760
  %v2027 = vsub.f32 %v283, %v2026
  %2028 = vmatpush1.msra.mxu0 %v2027
  %2029 = vmatprep.subr.mxu0 0.0
  %2030 = vmatpush2.msra.mxu0 0.0
  %2031 = vmatprep.subr.mxu0 0.0
  %2032 = vmatpush2.msra.mxu0 0.0
  %2033 = vmatprep.subr.mxu0 0.0
  %2034 = vmatpush2.msra.mxu0 0.0
  %2035 = vmatprep.subr.mxu0 0.0
  %2036 = vmatpush2.msra.mxu0 0.0
  %2037 = vmatprep.subr.mxu0 0.0
  %2038 = vmatpush2.msra.mxu0 0.0
  %2039 = vmatprep.subr.mxu0 0.0
  %2040 = vmatpush2.msra.mxu0 0.0
  %2041 = vmatprep.subr.mxu0 0.0
  %2042 = vmatpush2.msra.mxu0 0.0
  %2043 = vmatprep.subr.mxu0 0.0
  %2044 = vmatpush2.msra.mxu0 0.0
  %2045 = vmatprep.subr.mxu0 0.0
  %2046 = vmatpush2.msra.mxu0 0.0
  %2047 = vmatprep.subr.mxu0 0.0
  %2048 = vmatpush2.msra.mxu0 0.0
  %2049 = vmatprep.subr.mxu0 0.0
  %2050 = vmatpush2.msra.mxu0 0.0
  %2051 = vmatprep.subr.mxu0 0.0
  %2052 = vmatpush2.msra.mxu0 0.0
  %2053 = vmatprep.subr.mxu0 0.0
  %2054 = vmatpush2.msra.mxu0 0.0
  %2055 = vmatprep.subr.mxu0 0.0
  %2056 = vmatpush2.msra.mxu0 0.0
  %2057 = vmatprep.subr.mxu0 0.0
  %2058 = vmatpush2.msra.mxu0 0.0
  %2059 = vmatprep.subr.mxu0 0.0
  %2060 = vmatpush2.msra.mxu0 0.0
  %2061 = vmatprep.mubr.f32.mxu0 0.0
  %v2062 = vand.u32 %v258, 4294901760
  %v2063 = vsub.f32 %v258, %v2062
  %2064 = vmatmul.mubr.f32.gmra.mxu0 %v2063
  %v2065 = vpop.f32.mrf.mxu0
  %v2066 = vadd.f32 %v1986, %v2065
  %v2067 = vpop.f32.mrf.mxu0
  %2068 = vmatprep.mubr.f32.mxu0 0.0
  %v2069 = vand.u32 %v261, 4294901760
  %v2070 = vsub.f32 %v261, %v2069
  %2071 = vmatmul.mubr.f32.gmra.mxu0 %v2070
  %v2072 = vpop.f32.mrf.mxu0
  %v2073 = vadd.f32 %v1992, %v2072
  %v2074 = vpop.f32.mrf.mxu0
  %2075 = vdwg.mxu0
  %2076 = vmatprep.subr.mxu0 0.0
  %2077 = vmatpush1.msra.mxu0 0.0
  %2078 = vmatprep.subr.mxu0 0.0
  %2079 = vmatpush1.msra.mxu0 0.0
  %2080 = vmatprep.subr.mxu0 0.0
  %2081 = vmatpush1.msra.mxu0 0.0
  %2082 = vmatprep.subr.mxu0 0.0
  %2083 = vmatpush1.msra.mxu0 0.0
  %2084 = vmatprep.subr.mxu0 0.0
  %2085 = vmatpush1.msra.mxu0 0.0
  %2086 = vmatprep.subr.mxu0 0.0
  %2087 = vmatpush1.msra.mxu0 0.0
  %2088 = vmatprep.subr.mxu0 0.0
  %2089 = vmatpush1.msra.mxu0 0.0
  %2090 = vmatprep.subr.mxu0 0.0
  %2091 = vmatpush1.msra.mxu0 0.0
  %2092 = vmatprep.subr.mxu0 0.0
  %2093 = vmatpush1.msra.mxu0 0.0
  %2094 = vmatprep.subr.mxu0 0.0
  %2095 = vmatpush1.msra.mxu0 0.0
  %2096 = vmatprep.subr.mxu0 0.0
  %2097 = vmatpush1.msra.mxu0 0.0
  %2098 = vmatprep.subr.mxu0 0.0
  %2099 = vmatpush1.msra.mxu0 0.0
  %2100 = vmatprep.subr.mxu0 0.0
  %2101 = vmatpush1.msra.mxu0 0.0
  %2102 = vmatprep.subr.mxu0 0.0
  %2103 = vmatpush1.msra.mxu0 0.0
  %2104 = vmatprep.subr.mxu0 0.0
  %2105 = vmatpush1.msra.mxu0 0.0
  %2106 = vmatprep.subr.mxu0 0.0
  %v2107 = vand.u32 %v283, 4294901760
  %2108 = vmatpush1.msra.mxu0 %v2107
  %2109 = vmatprep.subr.mxu0 0.0
  %2110 = vmatpush2.msra.mxu0 0.0
  %2111 = vmatprep.subr.mxu0 0.0
  %2112 = vmatpush2.msra.mxu0 0.0
  %2113 = vmatprep.subr.mxu0 0.0
  %2114 = vmatpush2.msra.mxu0 0.0
  %2115 = vmatprep.subr.mxu0 0.0
  %2116 = vmatpush2.msra.mxu0 0.0
  %2117 = vmatprep.subr.mxu0 0.0
  %2118 = vmatpush2.msra.mxu0 0.0
  %2119 = vmatprep.subr.mxu0 0.0
  %2120 = vmatpush2.msra.mxu0 0.0
  %2121 = vmatprep.subr.mxu0 0.0
  %2122 = vmatpush2.msra.mxu0 0.0
  %2123 = vmatprep.subr.mxu0 0.0
  %2124 = vmatpush2.msra.mxu0 0.0
  %2125 = vmatprep.subr.mxu0 0.0
  %2126 = vmatpush2.msra.mxu0 0.0
  %2127 = vmatprep.subr.mxu0 0.0
  %2128 = vmatpush2.msra.mxu0 0.0
  %2129 = vmatprep.subr.mxu0 0.0
  %2130 = vmatpush2.msra.mxu0 0.0
  %2131 = vmatprep.subr.mxu0 0.0
  %2132 = vmatpush2.msra.mxu0 0.0
  %2133 = vmatprep.subr.mxu0 0.0
  %2134 = vmatpush2.msra.mxu0 0.0
  %2135 = vmatprep.subr.mxu0 0.0
  %2136 = vmatpush2.msra.mxu0 0.0
  %2137 = vmatprep.subr.mxu0 0.0
  %2138 = vmatpush2.msra.mxu0 0.0
  %2139 = vmatprep.subr.mxu0 0.0
  %2140 = vmatpush2.msra.mxu0 0.0
  %2141 = vmatprep.mubr.f32.mxu0 0.0
  %v2142 = vand.u32 %v258, 4294901760
  %v2143 = vsub.f32 %v258, %v2142
  %v2144 = vand.u32 %v2143, 4294901760
  %2145 = vmatmul.mubr.f32.gmra.mxu0 %v2144
  %v2146 = vpop.f32.mrf.mxu0
  %v2147 = vadd.f32 %v2066, %v2146
  %v2148 = vpop.f32.mrf.mxu0
  %2149 = vmatprep.mubr.f32.mxu0 0.0
  %v2150 = vand.u32 %v261, 4294901760
  %v2151 = vsub.f32 %v261, %v2150
  %v2152 = vand.u32 %v2151, 4294901760
  %2153 = vmatmul.mubr.f32.gmra.mxu0 %v2152
  %v2154 = vpop.f32.mrf.mxu0
  %v2155 = vadd.f32 %v2073, %v2154
  %v2156 = vpop.f32.mrf.mxu0
  %2157 = vdwg.mxu0
  %2158 = vmatprep.subr.mxu0 0.0
  %2159 = vmatpush1.msra.mxu0 0.0
  %2160 = vmatprep.subr.mxu0 0.0
  %2161 = vmatpush1.msra.mxu0 0.0
  %2162 = vmatprep.subr.mxu0 0.0
  %2163 = vmatpush1.msra.mxu0 0.0
  %2164 = vmatprep.subr.mxu0 0.0
  %2165 = vmatpush1.msra.mxu0 0.0
  %2166 = vmatprep.subr.mxu0 0.0
  %2167 = vmatpush1.msra.mxu0 0.0
  %2168 = vmatprep.subr.mxu0 0.0
  %2169 = vmatpush1.msra.mxu0 0.0
  %2170 = vmatprep.subr.mxu0 0.0
  %2171 = vmatpush1.msra.mxu0 0.0
  %2172 = vmatprep.subr.mxu0 0.0
  %2173 = vmatpush1.msra.mxu0 0.0
  %2174 = vmatprep.subr.mxu0 0.0
  %2175 = vmatpush1.msra.mxu0 0.0
  %2176 = vmatprep.subr.mxu0 0.0
  %2177 = vmatpush1.msra.mxu0 0.0
  %2178 = vmatprep.subr.mxu0 0.0
  %2179 = vmatpush1.msra.mxu0 0.0
  %2180 = vmatprep.subr.mxu0 0.0
  %2181 = vmatpush1.msra.mxu0 0.0
  %2182 = vmatprep.subr.mxu0 0.0
  %2183 = vmatpush1.msra.mxu0 0.0
  %2184 = vmatprep.subr.mxu0 0.0
  %2185 = vmatpush1.msra.mxu0 0.0
  %2186 = vmatprep.subr.mxu0 0.0
  %2187 = vmatpush1.msra.mxu0 0.0
  %2188 = vmatprep.subr.mxu0 0.0
  %v2189 = vand.u32 %v283, 4294901760
  %v2190 = vsub.f32 %v283, %v2189
  %v2191 = vand.u32 %v2190, 4294901760
  %2192 = vmatpush1.msra.mxu0 %v2191
  %2193 = vmatprep.subr.mxu0 0.0
  %2194 = vmatpush2.msra.mxu0 0.0
  %2195 = vmatprep.subr.mxu0 0.0
  %2196 = vmatpush2.msra.mxu0 0.0
  %2197 = vmatprep.subr.mxu0 0.0
  %2198 = vmatpush2.msra.mxu0 0.0
  %2199 = vmatprep.subr.mxu0 0.0
  %2200 = vmatpush2.msra.mxu0 0.0
  %2201 = vmatprep.subr.mxu0 0.0
  %2202 = vmatpush2.msra.mxu0 0.0
  %2203 = vmatprep.subr.mxu0 0.0
  %2204 = vmatpush2.msra.mxu0 0.0
  %2205 = vmatprep.subr.mxu0 0.0
  %2206 = vmatpush2.msra.mxu0 0.0
  %2207 = vmatprep.subr.mxu0 0.0
  %2208 = vmatpush2.msra.mxu0 0.0
  %2209 = vmatprep.subr.mxu0 0.0
  %2210 = vmatpush2.msra.mxu0 0.0
  %2211 = vmatprep.subr.mxu0 0.0
  %2212 = vmatpush2.msra.mxu0 0.0
  %2213 = vmatprep.subr.mxu0 0.0
  %2214 = vmatpush2.msra.mxu0 0.0
  %2215 = vmatprep.subr.mxu0 0.0
  %2216 = vmatpush2.msra.mxu0 0.0
  %2217 = vmatprep.subr.mxu0 0.0
  %2218 = vmatpush2.msra.mxu0 0.0
  %2219 = vmatprep.subr.mxu0 0.0
  %2220 = vmatpush2.msra.mxu0 0.0
  %2221 = vmatprep.subr.mxu0 0.0
  %2222 = vmatpush2.msra.mxu0 0.0
  %2223 = vmatprep.subr.mxu0 0.0
  %2224 = vmatpush2.msra.mxu0 0.0
  %2225 = vmatprep.mubr.f32.mxu0 0.0
  %v2226 = vand.u32 %v258, 4294901760
  %2227 = vmatmul.mubr.f32.gmra.mxu0 %v2226
  %v2228 = vpop.f32.mrf.mxu0
  %v2229 = vadd.f32 %v2147, %v2228
  %v2230 = vpop.f32.mrf.mxu0
  %2231 = vmatprep.mubr.f32.mxu0 0.0
  %v2232 = vand.u32 %v261, 4294901760
  %2233 = vmatmul.mubr.f32.gmra.mxu0 %v2232
  %v2234 = vpop.f32.mrf.mxu0
  %v2235 = vadd.f32 %v2155, %v2234
  %v2236 = vpop.f32.mrf.mxu0
  %2237 = vdwg.mxu0
  %2238 = vmatprep.subr.mxu0 0.0
  %2239 = vmatpush1.msra.mxu0 0.0
  %2240 = vmatprep.subr.mxu0 0.0
  %2241 = vmatpush1.msra.mxu0 0.0
  %2242 = vmatprep.subr.mxu0 0.0
  %2243 = vmatpush1.msra.mxu0 0.0
  %2244 = vmatprep.subr.mxu0 0.0
  %2245 = vmatpush1.msra.mxu0 0.0
  %2246 = vmatprep.subr.mxu0 0.0
  %2247 = vmatpush1.msra.mxu0 0.0
  %2248 = vmatprep.subr.mxu0 0.0
  %2249 = vmatpush1.msra.mxu0 0.0
  %2250 = vmatprep.subr.mxu0 0.0
  %2251 = vmatpush1.msra.mxu0 0.0
  %2252 = vmatprep.subr.mxu0 0.0
  %2253 = vmatpush1.msra.mxu0 0.0
  %2254 = vmatprep.subr.mxu0 0.0
  %2255 = vmatpush1.msra.mxu0 0.0
  %2256 = vmatprep.subr.mxu0 0.0
  %2257 = vmatpush1.msra.mxu0 0.0
  %2258 = vmatprep.subr.mxu0 0.0
  %2259 = vmatpush1.msra.mxu0 0.0
  %2260 = vmatprep.subr.mxu0 0.0
  %2261 = vmatpush1.msra.mxu0 0.0
  %2262 = vmatprep.subr.mxu0 0.0
  %2263 = vmatpush1.msra.mxu0 0.0
  %2264 = vmatprep.subr.mxu0 0.0
  %2265 = vmatpush1.msra.mxu0 0.0
  %2266 = vmatprep.subr.mxu0 0.0
  %2267 = vmatpush1.msra.mxu0 0.0
  %2268 = vmatprep.subr.mxu0 0.0
  %v2269 = vand.u32 %v283, 4294901760
  %2270 = vmatpush1.msra.mxu0 %v2269
  %2271 = vmatprep.subr.mxu0 0.0
  %2272 = vmatpush2.msra.mxu0 0.0
  %2273 = vmatprep.subr.mxu0 0.0
  %2274 = vmatpush2.msra.mxu0 0.0
  %2275 = vmatprep.subr.mxu0 0.0
  %2276 = vmatpush2.msra.mxu0 0.0
  %2277 = vmatprep.subr.mxu0 0.0
  %2278 = vmatpush2.msra.mxu0 0.0
  %2279 = vmatprep.subr.mxu0 0.0
  %2280 = vmatpush2.msra.mxu0 0.0
  %2281 = vmatprep.subr.mxu0 0.0
  %2282 = vmatpush2.msra.mxu0 0.0
  %2283 = vmatprep.subr.mxu0 0.0
  %2284 = vmatpush2.msra.mxu0 0.0
  %2285 = vmatprep.subr.mxu0 0.0
  %2286 = vmatpush2.msra.mxu0 0.0
  %2287 = vmatprep.subr.mxu0 0.0
  %2288 = vmatpush2.msra.mxu0 0.0
  %2289 = vmatprep.subr.mxu0 0.0
  %2290 = vmatpush2.msra.mxu0 0.0
  %2291 = vmatprep.subr.mxu0 0.0
  %2292 = vmatpush2.msra.mxu0 0.0
  %2293 = vmatprep.subr.mxu0 0.0
  %2294 = vmatpush2.msra.mxu0 0.0
  %2295 = vmatprep.subr.mxu0 0.0
  %2296 = vmatpush2.msra.mxu0 0.0
  %2297 = vmatprep.subr.mxu0 0.0
  %2298 = vmatpush2.msra.mxu0 0.0
  %2299 = vmatprep.subr.mxu0 0.0
  %2300 = vmatpush2.msra.mxu0 0.0
  %2301 = vmatprep.subr.mxu0 0.0
  %2302 = vmatpush2.msra.mxu0 0.0
  %2303 = vmatprep.mubr.f32.mxu0 0.0
  %v2304 = vand.u32 %v258, 4294901760
  %2305 = vmatmul.mubr.f32.gmra.mxu0 %v2304
  %v2306 = vpop.f32.mrf.mxu0
  %v2307 = vadd.f32 %v2229, %v2306
  %v2308 = vpop.f32.mrf.mxu0
  %2309 = vmatprep.mubr.f32.mxu0 0.0
  %v2310 = vand.u32 %v261, 4294901760
  %2311 = vmatmul.mubr.f32.gmra.mxu0 %v2310
  %v2312 = vpop.f32.mrf.mxu0
  %v2313 = vadd.f32 %v2235, %v2312
  %v2314 = vpop.f32.mrf.mxu0
  %2315 = vdwg.mxu0
  %v2316 = vmax.f32 %v788, 0.0
  %v2317 = vmax.f32 %v790, 0.0
  %v2318 = vmax.f32 %v1302, 0.0
  %v2319 = vmax.f32 %v1304, 0.0
  %v2320 = vmax.f32 %v1816, 0.0
  %v2321 = vmax.f32 %v1818, 0.0
  %v2322 = vmax.f32 %v2307, 0.0
  %v2323 = vmax.f32 %v795, 0.0
  %v2324 = vmax.f32 %v797, 0.0
  %v2325 = vmax.f32 %v1309, 0.0
  %v2326 = vmax.f32 %v1311, 0.0
  %v2327 = vmax.f32 %v1823, 0.0
  %v2328 = vmax.f32 %v1825, 0.0
  %v2329 = vmax.f32 %v2313, 0.0
  %2330 = vrot.lane.b32.xlu0 %v2316, 1
  %v2331 = vpop.permute.xlu0 %2330
  %2332 = vrot.lane.b32.xlu0 %v2323, 1
  %v2333 = vpop.permute.xlu0 %2332
  %2334 = vrot.lane.b32.xlu0 %v2317, 1
  %v2335 = vpop.permute.xlu0 %2334
  %2336 = vrot.lane.b32.xlu0 %v2324, 1
  %v2337 = vpop.permute.xlu0 %2336
  %2338 = vrot.lane.b32.xlu0 %v2318, 1
  %v2339 = vpop.permute.xlu0 %2338
  %2340 = vrot.lane.b32.xlu0 %v2325, 1
  %v2341 = vpop.permute.xlu0 %2340
  %2342 = vrot.lane.b32.xlu0 %v2319, 1
  %v2343 = vpop.permute.xlu0 %2342
  %2344 = vrot.lane.b32.xlu0 %v2326, 1
  %v2345 = vpop.permute.xlu0 %2344
  %2346 = vrot.lane.b32.xlu0 %v2320, 1
  %v2347 = vpop.permute.xlu0 %2346
  %2348 = vrot.lane.b32.xlu0 %v2327, 1
  %v2349 = vpop.permute.xlu0 %2348
  %2350 = vrot.lane.b32.xlu0 %v2321, 1
  %v2351 = vpop.permute.xlu0 %2350
  %2352 = vrot.lane.b32.xlu0 %v2328, 1
  %v2353 = vpop.permute.xlu0 %2352
  %2354 = vrot.lane.b32.xlu0 %v2322, 1
  %v2355 = vpop.permute.xlu0 %2354
  %2356 = vrot.lane.b32.xlu0 %v2329, 1
  %v2357 = vpop.permute.xlu0 %2356
  %v2358 = vsel %vm89, %v2351, %v2355
  %v2359 = vsel %vm89, %v2353, %v2357
  %v2360 = vsel %vm89, %v2347, %v2351
  %v2361 = vsel %vm89, %v2349, %v2353
  %v2362 = vsel %vm89, %v2343, %v2347
  %v2363 = vsel %vm89, %v2345, %v2349
  %v2364 = vsel %vm89, %v2339, %v2343
  %v2365 = vsel %vm89, %v2341, %v2345
  %v2366 = vsel %vm89, %v2335, %v2339
  %v2367 = vsel %vm89, %v2337, %v2341
  %v2368 = vsel %vm89, %v2331, %v2335
  %v2369 = vsel %vm89, %v2333, %v2337
  %v2370 = vsel %vm89, %v2355, %v2331
  %v2371 = vsel %vm89, %v2357, %v2333
  %v2372 = vmul.f32 %v2370, %v101
  %v2373 = vmul.f32 %v2368, %v105
  %v2374 = vmul.f32 %v2366, %v109
  %v2375 = vmul.f32 %v2364, %v113
  %v2376 = vmul.f32 %v2362, %v117
  %v2377 = vmul.f32 %v2360, %v121
  %v2378 = vmul.f32 %v2358, %v125
  %v2379 = vmul.f32 %v2371, %v101
  %v2380 = vmul.f32 %v2369, %v105
  %v2381 = vmul.f32 %v2367, %v109
  %v2382 = vmul.f32 %v2365, %v113
  %v2383 = vmul.f32 %v2363, %v117
  %v2384 = vmul.f32 %v2361, %v121
  %v2385 = vmul.f32 %v2359, %v125
  %2386 = vrot.lane.b32.xlu0 %v2316, 127
  %v2387 = vpop.permute.xlu0 %2386
  %2388 = vrot.lane.b32.xlu0 %v2323, 127
  %v2389 = vpop.permute.xlu0 %2388
  %2390 = vrot.lane.b32.xlu0 %v2317, 127
  %v2391 = vpop.permute.xlu0 %2390
  %2392 = vrot.lane.b32.xlu0 %v2324, 127
  %v2393 = vpop.permute.xlu0 %2392
  %2394 = vrot.lane.b32.xlu0 %v2318, 127
  %v2395 = vpop.permute.xlu0 %2394
  %2396 = vrot.lane.b32.xlu0 %v2325, 127
  %v2397 = vpop.permute.xlu0 %2396
  %2398 = vrot.lane.b32.xlu0 %v2319, 127
  %v2399 = vpop.permute.xlu0 %2398
  %2400 = vrot.lane.b32.xlu0 %v2326, 127
  %v2401 = vpop.permute.xlu0 %2400
  %2402 = vrot.lane.b32.xlu0 %v2320, 127
  %v2403 = vpop.permute.xlu0 %2402
  %2404 = vrot.lane.b32.xlu0 %v2327, 127
  %v2405 = vpop.permute.xlu0 %2404
  %2406 = vrot.lane.b32.xlu0 %v2321, 127
  %v2407 = vpop.permute.xlu0 %2406
  %2408 = vrot.lane.b32.xlu0 %v2328, 127
  %v2409 = vpop.permute.xlu0 %2408
  %2410 = vrot.lane.b32.xlu0 %v2322, 127
  %v2411 = vpop.permute.xlu0 %2410
  %2412 = vrot.lane.b32.xlu0 %v2329, 127
  %v2413 = vpop.permute.xlu0 %2412
  %v2414 = vsel %vm154, %v2407, %v2411
  %v2415 = vsel %vm154, %v2409, %v2413
  %v2416 = vsel %vm154, %v2403, %v2407
  %v2417 = vsel %vm154, %v2405, %v2409
  %v2418 = vsel %vm154, %v2399, %v2403
  %v2419 = vsel %vm154, %v2401, %v2405
  %v2420 = vsel %vm154, %v2395, %v2399
  %v2421 = vsel %vm154, %v2397, %v2401
  %v2422 = vsel %vm154, %v2391, %v2395
  %v2423 = vsel %vm154, %v2393, %v2397
  %v2424 = vsel %vm154, %v2387, %v2391
  %v2425 = vsel %vm154, %v2389, %v2393
  %v2426 = vsel %vm154, %v2411, %v2387
  %v2427 = vsel %vm154, %v2413, %v2389
  %v2428 = vmul.f32 %v2424, %v166
  %v2429 = vmul.f32 %v2422, %v170
  %v2430 = vmul.f32 %v2420, %v174
  %v2431 = vmul.f32 %v2418, %v178
  %v2432 = vmul.f32 %v2416, %v182
  %v2433 = vmul.f32 %v2414, %v186
  %v2434 = vmul.f32 %v2426, %v190
  %v2435 = vmul.f32 %v2425, %v166
  %v2436 = vmul.f32 %v2423, %v170
  %v2437 = vmul.f32 %v2421, %v174
  %v2438 = vmul.f32 %v2419, %v178
  %v2439 = vmul.f32 %v2417, %v182
  %v2440 = vmul.f32 %v2415, %v186
  %v2441 = vmul.f32 %v2427, %v190
  %v2442 = vld [vmem:[%s5] sm:$0xff]
  %v2443 = vld [vmem:[%s5 + $0x8] sm:$0xff]
  %v2444 = vld [vmem:[%s5 + $0x10] sm:$0xff]
  %v2445 = vld [vmem:[%s5 + $0x18] sm:$0xff]
  %v2446 = vld [vmem:[%s6] sm:$0xff]
  %v2447 = vld [vmem:[%s6 + $0x8] sm:$0xff]
  %v2448 = vld [vmem:[%s6 + $0x10] sm:$0xff]
  %v2449 = vld [vmem:[%s6 + $0x18] sm:$0xff]
  %2451 = vset.pattern.permute.xlu0 0
  %2452 = vperm.xlu0 %2451, %v2446
  %v2453 = vpop.permute.xlu0 %2452
  %2456 = vset.pattern.permute.xlu0 0
  %2457 = vperm.xlu0 %2456, %v2447
  %v2458 = vpop.permute.xlu0 %2457
  %2461 = vset.pattern.permute.xlu0 0
  %2462 = vperm.xlu0 %2461, %v2448
  %v2463 = vpop.permute.xlu0 %2462
  %2466 = vset.pattern.permute.xlu0 0
  %2467 = vperm.xlu0 %2466, %v2449
  %v2468 = vpop.permute.xlu0 %2467
  %vm2470 = vcmask 392192
  %v2472 = vsel %vm2470, %v2442, 0
  %v2475 = vsel %vm2470, %v2443, 0
  %v2478 = vsel %vm2470, %v2444, 0
  %v2481 = vsel %vm2470, %v2445, 0
  %2483 = vmatprep.subr.mxu0 0.0
  %2484 = vmatpush1.msra.mxu0 0.0
  %2485 = vmatprep.subr.mxu0 0.0
  %2486 = vmatpush1.msra.mxu0 0.0
  %2487 = vmatprep.subr.mxu0 0.0
  %2488 = vmatpush1.msra.mxu0 0.0
  %2489 = vmatprep.subr.mxu0 0.0
  %2490 = vmatpush1.msra.mxu0 0.0
  %2491 = vmatprep.subr.mxu0 0.0
  %2492 = vmatpush1.msra.mxu0 0.0
  %2493 = vmatprep.subr.mxu0 0.0
  %2494 = vmatpush1.msra.mxu0 0.0
  %2495 = vmatprep.subr.mxu0 0.0
  %2496 = vmatpush1.msra.mxu0 0.0
  %2497 = vmatprep.subr.mxu0 0.0
  %2498 = vmatpush1.msra.mxu0 0.0
  %2499 = vmatprep.subr.mxu0 0.0
  %2500 = vmatpush1.msra.mxu0 0.0
  %2501 = vmatprep.subr.mxu0 0.0
  %2502 = vmatpush1.msra.mxu0 0.0
  %v2503 = vand.u32 %v2436, 4294901760
  %2504 = vmatprep.subr.mxu0 %v2503
  %v2505 = vand.u32 %v2435, 4294901760
  %2506 = vmatpush1.msra.mxu0 %v2505
  %v2507 = vand.u32 %v2429, 4294901760
  %2508 = vmatprep.subr.mxu0 %v2507
  %v2509 = vand.u32 %v2428, 4294901760
  %2510 = vmatpush1.msra.mxu0 %v2509
  %v2511 = vand.u32 %v2324, 4294901760
  %2512 = vmatprep.subr.mxu0 %v2511
  %v2513 = vand.u32 %v2323, 4294901760
  %2514 = vmatpush1.msra.mxu0 %v2513
  %v2515 = vand.u32 %v2317, 4294901760
  %2516 = vmatprep.subr.mxu0 %v2515
  %v2517 = vand.u32 %v2316, 4294901760
  %2518 = vmatpush1.msra.mxu0 %v2517
  %v2519 = vand.u32 %v2380, 4294901760
  %2520 = vmatprep.subr.mxu0 %v2519
  %v2521 = vand.u32 %v2379, 4294901760
  %2522 = vmatpush1.msra.mxu0 %v2521
  %v2523 = vand.u32 %v2373, 4294901760
  %2524 = vmatprep.subr.mxu0 %v2523
  %v2525 = vand.u32 %v2372, 4294901760
  %2526 = vmatpush1.msra.mxu0 %v2525
  %2527 = vmatprep.subr.mxu0 0.0
  %2528 = vmatpush2.msra.mxu0 0.0
  %2529 = vmatprep.subr.mxu0 0.0
  %2530 = vmatpush2.msra.mxu0 0.0
  %2531 = vmatprep.subr.mxu0 0.0
  %2532 = vmatpush2.msra.mxu0 0.0
  %2533 = vmatprep.subr.mxu0 0.0
  %2534 = vmatpush2.msra.mxu0 0.0
  %2535 = vmatprep.subr.mxu0 0.0
  %2536 = vmatpush2.msra.mxu0 0.0
  %2537 = vmatprep.subr.mxu0 0.0
  %2538 = vmatpush2.msra.mxu0 0.0
  %2539 = vmatprep.subr.mxu0 0.0
  %2540 = vmatpush2.msra.mxu0 0.0
  %2541 = vmatprep.subr.mxu0 0.0
  %2542 = vmatpush2.msra.mxu0 0.0
  %2543 = vmatprep.subr.mxu0 0.0
  %2544 = vmatpush2.msra.mxu0 0.0
  %2545 = vmatprep.subr.mxu0 0.0
  %2546 = vmatpush2.msra.mxu0 0.0
  %2547 = vmatprep.subr.mxu0 0.0
  %2548 = vmatpush2.msra.mxu0 0.0
  %2549 = vmatprep.subr.mxu0 0.0
  %2550 = vmatpush2.msra.mxu0 0.0
  %2551 = vmatprep.subr.mxu0 0.0
  %2552 = vmatpush2.msra.mxu0 0.0
  %2553 = vmatprep.subr.mxu0 0.0
  %2554 = vmatpush2.msra.mxu0 0.0
  %2555 = vmatprep.subr.mxu0 0.0
  %2556 = vmatpush2.msra.mxu0 0.0
  %2557 = vmatprep.subr.mxu0 0.0
  %2558 = vmatpush2.msra.mxu0 0.0
  %2559 = vmatprep.mubr.f32.mxu0 0.0
  %v2560 = vand.u32 %v2472, 4294901760
  %v2561 = vsub.f32 %v2472, %v2560
  %v2562 = vand.u32 %v2561, 4294901760
  %v2563 = vsub.f32 %v2561, %v2562
  %v2564 = vand.u32 %v2563, 4294901760
  %2565 = vmatmul.mubr.f32.gmra.mxu0 %v2564
  %v2566 = vpop.f32.mrf.mxu0
  %v2567 = vadd.f32 %v2453, %v2566
  %v2568 = vpop.f32.mrf.mxu0
  %v2569 = vadd.f32 %v2453, %v2568
  %2570 = vmatprep.mubr.f32.mxu0 0.0
  %v2571 = vand.u32 %v2475, 4294901760
  %v2572 = vsub.f32 %v2475, %v2571
  %v2573 = vand.u32 %v2572, 4294901760
  %v2574 = vsub.f32 %v2572, %v2573
  %v2575 = vand.u32 %v2574, 4294901760
  %2576 = vmatmul.mubr.f32.gmra.mxu0 %v2575
  %v2577 = vpop.f32.mrf.mxu0
  %v2578 = vadd.f32 %v2458, %v2577
  %v2579 = vpop.f32.mrf.mxu0
  %v2580 = vadd.f32 %v2458, %v2579
  %2581 = vmatprep.mubr.f32.mxu0 0.0
  %v2582 = vand.u32 %v2478, 4294901760
  %v2583 = vsub.f32 %v2478, %v2582
  %v2584 = vand.u32 %v2583, 4294901760
  %v2585 = vsub.f32 %v2583, %v2584
  %v2586 = vand.u32 %v2585, 4294901760
  %2587 = vmatmul.mubr.f32.gmra.mxu0 %v2586
  %v2588 = vpop.f32.mrf.mxu0
  %v2589 = vadd.f32 %v2463, %v2588
  %v2590 = vpop.f32.mrf.mxu0
  %v2591 = vadd.f32 %v2463, %v2590
  %2592 = vmatprep.mubr.f32.mxu0 0.0
  %v2593 = vand.u32 %v2481, 4294901760
  %v2594 = vsub.f32 %v2481, %v2593
  %v2595 = vand.u32 %v2594, 4294901760
  %v2596 = vsub.f32 %v2594, %v2595
  %v2597 = vand.u32 %v2596, 4294901760
  %2598 = vmatmul.mubr.f32.gmra.mxu0 %v2597
  %v2599 = vpop.f32.mrf.mxu0
  %v2600 = vadd.f32 %v2468, %v2599
  %v2601 = vpop.f32.mrf.mxu0
  %v2602 = vadd.f32 %v2468, %v2601
  %2603 = vdwg.mxu0
  %2604 = vmatprep.subr.mxu0 0.0
  %2605 = vmatpush1.msra.mxu0 0.0
  %2606 = vmatprep.subr.mxu0 0.0
  %2607 = vmatpush1.msra.mxu0 0.0
  %2608 = vmatprep.subr.mxu0 0.0
  %2609 = vmatpush1.msra.mxu0 0.0
  %2610 = vmatprep.subr.mxu0 0.0
  %2611 = vmatpush1.msra.mxu0 0.0
  %2612 = vmatprep.subr.mxu0 0.0
  %2613 = vmatpush1.msra.mxu0 0.0
  %2614 = vmatprep.subr.mxu0 0.0
  %2615 = vmatpush1.msra.mxu0 0.0
  %2616 = vmatprep.subr.mxu0 0.0
  %2617 = vmatpush1.msra.mxu0 0.0
  %2618 = vmatprep.subr.mxu0 0.0
  %2619 = vmatpush1.msra.mxu0 0.0
  %2620 = vmatprep.subr.mxu0 0.0
  %2621 = vmatpush1.msra.mxu0 0.0
  %2622 = vmatprep.subr.mxu0 0.0
  %2623 = vmatpush1.msra.mxu0 0.0
  %v2624 = vand.u32 %v2436, 4294901760
  %v2625 = vsub.f32 %v2436, %v2624
  %v2626 = vand.u32 %v2625, 4294901760
  %v2627 = vsub.f32 %v2625, %v2626
  %v2628 = vand.u32 %v2627, 4294901760
  %2629 = vmatprep.subr.mxu0 %v2628
  %v2630 = vand.u32 %v2435, 4294901760
  %v2631 = vsub.f32 %v2435, %v2630
  %v2632 = vand.u32 %v2631, 4294901760
  %v2633 = vsub.f32 %v2631, %v2632
  %v2634 = vand.u32 %v2633, 4294901760
  %2635 = vmatpush1.msra.mxu0 %v2634
  %v2636 = vand.u32 %v2429, 4294901760
  %v2637 = vsub.f32 %v2429, %v2636
  %v2638 = vand.u32 %v2637, 4294901760
  %v2639 = vsub.f32 %v2637, %v2638
  %v2640 = vand.u32 %v2639, 4294901760
  %2641 = vmatprep.subr.mxu0 %v2640
  %v2642 = vand.u32 %v2428, 4294901760
  %v2643 = vsub.f32 %v2428, %v2642
  %v2644 = vand.u32 %v2643, 4294901760
  %v2645 = vsub.f32 %v2643, %v2644
  %v2646 = vand.u32 %v2645, 4294901760
  %2647 = vmatpush1.msra.mxu0 %v2646
  %v2648 = vand.u32 %v2324, 4294901760
  %v2649 = vsub.f32 %v2324, %v2648
  %v2650 = vand.u32 %v2649, 4294901760
  %v2651 = vsub.f32 %v2649, %v2650
  %v2652 = vand.u32 %v2651, 4294901760
  %2653 = vmatprep.subr.mxu0 %v2652
  %v2654 = vand.u32 %v2323, 4294901760
  %v2655 = vsub.f32 %v2323, %v2654
  %v2656 = vand.u32 %v2655, 4294901760
  %v2657 = vsub.f32 %v2655, %v2656
  %v2658 = vand.u32 %v2657, 4294901760
  %2659 = vmatpush1.msra.mxu0 %v2658
  %v2660 = vand.u32 %v2317, 4294901760
  %v2661 = vsub.f32 %v2317, %v2660
  %v2662 = vand.u32 %v2661, 4294901760
  %v2663 = vsub.f32 %v2661, %v2662
  %v2664 = vand.u32 %v2663, 4294901760
  %2665 = vmatprep.subr.mxu0 %v2664
  %v2666 = vand.u32 %v2316, 4294901760
  %v2667 = vsub.f32 %v2316, %v2666
  %v2668 = vand.u32 %v2667, 4294901760
  %v2669 = vsub.f32 %v2667, %v2668
  %v2670 = vand.u32 %v2669, 4294901760
  %2671 = vmatpush1.msra.mxu0 %v2670
  %v2672 = vand.u32 %v2380, 4294901760
  %v2673 = vsub.f32 %v2380, %v2672
  %v2674 = vand.u32 %v2673, 4294901760
  %v2675 = vsub.f32 %v2673, %v2674
  %v2676 = vand.u32 %v2675, 4294901760
  %2677 = vmatprep.subr.mxu0 %v2676
  %v2678 = vand.u32 %v2379, 4294901760
  %v2679 = vsub.f32 %v2379, %v2678
  %v2680 = vand.u32 %v2679, 4294901760
  %v2681 = vsub.f32 %v2679, %v2680
  %v2682 = vand.u32 %v2681, 4294901760
  %2683 = vmatpush1.msra.mxu0 %v2682
  %v2684 = vand.u32 %v2373, 4294901760
  %v2685 = vsub.f32 %v2373, %v2684
  %v2686 = vand.u32 %v2685, 4294901760
  %v2687 = vsub.f32 %v2685, %v2686
  %v2688 = vand.u32 %v2687, 4294901760
  %2689 = vmatprep.subr.mxu0 %v2688
  %v2690 = vand.u32 %v2372, 4294901760
  %v2691 = vsub.f32 %v2372, %v2690
  %v2692 = vand.u32 %v2691, 4294901760
  %v2693 = vsub.f32 %v2691, %v2692
  %v2694 = vand.u32 %v2693, 4294901760
  %2695 = vmatpush1.msra.mxu0 %v2694
  %2696 = vmatprep.subr.mxu0 0.0
  %2697 = vmatpush2.msra.mxu0 0.0
  %2698 = vmatprep.subr.mxu0 0.0
  %2699 = vmatpush2.msra.mxu0 0.0
  %2700 = vmatprep.subr.mxu0 0.0
  %2701 = vmatpush2.msra.mxu0 0.0
  %2702 = vmatprep.subr.mxu0 0.0
  %2703 = vmatpush2.msra.mxu0 0.0
  %2704 = vmatprep.subr.mxu0 0.0
  %2705 = vmatpush2.msra.mxu0 0.0
  %2706 = vmatprep.subr.mxu0 0.0
  %2707 = vmatpush2.msra.mxu0 0.0
  %2708 = vmatprep.subr.mxu0 0.0
  %2709 = vmatpush2.msra.mxu0 0.0
  %2710 = vmatprep.subr.mxu0 0.0
  %2711 = vmatpush2.msra.mxu0 0.0
  %2712 = vmatprep.subr.mxu0 0.0
  %2713 = vmatpush2.msra.mxu0 0.0
  %2714 = vmatprep.subr.mxu0 0.0
  %2715 = vmatpush2.msra.mxu0 0.0
  %2716 = vmatprep.subr.mxu0 0.0
  %2717 = vmatpush2.msra.mxu0 0.0
  %2718 = vmatprep.subr.mxu0 0.0
  %2719 = vmatpush2.msra.mxu0 0.0
  %2720 = vmatprep.subr.mxu0 0.0
  %2721 = vmatpush2.msra.mxu0 0.0
  %2722 = vmatprep.subr.mxu0 0.0
  %2723 = vmatpush2.msra.mxu0 0.0
  %2724 = vmatprep.subr.mxu0 0.0
  %2725 = vmatpush2.msra.mxu0 0.0
  %2726 = vmatprep.subr.mxu0 0.0
  %2727 = vmatpush2.msra.mxu0 0.0
  %2728 = vmatprep.mubr.f32.mxu0 0.0
  %v2729 = vand.u32 %v2472, 4294901760
  %2730 = vmatmul.mubr.f32.gmra.mxu0 %v2729
  %v2731 = vpop.f32.mrf.mxu0
  %v2732 = vadd.f32 %v2567, %v2731
  %v2733 = vpop.f32.mrf.mxu0
  %v2734 = vadd.f32 %v2569, %v2733
  %2735 = vmatprep.mubr.f32.mxu0 0.0
  %v2736 = vand.u32 %v2475, 4294901760
  %2737 = vmatmul.mubr.f32.gmra.mxu0 %v2736
  %v2738 = vpop.f32.mrf.mxu0
  %v2739 = vadd.f32 %v2578, %v2738
  %v2740 = vpop.f32.mrf.mxu0
  %v2741 = vadd.f32 %v2580, %v2740
  %2742 = vmatprep.mubr.f32.mxu0 0.0
  %v2743 = vand.u32 %v2478, 4294901760
  %2744 = vmatmul.mubr.f32.gmra.mxu0 %v2743
  %v2745 = vpop.f32.mrf.mxu0
  %v2746 = vadd.f32 %v2589, %v2745
  %v2747 = vpop.f32.mrf.mxu0
  %v2748 = vadd.f32 %v2591, %v2747
  %2749 = vmatprep.mubr.f32.mxu0 0.0
  %v2750 = vand.u32 %v2481, 4294901760
  %2751 = vmatmul.mubr.f32.gmra.mxu0 %v2750
  %v2752 = vpop.f32.mrf.mxu0
  %v2753 = vadd.f32 %v2600, %v2752
  %v2754 = vpop.f32.mrf.mxu0
  %v2755 = vadd.f32 %v2602, %v2754
  %2756 = vdwg.mxu0
  %2757 = vmatprep.subr.mxu0 0.0
  %2758 = vmatpush1.msra.mxu0 0.0
  %2759 = vmatprep.subr.mxu0 0.0
  %2760 = vmatpush1.msra.mxu0 0.0
  %2761 = vmatprep.subr.mxu0 0.0
  %2762 = vmatpush1.msra.mxu0 0.0
  %2763 = vmatprep.subr.mxu0 0.0
  %2764 = vmatpush1.msra.mxu0 0.0
  %2765 = vmatprep.subr.mxu0 0.0
  %2766 = vmatpush1.msra.mxu0 0.0
  %2767 = vmatprep.subr.mxu0 0.0
  %2768 = vmatpush1.msra.mxu0 0.0
  %2769 = vmatprep.subr.mxu0 0.0
  %2770 = vmatpush1.msra.mxu0 0.0
  %2771 = vmatprep.subr.mxu0 0.0
  %2772 = vmatpush1.msra.mxu0 0.0
  %2773 = vmatprep.subr.mxu0 0.0
  %2774 = vmatpush1.msra.mxu0 0.0
  %2775 = vmatprep.subr.mxu0 0.0
  %2776 = vmatpush1.msra.mxu0 0.0
  %v2777 = vand.u32 %v2436, 4294901760
  %v2778 = vsub.f32 %v2436, %v2777
  %2779 = vmatprep.subr.mxu0 %v2778
  %v2780 = vand.u32 %v2435, 4294901760
  %v2781 = vsub.f32 %v2435, %v2780
  %2782 = vmatpush1.msra.mxu0 %v2781
  %v2783 = vand.u32 %v2429, 4294901760
  %v2784 = vsub.f32 %v2429, %v2783
  %2785 = vmatprep.subr.mxu0 %v2784
  %v2786 = vand.u32 %v2428, 4294901760
  %v2787 = vsub.f32 %v2428, %v2786
  %2788 = vmatpush1.msra.mxu0 %v2787
  %v2789 = vand.u32 %v2324, 4294901760
  %v2790 = vsub.f32 %v2324, %v2789
  %2791 = vmatprep.subr.mxu0 %v2790
  %v2792 = vand.u32 %v2323, 4294901760
  %v2793 = vsub.f32 %v2323, %v2792
  %2794 = vmatpush1.msra.mxu0 %v2793
  %v2795 = vand.u32 %v2317, 4294901760
  %v2796 = vsub.f32 %v2317, %v2795
  %2797 = vmatprep.subr.mxu0 %v2796
  %v2798 = vand.u32 %v2316, 4294901760
  %v2799 = vsub.f32 %v2316, %v2798
  %2800 = vmatpush1.msra.mxu0 %v2799
  %v2801 = vand.u32 %v2380, 4294901760
  %v2802 = vsub.f32 %v2380, %v2801
  %2803 = vmatprep.subr.mxu0 %v2802
  %v2804 = vand.u32 %v2379, 4294901760
  %v2805 = vsub.f32 %v2379, %v2804
  %2806 = vmatpush1.msra.mxu0 %v2805
  %v2807 = vand.u32 %v2373, 4294901760
  %v2808 = vsub.f32 %v2373, %v2807
  %2809 = vmatprep.subr.mxu0 %v2808
  %v2810 = vand.u32 %v2372, 4294901760
  %v2811 = vsub.f32 %v2372, %v2810
  %2812 = vmatpush1.msra.mxu0 %v2811
  %2813 = vmatprep.subr.mxu0 0.0
  %2814 = vmatpush2.msra.mxu0 0.0
  %2815 = vmatprep.subr.mxu0 0.0
  %2816 = vmatpush2.msra.mxu0 0.0
  %2817 = vmatprep.subr.mxu0 0.0
  %2818 = vmatpush2.msra.mxu0 0.0
  %2819 = vmatprep.subr.mxu0 0.0
  %2820 = vmatpush2.msra.mxu0 0.0
  %2821 = vmatprep.subr.mxu0 0.0
  %2822 = vmatpush2.msra.mxu0 0.0
  %2823 = vmatprep.subr.mxu0 0.0
  %2824 = vmatpush2.msra.mxu0 0.0
  %2825 = vmatprep.subr.mxu0 0.0
  %2826 = vmatpush2.msra.mxu0 0.0
  %2827 = vmatprep.subr.mxu0 0.0
  %2828 = vmatpush2.msra.mxu0 0.0
  %2829 = vmatprep.subr.mxu0 0.0
  %2830 = vmatpush2.msra.mxu0 0.0
  %2831 = vmatprep.subr.mxu0 0.0
  %2832 = vmatpush2.msra.mxu0 0.0
  %2833 = vmatprep.subr.mxu0 0.0
  %2834 = vmatpush2.msra.mxu0 0.0
  %2835 = vmatprep.subr.mxu0 0.0
  %2836 = vmatpush2.msra.mxu0 0.0
  %2837 = vmatprep.subr.mxu0 0.0
  %2838 = vmatpush2.msra.mxu0 0.0
  %2839 = vmatprep.subr.mxu0 0.0
  %2840 = vmatpush2.msra.mxu0 0.0
  %2841 = vmatprep.subr.mxu0 0.0
  %2842 = vmatpush2.msra.mxu0 0.0
  %2843 = vmatprep.subr.mxu0 0.0
  %2844 = vmatpush2.msra.mxu0 0.0
  %2845 = vmatprep.mubr.f32.mxu0 0.0
  %v2846 = vand.u32 %v2472, 4294901760
  %v2847 = vsub.f32 %v2472, %v2846
  %2848 = vmatmul.mubr.f32.gmra.mxu0 %v2847
  %v2849 = vpop.f32.mrf.mxu0
  %v2850 = vadd.f32 %v2732, %v2849
  %v2851 = vpop.f32.mrf.mxu0
  %v2852 = vadd.f32 %v2734, %v2851
  %2853 = vmatprep.mubr.f32.mxu0 0.0
  %v2854 = vand.u32 %v2475, 4294901760
  %v2855 = vsub.f32 %v2475, %v2854
  %2856 = vmatmul.mubr.f32.gmra.mxu0 %v2855
  %v2857 = vpop.f32.mrf.mxu0
  %v2858 = vadd.f32 %v2739, %v2857
  %v2859 = vpop.f32.mrf.mxu0
  %v2860 = vadd.f32 %v2741, %v2859
  %2861 = vmatprep.mubr.f32.mxu0 0.0
  %v2862 = vand.u32 %v2478, 4294901760
  %v2863 = vsub.f32 %v2478, %v2862
  %2864 = vmatmul.mubr.f32.gmra.mxu0 %v2863
  %v2865 = vpop.f32.mrf.mxu0
  %v2866 = vadd.f32 %v2746, %v2865
  %v2867 = vpop.f32.mrf.mxu0
  %v2868 = vadd.f32 %v2748, %v2867
  %2869 = vmatprep.mubr.f32.mxu0 0.0
  %v2870 = vand.u32 %v2481, 4294901760
  %v2871 = vsub.f32 %v2481, %v2870
  %2872 = vmatmul.mubr.f32.gmra.mxu0 %v2871
  %v2873 = vpop.f32.mrf.mxu0
  %v2874 = vadd.f32 %v2753, %v2873
  %v2875 = vpop.f32.mrf.mxu0
  %v2876 = vadd.f32 %v2755, %v2875
  %2877 = vdwg.mxu0
  %2878 = vmatprep.subr.mxu0 0.0
  %2879 = vmatpush1.msra.mxu0 0.0
  %2880 = vmatprep.subr.mxu0 0.0
  %2881 = vmatpush1.msra.mxu0 0.0
  %2882 = vmatprep.subr.mxu0 0.0
  %2883 = vmatpush1.msra.mxu0 0.0
  %2884 = vmatprep.subr.mxu0 0.0
  %2885 = vmatpush1.msra.mxu0 0.0
  %2886 = vmatprep.subr.mxu0 0.0
  %2887 = vmatpush1.msra.mxu0 0.0
  %2888 = vmatprep.subr.mxu0 0.0
  %2889 = vmatpush1.msra.mxu0 0.0
  %2890 = vmatprep.subr.mxu0 0.0
  %2891 = vmatpush1.msra.mxu0 0.0
  %2892 = vmatprep.subr.mxu0 0.0
  %2893 = vmatpush1.msra.mxu0 0.0
  %2894 = vmatprep.subr.mxu0 0.0
  %2895 = vmatpush1.msra.mxu0 0.0
  %2896 = vmatprep.subr.mxu0 0.0
  %2897 = vmatpush1.msra.mxu0 0.0
  %v2898 = vand.u32 %v2436, 4294901760
  %2899 = vmatprep.subr.mxu0 %v2898
  %v2900 = vand.u32 %v2435, 4294901760
  %2901 = vmatpush1.msra.mxu0 %v2900
  %v2902 = vand.u32 %v2429, 4294901760
  %2903 = vmatprep.subr.mxu0 %v2902
  %v2904 = vand.u32 %v2428, 4294901760
  %2905 = vmatpush1.msra.mxu0 %v2904
  %v2906 = vand.u32 %v2324, 4294901760
  %2907 = vmatprep.subr.mxu0 %v2906
  %v2908 = vand.u32 %v2323, 4294901760
  %2909 = vmatpush1.msra.mxu0 %v2908
  %v2910 = vand.u32 %v2317, 4294901760
  %2911 = vmatprep.subr.mxu0 %v2910
  %v2912 = vand.u32 %v2316, 4294901760
  %2913 = vmatpush1.msra.mxu0 %v2912
  %v2914 = vand.u32 %v2380, 4294901760
  %2915 = vmatprep.subr.mxu0 %v2914
  %v2916 = vand.u32 %v2379, 4294901760
  %2917 = vmatpush1.msra.mxu0 %v2916
  %v2918 = vand.u32 %v2373, 4294901760
  %2919 = vmatprep.subr.mxu0 %v2918
  %v2920 = vand.u32 %v2372, 4294901760
  %2921 = vmatpush1.msra.mxu0 %v2920
  %2922 = vmatprep.subr.mxu0 0.0
  %2923 = vmatpush2.msra.mxu0 0.0
  %2924 = vmatprep.subr.mxu0 0.0
  %2925 = vmatpush2.msra.mxu0 0.0
  %2926 = vmatprep.subr.mxu0 0.0
  %2927 = vmatpush2.msra.mxu0 0.0
  %2928 = vmatprep.subr.mxu0 0.0
  %2929 = vmatpush2.msra.mxu0 0.0
  %2930 = vmatprep.subr.mxu0 0.0
  %2931 = vmatpush2.msra.mxu0 0.0
  %2932 = vmatprep.subr.mxu0 0.0
  %2933 = vmatpush2.msra.mxu0 0.0
  %2934 = vmatprep.subr.mxu0 0.0
  %2935 = vmatpush2.msra.mxu0 0.0
  %2936 = vmatprep.subr.mxu0 0.0
  %2937 = vmatpush2.msra.mxu0 0.0
  %2938 = vmatprep.subr.mxu0 0.0
  %2939 = vmatpush2.msra.mxu0 0.0
  %2940 = vmatprep.subr.mxu0 0.0
  %2941 = vmatpush2.msra.mxu0 0.0
  %2942 = vmatprep.subr.mxu0 0.0
  %2943 = vmatpush2.msra.mxu0 0.0
  %2944 = vmatprep.subr.mxu0 0.0
  %2945 = vmatpush2.msra.mxu0 0.0
  %2946 = vmatprep.subr.mxu0 0.0
  %2947 = vmatpush2.msra.mxu0 0.0
  %2948 = vmatprep.subr.mxu0 0.0
  %2949 = vmatpush2.msra.mxu0 0.0
  %2950 = vmatprep.subr.mxu0 0.0
  %2951 = vmatpush2.msra.mxu0 0.0
  %2952 = vmatprep.subr.mxu0 0.0
  %2953 = vmatpush2.msra.mxu0 0.0
  %2954 = vmatprep.mubr.f32.mxu0 0.0
  %v2955 = vand.u32 %v2472, 4294901760
  %v2956 = vsub.f32 %v2472, %v2955
  %v2957 = vand.u32 %v2956, 4294901760
  %2958 = vmatmul.mubr.f32.gmra.mxu0 %v2957
  %v2959 = vpop.f32.mrf.mxu0
  %v2960 = vadd.f32 %v2850, %v2959
  %v2961 = vpop.f32.mrf.mxu0
  %v2962 = vadd.f32 %v2852, %v2961
  %2963 = vmatprep.mubr.f32.mxu0 0.0
  %v2964 = vand.u32 %v2475, 4294901760
  %v2965 = vsub.f32 %v2475, %v2964
  %v2966 = vand.u32 %v2965, 4294901760
  %2967 = vmatmul.mubr.f32.gmra.mxu0 %v2966
  %v2968 = vpop.f32.mrf.mxu0
  %v2969 = vadd.f32 %v2858, %v2968
  %v2970 = vpop.f32.mrf.mxu0
  %v2971 = vadd.f32 %v2860, %v2970
  %2972 = vmatprep.mubr.f32.mxu0 0.0
  %v2973 = vand.u32 %v2478, 4294901760
  %v2974 = vsub.f32 %v2478, %v2973
  %v2975 = vand.u32 %v2974, 4294901760
  %2976 = vmatmul.mubr.f32.gmra.mxu0 %v2975
  %v2977 = vpop.f32.mrf.mxu0
  %v2978 = vadd.f32 %v2866, %v2977
  %v2979 = vpop.f32.mrf.mxu0
  %v2980 = vadd.f32 %v2868, %v2979
  %2981 = vmatprep.mubr.f32.mxu0 0.0
  %v2982 = vand.u32 %v2481, 4294901760
  %v2983 = vsub.f32 %v2481, %v2982
  %v2984 = vand.u32 %v2983, 4294901760
  %2985 = vmatmul.mubr.f32.gmra.mxu0 %v2984
  %v2986 = vpop.f32.mrf.mxu0
  %v2987 = vadd.f32 %v2874, %v2986
  %v2988 = vpop.f32.mrf.mxu0
  %v2989 = vadd.f32 %v2876, %v2988
  %2990 = vdwg.mxu0
  %2991 = vmatprep.subr.mxu0 0.0
  %2992 = vmatpush1.msra.mxu0 0.0
  %2993 = vmatprep.subr.mxu0 0.0
  %2994 = vmatpush1.msra.mxu0 0.0
  %2995 = vmatprep.subr.mxu0 0.0
  %2996 = vmatpush1.msra.mxu0 0.0
  %2997 = vmatprep.subr.mxu0 0.0
  %2998 = vmatpush1.msra.mxu0 0.0
  %2999 = vmatprep.subr.mxu0 0.0
  %3000 = vmatpush1.msra.mxu0 0.0
  %3001 = vmatprep.subr.mxu0 0.0
  %3002 = vmatpush1.msra.mxu0 0.0
  %3003 = vmatprep.subr.mxu0 0.0
  %3004 = vmatpush1.msra.mxu0 0.0
  %3005 = vmatprep.subr.mxu0 0.0
  %3006 = vmatpush1.msra.mxu0 0.0
  %3007 = vmatprep.subr.mxu0 0.0
  %3008 = vmatpush1.msra.mxu0 0.0
  %3009 = vmatprep.subr.mxu0 0.0
  %3010 = vmatpush1.msra.mxu0 0.0
  %v3011 = vand.u32 %v2436, 4294901760
  %v3012 = vsub.f32 %v2436, %v3011
  %v3013 = vand.u32 %v3012, 4294901760
  %3014 = vmatprep.subr.mxu0 %v3013
  %v3015 = vand.u32 %v2435, 4294901760
  %v3016 = vsub.f32 %v2435, %v3015
  %v3017 = vand.u32 %v3016, 4294901760
  %3018 = vmatpush1.msra.mxu0 %v3017
  %v3019 = vand.u32 %v2429, 4294901760
  %v3020 = vsub.f32 %v2429, %v3019
  %v3021 = vand.u32 %v3020, 4294901760
  %3022 = vmatprep.subr.mxu0 %v3021
  %v3023 = vand.u32 %v2428, 4294901760
  %v3024 = vsub.f32 %v2428, %v3023
  %v3025 = vand.u32 %v3024, 4294901760
  %3026 = vmatpush1.msra.mxu0 %v3025
  %v3027 = vand.u32 %v2324, 4294901760
  %v3028 = vsub.f32 %v2324, %v3027
  %v3029 = vand.u32 %v3028, 4294901760
  %3030 = vmatprep.subr.mxu0 %v3029
  %v3031 = vand.u32 %v2323, 4294901760
  %v3032 = vsub.f32 %v2323, %v3031
  %v3033 = vand.u32 %v3032, 4294901760
  %3034 = vmatpush1.msra.mxu0 %v3033
  %v3035 = vand.u32 %v2317, 4294901760
  %v3036 = vsub.f32 %v2317, %v3035
  %v3037 = vand.u32 %v3036, 4294901760
  %3038 = vmatprep.subr.mxu0 %v3037
  %v3039 = vand.u32 %v2316, 4294901760
  %v3040 = vsub.f32 %v2316, %v3039
  %v3041 = vand.u32 %v3040, 4294901760
  %3042 = vmatpush1.msra.mxu0 %v3041
  %v3043 = vand.u32 %v2380, 4294901760
  %v3044 = vsub.f32 %v2380, %v3043
  %v3045 = vand.u32 %v3044, 4294901760
  %3046 = vmatprep.subr.mxu0 %v3045
  %v3047 = vand.u32 %v2379, 4294901760
  %v3048 = vsub.f32 %v2379, %v3047
  %v3049 = vand.u32 %v3048, 4294901760
  %3050 = vmatpush1.msra.mxu0 %v3049
  %v3051 = vand.u32 %v2373, 4294901760
  %v3052 = vsub.f32 %v2373, %v3051
  %v3053 = vand.u32 %v3052, 4294901760
  %3054 = vmatprep.subr.mxu0 %v3053
  %v3055 = vand.u32 %v2372, 4294901760
  %v3056 = vsub.f32 %v2372, %v3055
  %v3057 = vand.u32 %v3056, 4294901760
  %3058 = vmatpush1.msra.mxu0 %v3057
  %3059 = vmatprep.subr.mxu0 0.0
  %3060 = vmatpush2.msra.mxu0 0.0
  %3061 = vmatprep.subr.mxu0 0.0
  %3062 = vmatpush2.msra.mxu0 0.0
  %3063 = vmatprep.subr.mxu0 0.0
  %3064 = vmatpush2.msra.mxu0 0.0
  %3065 = vmatprep.subr.mxu0 0.0
  %3066 = vmatpush2.msra.mxu0 0.0
  %3067 = vmatprep.subr.mxu0 0.0
  %3068 = vmatpush2.msra.mxu0 0.0
  %3069 = vmatprep.subr.mxu0 0.0
  %3070 = vmatpush2.msra.mxu0 0.0
  %3071 = vmatprep.subr.mxu0 0.0
  %3072 = vmatpush2.msra.mxu0 0.0
  %3073 = vmatprep.subr.mxu0 0.0
  %3074 = vmatpush2.msra.mxu0 0.0
  %3075 = vmatprep.subr.mxu0 0.0
  %3076 = vmatpush2.msra.mxu0 0.0
  %3077 = vmatprep.subr.mxu0 0.0
  %3078 = vmatpush2.msra.mxu0 0.0
  %3079 = vmatprep.subr.mxu0 0.0
  %3080 = vmatpush2.msra.mxu0 0.0
  %3081 = vmatprep.subr.mxu0 0.0
  %3082 = vmatpush2.msra.mxu0 0.0
  %3083 = vmatprep.subr.mxu0 0.0
  %3084 = vmatpush2.msra.mxu0 0.0
  %3085 = vmatprep.subr.mxu0 0.0
  %3086 = vmatpush2.msra.mxu0 0.0
  %3087 = vmatprep.subr.mxu0 0.0
  %3088 = vmatpush2.msra.mxu0 0.0
  %3089 = vmatprep.subr.mxu0 0.0
  %3090 = vmatpush2.msra.mxu0 0.0
  %3091 = vmatprep.mubr.f32.mxu0 0.0
  %v3092 = vand.u32 %v2472, 4294901760
  %3093 = vmatmul.mubr.f32.gmra.mxu0 %v3092
  %v3094 = vpop.f32.mrf.mxu0
  %v3095 = vadd.f32 %v2960, %v3094
  %v3096 = vpop.f32.mrf.mxu0
  %v3097 = vadd.f32 %v2962, %v3096
  %3098 = vmatprep.mubr.f32.mxu0 0.0
  %v3099 = vand.u32 %v2475, 4294901760
  %3100 = vmatmul.mubr.f32.gmra.mxu0 %v3099
  %v3101 = vpop.f32.mrf.mxu0
  %v3102 = vadd.f32 %v2969, %v3101
  %v3103 = vpop.f32.mrf.mxu0
  %v3104 = vadd.f32 %v2971, %v3103
  %3105 = vmatprep.mubr.f32.mxu0 0.0
  %v3106 = vand.u32 %v2478, 4294901760
  %3107 = vmatmul.mubr.f32.gmra.mxu0 %v3106
  %v3108 = vpop.f32.mrf.mxu0
  %v3109 = vadd.f32 %v2978, %v3108
  %v3110 = vpop.f32.mrf.mxu0
  %v3111 = vadd.f32 %v2980, %v3110
  %3112 = vmatprep.mubr.f32.mxu0 0.0
  %v3113 = vand.u32 %v2481, 4294901760
  %3114 = vmatmul.mubr.f32.gmra.mxu0 %v3113
  %v3115 = vpop.f32.mrf.mxu0
  %v3116 = vadd.f32 %v2987, %v3115
  %v3117 = vpop.f32.mrf.mxu0
  %v3118 = vadd.f32 %v2989, %v3117
  %3119 = vdwg.mxu0
  %3120 = vmatprep.subr.mxu0 0.0
  %3121 = vmatpush1.msra.mxu0 0.0
  %3122 = vmatprep.subr.mxu0 0.0
  %3123 = vmatpush1.msra.mxu0 0.0
  %3124 = vmatprep.subr.mxu0 0.0
  %3125 = vmatpush1.msra.mxu0 0.0
  %3126 = vmatprep.subr.mxu0 0.0
  %3127 = vmatpush1.msra.mxu0 0.0
  %3128 = vmatprep.subr.mxu0 0.0
  %3129 = vmatpush1.msra.mxu0 0.0
  %3130 = vmatprep.subr.mxu0 0.0
  %3131 = vmatpush1.msra.mxu0 0.0
  %3132 = vmatprep.subr.mxu0 0.0
  %3133 = vmatpush1.msra.mxu0 0.0
  %3134 = vmatprep.subr.mxu0 0.0
  %3135 = vmatpush1.msra.mxu0 0.0
  %3136 = vmatprep.subr.mxu0 0.0
  %3137 = vmatpush1.msra.mxu0 0.0
  %3138 = vmatprep.subr.mxu0 0.0
  %3139 = vmatpush1.msra.mxu0 0.0
  %v3140 = vand.u32 %v2436, 4294901760
  %3141 = vmatprep.subr.mxu0 %v3140
  %v3142 = vand.u32 %v2435, 4294901760
  %3143 = vmatpush1.msra.mxu0 %v3142
  %v3144 = vand.u32 %v2429, 4294901760
  %3145 = vmatprep.subr.mxu0 %v3144
  %v3146 = vand.u32 %v2428, 4294901760
  %3147 = vmatpush1.msra.mxu0 %v3146
  %v3148 = vand.u32 %v2324, 4294901760
  %3149 = vmatprep.subr.mxu0 %v3148
  %v3150 = vand.u32 %v2323, 4294901760
  %3151 = vmatpush1.msra.mxu0 %v3150
  %v3152 = vand.u32 %v2317, 4294901760
  %3153 = vmatprep.subr.mxu0 %v3152
  %v3154 = vand.u32 %v2316, 4294901760
  %3155 = vmatpush1.msra.mxu0 %v3154
  %v3156 = vand.u32 %v2380, 4294901760
  %3157 = vmatprep.subr.mxu0 %v3156
  %v3158 = vand.u32 %v2379, 4294901760
  %3159 = vmatpush1.msra.mxu0 %v3158
  %v3160 = vand.u32 %v2373, 4294901760
  %3161 = vmatprep.subr.mxu0 %v3160
  %v3162 = vand.u32 %v2372, 4294901760
  %3163 = vmatpush1.msra.mxu0 %v3162
  %3164 = vmatprep.subr.mxu0 0.0
  %3165 = vmatpush2.msra.mxu0 0.0
  %3166 = vmatprep.subr.mxu0 0.0
  %3167 = vmatpush2.msra.mxu0 0.0
  %3168 = vmatprep.subr.mxu0 0.0
  %3169 = vmatpush2.msra.mxu0 0.0
  %3170 = vmatprep.subr.mxu0 0.0
  %3171 = vmatpush2.msra.mxu0 0.0
  %3172 = vmatprep.subr.mxu0 0.0
  %3173 = vmatpush2.msra.mxu0 0.0
  %3174 = vmatprep.subr.mxu0 0.0
  %3175 = vmatpush2.msra.mxu0 0.0
  %3176 = vmatprep.subr.mxu0 0.0
  %3177 = vmatpush2.msra.mxu0 0.0
  %3178 = vmatprep.subr.mxu0 0.0
  %3179 = vmatpush2.msra.mxu0 0.0
  %3180 = vmatprep.subr.mxu0 0.0
  %3181 = vmatpush2.msra.mxu0 0.0
  %3182 = vmatprep.subr.mxu0 0.0
  %3183 = vmatpush2.msra.mxu0 0.0
  %3184 = vmatprep.subr.mxu0 0.0
  %3185 = vmatpush2.msra.mxu0 0.0
  %3186 = vmatprep.subr.mxu0 0.0
  %3187 = vmatpush2.msra.mxu0 0.0
  %3188 = vmatprep.subr.mxu0 0.0
  %3189 = vmatpush2.msra.mxu0 0.0
  %3190 = vmatprep.subr.mxu0 0.0
  %3191 = vmatpush2.msra.mxu0 0.0
  %3192 = vmatprep.subr.mxu0 0.0
  %3193 = vmatpush2.msra.mxu0 0.0
  %3194 = vmatprep.subr.mxu0 0.0
  %3195 = vmatpush2.msra.mxu0 0.0
  %3196 = vmatprep.mubr.f32.mxu0 0.0
  %v3197 = vand.u32 %v2472, 4294901760
  %3198 = vmatmul.mubr.f32.gmra.mxu0 %v3197
  %v3199 = vpop.f32.mrf.mxu0
  %v3200 = vadd.f32 %v3095, %v3199
  %v3201 = vpop.f32.mrf.mxu0
  %v3202 = vadd.f32 %v3097, %v3201
  %3203 = vmatprep.mubr.f32.mxu0 0.0
  %v3204 = vand.u32 %v2475, 4294901760
  %3205 = vmatmul.mubr.f32.gmra.mxu0 %v3204
  %v3206 = vpop.f32.mrf.mxu0
  %v3207 = vadd.f32 %v3102, %v3206
  %v3208 = vpop.f32.mrf.mxu0
  %v3209 = vadd.f32 %v3104, %v3208
  %3210 = vmatprep.mubr.f32.mxu0 0.0
  %v3211 = vand.u32 %v2478, 4294901760
  %3212 = vmatmul.mubr.f32.gmra.mxu0 %v3211
  %v3213 = vpop.f32.mrf.mxu0
  %v3214 = vadd.f32 %v3109, %v3213
  %v3215 = vpop.f32.mrf.mxu0
  %v3216 = vadd.f32 %v3111, %v3215
  %3217 = vmatprep.mubr.f32.mxu0 0.0
  %v3218 = vand.u32 %v2481, 4294901760
  %3219 = vmatmul.mubr.f32.gmra.mxu0 %v3218
  %v3220 = vpop.f32.mrf.mxu0
  %v3221 = vadd.f32 %v3116, %v3220
  %v3222 = vpop.f32.mrf.mxu0
  %v3223 = vadd.f32 %v3118, %v3222
  %3224 = vdwg.mxu0
  %3225 = vmatprep.subr.mxu0 0.0
  %3226 = vmatpush1.msra.mxu0 0.0
  %3227 = vmatprep.subr.mxu0 0.0
  %3228 = vmatpush1.msra.mxu0 0.0
  %3229 = vmatprep.subr.mxu0 0.0
  %3230 = vmatpush1.msra.mxu0 0.0
  %3231 = vmatprep.subr.mxu0 0.0
  %3232 = vmatpush1.msra.mxu0 0.0
  %3233 = vmatprep.subr.mxu0 0.0
  %3234 = vmatpush1.msra.mxu0 0.0
  %3235 = vmatprep.subr.mxu0 0.0
  %3236 = vmatpush1.msra.mxu0 0.0
  %3237 = vmatprep.subr.mxu0 0.0
  %3238 = vmatpush1.msra.mxu0 0.0
  %3239 = vmatprep.subr.mxu0 0.0
  %3240 = vmatpush1.msra.mxu0 0.0
  %3241 = vmatprep.subr.mxu0 0.0
  %3242 = vmatpush1.msra.mxu0 0.0
  %3243 = vmatprep.subr.mxu0 0.0
  %3244 = vmatpush1.msra.mxu0 0.0
  %v3245 = vand.u32 %v2438, 4294901760
  %3246 = vmatprep.subr.mxu0 %v3245
  %v3247 = vand.u32 %v2437, 4294901760
  %3248 = vmatpush1.msra.mxu0 %v3247
  %v3249 = vand.u32 %v2431, 4294901760
  %3250 = vmatprep.subr.mxu0 %v3249
  %v3251 = vand.u32 %v2430, 4294901760
  %3252 = vmatpush1.msra.mxu0 %v3251
  %v3253 = vand.u32 %v2326, 4294901760
  %3254 = vmatprep.subr.mxu0 %v3253
  %v3255 = vand.u32 %v2325, 4294901760
  %3256 = vmatpush1.msra.mxu0 %v3255
  %v3257 = vand.u32 %v2319, 4294901760
  %3258 = vmatprep.subr.mxu0 %v3257
  %v3259 = vand.u32 %v2318, 4294901760
  %3260 = vmatpush1.msra.mxu0 %v3259
  %v3261 = vand.u32 %v2382, 4294901760
  %3262 = vmatprep.subr.mxu0 %v3261
  %v3263 = vand.u32 %v2381, 4294901760
  %3264 = vmatpush1.msra.mxu0 %v3263
  %v3265 = vand.u32 %v2375, 4294901760
  %3266 = vmatprep.subr.mxu0 %v3265
  %v3267 = vand.u32 %v2374, 4294901760
  %3268 = vmatpush1.msra.mxu0 %v3267
  %3269 = vmatprep.subr.mxu0 0.0
  %3270 = vmatpush2.msra.mxu0 0.0
  %3271 = vmatprep.subr.mxu0 0.0
  %3272 = vmatpush2.msra.mxu0 0.0
  %3273 = vmatprep.subr.mxu0 0.0
  %3274 = vmatpush2.msra.mxu0 0.0
  %3275 = vmatprep.subr.mxu0 0.0
  %3276 = vmatpush2.msra.mxu0 0.0
  %3277 = vmatprep.subr.mxu0 0.0
  %3278 = vmatpush2.msra.mxu0 0.0
  %3279 = vmatprep.subr.mxu0 0.0
  %3280 = vmatpush2.msra.mxu0 0.0
  %3281 = vmatprep.subr.mxu0 0.0
  %3282 = vmatpush2.msra.mxu0 0.0
  %3283 = vmatprep.subr.mxu0 0.0
  %3284 = vmatpush2.msra.mxu0 0.0
  %3285 = vmatprep.subr.mxu0 0.0
  %3286 = vmatpush2.msra.mxu0 0.0
  %3287 = vmatprep.subr.mxu0 0.0
  %3288 = vmatpush2.msra.mxu0 0.0
  %3289 = vmatprep.subr.mxu0 0.0
  %3290 = vmatpush2.msra.mxu0 0.0
  %3291 = vmatprep.subr.mxu0 0.0
  %3292 = vmatpush2.msra.mxu0 0.0
  %3293 = vmatprep.subr.mxu0 0.0
  %3294 = vmatpush2.msra.mxu0 0.0
  %3295 = vmatprep.subr.mxu0 0.0
  %3296 = vmatpush2.msra.mxu0 0.0
  %3297 = vmatprep.subr.mxu0 0.0
  %3298 = vmatpush2.msra.mxu0 0.0
  %3299 = vmatprep.subr.mxu0 0.0
  %3300 = vmatpush2.msra.mxu0 0.0
  %3301 = vmatprep.mubr.f32.mxu0 0.0
  %v3302 = vand.u32 %v2472, 4294901760
  %v3303 = vsub.f32 %v2472, %v3302
  %v3304 = vand.u32 %v3303, 4294901760
  %v3305 = vsub.f32 %v3303, %v3304
  %v3306 = vand.u32 %v3305, 4294901760
  %3307 = vmatmul.mubr.f32.gmra.mxu0 %v3306
  %v3308 = vpop.f32.mrf.mxu0
  %v3309 = vadd.f32 %v2453, %v3308
  %v3310 = vpop.f32.mrf.mxu0
  %v3311 = vadd.f32 %v2453, %v3310
  %3312 = vmatprep.mubr.f32.mxu0 0.0
  %v3313 = vand.u32 %v2475, 4294901760
  %v3314 = vsub.f32 %v2475, %v3313
  %v3315 = vand.u32 %v3314, 4294901760
  %v3316 = vsub.f32 %v3314, %v3315
  %v3317 = vand.u32 %v3316, 4294901760
  %3318 = vmatmul.mubr.f32.gmra.mxu0 %v3317
  %v3319 = vpop.f32.mrf.mxu0
  %v3320 = vadd.f32 %v2458, %v3319
  %v3321 = vpop.f32.mrf.mxu0
  %v3322 = vadd.f32 %v2458, %v3321
  %3323 = vmatprep.mubr.f32.mxu0 0.0
  %v3324 = vand.u32 %v2478, 4294901760
  %v3325 = vsub.f32 %v2478, %v3324
  %v3326 = vand.u32 %v3325, 4294901760
  %v3327 = vsub.f32 %v3325, %v3326
  %v3328 = vand.u32 %v3327, 4294901760
  %3329 = vmatmul.mubr.f32.gmra.mxu0 %v3328
  %v3330 = vpop.f32.mrf.mxu0
  %v3331 = vadd.f32 %v2463, %v3330
  %v3332 = vpop.f32.mrf.mxu0
  %v3333 = vadd.f32 %v2463, %v3332
  %3334 = vmatprep.mubr.f32.mxu0 0.0
  %v3335 = vand.u32 %v2481, 4294901760
  %v3336 = vsub.f32 %v2481, %v3335
  %v3337 = vand.u32 %v3336, 4294901760
  %v3338 = vsub.f32 %v3336, %v3337
  %v3339 = vand.u32 %v3338, 4294901760
  %3340 = vmatmul.mubr.f32.gmra.mxu0 %v3339
  %v3341 = vpop.f32.mrf.mxu0
  %v3342 = vadd.f32 %v2468, %v3341
  %v3343 = vpop.f32.mrf.mxu0
  %v3344 = vadd.f32 %v2468, %v3343
  %3345 = vdwg.mxu0
  %3346 = vmatprep.subr.mxu0 0.0
  %3347 = vmatpush1.msra.mxu0 0.0
  %3348 = vmatprep.subr.mxu0 0.0
  %3349 = vmatpush1.msra.mxu0 0.0
  %3350 = vmatprep.subr.mxu0 0.0
  %3351 = vmatpush1.msra.mxu0 0.0
  %3352 = vmatprep.subr.mxu0 0.0
  %3353 = vmatpush1.msra.mxu0 0.0
  %3354 = vmatprep.subr.mxu0 0.0
  %3355 = vmatpush1.msra.mxu0 0.0
  %3356 = vmatprep.subr.mxu0 0.0
  %3357 = vmatpush1.msra.mxu0 0.0
  %3358 = vmatprep.subr.mxu0 0.0
  %3359 = vmatpush1.msra.mxu0 0.0
  %3360 = vmatprep.subr.mxu0 0.0
  %3361 = vmatpush1.msra.mxu0 0.0
  %3362 = vmatprep.subr.mxu0 0.0
  %3363 = vmatpush1.msra.mxu0 0.0
  %3364 = vmatprep.subr.mxu0 0.0
  %3365 = vmatpush1.msra.mxu0 0.0
  %v3366 = vand.u32 %v2438, 4294901760
  %v3367 = vsub.f32 %v2438, %v3366
  %v3368 = vand.u32 %v3367, 4294901760
  %v3369 = vsub.f32 %v3367, %v3368
  %v3370 = vand.u32 %v3369, 4294901760
  %3371 = vmatprep.subr.mxu0 %v3370
  %v3372 = vand.u32 %v2437, 4294901760
  %v3373 = vsub.f32 %v2437, %v3372
  %v3374 = vand.u32 %v3373, 4294901760
  %v3375 = vsub.f32 %v3373, %v3374
  %v3376 = vand.u32 %v3375, 4294901760
  %3377 = vmatpush1.msra.mxu0 %v3376
  %v3378 = vand.u32 %v2431, 4294901760
  %v3379 = vsub.f32 %v2431, %v3378
  %v3380 = vand.u32 %v3379, 4294901760
  %v3381 = vsub.f32 %v3379, %v3380
  %v3382 = vand.u32 %v3381, 4294901760
  %3383 = vmatprep.subr.mxu0 %v3382
  %v3384 = vand.u32 %v2430, 4294901760
  %v3385 = vsub.f32 %v2430, %v3384
  %v3386 = vand.u32 %v3385, 4294901760
  %v3387 = vsub.f32 %v3385, %v3386
  %v3388 = vand.u32 %v3387, 4294901760
  %3389 = vmatpush1.msra.mxu0 %v3388
  %v3390 = vand.u32 %v2326, 4294901760
  %v3391 = vsub.f32 %v2326, %v3390
  %v3392 = vand.u32 %v3391, 4294901760
  %v3393 = vsub.f32 %v3391, %v3392
  %v3394 = vand.u32 %v3393, 4294901760
  %3395 = vmatprep.subr.mxu0 %v3394
  %v3396 = vand.u32 %v2325, 4294901760
  %v3397 = vsub.f32 %v2325, %v3396
  %v3398 = vand.u32 %v3397, 4294901760
  %v3399 = vsub.f32 %v3397, %v3398
  %v3400 = vand.u32 %v3399, 4294901760
  %3401 = vmatpush1.msra.mxu0 %v3400
  %v3402 = vand.u32 %v2319, 4294901760
  %v3403 = vsub.f32 %v2319, %v3402
  %v3404 = vand.u32 %v3403, 4294901760
  %v3405 = vsub.f32 %v3403, %v3404
  %v3406 = vand.u32 %v3405, 4294901760
  %3407 = vmatprep.subr.mxu0 %v3406
  %v3408 = vand.u32 %v2318, 4294901760
  %v3409 = vsub.f32 %v2318, %v3408
  %v3410 = vand.u32 %v3409, 4294901760
  %v3411 = vsub.f32 %v3409, %v3410
  %v3412 = vand.u32 %v3411, 4294901760
  %3413 = vmatpush1.msra.mxu0 %v3412
  %v3414 = vand.u32 %v2382, 4294901760
  %v3415 = vsub.f32 %v2382, %v3414
  %v3416 = vand.u32 %v3415, 4294901760
  %v3417 = vsub.f32 %v3415, %v3416
  %v3418 = vand.u32 %v3417, 4294901760
  %3419 = vmatprep.subr.mxu0 %v3418
  %v3420 = vand.u32 %v2381, 4294901760
  %v3421 = vsub.f32 %v2381, %v3420
  %v3422 = vand.u32 %v3421, 4294901760
  %v3423 = vsub.f32 %v3421, %v3422
  %v3424 = vand.u32 %v3423, 4294901760
  %3425 = vmatpush1.msra.mxu0 %v3424
  %v3426 = vand.u32 %v2375, 4294901760
  %v3427 = vsub.f32 %v2375, %v3426
  %v3428 = vand.u32 %v3427, 4294901760
  %v3429 = vsub.f32 %v3427, %v3428
  %v3430 = vand.u32 %v3429, 4294901760
  %3431 = vmatprep.subr.mxu0 %v3430
  %v3432 = vand.u32 %v2374, 4294901760
  %v3433 = vsub.f32 %v2374, %v3432
  %v3434 = vand.u32 %v3433, 4294901760
  %v3435 = vsub.f32 %v3433, %v3434
  %v3436 = vand.u32 %v3435, 4294901760
  %3437 = vmatpush1.msra.mxu0 %v3436
  %3438 = vmatprep.subr.mxu0 0.0
  %3439 = vmatpush2.msra.mxu0 0.0
  %3440 = vmatprep.subr.mxu0 0.0
  %3441 = vmatpush2.msra.mxu0 0.0
  %3442 = vmatprep.subr.mxu0 0.0
  %3443 = vmatpush2.msra.mxu0 0.0
  %3444 = vmatprep.subr.mxu0 0.0
  %3445 = vmatpush2.msra.mxu0 0.0
  %3446 = vmatprep.subr.mxu0 0.0
  %3447 = vmatpush2.msra.mxu0 0.0
  %3448 = vmatprep.subr.mxu0 0.0
  %3449 = vmatpush2.msra.mxu0 0.0
  %3450 = vmatprep.subr.mxu0 0.0
  %3451 = vmatpush2.msra.mxu0 0.0
  %3452 = vmatprep.subr.mxu0 0.0
  %3453 = vmatpush2.msra.mxu0 0.0
  %3454 = vmatprep.subr.mxu0 0.0
  %3455 = vmatpush2.msra.mxu0 0.0
  %3456 = vmatprep.subr.mxu0 0.0
  %3457 = vmatpush2.msra.mxu0 0.0
  %3458 = vmatprep.subr.mxu0 0.0
  %3459 = vmatpush2.msra.mxu0 0.0
  %3460 = vmatprep.subr.mxu0 0.0
  %3461 = vmatpush2.msra.mxu0 0.0
  %3462 = vmatprep.subr.mxu0 0.0
  %3463 = vmatpush2.msra.mxu0 0.0
  %3464 = vmatprep.subr.mxu0 0.0
  %3465 = vmatpush2.msra.mxu0 0.0
  %3466 = vmatprep.subr.mxu0 0.0
  %3467 = vmatpush2.msra.mxu0 0.0
  %3468 = vmatprep.subr.mxu0 0.0
  %3469 = vmatpush2.msra.mxu0 0.0
  %3470 = vmatprep.mubr.f32.mxu0 0.0
  %v3471 = vand.u32 %v2472, 4294901760
  %3472 = vmatmul.mubr.f32.gmra.mxu0 %v3471
  %v3473 = vpop.f32.mrf.mxu0
  %v3474 = vadd.f32 %v3309, %v3473
  %v3475 = vpop.f32.mrf.mxu0
  %v3476 = vadd.f32 %v3311, %v3475
  %3477 = vmatprep.mubr.f32.mxu0 0.0
  %v3478 = vand.u32 %v2475, 4294901760
  %3479 = vmatmul.mubr.f32.gmra.mxu0 %v3478
  %v3480 = vpop.f32.mrf.mxu0
  %v3481 = vadd.f32 %v3320, %v3480
  %v3482 = vpop.f32.mrf.mxu0
  %v3483 = vadd.f32 %v3322, %v3482
  %3484 = vmatprep.mubr.f32.mxu0 0.0
  %v3485 = vand.u32 %v2478, 4294901760
  %3486 = vmatmul.mubr.f32.gmra.mxu0 %v3485
  %v3487 = vpop.f32.mrf.mxu0
  %v3488 = vadd.f32 %v3331, %v3487
  %v3489 = vpop.f32.mrf.mxu0
  %v3490 = vadd.f32 %v3333, %v3489
  %3491 = vmatprep.mubr.f32.mxu0 0.0
  %v3492 = vand.u32 %v2481, 4294901760
  %3493 = vmatmul.mubr.f32.gmra.mxu0 %v3492
  %v3494 = vpop.f32.mrf.mxu0
  %v3495 = vadd.f32 %v3342, %v3494
  %v3496 = vpop.f32.mrf.mxu0
  %v3497 = vadd.f32 %v3344, %v3496
  %3498 = vdwg.mxu0
  %3499 = vmatprep.subr.mxu0 0.0
  %3500 = vmatpush1.msra.mxu0 0.0
  %3501 = vmatprep.subr.mxu0 0.0
  %3502 = vmatpush1.msra.mxu0 0.0
  %3503 = vmatprep.subr.mxu0 0.0
  %3504 = vmatpush1.msra.mxu0 0.0
  %3505 = vmatprep.subr.mxu0 0.0
  %3506 = vmatpush1.msra.mxu0 0.0
  %3507 = vmatprep.subr.mxu0 0.0
  %3508 = vmatpush1.msra.mxu0 0.0
  %3509 = vmatprep.subr.mxu0 0.0
  %3510 = vmatpush1.msra.mxu0 0.0
  %3511 = vmatprep.subr.mxu0 0.0
  %3512 = vmatpush1.msra.mxu0 0.0
  %3513 = vmatprep.subr.mxu0 0.0
  %3514 = vmatpush1.msra.mxu0 0.0
  %3515 = vmatprep.subr.mxu0 0.0
  %3516 = vmatpush1.msra.mxu0 0.0
  %3517 = vmatprep.subr.mxu0 0.0
  %3518 = vmatpush1.msra.mxu0 0.0
  %v3519 = vand.u32 %v2438, 4294901760
  %v3520 = vsub.f32 %v2438, %v3519
  %3521 = vmatprep.subr.mxu0 %v3520
  %v3522 = vand.u32 %v2437, 4294901760
  %v3523 = vsub.f32 %v2437, %v3522
  %3524 = vmatpush1.msra.mxu0 %v3523
  %v3525 = vand.u32 %v2431, 4294901760
  %v3526 = vsub.f32 %v2431, %v3525
  %3527 = vmatprep.subr.mxu0 %v3526
  %v3528 = vand.u32 %v2430, 4294901760
  %v3529 = vsub.f32 %v2430, %v3528
  %3530 = vmatpush1.msra.mxu0 %v3529
  %v3531 = vand.u32 %v2326, 4294901760
  %v3532 = vsub.f32 %v2326, %v3531
  %3533 = vmatprep.subr.mxu0 %v3532
  %v3534 = vand.u32 %v2325, 4294901760
  %v3535 = vsub.f32 %v2325, %v3534
  %3536 = vmatpush1.msra.mxu0 %v3535
  %v3537 = vand.u32 %v2319, 4294901760
  %v3538 = vsub.f32 %v2319, %v3537
  %3539 = vmatprep.subr.mxu0 %v3538
  %v3540 = vand.u32 %v2318, 4294901760
  %v3541 = vsub.f32 %v2318, %v3540
  %3542 = vmatpush1.msra.mxu0 %v3541
  %v3543 = vand.u32 %v2382, 4294901760
  %v3544 = vsub.f32 %v2382, %v3543
  %3545 = vmatprep.subr.mxu0 %v3544
  %v3546 = vand.u32 %v2381, 4294901760
  %v3547 = vsub.f32 %v2381, %v3546
  %3548 = vmatpush1.msra.mxu0 %v3547
  %v3549 = vand.u32 %v2375, 4294901760
  %v3550 = vsub.f32 %v2375, %v3549
  %3551 = vmatprep.subr.mxu0 %v3550
  %v3552 = vand.u32 %v2374, 4294901760
  %v3553 = vsub.f32 %v2374, %v3552
  %3554 = vmatpush1.msra.mxu0 %v3553
  %3555 = vmatprep.subr.mxu0 0.0
  %3556 = vmatpush2.msra.mxu0 0.0
  %3557 = vmatprep.subr.mxu0 0.0
  %3558 = vmatpush2.msra.mxu0 0.0
  %3559 = vmatprep.subr.mxu0 0.0
  %3560 = vmatpush2.msra.mxu0 0.0
  %3561 = vmatprep.subr.mxu0 0.0
  %3562 = vmatpush2.msra.mxu0 0.0
  %3563 = vmatprep.subr.mxu0 0.0
  %3564 = vmatpush2.msra.mxu0 0.0
  %3565 = vmatprep.subr.mxu0 0.0
  %3566 = vmatpush2.msra.mxu0 0.0
  %3567 = vmatprep.subr.mxu0 0.0
  %3568 = vmatpush2.msra.mxu0 0.0
  %3569 = vmatprep.subr.mxu0 0.0
  %3570 = vmatpush2.msra.mxu0 0.0
  %3571 = vmatprep.subr.mxu0 0.0
  %3572 = vmatpush2.msra.mxu0 0.0
  %3573 = vmatprep.subr.mxu0 0.0
  %3574 = vmatpush2.msra.mxu0 0.0
  %3575 = vmatprep.subr.mxu0 0.0
  %3576 = vmatpush2.msra.mxu0 0.0
  %3577 = vmatprep.subr.mxu0 0.0
  %3578 = vmatpush2.msra.mxu0 0.0
  %3579 = vmatprep.subr.mxu0 0.0
  %3580 = vmatpush2.msra.mxu0 0.0
  %3581 = vmatprep.subr.mxu0 0.0
  %3582 = vmatpush2.msra.mxu0 0.0
  %3583 = vmatprep.subr.mxu0 0.0
  %3584 = vmatpush2.msra.mxu0 0.0
  %3585 = vmatprep.subr.mxu0 0.0
  %3586 = vmatpush2.msra.mxu0 0.0
  %3587 = vmatprep.mubr.f32.mxu0 0.0
  %v3588 = vand.u32 %v2472, 4294901760
  %v3589 = vsub.f32 %v2472, %v3588
  %3590 = vmatmul.mubr.f32.gmra.mxu0 %v3589
  %v3591 = vpop.f32.mrf.mxu0
  %v3592 = vadd.f32 %v3474, %v3591
  %v3593 = vpop.f32.mrf.mxu0
  %v3594 = vadd.f32 %v3476, %v3593
  %3595 = vmatprep.mubr.f32.mxu0 0.0
  %v3596 = vand.u32 %v2475, 4294901760
  %v3597 = vsub.f32 %v2475, %v3596
  %3598 = vmatmul.mubr.f32.gmra.mxu0 %v3597
  %v3599 = vpop.f32.mrf.mxu0
  %v3600 = vadd.f32 %v3481, %v3599
  %v3601 = vpop.f32.mrf.mxu0
  %v3602 = vadd.f32 %v3483, %v3601
  %3603 = vmatprep.mubr.f32.mxu0 0.0
  %v3604 = vand.u32 %v2478, 4294901760
  %v3605 = vsub.f32 %v2478, %v3604
  %3606 = vmatmul.mubr.f32.gmra.mxu0 %v3605
  %v3607 = vpop.f32.mrf.mxu0
  %v3608 = vadd.f32 %v3488, %v3607
  %v3609 = vpop.f32.mrf.mxu0
  %v3610 = vadd.f32 %v3490, %v3609
  %3611 = vmatprep.mubr.f32.mxu0 0.0
  %v3612 = vand.u32 %v2481, 4294901760
  %v3613 = vsub.f32 %v2481, %v3612
  %3614 = vmatmul.mubr.f32.gmra.mxu0 %v3613
  %v3615 = vpop.f32.mrf.mxu0
  %v3616 = vadd.f32 %v3495, %v3615
  %v3617 = vpop.f32.mrf.mxu0
  %v3618 = vadd.f32 %v3497, %v3617
  %3619 = vdwg.mxu0
  %3620 = vmatprep.subr.mxu0 0.0
  %3621 = vmatpush1.msra.mxu0 0.0
  %3622 = vmatprep.subr.mxu0 0.0
  %3623 = vmatpush1.msra.mxu0 0.0
  %3624 = vmatprep.subr.mxu0 0.0
  %3625 = vmatpush1.msra.mxu0 0.0
  %3626 = vmatprep.subr.mxu0 0.0
  %3627 = vmatpush1.msra.mxu0 0.0
  %3628 = vmatprep.subr.mxu0 0.0
  %3629 = vmatpush1.msra.mxu0 0.0
  %3630 = vmatprep.subr.mxu0 0.0
  %3631 = vmatpush1.msra.mxu0 0.0
  %3632 = vmatprep.subr.mxu0 0.0
  %3633 = vmatpush1.msra.mxu0 0.0
  %3634 = vmatprep.subr.mxu0 0.0
  %3635 = vmatpush1.msra.mxu0 0.0
  %3636 = vmatprep.subr.mxu0 0.0
  %3637 = vmatpush1.msra.mxu0 0.0
  %3638 = vmatprep.subr.mxu0 0.0
  %3639 = vmatpush1.msra.mxu0 0.0
  %v3640 = vand.u32 %v2438, 4294901760
  %3641 = vmatprep.subr.mxu0 %v3640
  %v3642 = vand.u32 %v2437, 4294901760
  %3643 = vmatpush1.msra.mxu0 %v3642
  %v3644 = vand.u32 %v2431, 4294901760
  %3645 = vmatprep.subr.mxu0 %v3644
  %v3646 = vand.u32 %v2430, 4294901760
  %3647 = vmatpush1.msra.mxu0 %v3646
  %v3648 = vand.u32 %v2326, 4294901760
  %3649 = vmatprep.subr.mxu0 %v3648
  %v3650 = vand.u32 %v2325, 4294901760
  %3651 = vmatpush1.msra.mxu0 %v3650
  %v3652 = vand.u32 %v2319, 4294901760
  %3653 = vmatprep.subr.mxu0 %v3652
  %v3654 = vand.u32 %v2318, 4294901760
  %3655 = vmatpush1.msra.mxu0 %v3654
  %v3656 = vand.u32 %v2382, 4294901760
  %3657 = vmatprep.subr.mxu0 %v3656
  %v3658 = vand.u32 %v2381, 4294901760
  %3659 = vmatpush1.msra.mxu0 %v3658
  %v3660 = vand.u32 %v2375, 4294901760
  %3661 = vmatprep.subr.mxu0 %v3660
  %v3662 = vand.u32 %v2374, 4294901760
  %3663 = vmatpush1.msra.mxu0 %v3662
  %3664 = vmatprep.subr.mxu0 0.0
  %3665 = vmatpush2.msra.mxu0 0.0
  %3666 = vmatprep.subr.mxu0 0.0
  %3667 = vmatpush2.msra.mxu0 0.0
  %3668 = vmatprep.subr.mxu0 0.0
  %3669 = vmatpush2.msra.mxu0 0.0
  %3670 = vmatprep.subr.mxu0 0.0
  %3671 = vmatpush2.msra.mxu0 0.0
  %3672 = vmatprep.subr.mxu0 0.0
  %3673 = vmatpush2.msra.mxu0 0.0
  %3674 = vmatprep.subr.mxu0 0.0
  %3675 = vmatpush2.msra.mxu0 0.0
  %3676 = vmatprep.subr.mxu0 0.0
  %3677 = vmatpush2.msra.mxu0 0.0
  %3678 = vmatprep.subr.mxu0 0.0
  %3679 = vmatpush2.msra.mxu0 0.0
  %3680 = vmatprep.subr.mxu0 0.0
  %3681 = vmatpush2.msra.mxu0 0.0
  %3682 = vmatprep.subr.mxu0 0.0
  %3683 = vmatpush2.msra.mxu0 0.0
  %3684 = vmatprep.subr.mxu0 0.0
  %3685 = vmatpush2.msra.mxu0 0.0
  %3686 = vmatprep.subr.mxu0 0.0
  %3687 = vmatpush2.msra.mxu0 0.0
  %3688 = vmatprep.subr.mxu0 0.0
  %3689 = vmatpush2.msra.mxu0 0.0
  %3690 = vmatprep.subr.mxu0 0.0
  %3691 = vmatpush2.msra.mxu0 0.0
  %3692 = vmatprep.subr.mxu0 0.0
  %3693 = vmatpush2.msra.mxu0 0.0
  %3694 = vmatprep.subr.mxu0 0.0
  %3695 = vmatpush2.msra.mxu0 0.0
  %3696 = vmatprep.mubr.f32.mxu0 0.0
  %v3697 = vand.u32 %v2472, 4294901760
  %v3698 = vsub.f32 %v2472, %v3697
  %v3699 = vand.u32 %v3698, 4294901760
  %3700 = vmatmul.mubr.f32.gmra.mxu0 %v3699
  %v3701 = vpop.f32.mrf.mxu0
  %v3702 = vadd.f32 %v3592, %v3701
  %v3703 = vpop.f32.mrf.mxu0
  %v3704 = vadd.f32 %v3594, %v3703
  %3705 = vmatprep.mubr.f32.mxu0 0.0
  %v3706 = vand.u32 %v2475, 4294901760
  %v3707 = vsub.f32 %v2475, %v3706
  %v3708 = vand.u32 %v3707, 4294901760
  %3709 = vmatmul.mubr.f32.gmra.mxu0 %v3708
  %v3710 = vpop.f32.mrf.mxu0
  %v3711 = vadd.f32 %v3600, %v3710
  %v3712 = vpop.f32.mrf.mxu0
  %v3713 = vadd.f32 %v3602, %v3712
  %3714 = vmatprep.mubr.f32.mxu0 0.0
  %v3715 = vand.u32 %v2478, 4294901760
  %v3716 = vsub.f32 %v2478, %v3715
  %v3717 = vand.u32 %v3716, 4294901760
  %3718 = vmatmul.mubr.f32.gmra.mxu0 %v3717
  %v3719 = vpop.f32.mrf.mxu0
  %v3720 = vadd.f32 %v3608, %v3719
  %v3721 = vpop.f32.mrf.mxu0
  %v3722 = vadd.f32 %v3610, %v3721
  %3723 = vmatprep.mubr.f32.mxu0 0.0
  %v3724 = vand.u32 %v2481, 4294901760
  %v3725 = vsub.f32 %v2481, %v3724
  %v3726 = vand.u32 %v3725, 4294901760
  %3727 = vmatmul.mubr.f32.gmra.mxu0 %v3726
  %v3728 = vpop.f32.mrf.mxu0
  %v3729 = vadd.f32 %v3616, %v3728
  %v3730 = vpop.f32.mrf.mxu0
  %v3731 = vadd.f32 %v3618, %v3730
  %3732 = vdwg.mxu0
  %3733 = vmatprep.subr.mxu0 0.0
  %3734 = vmatpush1.msra.mxu0 0.0
  %3735 = vmatprep.subr.mxu0 0.0
  %3736 = vmatpush1.msra.mxu0 0.0
  %3737 = vmatprep.subr.mxu0 0.0
  %3738 = vmatpush1.msra.mxu0 0.0
  %3739 = vmatprep.subr.mxu0 0.0
  %3740 = vmatpush1.msra.mxu0 0.0
  %3741 = vmatprep.subr.mxu0 0.0
  %3742 = vmatpush1.msra.mxu0 0.0
  %3743 = vmatprep.subr.mxu0 0.0
  %3744 = vmatpush1.msra.mxu0 0.0
  %3745 = vmatprep.subr.mxu0 0.0
  %3746 = vmatpush1.msra.mxu0 0.0
  %3747 = vmatprep.subr.mxu0 0.0
  %3748 = vmatpush1.msra.mxu0 0.0
  %3749 = vmatprep.subr.mxu0 0.0
  %3750 = vmatpush1.msra.mxu0 0.0
  %3751 = vmatprep.subr.mxu0 0.0
  %3752 = vmatpush1.msra.mxu0 0.0
  %v3753 = vand.u32 %v2438, 4294901760
  %v3754 = vsub.f32 %v2438, %v3753
  %v3755 = vand.u32 %v3754, 4294901760
  %3756 = vmatprep.subr.mxu0 %v3755
  %v3757 = vand.u32 %v2437, 4294901760
  %v3758 = vsub.f32 %v2437, %v3757
  %v3759 = vand.u32 %v3758, 4294901760
  %3760 = vmatpush1.msra.mxu0 %v3759
  %v3761 = vand.u32 %v2431, 4294901760
  %v3762 = vsub.f32 %v2431, %v3761
  %v3763 = vand.u32 %v3762, 4294901760
  %3764 = vmatprep.subr.mxu0 %v3763
  %v3765 = vand.u32 %v2430, 4294901760
  %v3766 = vsub.f32 %v2430, %v3765
  %v3767 = vand.u32 %v3766, 4294901760
  %3768 = vmatpush1.msra.mxu0 %v3767
  %v3769 = vand.u32 %v2326, 4294901760
  %v3770 = vsub.f32 %v2326, %v3769
  %v3771 = vand.u32 %v3770, 4294901760
  %3772 = vmatprep.subr.mxu0 %v3771
  %v3773 = vand.u32 %v2325, 4294901760
  %v3774 = vsub.f32 %v2325, %v3773
  %v3775 = vand.u32 %v3774, 4294901760
  %3776 = vmatpush1.msra.mxu0 %v3775
  %v3777 = vand.u32 %v2319, 4294901760
  %v3778 = vsub.f32 %v2319, %v3777
  %v3779 = vand.u32 %v3778, 4294901760
  %3780 = vmatprep.subr.mxu0 %v3779
  %v3781 = vand.u32 %v2318, 4294901760
  %v3782 = vsub.f32 %v2318, %v3781
  %v3783 = vand.u32 %v3782, 4294901760
  %3784 = vmatpush1.msra.mxu0 %v3783
  %v3785 = vand.u32 %v2382, 4294901760
  %v3786 = vsub.f32 %v2382, %v3785
  %v3787 = vand.u32 %v3786, 4294901760
  %3788 = vmatprep.subr.mxu0 %v3787
  %v3789 = vand.u32 %v2381, 4294901760
  %v3790 = vsub.f32 %v2381, %v3789
  %v3791 = vand.u32 %v3790, 4294901760
  %3792 = vmatpush1.msra.mxu0 %v3791
  %v3793 = vand.u32 %v2375, 4294901760
  %v3794 = vsub.f32 %v2375, %v3793
  %v3795 = vand.u32 %v3794, 4294901760
  %3796 = vmatprep.subr.mxu0 %v3795
  %v3797 = vand.u32 %v2374, 4294901760
  %v3798 = vsub.f32 %v2374, %v3797
  %v3799 = vand.u32 %v3798, 4294901760
  %3800 = vmatpush1.msra.mxu0 %v3799
  %3801 = vmatprep.subr.mxu0 0.0
  %3802 = vmatpush2.msra.mxu0 0.0
  %3803 = vmatprep.subr.mxu0 0.0
  %3804 = vmatpush2.msra.mxu0 0.0
  %3805 = vmatprep.subr.mxu0 0.0
  %3806 = vmatpush2.msra.mxu0 0.0
  %3807 = vmatprep.subr.mxu0 0.0
  %3808 = vmatpush2.msra.mxu0 0.0
  %3809 = vmatprep.subr.mxu0 0.0
  %3810 = vmatpush2.msra.mxu0 0.0
  %3811 = vmatprep.subr.mxu0 0.0
  %3812 = vmatpush2.msra.mxu0 0.0
  %3813 = vmatprep.subr.mxu0 0.0
  %3814 = vmatpush2.msra.mxu0 0.0
  %3815 = vmatprep.subr.mxu0 0.0
  %3816 = vmatpush2.msra.mxu0 0.0
  %3817 = vmatprep.subr.mxu0 0.0
  %3818 = vmatpush2.msra.mxu0 0.0
  %3819 = vmatprep.subr.mxu0 0.0
  %3820 = vmatpush2.msra.mxu0 0.0
  %3821 = vmatprep.subr.mxu0 0.0
  %3822 = vmatpush2.msra.mxu0 0.0
  %3823 = vmatprep.subr.mxu0 0.0
  %3824 = vmatpush2.msra.mxu0 0.0
  %3825 = vmatprep.subr.mxu0 0.0
  %3826 = vmatpush2.msra.mxu0 0.0
  %3827 = vmatprep.subr.mxu0 0.0
  %3828 = vmatpush2.msra.mxu0 0.0
  %3829 = vmatprep.subr.mxu0 0.0
  %3830 = vmatpush2.msra.mxu0 0.0
  %3831 = vmatprep.subr.mxu0 0.0
  %3832 = vmatpush2.msra.mxu0 0.0
  %3833 = vmatprep.mubr.f32.mxu0 0.0
  %v3834 = vand.u32 %v2472, 4294901760
  %3835 = vmatmul.mubr.f32.gmra.mxu0 %v3834
  %v3836 = vpop.f32.mrf.mxu0
  %v3837 = vadd.f32 %v3702, %v3836
  %v3838 = vpop.f32.mrf.mxu0
  %v3839 = vadd.f32 %v3704, %v3838
  %3840 = vmatprep.mubr.f32.mxu0 0.0
  %v3841 = vand.u32 %v2475, 4294901760
  %3842 = vmatmul.mubr.f32.gmra.mxu0 %v3841
  %v3843 = vpop.f32.mrf.mxu0
  %v3844 = vadd.f32 %v3711, %v3843
  %v3845 = vpop.f32.mrf.mxu0
  %v3846 = vadd.f32 %v3713, %v3845
  %3847 = vmatprep.mubr.f32.mxu0 0.0
  %v3848 = vand.u32 %v2478, 4294901760
  %3849 = vmatmul.mubr.f32.gmra.mxu0 %v3848
  %v3850 = vpop.f32.mrf.mxu0
  %v3851 = vadd.f32 %v3720, %v3850
  %v3852 = vpop.f32.mrf.mxu0
  %v3853 = vadd.f32 %v3722, %v3852
  %3854 = vmatprep.mubr.f32.mxu0 0.0
  %v3855 = vand.u32 %v2481, 4294901760
  %3856 = vmatmul.mubr.f32.gmra.mxu0 %v3855
  %v3857 = vpop.f32.mrf.mxu0
  %v3858 = vadd.f32 %v3729, %v3857
  %v3859 = vpop.f32.mrf.mxu0
  %v3860 = vadd.f32 %v3731, %v3859
  %3861 = vdwg.mxu0
  %3862 = vmatprep.subr.mxu0 0.0
  %3863 = vmatpush1.msra.mxu0 0.0
  %3864 = vmatprep.subr.mxu0 0.0
  %3865 = vmatpush1.msra.mxu0 0.0
  %3866 = vmatprep.subr.mxu0 0.0
  %3867 = vmatpush1.msra.mxu0 0.0
  %3868 = vmatprep.subr.mxu0 0.0
  %3869 = vmatpush1.msra.mxu0 0.0
  %3870 = vmatprep.subr.mxu0 0.0
  %3871 = vmatpush1.msra.mxu0 0.0
  %3872 = vmatprep.subr.mxu0 0.0
  %3873 = vmatpush1.msra.mxu0 0.0
  %3874 = vmatprep.subr.mxu0 0.0
  %3875 = vmatpush1.msra.mxu0 0.0
  %3876 = vmatprep.subr.mxu0 0.0
  %3877 = vmatpush1.msra.mxu0 0.0
  %3878 = vmatprep.subr.mxu0 0.0
  %3879 = vmatpush1.msra.mxu0 0.0
  %3880 = vmatprep.subr.mxu0 0.0
  %3881 = vmatpush1.msra.mxu0 0.0
  %v3882 = vand.u32 %v2438, 4294901760
  %3883 = vmatprep.subr.mxu0 %v3882
  %v3884 = vand.u32 %v2437, 4294901760
  %3885 = vmatpush1.msra.mxu0 %v3884
  %v3886 = vand.u32 %v2431, 4294901760
  %3887 = vmatprep.subr.mxu0 %v3886
  %v3888 = vand.u32 %v2430, 4294901760
  %3889 = vmatpush1.msra.mxu0 %v3888
  %v3890 = vand.u32 %v2326, 4294901760
  %3891 = vmatprep.subr.mxu0 %v3890
  %v3892 = vand.u32 %v2325, 4294901760
  %3893 = vmatpush1.msra.mxu0 %v3892
  %v3894 = vand.u32 %v2319, 4294901760
  %3895 = vmatprep.subr.mxu0 %v3894
  %v3896 = vand.u32 %v2318, 4294901760
  %3897 = vmatpush1.msra.mxu0 %v3896
  %v3898 = vand.u32 %v2382, 4294901760
  %3899 = vmatprep.subr.mxu0 %v3898
  %v3900 = vand.u32 %v2381, 4294901760
  %3901 = vmatpush1.msra.mxu0 %v3900
  %v3902 = vand.u32 %v2375, 4294901760
  %3903 = vmatprep.subr.mxu0 %v3902
  %v3904 = vand.u32 %v2374, 4294901760
  %3905 = vmatpush1.msra.mxu0 %v3904
  %3906 = vmatprep.subr.mxu0 0.0
  %3907 = vmatpush2.msra.mxu0 0.0
  %3908 = vmatprep.subr.mxu0 0.0
  %3909 = vmatpush2.msra.mxu0 0.0
  %3910 = vmatprep.subr.mxu0 0.0
  %3911 = vmatpush2.msra.mxu0 0.0
  %3912 = vmatprep.subr.mxu0 0.0
  %3913 = vmatpush2.msra.mxu0 0.0
  %3914 = vmatprep.subr.mxu0 0.0
  %3915 = vmatpush2.msra.mxu0 0.0
  %3916 = vmatprep.subr.mxu0 0.0
  %3917 = vmatpush2.msra.mxu0 0.0
  %3918 = vmatprep.subr.mxu0 0.0
  %3919 = vmatpush2.msra.mxu0 0.0
  %3920 = vmatprep.subr.mxu0 0.0
  %3921 = vmatpush2.msra.mxu0 0.0
  %3922 = vmatprep.subr.mxu0 0.0
  %3923 = vmatpush2.msra.mxu0 0.0
  %3924 = vmatprep.subr.mxu0 0.0
  %3925 = vmatpush2.msra.mxu0 0.0
  %3926 = vmatprep.subr.mxu0 0.0
  %3927 = vmatpush2.msra.mxu0 0.0
  %3928 = vmatprep.subr.mxu0 0.0
  %3929 = vmatpush2.msra.mxu0 0.0
  %3930 = vmatprep.subr.mxu0 0.0
  %3931 = vmatpush2.msra.mxu0 0.0
  %3932 = vmatprep.subr.mxu0 0.0
  %3933 = vmatpush2.msra.mxu0 0.0
  %3934 = vmatprep.subr.mxu0 0.0
  %3935 = vmatpush2.msra.mxu0 0.0
  %3936 = vmatprep.subr.mxu0 0.0
  %3937 = vmatpush2.msra.mxu0 0.0
  %3938 = vmatprep.mubr.f32.mxu0 0.0
  %v3939 = vand.u32 %v2472, 4294901760
  %3940 = vmatmul.mubr.f32.gmra.mxu0 %v3939
  %v3941 = vpop.f32.mrf.mxu0
  %v3942 = vadd.f32 %v3837, %v3941
  %v3943 = vpop.f32.mrf.mxu0
  %v3944 = vadd.f32 %v3839, %v3943
  %3945 = vmatprep.mubr.f32.mxu0 0.0
  %v3946 = vand.u32 %v2475, 4294901760
  %3947 = vmatmul.mubr.f32.gmra.mxu0 %v3946
  %v3948 = vpop.f32.mrf.mxu0
  %v3949 = vadd.f32 %v3844, %v3948
  %v3950 = vpop.f32.mrf.mxu0
  %v3951 = vadd.f32 %v3846, %v3950
  %3952 = vmatprep.mubr.f32.mxu0 0.0
  %v3953 = vand.u32 %v2478, 4294901760
  %3954 = vmatmul.mubr.f32.gmra.mxu0 %v3953
  %v3955 = vpop.f32.mrf.mxu0
  %v3956 = vadd.f32 %v3851, %v3955
  %v3957 = vpop.f32.mrf.mxu0
  %v3958 = vadd.f32 %v3853, %v3957
  %3959 = vmatprep.mubr.f32.mxu0 0.0
  %v3960 = vand.u32 %v2481, 4294901760
  %3961 = vmatmul.mubr.f32.gmra.mxu0 %v3960
  %v3962 = vpop.f32.mrf.mxu0
  %v3963 = vadd.f32 %v3858, %v3962
  %v3964 = vpop.f32.mrf.mxu0
  %v3965 = vadd.f32 %v3860, %v3964
  %3966 = vdwg.mxu0
  %3967 = vmatprep.subr.mxu0 0.0
  %3968 = vmatpush1.msra.mxu0 0.0
  %3969 = vmatprep.subr.mxu0 0.0
  %3970 = vmatpush1.msra.mxu0 0.0
  %3971 = vmatprep.subr.mxu0 0.0
  %3972 = vmatpush1.msra.mxu0 0.0
  %3973 = vmatprep.subr.mxu0 0.0
  %3974 = vmatpush1.msra.mxu0 0.0
  %3975 = vmatprep.subr.mxu0 0.0
  %3976 = vmatpush1.msra.mxu0 0.0
  %3977 = vmatprep.subr.mxu0 0.0
  %3978 = vmatpush1.msra.mxu0 0.0
  %3979 = vmatprep.subr.mxu0 0.0
  %3980 = vmatpush1.msra.mxu0 0.0
  %3981 = vmatprep.subr.mxu0 0.0
  %3982 = vmatpush1.msra.mxu0 0.0
  %3983 = vmatprep.subr.mxu0 0.0
  %3984 = vmatpush1.msra.mxu0 0.0
  %3985 = vmatprep.subr.mxu0 0.0
  %3986 = vmatpush1.msra.mxu0 0.0
  %v3987 = vand.u32 %v2440, 4294901760
  %3988 = vmatprep.subr.mxu0 %v3987
  %v3989 = vand.u32 %v2439, 4294901760
  %3990 = vmatpush1.msra.mxu0 %v3989
  %v3991 = vand.u32 %v2433, 4294901760
  %3992 = vmatprep.subr.mxu0 %v3991
  %v3993 = vand.u32 %v2432, 4294901760
  %3994 = vmatpush1.msra.mxu0 %v3993
  %v3995 = vand.u32 %v2328, 4294901760
  %3996 = vmatprep.subr.mxu0 %v3995
  %v3997 = vand.u32 %v2327, 4294901760
  %3998 = vmatpush1.msra.mxu0 %v3997
  %v3999 = vand.u32 %v2321, 4294901760
  %4000 = vmatprep.subr.mxu0 %v3999
  %v4001 = vand.u32 %v2320, 4294901760
  %4002 = vmatpush1.msra.mxu0 %v4001
  %v4003 = vand.u32 %v2384, 4294901760
  %4004 = vmatprep.subr.mxu0 %v4003
  %v4005 = vand.u32 %v2383, 4294901760
  %4006 = vmatpush1.msra.mxu0 %v4005
  %v4007 = vand.u32 %v2377, 4294901760
  %4008 = vmatprep.subr.mxu0 %v4007
  %v4009 = vand.u32 %v2376, 4294901760
  %4010 = vmatpush1.msra.mxu0 %v4009
  %4011 = vmatprep.subr.mxu0 0.0
  %4012 = vmatpush2.msra.mxu0 0.0
  %4013 = vmatprep.subr.mxu0 0.0
  %4014 = vmatpush2.msra.mxu0 0.0
  %4015 = vmatprep.subr.mxu0 0.0
  %4016 = vmatpush2.msra.mxu0 0.0
  %4017 = vmatprep.subr.mxu0 0.0
  %4018 = vmatpush2.msra.mxu0 0.0
  %4019 = vmatprep.subr.mxu0 0.0
  %4020 = vmatpush2.msra.mxu0 0.0
  %4021 = vmatprep.subr.mxu0 0.0
  %4022 = vmatpush2.msra.mxu0 0.0
  %4023 = vmatprep.subr.mxu0 0.0
  %4024 = vmatpush2.msra.mxu0 0.0
  %4025 = vmatprep.subr.mxu0 0.0
  %4026 = vmatpush2.msra.mxu0 0.0
  %4027 = vmatprep.subr.mxu0 0.0
  %4028 = vmatpush2.msra.mxu0 0.0
  %4029 = vmatprep.subr.mxu0 0.0
  %4030 = vmatpush2.msra.mxu0 0.0
  %4031 = vmatprep.subr.mxu0 0.0
  %4032 = vmatpush2.msra.mxu0 0.0
  %4033 = vmatprep.subr.mxu0 0.0
  %4034 = vmatpush2.msra.mxu0 0.0
  %4035 = vmatprep.subr.mxu0 0.0
  %4036 = vmatpush2.msra.mxu0 0.0
  %4037 = vmatprep.subr.mxu0 0.0
  %4038 = vmatpush2.msra.mxu0 0.0
  %4039 = vmatprep.subr.mxu0 0.0
  %4040 = vmatpush2.msra.mxu0 0.0
  %4041 = vmatprep.subr.mxu0 0.0
  %4042 = vmatpush2.msra.mxu0 0.0
  %4043 = vmatprep.mubr.f32.mxu0 0.0
  %v4044 = vand.u32 %v2472, 4294901760
  %v4045 = vsub.f32 %v2472, %v4044
  %v4046 = vand.u32 %v4045, 4294901760
  %v4047 = vsub.f32 %v4045, %v4046
  %v4048 = vand.u32 %v4047, 4294901760
  %4049 = vmatmul.mubr.f32.gmra.mxu0 %v4048
  %v4050 = vpop.f32.mrf.mxu0
  %v4051 = vadd.f32 %v2453, %v4050
  %v4052 = vpop.f32.mrf.mxu0
  %v4053 = vadd.f32 %v2453, %v4052
  %4054 = vmatprep.mubr.f32.mxu0 0.0
  %v4055 = vand.u32 %v2475, 4294901760
  %v4056 = vsub.f32 %v2475, %v4055
  %v4057 = vand.u32 %v4056, 4294901760
  %v4058 = vsub.f32 %v4056, %v4057
  %v4059 = vand.u32 %v4058, 4294901760
  %4060 = vmatmul.mubr.f32.gmra.mxu0 %v4059
  %v4061 = vpop.f32.mrf.mxu0
  %v4062 = vadd.f32 %v2458, %v4061
  %v4063 = vpop.f32.mrf.mxu0
  %v4064 = vadd.f32 %v2458, %v4063
  %4065 = vmatprep.mubr.f32.mxu0 0.0
  %v4066 = vand.u32 %v2478, 4294901760
  %v4067 = vsub.f32 %v2478, %v4066
  %v4068 = vand.u32 %v4067, 4294901760
  %v4069 = vsub.f32 %v4067, %v4068
  %v4070 = vand.u32 %v4069, 4294901760
  %4071 = vmatmul.mubr.f32.gmra.mxu0 %v4070
  %v4072 = vpop.f32.mrf.mxu0
  %v4073 = vadd.f32 %v2463, %v4072
  %v4074 = vpop.f32.mrf.mxu0
  %v4075 = vadd.f32 %v2463, %v4074
  %4076 = vmatprep.mubr.f32.mxu0 0.0
  %v4077 = vand.u32 %v2481, 4294901760
  %v4078 = vsub.f32 %v2481, %v4077
  %v4079 = vand.u32 %v4078, 4294901760
  %v4080 = vsub.f32 %v4078, %v4079
  %v4081 = vand.u32 %v4080, 4294901760
  %4082 = vmatmul.mubr.f32.gmra.mxu0 %v4081
  %v4083 = vpop.f32.mrf.mxu0
  %v4084 = vadd.f32 %v2468, %v4083
  %v4085 = vpop.f32.mrf.mxu0
  %v4086 = vadd.f32 %v2468, %v4085
  %4087 = vdwg.mxu0
  %4088 = vmatprep.subr.mxu0 0.0
  %4089 = vmatpush1.msra.mxu0 0.0
  %4090 = vmatprep.subr.mxu0 0.0
  %4091 = vmatpush1.msra.mxu0 0.0
  %4092 = vmatprep.subr.mxu0 0.0
  %4093 = vmatpush1.msra.mxu0 0.0
  %4094 = vmatprep.subr.mxu0 0.0
  %4095 = vmatpush1.msra.mxu0 0.0
  %4096 = vmatprep.subr.mxu0 0.0
  %4097 = vmatpush1.msra.mxu0 0.0
  %4098 = vmatprep.subr.mxu0 0.0
  %4099 = vmatpush1.msra.mxu0 0.0
  %4100 = vmatprep.subr.mxu0 0.0
  %4101 = vmatpush1.msra.mxu0 0.0
  %4102 = vmatprep.subr.mxu0 0.0
  %4103 = vmatpush1.msra.mxu0 0.0
  %4104 = vmatprep.subr.mxu0 0.0
  %4105 = vmatpush1.msra.mxu0 0.0
  %4106 = vmatprep.subr.mxu0 0.0
  %4107 = vmatpush1.msra.mxu0 0.0
  %v4108 = vand.u32 %v2440, 4294901760
  %v4109 = vsub.f32 %v2440, %v4108
  %v4110 = vand.u32 %v4109, 4294901760
  %v4111 = vsub.f32 %v4109, %v4110
  %v4112 = vand.u32 %v4111, 4294901760
  %4113 = vmatprep.subr.mxu0 %v4112
  %v4114 = vand.u32 %v2439, 4294901760
  %v4115 = vsub.f32 %v2439, %v4114
  %v4116 = vand.u32 %v4115, 4294901760
  %v4117 = vsub.f32 %v4115, %v4116
  %v4118 = vand.u32 %v4117, 4294901760
  %4119 = vmatpush1.msra.mxu0 %v4118
  %v4120 = vand.u32 %v2433, 4294901760
  %v4121 = vsub.f32 %v2433, %v4120
  %v4122 = vand.u32 %v4121, 4294901760
  %v4123 = vsub.f32 %v4121, %v4122
  %v4124 = vand.u32 %v4123, 4294901760
  %4125 = vmatprep.subr.mxu0 %v4124
  %v4126 = vand.u32 %v2432, 4294901760
  %v4127 = vsub.f32 %v2432, %v4126
  %v4128 = vand.u32 %v4127, 4294901760
  %v4129 = vsub.f32 %v4127, %v4128
  %v4130 = vand.u32 %v4129, 4294901760
  %4131 = vmatpush1.msra.mxu0 %v4130
  %v4132 = vand.u32 %v2328, 4294901760
  %v4133 = vsub.f32 %v2328, %v4132
  %v4134 = vand.u32 %v4133, 4294901760
  %v4135 = vsub.f32 %v4133, %v4134
  %v4136 = vand.u32 %v4135, 4294901760
  %4137 = vmatprep.subr.mxu0 %v4136
  %v4138 = vand.u32 %v2327, 4294901760
  %v4139 = vsub.f32 %v2327, %v4138
  %v4140 = vand.u32 %v4139, 4294901760
  %v4141 = vsub.f32 %v4139, %v4140
  %v4142 = vand.u32 %v4141, 4294901760
  %4143 = vmatpush1.msra.mxu0 %v4142
  %v4144 = vand.u32 %v2321, 4294901760
  %v4145 = vsub.f32 %v2321, %v4144
  %v4146 = vand.u32 %v4145, 4294901760
  %v4147 = vsub.f32 %v4145, %v4146
  %v4148 = vand.u32 %v4147, 4294901760
  %4149 = vmatprep.subr.mxu0 %v4148
  %v4150 = vand.u32 %v2320, 4294901760
  %v4151 = vsub.f32 %v2320, %v4150
  %v4152 = vand.u32 %v4151, 4294901760
  %v4153 = vsub.f32 %v4151, %v4152
  %v4154 = vand.u32 %v4153, 4294901760
  %4155 = vmatpush1.msra.mxu0 %v4154
  %v4156 = vand.u32 %v2384, 4294901760
  %v4157 = vsub.f32 %v2384, %v4156
  %v4158 = vand.u32 %v4157, 4294901760
  %v4159 = vsub.f32 %v4157, %v4158
  %v4160 = vand.u32 %v4159, 4294901760
  %4161 = vmatprep.subr.mxu0 %v4160
  %v4162 = vand.u32 %v2383, 4294901760
  %v4163 = vsub.f32 %v2383, %v4162
  %v4164 = vand.u32 %v4163, 4294901760
  %v4165 = vsub.f32 %v4163, %v4164
  %v4166 = vand.u32 %v4165, 4294901760
  %4167 = vmatpush1.msra.mxu0 %v4166
  %v4168 = vand.u32 %v2377, 4294901760
  %v4169 = vsub.f32 %v2377, %v4168
  %v4170 = vand.u32 %v4169, 4294901760
  %v4171 = vsub.f32 %v4169, %v4170
  %v4172 = vand.u32 %v4171, 4294901760
  %4173 = vmatprep.subr.mxu0 %v4172
  %v4174 = vand.u32 %v2376, 4294901760
  %v4175 = vsub.f32 %v2376, %v4174
  %v4176 = vand.u32 %v4175, 4294901760
  %v4177 = vsub.f32 %v4175, %v4176
  %v4178 = vand.u32 %v4177, 4294901760
  %4179 = vmatpush1.msra.mxu0 %v4178
  %4180 = vmatprep.subr.mxu0 0.0
  %4181 = vmatpush2.msra.mxu0 0.0
  %4182 = vmatprep.subr.mxu0 0.0
  %4183 = vmatpush2.msra.mxu0 0.0
  %4184 = vmatprep.subr.mxu0 0.0
  %4185 = vmatpush2.msra.mxu0 0.0
  %4186 = vmatprep.subr.mxu0 0.0
  %4187 = vmatpush2.msra.mxu0 0.0
  %4188 = vmatprep.subr.mxu0 0.0
  %4189 = vmatpush2.msra.mxu0 0.0
  %4190 = vmatprep.subr.mxu0 0.0
  %4191 = vmatpush2.msra.mxu0 0.0
  %4192 = vmatprep.subr.mxu0 0.0
  %4193 = vmatpush2.msra.mxu0 0.0
  %4194 = vmatprep.subr.mxu0 0.0
  %4195 = vmatpush2.msra.mxu0 0.0
  %4196 = vmatprep.subr.mxu0 0.0
  %4197 = vmatpush2.msra.mxu0 0.0
  %4198 = vmatprep.subr.mxu0 0.0
  %4199 = vmatpush2.msra.mxu0 0.0
  %4200 = vmatprep.subr.mxu0 0.0
  %4201 = vmatpush2.msra.mxu0 0.0
  %4202 = vmatprep.subr.mxu0 0.0
  %4203 = vmatpush2.msra.mxu0 0.0
  %4204 = vmatprep.subr.mxu0 0.0
  %4205 = vmatpush2.msra.mxu0 0.0
  %4206 = vmatprep.subr.mxu0 0.0
  %4207 = vmatpush2.msra.mxu0 0.0
  %4208 = vmatprep.subr.mxu0 0.0
  %4209 = vmatpush2.msra.mxu0 0.0
  %4210 = vmatprep.subr.mxu0 0.0
  %4211 = vmatpush2.msra.mxu0 0.0
  %4212 = vmatprep.mubr.f32.mxu0 0.0
  %v4213 = vand.u32 %v2472, 4294901760
  %4214 = vmatmul.mubr.f32.gmra.mxu0 %v4213
  %v4215 = vpop.f32.mrf.mxu0
  %v4216 = vadd.f32 %v4051, %v4215
  %v4217 = vpop.f32.mrf.mxu0
  %v4218 = vadd.f32 %v4053, %v4217
  %4219 = vmatprep.mubr.f32.mxu0 0.0
  %v4220 = vand.u32 %v2475, 4294901760
  %4221 = vmatmul.mubr.f32.gmra.mxu0 %v4220
  %v4222 = vpop.f32.mrf.mxu0
  %v4223 = vadd.f32 %v4062, %v4222
  %v4224 = vpop.f32.mrf.mxu0
  %v4225 = vadd.f32 %v4064, %v4224
  %4226 = vmatprep.mubr.f32.mxu0 0.0
  %v4227 = vand.u32 %v2478, 4294901760
  %4228 = vmatmul.mubr.f32.gmra.mxu0 %v4227
  %v4229 = vpop.f32.mrf.mxu0
  %v4230 = vadd.f32 %v4073, %v4229
  %v4231 = vpop.f32.mrf.mxu0
  %v4232 = vadd.f32 %v4075, %v4231
  %4233 = vmatprep.mubr.f32.mxu0 0.0
  %v4234 = vand.u32 %v2481, 4294901760
  %4235 = vmatmul.mubr.f32.gmra.mxu0 %v4234
  %v4236 = vpop.f32.mrf.mxu0
  %v4237 = vadd.f32 %v4084, %v4236
  %v4238 = vpop.f32.mrf.mxu0
  %v4239 = vadd.f32 %v4086, %v4238
  %4240 = vdwg.mxu0
  %4241 = vmatprep.subr.mxu0 0.0
  %4242 = vmatpush1.msra.mxu0 0.0
  %4243 = vmatprep.subr.mxu0 0.0
  %4244 = vmatpush1.msra.mxu0 0.0
  %4245 = vmatprep.subr.mxu0 0.0
  %4246 = vmatpush1.msra.mxu0 0.0
  %4247 = vmatprep.subr.mxu0 0.0
  %4248 = vmatpush1.msra.mxu0 0.0
  %4249 = vmatprep.subr.mxu0 0.0
  %4250 = vmatpush1.msra.mxu0 0.0
  %4251 = vmatprep.subr.mxu0 0.0
  %4252 = vmatpush1.msra.mxu0 0.0
  %4253 = vmatprep.subr.mxu0 0.0
  %4254 = vmatpush1.msra.mxu0 0.0
  %4255 = vmatprep.subr.mxu0 0.0
  %4256 = vmatpush1.msra.mxu0 0.0
  %4257 = vmatprep.subr.mxu0 0.0
  %4258 = vmatpush1.msra.mxu0 0.0
  %4259 = vmatprep.subr.mxu0 0.0
  %4260 = vmatpush1.msra.mxu0 0.0
  %v4261 = vand.u32 %v2440, 4294901760
  %v4262 = vsub.f32 %v2440, %v4261
  %4263 = vmatprep.subr.mxu0 %v4262
  %v4264 = vand.u32 %v2439, 4294901760
  %v4265 = vsub.f32 %v2439, %v4264
  %4266 = vmatpush1.msra.mxu0 %v4265
  %v4267 = vand.u32 %v2433, 4294901760
  %v4268 = vsub.f32 %v2433, %v4267
  %4269 = vmatprep.subr.mxu0 %v4268
  %v4270 = vand.u32 %v2432, 4294901760
  %v4271 = vsub.f32 %v2432, %v4270
  %4272 = vmatpush1.msra.mxu0 %v4271
  %v4273 = vand.u32 %v2328, 4294901760
  %v4274 = vsub.f32 %v2328, %v4273
  %4275 = vmatprep.subr.mxu0 %v4274
  %v4276 = vand.u32 %v2327, 4294901760
  %v4277 = vsub.f32 %v2327, %v4276
  %4278 = vmatpush1.msra.mxu0 %v4277
  %v4279 = vand.u32 %v2321, 4294901760
  %v4280 = vsub.f32 %v2321, %v4279
  %4281 = vmatprep.subr.mxu0 %v4280
  %v4282 = vand.u32 %v2320, 4294901760
  %v4283 = vsub.f32 %v2320, %v4282
  %4284 = vmatpush1.msra.mxu0 %v4283
  %v4285 = vand.u32 %v2384, 4294901760
  %v4286 = vsub.f32 %v2384, %v4285
  %4287 = vmatprep.subr.mxu0 %v4286
  %v4288 = vand.u32 %v2383, 4294901760
  %v4289 = vsub.f32 %v2383, %v4288
  %4290 = vmatpush1.msra.mxu0 %v4289
  %v4291 = vand.u32 %v2377, 4294901760
  %v4292 = vsub.f32 %v2377, %v4291
  %4293 = vmatprep.subr.mxu0 %v4292
  %v4294 = vand.u32 %v2376, 4294901760
  %v4295 = vsub.f32 %v2376, %v4294
  %4296 = vmatpush1.msra.mxu0 %v4295
  %4297 = vmatprep.subr.mxu0 0.0
  %4298 = vmatpush2.msra.mxu0 0.0
  %4299 = vmatprep.subr.mxu0 0.0
  %4300 = vmatpush2.msra.mxu0 0.0
  %4301 = vmatprep.subr.mxu0 0.0
  %4302 = vmatpush2.msra.mxu0 0.0
  %4303 = vmatprep.subr.mxu0 0.0
  %4304 = vmatpush2.msra.mxu0 0.0
  %4305 = vmatprep.subr.mxu0 0.0
  %4306 = vmatpush2.msra.mxu0 0.0
  %4307 = vmatprep.subr.mxu0 0.0
  %4308 = vmatpush2.msra.mxu0 0.0
  %4309 = vmatprep.subr.mxu0 0.0
  %4310 = vmatpush2.msra.mxu0 0.0
  %4311 = vmatprep.subr.mxu0 0.0
  %4312 = vmatpush2.msra.mxu0 0.0
  %4313 = vmatprep.subr.mxu0 0.0
  %4314 = vmatpush2.msra.mxu0 0.0
  %4315 = vmatprep.subr.mxu0 0.0
  %4316 = vmatpush2.msra.mxu0 0.0
  %4317 = vmatprep.subr.mxu0 0.0
  %4318 = vmatpush2.msra.mxu0 0.0
  %4319 = vmatprep.subr.mxu0 0.0
  %4320 = vmatpush2.msra.mxu0 0.0
  %4321 = vmatprep.subr.mxu0 0.0
  %4322 = vmatpush2.msra.mxu0 0.0
  %4323 = vmatprep.subr.mxu0 0.0
  %4324 = vmatpush2.msra.mxu0 0.0
  %4325 = vmatprep.subr.mxu0 0.0
  %4326 = vmatpush2.msra.mxu0 0.0
  %4327 = vmatprep.subr.mxu0 0.0
  %4328 = vmatpush2.msra.mxu0 0.0
  %4329 = vmatprep.mubr.f32.mxu0 0.0
  %v4330 = vand.u32 %v2472, 4294901760
  %v4331 = vsub.f32 %v2472, %v4330
  %4332 = vmatmul.mubr.f32.gmra.mxu0 %v4331
  %v4333 = vpop.f32.mrf.mxu0
  %v4334 = vadd.f32 %v4216, %v4333
  %v4335 = vpop.f32.mrf.mxu0
  %v4336 = vadd.f32 %v4218, %v4335
  %4337 = vmatprep.mubr.f32.mxu0 0.0
  %v4338 = vand.u32 %v2475, 4294901760
  %v4339 = vsub.f32 %v2475, %v4338
  %4340 = vmatmul.mubr.f32.gmra.mxu0 %v4339
  %v4341 = vpop.f32.mrf.mxu0
  %v4342 = vadd.f32 %v4223, %v4341
  %v4343 = vpop.f32.mrf.mxu0
  %v4344 = vadd.f32 %v4225, %v4343
  %4345 = vmatprep.mubr.f32.mxu0 0.0
  %v4346 = vand.u32 %v2478, 4294901760
  %v4347 = vsub.f32 %v2478, %v4346
  %4348 = vmatmul.mubr.f32.gmra.mxu0 %v4347
  %v4349 = vpop.f32.mrf.mxu0
  %v4350 = vadd.f32 %v4230, %v4349
  %v4351 = vpop.f32.mrf.mxu0
  %v4352 = vadd.f32 %v4232, %v4351
  %4353 = vmatprep.mubr.f32.mxu0 0.0
  %v4354 = vand.u32 %v2481, 4294901760
  %v4355 = vsub.f32 %v2481, %v4354
  %4356 = vmatmul.mubr.f32.gmra.mxu0 %v4355
  %v4357 = vpop.f32.mrf.mxu0
  %v4358 = vadd.f32 %v4237, %v4357
  %v4359 = vpop.f32.mrf.mxu0
  %v4360 = vadd.f32 %v4239, %v4359
  %4361 = vdwg.mxu0
  %4362 = vmatprep.subr.mxu0 0.0
  %4363 = vmatpush1.msra.mxu0 0.0
  %4364 = vmatprep.subr.mxu0 0.0
  %4365 = vmatpush1.msra.mxu0 0.0
  %4366 = vmatprep.subr.mxu0 0.0
  %4367 = vmatpush1.msra.mxu0 0.0
  %4368 = vmatprep.subr.mxu0 0.0
  %4369 = vmatpush1.msra.mxu0 0.0
  %4370 = vmatprep.subr.mxu0 0.0
  %4371 = vmatpush1.msra.mxu0 0.0
  %4372 = vmatprep.subr.mxu0 0.0
  %4373 = vmatpush1.msra.mxu0 0.0
  %4374 = vmatprep.subr.mxu0 0.0
  %4375 = vmatpush1.msra.mxu0 0.0
  %4376 = vmatprep.subr.mxu0 0.0
  %4377 = vmatpush1.msra.mxu0 0.0
  %4378 = vmatprep.subr.mxu0 0.0
  %4379 = vmatpush1.msra.mxu0 0.0
  %4380 = vmatprep.subr.mxu0 0.0
  %4381 = vmatpush1.msra.mxu0 0.0
  %v4382 = vand.u32 %v2440, 4294901760
  %4383 = vmatprep.subr.mxu0 %v4382
  %v4384 = vand.u32 %v2439, 4294901760
  %4385 = vmatpush1.msra.mxu0 %v4384
  %v4386 = vand.u32 %v2433, 4294901760
  %4387 = vmatprep.subr.mxu0 %v4386
  %v4388 = vand.u32 %v2432, 4294901760
  %4389 = vmatpush1.msra.mxu0 %v4388
  %v4390 = vand.u32 %v2328, 4294901760
  %4391 = vmatprep.subr.mxu0 %v4390
  %v4392 = vand.u32 %v2327, 4294901760
  %4393 = vmatpush1.msra.mxu0 %v4392
  %v4394 = vand.u32 %v2321, 4294901760
  %4395 = vmatprep.subr.mxu0 %v4394
  %v4396 = vand.u32 %v2320, 4294901760
  %4397 = vmatpush1.msra.mxu0 %v4396
  %v4398 = vand.u32 %v2384, 4294901760
  %4399 = vmatprep.subr.mxu0 %v4398
  %v4400 = vand.u32 %v2383, 4294901760
  %4401 = vmatpush1.msra.mxu0 %v4400
  %v4402 = vand.u32 %v2377, 4294901760
  %4403 = vmatprep.subr.mxu0 %v4402
  %v4404 = vand.u32 %v2376, 4294901760
  %4405 = vmatpush1.msra.mxu0 %v4404
  %4406 = vmatprep.subr.mxu0 0.0
  %4407 = vmatpush2.msra.mxu0 0.0
  %4408 = vmatprep.subr.mxu0 0.0
  %4409 = vmatpush2.msra.mxu0 0.0
  %4410 = vmatprep.subr.mxu0 0.0
  %4411 = vmatpush2.msra.mxu0 0.0
  %4412 = vmatprep.subr.mxu0 0.0
  %4413 = vmatpush2.msra.mxu0 0.0
  %4414 = vmatprep.subr.mxu0 0.0
  %4415 = vmatpush2.msra.mxu0 0.0
  %4416 = vmatprep.subr.mxu0 0.0
  %4417 = vmatpush2.msra.mxu0 0.0
  %4418 = vmatprep.subr.mxu0 0.0
  %4419 = vmatpush2.msra.mxu0 0.0
  %4420 = vmatprep.subr.mxu0 0.0
  %4421 = vmatpush2.msra.mxu0 0.0
  %4422 = vmatprep.subr.mxu0 0.0
  %4423 = vmatpush2.msra.mxu0 0.0
  %4424 = vmatprep.subr.mxu0 0.0
  %4425 = vmatpush2.msra.mxu0 0.0
  %4426 = vmatprep.subr.mxu0 0.0
  %4427 = vmatpush2.msra.mxu0 0.0
  %4428 = vmatprep.subr.mxu0 0.0
  %4429 = vmatpush2.msra.mxu0 0.0
  %4430 = vmatprep.subr.mxu0 0.0
  %4431 = vmatpush2.msra.mxu0 0.0
  %4432 = vmatprep.subr.mxu0 0.0
  %4433 = vmatpush2.msra.mxu0 0.0
  %4434 = vmatprep.subr.mxu0 0.0
  %4435 = vmatpush2.msra.mxu0 0.0
  %4436 = vmatprep.subr.mxu0 0.0
  %4437 = vmatpush2.msra.mxu0 0.0
  %4438 = vmatprep.mubr.f32.mxu0 0.0
  %v4439 = vand.u32 %v2472, 4294901760
  %v4440 = vsub.f32 %v2472, %v4439
  %v4441 = vand.u32 %v4440, 4294901760
  %4442 = vmatmul.mubr.f32.gmra.mxu0 %v4441
  %v4443 = vpop.f32.mrf.mxu0
  %v4444 = vadd.f32 %v4334, %v4443
  %v4445 = vpop.f32.mrf.mxu0
  %v4446 = vadd.f32 %v4336, %v4445
  %4447 = vmatprep.mubr.f32.mxu0 0.0
  %v4448 = vand.u32 %v2475, 4294901760
  %v4449 = vsub.f32 %v2475, %v4448
  %v4450 = vand.u32 %v4449, 4294901760
  %4451 = vmatmul.mubr.f32.gmra.mxu0 %v4450
  %v4452 = vpop.f32.mrf.mxu0
  %v4453 = vadd.f32 %v4342, %v4452
  %v4454 = vpop.f32.mrf.mxu0
  %v4455 = vadd.f32 %v4344, %v4454
  %4456 = vmatprep.mubr.f32.mxu0 0.0
  %v4457 = vand.u32 %v2478, 4294901760
  %v4458 = vsub.f32 %v2478, %v4457
  %v4459 = vand.u32 %v4458, 4294901760
  %4460 = vmatmul.mubr.f32.gmra.mxu0 %v4459
  %v4461 = vpop.f32.mrf.mxu0
  %v4462 = vadd.f32 %v4350, %v4461
  %v4463 = vpop.f32.mrf.mxu0
  %v4464 = vadd.f32 %v4352, %v4463
  %4465 = vmatprep.mubr.f32.mxu0 0.0
  %v4466 = vand.u32 %v2481, 4294901760
  %v4467 = vsub.f32 %v2481, %v4466
  %v4468 = vand.u32 %v4467, 4294901760
  %4469 = vmatmul.mubr.f32.gmra.mxu0 %v4468
  %v4470 = vpop.f32.mrf.mxu0
  %v4471 = vadd.f32 %v4358, %v4470
  %v4472 = vpop.f32.mrf.mxu0
  %v4473 = vadd.f32 %v4360, %v4472
  %4474 = vdwg.mxu0
  %4475 = vmatprep.subr.mxu0 0.0
  %4476 = vmatpush1.msra.mxu0 0.0
  %4477 = vmatprep.subr.mxu0 0.0
  %4478 = vmatpush1.msra.mxu0 0.0
  %4479 = vmatprep.subr.mxu0 0.0
  %4480 = vmatpush1.msra.mxu0 0.0
  %4481 = vmatprep.subr.mxu0 0.0
  %4482 = vmatpush1.msra.mxu0 0.0
  %4483 = vmatprep.subr.mxu0 0.0
  %4484 = vmatpush1.msra.mxu0 0.0
  %4485 = vmatprep.subr.mxu0 0.0
  %4486 = vmatpush1.msra.mxu0 0.0
  %4487 = vmatprep.subr.mxu0 0.0
  %4488 = vmatpush1.msra.mxu0 0.0
  %4489 = vmatprep.subr.mxu0 0.0
  %4490 = vmatpush1.msra.mxu0 0.0
  %4491 = vmatprep.subr.mxu0 0.0
  %4492 = vmatpush1.msra.mxu0 0.0
  %4493 = vmatprep.subr.mxu0 0.0
  %4494 = vmatpush1.msra.mxu0 0.0
  %v4495 = vand.u32 %v2440, 4294901760
  %v4496 = vsub.f32 %v2440, %v4495
  %v4497 = vand.u32 %v4496, 4294901760
  %4498 = vmatprep.subr.mxu0 %v4497
  %v4499 = vand.u32 %v2439, 4294901760
  %v4500 = vsub.f32 %v2439, %v4499
  %v4501 = vand.u32 %v4500, 4294901760
  %4502 = vmatpush1.msra.mxu0 %v4501
  %v4503 = vand.u32 %v2433, 4294901760
  %v4504 = vsub.f32 %v2433, %v4503
  %v4505 = vand.u32 %v4504, 4294901760
  %4506 = vmatprep.subr.mxu0 %v4505
  %v4507 = vand.u32 %v2432, 4294901760
  %v4508 = vsub.f32 %v2432, %v4507
  %v4509 = vand.u32 %v4508, 4294901760
  %4510 = vmatpush1.msra.mxu0 %v4509
  %v4511 = vand.u32 %v2328, 4294901760
  %v4512 = vsub.f32 %v2328, %v4511
  %v4513 = vand.u32 %v4512, 4294901760
  %4514 = vmatprep.subr.mxu0 %v4513
  %v4515 = vand.u32 %v2327, 4294901760
  %v4516 = vsub.f32 %v2327, %v4515
  %v4517 = vand.u32 %v4516, 4294901760
  %4518 = vmatpush1.msra.mxu0 %v4517
  %v4519 = vand.u32 %v2321, 4294901760
  %v4520 = vsub.f32 %v2321, %v4519
  %v4521 = vand.u32 %v4520, 4294901760
  %4522 = vmatprep.subr.mxu0 %v4521
  %v4523 = vand.u32 %v2320, 4294901760
  %v4524 = vsub.f32 %v2320, %v4523
  %v4525 = vand.u32 %v4524, 4294901760
  %4526 = vmatpush1.msra.mxu0 %v4525
  %v4527 = vand.u32 %v2384, 4294901760
  %v4528 = vsub.f32 %v2384, %v4527
  %v4529 = vand.u32 %v4528, 4294901760
  %4530 = vmatprep.subr.mxu0 %v4529
  %v4531 = vand.u32 %v2383, 4294901760
  %v4532 = vsub.f32 %v2383, %v4531
  %v4533 = vand.u32 %v4532, 4294901760
  %4534 = vmatpush1.msra.mxu0 %v4533
  %v4535 = vand.u32 %v2377, 4294901760
  %v4536 = vsub.f32 %v2377, %v4535
  %v4537 = vand.u32 %v4536, 4294901760
  %4538 = vmatprep.subr.mxu0 %v4537
  %v4539 = vand.u32 %v2376, 4294901760
  %v4540 = vsub.f32 %v2376, %v4539
  %v4541 = vand.u32 %v4540, 4294901760
  %4542 = vmatpush1.msra.mxu0 %v4541
  %4543 = vmatprep.subr.mxu0 0.0
  %4544 = vmatpush2.msra.mxu0 0.0
  %4545 = vmatprep.subr.mxu0 0.0
  %4546 = vmatpush2.msra.mxu0 0.0
  %4547 = vmatprep.subr.mxu0 0.0
  %4548 = vmatpush2.msra.mxu0 0.0
  %4549 = vmatprep.subr.mxu0 0.0
  %4550 = vmatpush2.msra.mxu0 0.0
  %4551 = vmatprep.subr.mxu0 0.0
  %4552 = vmatpush2.msra.mxu0 0.0
  %4553 = vmatprep.subr.mxu0 0.0
  %4554 = vmatpush2.msra.mxu0 0.0
  %4555 = vmatprep.subr.mxu0 0.0
  %4556 = vmatpush2.msra.mxu0 0.0
  %4557 = vmatprep.subr.mxu0 0.0
  %4558 = vmatpush2.msra.mxu0 0.0
  %4559 = vmatprep.subr.mxu0 0.0
  %4560 = vmatpush2.msra.mxu0 0.0
  %4561 = vmatprep.subr.mxu0 0.0
  %4562 = vmatpush2.msra.mxu0 0.0
  %4563 = vmatprep.subr.mxu0 0.0
  %4564 = vmatpush2.msra.mxu0 0.0
  %4565 = vmatprep.subr.mxu0 0.0
  %4566 = vmatpush2.msra.mxu0 0.0
  %4567 = vmatprep.subr.mxu0 0.0
  %4568 = vmatpush2.msra.mxu0 0.0
  %4569 = vmatprep.subr.mxu0 0.0
  %4570 = vmatpush2.msra.mxu0 0.0
  %4571 = vmatprep.subr.mxu0 0.0
  %4572 = vmatpush2.msra.mxu0 0.0
  %4573 = vmatprep.subr.mxu0 0.0
  %4574 = vmatpush2.msra.mxu0 0.0
  %4575 = vmatprep.mubr.f32.mxu0 0.0
  %v4576 = vand.u32 %v2472, 4294901760
  %4577 = vmatmul.mubr.f32.gmra.mxu0 %v4576
  %v4578 = vpop.f32.mrf.mxu0
  %v4579 = vadd.f32 %v4444, %v4578
  %v4580 = vpop.f32.mrf.mxu0
  %v4581 = vadd.f32 %v4446, %v4580
  %4582 = vmatprep.mubr.f32.mxu0 0.0
  %v4583 = vand.u32 %v2475, 4294901760
  %4584 = vmatmul.mubr.f32.gmra.mxu0 %v4583
  %v4585 = vpop.f32.mrf.mxu0
  %v4586 = vadd.f32 %v4453, %v4585
  %v4587 = vpop.f32.mrf.mxu0
  %v4588 = vadd.f32 %v4455, %v4587
  %4589 = vmatprep.mubr.f32.mxu0 0.0
  %v4590 = vand.u32 %v2478, 4294901760
  %4591 = vmatmul.mubr.f32.gmra.mxu0 %v4590
  %v4592 = vpop.f32.mrf.mxu0
  %v4593 = vadd.f32 %v4462, %v4592
  %v4594 = vpop.f32.mrf.mxu0
  %v4595 = vadd.f32 %v4464, %v4594
  %4596 = vmatprep.mubr.f32.mxu0 0.0
  %v4597 = vand.u32 %v2481, 4294901760
  %4598 = vmatmul.mubr.f32.gmra.mxu0 %v4597
  %v4599 = vpop.f32.mrf.mxu0
  %v4600 = vadd.f32 %v4471, %v4599
  %v4601 = vpop.f32.mrf.mxu0
  %v4602 = vadd.f32 %v4473, %v4601
  %4603 = vdwg.mxu0
  %4604 = vmatprep.subr.mxu0 0.0
  %4605 = vmatpush1.msra.mxu0 0.0
  %4606 = vmatprep.subr.mxu0 0.0
  %4607 = vmatpush1.msra.mxu0 0.0
  %4608 = vmatprep.subr.mxu0 0.0
  %4609 = vmatpush1.msra.mxu0 0.0
  %4610 = vmatprep.subr.mxu0 0.0
  %4611 = vmatpush1.msra.mxu0 0.0
  %4612 = vmatprep.subr.mxu0 0.0
  %4613 = vmatpush1.msra.mxu0 0.0
  %4614 = vmatprep.subr.mxu0 0.0
  %4615 = vmatpush1.msra.mxu0 0.0
  %4616 = vmatprep.subr.mxu0 0.0
  %4617 = vmatpush1.msra.mxu0 0.0
  %4618 = vmatprep.subr.mxu0 0.0
  %4619 = vmatpush1.msra.mxu0 0.0
  %4620 = vmatprep.subr.mxu0 0.0
  %4621 = vmatpush1.msra.mxu0 0.0
  %4622 = vmatprep.subr.mxu0 0.0
  %4623 = vmatpush1.msra.mxu0 0.0
  %v4624 = vand.u32 %v2440, 4294901760
  %4625 = vmatprep.subr.mxu0 %v4624
  %v4626 = vand.u32 %v2439, 4294901760
  %4627 = vmatpush1.msra.mxu0 %v4626
  %v4628 = vand.u32 %v2433, 4294901760
  %4629 = vmatprep.subr.mxu0 %v4628
  %v4630 = vand.u32 %v2432, 4294901760
  %4631 = vmatpush1.msra.mxu0 %v4630
  %v4632 = vand.u32 %v2328, 4294901760
  %4633 = vmatprep.subr.mxu0 %v4632
  %v4634 = vand.u32 %v2327, 4294901760
  %4635 = vmatpush1.msra.mxu0 %v4634
  %v4636 = vand.u32 %v2321, 4294901760
  %4637 = vmatprep.subr.mxu0 %v4636
  %v4638 = vand.u32 %v2320, 4294901760
  %4639 = vmatpush1.msra.mxu0 %v4638
  %v4640 = vand.u32 %v2384, 4294901760
  %4641 = vmatprep.subr.mxu0 %v4640
  %v4642 = vand.u32 %v2383, 4294901760
  %4643 = vmatpush1.msra.mxu0 %v4642
  %v4644 = vand.u32 %v2377, 4294901760
  %4645 = vmatprep.subr.mxu0 %v4644
  %v4646 = vand.u32 %v2376, 4294901760
  %4647 = vmatpush1.msra.mxu0 %v4646
  %4648 = vmatprep.subr.mxu0 0.0
  %4649 = vmatpush2.msra.mxu0 0.0
  %4650 = vmatprep.subr.mxu0 0.0
  %4651 = vmatpush2.msra.mxu0 0.0
  %4652 = vmatprep.subr.mxu0 0.0
  %4653 = vmatpush2.msra.mxu0 0.0
  %4654 = vmatprep.subr.mxu0 0.0
  %4655 = vmatpush2.msra.mxu0 0.0
  %4656 = vmatprep.subr.mxu0 0.0
  %4657 = vmatpush2.msra.mxu0 0.0
  %4658 = vmatprep.subr.mxu0 0.0
  %4659 = vmatpush2.msra.mxu0 0.0
  %4660 = vmatprep.subr.mxu0 0.0
  %4661 = vmatpush2.msra.mxu0 0.0
  %4662 = vmatprep.subr.mxu0 0.0
  %4663 = vmatpush2.msra.mxu0 0.0
  %4664 = vmatprep.subr.mxu0 0.0
  %4665 = vmatpush2.msra.mxu0 0.0
  %4666 = vmatprep.subr.mxu0 0.0
  %4667 = vmatpush2.msra.mxu0 0.0
  %4668 = vmatprep.subr.mxu0 0.0
  %4669 = vmatpush2.msra.mxu0 0.0
  %4670 = vmatprep.subr.mxu0 0.0
  %4671 = vmatpush2.msra.mxu0 0.0
  %4672 = vmatprep.subr.mxu0 0.0
  %4673 = vmatpush2.msra.mxu0 0.0
  %4674 = vmatprep.subr.mxu0 0.0
  %4675 = vmatpush2.msra.mxu0 0.0
  %4676 = vmatprep.subr.mxu0 0.0
  %4677 = vmatpush2.msra.mxu0 0.0
  %4678 = vmatprep.subr.mxu0 0.0
  %4679 = vmatpush2.msra.mxu0 0.0
  %4680 = vmatprep.mubr.f32.mxu0 0.0
  %v4681 = vand.u32 %v2472, 4294901760
  %4682 = vmatmul.mubr.f32.gmra.mxu0 %v4681
  %v4683 = vpop.f32.mrf.mxu0
  %v4684 = vadd.f32 %v4579, %v4683
  %v4685 = vpop.f32.mrf.mxu0
  %v4686 = vadd.f32 %v4581, %v4685
  %4687 = vmatprep.mubr.f32.mxu0 0.0
  %v4688 = vand.u32 %v2475, 4294901760
  %4689 = vmatmul.mubr.f32.gmra.mxu0 %v4688
  %v4690 = vpop.f32.mrf.mxu0
  %v4691 = vadd.f32 %v4586, %v4690
  %v4692 = vpop.f32.mrf.mxu0
  %v4693 = vadd.f32 %v4588, %v4692
  %4694 = vmatprep.mubr.f32.mxu0 0.0
  %v4695 = vand.u32 %v2478, 4294901760
  %4696 = vmatmul.mubr.f32.gmra.mxu0 %v4695
  %v4697 = vpop.f32.mrf.mxu0
  %v4698 = vadd.f32 %v4593, %v4697
  %v4699 = vpop.f32.mrf.mxu0
  %v4700 = vadd.f32 %v4595, %v4699
  %4701 = vmatprep.mubr.f32.mxu0 0.0
  %v4702 = vand.u32 %v2481, 4294901760
  %4703 = vmatmul.mubr.f32.gmra.mxu0 %v4702
  %v4704 = vpop.f32.mrf.mxu0
  %v4705 = vadd.f32 %v4600, %v4704
  %v4706 = vpop.f32.mrf.mxu0
  %v4707 = vadd.f32 %v4602, %v4706
  %4708 = vdwg.mxu0
  %4709 = vmatprep.subr.mxu0 0.0
  %4710 = vmatpush1.msra.mxu0 0.0
  %4711 = vmatprep.subr.mxu0 0.0
  %4712 = vmatpush1.msra.mxu0 0.0
  %4713 = vmatprep.subr.mxu0 0.0
  %4714 = vmatpush1.msra.mxu0 0.0
  %4715 = vmatprep.subr.mxu0 0.0
  %4716 = vmatpush1.msra.mxu0 0.0
  %4717 = vmatprep.subr.mxu0 0.0
  %4718 = vmatpush1.msra.mxu0 0.0
  %4719 = vmatprep.subr.mxu0 0.0
  %4720 = vmatpush1.msra.mxu0 0.0
  %4721 = vmatprep.subr.mxu0 0.0
  %4722 = vmatpush1.msra.mxu0 0.0
  %4723 = vmatprep.subr.mxu0 0.0
  %4724 = vmatpush1.msra.mxu0 0.0
  %4725 = vmatprep.subr.mxu0 0.0
  %4726 = vmatpush1.msra.mxu0 0.0
  %4727 = vmatprep.subr.mxu0 0.0
  %4728 = vmatpush1.msra.mxu0 0.0
  %4729 = vmatprep.subr.mxu0 0.0
  %v4730 = vand.u32 %v2441, 4294901760
  %4731 = vmatpush1.msra.mxu0 %v4730
  %4732 = vmatprep.subr.mxu0 0.0
  %v4733 = vand.u32 %v2434, 4294901760
  %4734 = vmatpush1.msra.mxu0 %v4733
  %4735 = vmatprep.subr.mxu0 0.0
  %v4736 = vand.u32 %v2329, 4294901760
  %4737 = vmatpush1.msra.mxu0 %v4736
  %4738 = vmatprep.subr.mxu0 0.0
  %v4739 = vand.u32 %v2322, 4294901760
  %4740 = vmatpush1.msra.mxu0 %v4739
  %4741 = vmatprep.subr.mxu0 0.0
  %v4742 = vand.u32 %v2385, 4294901760
  %4743 = vmatpush1.msra.mxu0 %v4742
  %4744 = vmatprep.subr.mxu0 0.0
  %v4745 = vand.u32 %v2378, 4294901760
  %4746 = vmatpush1.msra.mxu0 %v4745
  %4747 = vmatprep.subr.mxu0 0.0
  %4748 = vmatpush2.msra.mxu0 0.0
  %4749 = vmatprep.subr.mxu0 0.0
  %4750 = vmatpush2.msra.mxu0 0.0
  %4751 = vmatprep.subr.mxu0 0.0
  %4752 = vmatpush2.msra.mxu0 0.0
  %4753 = vmatprep.subr.mxu0 0.0
  %4754 = vmatpush2.msra.mxu0 0.0
  %4755 = vmatprep.subr.mxu0 0.0
  %4756 = vmatpush2.msra.mxu0 0.0
  %4757 = vmatprep.subr.mxu0 0.0
  %4758 = vmatpush2.msra.mxu0 0.0
  %4759 = vmatprep.subr.mxu0 0.0
  %4760 = vmatpush2.msra.mxu0 0.0
  %4761 = vmatprep.subr.mxu0 0.0
  %4762 = vmatpush2.msra.mxu0 0.0
  %4763 = vmatprep.subr.mxu0 0.0
  %4764 = vmatpush2.msra.mxu0 0.0
  %4765 = vmatprep.subr.mxu0 0.0
  %4766 = vmatpush2.msra.mxu0 0.0
  %4767 = vmatprep.subr.mxu0 0.0
  %4768 = vmatpush2.msra.mxu0 0.0
  %4769 = vmatprep.subr.mxu0 0.0
  %4770 = vmatpush2.msra.mxu0 0.0
  %4771 = vmatprep.subr.mxu0 0.0
  %4772 = vmatpush2.msra.mxu0 0.0
  %4773 = vmatprep.subr.mxu0 0.0
  %4774 = vmatpush2.msra.mxu0 0.0
  %4775 = vmatprep.subr.mxu0 0.0
  %4776 = vmatpush2.msra.mxu0 0.0
  %4777 = vmatprep.subr.mxu0 0.0
  %4778 = vmatpush2.msra.mxu0 0.0
  %4779 = vmatprep.mubr.f32.mxu0 0.0
  %v4780 = vand.u32 %v2472, 4294901760
  %v4781 = vsub.f32 %v2472, %v4780
  %v4782 = vand.u32 %v4781, 4294901760
  %v4783 = vsub.f32 %v4781, %v4782
  %v4784 = vand.u32 %v4783, 4294901760
  %4785 = vmatmul.mubr.f32.gmra.mxu0 %v4784
  %v4786 = vpop.f32.mrf.mxu0
  %v4787 = vadd.f32 %v2453, %v4786
  %v4788 = vpop.f32.mrf.mxu0
  %4789 = vmatprep.mubr.f32.mxu0 0.0
  %v4790 = vand.u32 %v2475, 4294901760
  %v4791 = vsub.f32 %v2475, %v4790
  %v4792 = vand.u32 %v4791, 4294901760
  %v4793 = vsub.f32 %v4791, %v4792
  %v4794 = vand.u32 %v4793, 4294901760
  %4795 = vmatmul.mubr.f32.gmra.mxu0 %v4794
  %v4796 = vpop.f32.mrf.mxu0
  %v4797 = vadd.f32 %v2458, %v4796
  %v4798 = vpop.f32.mrf.mxu0
  %4799 = vmatprep.mubr.f32.mxu0 0.0
  %v4800 = vand.u32 %v2478, 4294901760
  %v4801 = vsub.f32 %v2478, %v4800
  %v4802 = vand.u32 %v4801, 4294901760
  %v4803 = vsub.f32 %v4801, %v4802
  %v4804 = vand.u32 %v4803, 4294901760
  %4805 = vmatmul.mubr.f32.gmra.mxu0 %v4804
  %v4806 = vpop.f32.mrf.mxu0
  %v4807 = vadd.f32 %v2463, %v4806
  %v4808 = vpop.f32.mrf.mxu0
  %4809 = vmatprep.mubr.f32.mxu0 0.0
  %v4810 = vand.u32 %v2481, 4294901760
  %v4811 = vsub.f32 %v2481, %v4810
  %v4812 = vand.u32 %v4811, 4294901760
  %v4813 = vsub.f32 %v4811, %v4812
  %v4814 = vand.u32 %v4813, 4294901760
  %4815 = vmatmul.mubr.f32.gmra.mxu0 %v4814
  %v4816 = vpop.f32.mrf.mxu0
  %v4817 = vadd.f32 %v2468, %v4816
  %v4818 = vpop.f32.mrf.mxu0
  %4819 = vdwg.mxu0
  %4820 = vmatprep.subr.mxu0 0.0
  %4821 = vmatpush1.msra.mxu0 0.0
  %4822 = vmatprep.subr.mxu0 0.0
  %4823 = vmatpush1.msra.mxu0 0.0
  %4824 = vmatprep.subr.mxu0 0.0
  %4825 = vmatpush1.msra.mxu0 0.0
  %4826 = vmatprep.subr.mxu0 0.0
  %4827 = vmatpush1.msra.mxu0 0.0
  %4828 = vmatprep.subr.mxu0 0.0
  %4829 = vmatpush1.msra.mxu0 0.0
  %4830 = vmatprep.subr.mxu0 0.0
  %4831 = vmatpush1.msra.mxu0 0.0
  %4832 = vmatprep.subr.mxu0 0.0
  %4833 = vmatpush1.msra.mxu0 0.0
  %4834 = vmatprep.subr.mxu0 0.0
  %4835 = vmatpush1.msra.mxu0 0.0
  %4836 = vmatprep.subr.mxu0 0.0
  %4837 = vmatpush1.msra.mxu0 0.0
  %4838 = vmatprep.subr.mxu0 0.0
  %4839 = vmatpush1.msra.mxu0 0.0
  %4840 = vmatprep.subr.mxu0 0.0
  %v4841 = vand.u32 %v2441, 4294901760
  %v4842 = vsub.f32 %v2441, %v4841
  %v4843 = vand.u32 %v4842, 4294901760
  %v4844 = vsub.f32 %v4842, %v4843
  %v4845 = vand.u32 %v4844, 4294901760
  %4846 = vmatpush1.msra.mxu0 %v4845
  %4847 = vmatprep.subr.mxu0 0.0
  %v4848 = vand.u32 %v2434, 4294901760
  %v4849 = vsub.f32 %v2434, %v4848
  %v4850 = vand.u32 %v4849, 4294901760
  %v4851 = vsub.f32 %v4849, %v4850
  %v4852 = vand.u32 %v4851, 4294901760
  %4853 = vmatpush1.msra.mxu0 %v4852
  %4854 = vmatprep.subr.mxu0 0.0
  %v4855 = vand.u32 %v2329, 4294901760
  %v4856 = vsub.f32 %v2329, %v4855
  %v4857 = vand.u32 %v4856, 4294901760
  %v4858 = vsub.f32 %v4856, %v4857
  %v4859 = vand.u32 %v4858, 4294901760
  %4860 = vmatpush1.msra.mxu0 %v4859
  %4861 = vmatprep.subr.mxu0 0.0
  %v4862 = vand.u32 %v2322, 4294901760
  %v4863 = vsub.f32 %v2322, %v4862
  %v4864 = vand.u32 %v4863, 4294901760
  %v4865 = vsub.f32 %v4863, %v4864
  %v4866 = vand.u32 %v4865, 4294901760
  %4867 = vmatpush1.msra.mxu0 %v4866
  %4868 = vmatprep.subr.mxu0 0.0
  %v4869 = vand.u32 %v2385, 4294901760
  %v4870 = vsub.f32 %v2385, %v4869
  %v4871 = vand.u32 %v4870, 4294901760
  %v4872 = vsub.f32 %v4870, %v4871
  %v4873 = vand.u32 %v4872, 4294901760
  %4874 = vmatpush1.msra.mxu0 %v4873
  %4875 = vmatprep.subr.mxu0 0.0
  %v4876 = vand.u32 %v2378, 4294901760
  %v4877 = vsub.f32 %v2378, %v4876
  %v4878 = vand.u32 %v4877, 4294901760
  %v4879 = vsub.f32 %v4877, %v4878
  %v4880 = vand.u32 %v4879, 4294901760
  %4881 = vmatpush1.msra.mxu0 %v4880
  %4882 = vmatprep.subr.mxu0 0.0
  %4883 = vmatpush2.msra.mxu0 0.0
  %4884 = vmatprep.subr.mxu0 0.0
  %4885 = vmatpush2.msra.mxu0 0.0
  %4886 = vmatprep.subr.mxu0 0.0
  %4887 = vmatpush2.msra.mxu0 0.0
  %4888 = vmatprep.subr.mxu0 0.0
  %4889 = vmatpush2.msra.mxu0 0.0
  %4890 = vmatprep.subr.mxu0 0.0
  %4891 = vmatpush2.msra.mxu0 0.0
  %4892 = vmatprep.subr.mxu0 0.0
  %4893 = vmatpush2.msra.mxu0 0.0
  %4894 = vmatprep.subr.mxu0 0.0
  %4895 = vmatpush2.msra.mxu0 0.0
  %4896 = vmatprep.subr.mxu0 0.0
  %4897 = vmatpush2.msra.mxu0 0.0
  %4898 = vmatprep.subr.mxu0 0.0
  %4899 = vmatpush2.msra.mxu0 0.0
  %4900 = vmatprep.subr.mxu0 0.0
  %4901 = vmatpush2.msra.mxu0 0.0
  %4902 = vmatprep.subr.mxu0 0.0
  %4903 = vmatpush2.msra.mxu0 0.0
  %4904 = vmatprep.subr.mxu0 0.0
  %4905 = vmatpush2.msra.mxu0 0.0
  %4906 = vmatprep.subr.mxu0 0.0
  %4907 = vmatpush2.msra.mxu0 0.0
  %4908 = vmatprep.subr.mxu0 0.0
  %4909 = vmatpush2.msra.mxu0 0.0
  %4910 = vmatprep.subr.mxu0 0.0
  %4911 = vmatpush2.msra.mxu0 0.0
  %4912 = vmatprep.subr.mxu0 0.0
  %4913 = vmatpush2.msra.mxu0 0.0
  %4914 = vmatprep.mubr.f32.mxu0 0.0
  %v4915 = vand.u32 %v2472, 4294901760
  %4916 = vmatmul.mubr.f32.gmra.mxu0 %v4915
  %v4917 = vpop.f32.mrf.mxu0
  %v4918 = vadd.f32 %v4787, %v4917
  %v4919 = vpop.f32.mrf.mxu0
  %4920 = vmatprep.mubr.f32.mxu0 0.0
  %v4921 = vand.u32 %v2475, 4294901760
  %4922 = vmatmul.mubr.f32.gmra.mxu0 %v4921
  %v4923 = vpop.f32.mrf.mxu0
  %v4924 = vadd.f32 %v4797, %v4923
  %v4925 = vpop.f32.mrf.mxu0
  %4926 = vmatprep.mubr.f32.mxu0 0.0
  %v4927 = vand.u32 %v2478, 4294901760
  %4928 = vmatmul.mubr.f32.gmra.mxu0 %v4927
  %v4929 = vpop.f32.mrf.mxu0
  %v4930 = vadd.f32 %v4807, %v4929
  %v4931 = vpop.f32.mrf.mxu0
  %4932 = vmatprep.mubr.f32.mxu0 0.0
  %v4933 = vand.u32 %v2481, 4294901760
  %4934 = vmatmul.mubr.f32.gmra.mxu0 %v4933
  %v4935 = vpop.f32.mrf.mxu0
  %v4936 = vadd.f32 %v4817, %v4935
  %v4937 = vpop.f32.mrf.mxu0
  %4938 = vdwg.mxu0
  %4939 = vmatprep.subr.mxu0 0.0
  %4940 = vmatpush1.msra.mxu0 0.0
  %4941 = vmatprep.subr.mxu0 0.0
  %4942 = vmatpush1.msra.mxu0 0.0
  %4943 = vmatprep.subr.mxu0 0.0
  %4944 = vmatpush1.msra.mxu0 0.0
  %4945 = vmatprep.subr.mxu0 0.0
  %4946 = vmatpush1.msra.mxu0 0.0
  %4947 = vmatprep.subr.mxu0 0.0
  %4948 = vmatpush1.msra.mxu0 0.0
  %4949 = vmatprep.subr.mxu0 0.0
  %4950 = vmatpush1.msra.mxu0 0.0
  %4951 = vmatprep.subr.mxu0 0.0
  %4952 = vmatpush1.msra.mxu0 0.0
  %4953 = vmatprep.subr.mxu0 0.0
  %4954 = vmatpush1.msra.mxu0 0.0
  %4955 = vmatprep.subr.mxu0 0.0
  %4956 = vmatpush1.msra.mxu0 0.0
  %4957 = vmatprep.subr.mxu0 0.0
  %4958 = vmatpush1.msra.mxu0 0.0
  %4959 = vmatprep.subr.mxu0 0.0
  %v4960 = vand.u32 %v2441, 4294901760
  %v4961 = vsub.f32 %v2441, %v4960
  %4962 = vmatpush1.msra.mxu0 %v4961
  %4963 = vmatprep.subr.mxu0 0.0
  %v4964 = vand.u32 %v2434, 4294901760
  %v4965 = vsub.f32 %v2434, %v4964
  %4966 = vmatpush1.msra.mxu0 %v4965
  %4967 = vmatprep.subr.mxu0 0.0
  %v4968 = vand.u32 %v2329, 4294901760
  %v4969 = vsub.f32 %v2329, %v4968
  %4970 = vmatpush1.msra.mxu0 %v4969
  %4971 = vmatprep.subr.mxu0 0.0
  %v4972 = vand.u32 %v2322, 4294901760
  %v4973 = vsub.f32 %v2322, %v4972
  %4974 = vmatpush1.msra.mxu0 %v4973
  %4975 = vmatprep.subr.mxu0 0.0
  %v4976 = vand.u32 %v2385, 4294901760
  %v4977 = vsub.f32 %v2385, %v4976
  %4978 = vmatpush1.msra.mxu0 %v4977
  %4979 = vmatprep.subr.mxu0 0.0
  %v4980 = vand.u32 %v2378, 4294901760
  %v4981 = vsub.f32 %v2378, %v4980
  %4982 = vmatpush1.msra.mxu0 %v4981
  %4983 = vmatprep.subr.mxu0 0.0
  %4984 = vmatpush2.msra.mxu0 0.0
  %4985 = vmatprep.subr.mxu0 0.0
  %4986 = vmatpush2.msra.mxu0 0.0
  %4987 = vmatprep.subr.mxu0 0.0
  %4988 = vmatpush2.msra.mxu0 0.0
  %4989 = vmatprep.subr.mxu0 0.0
  %4990 = vmatpush2.msra.mxu0 0.0
  %4991 = vmatprep.subr.mxu0 0.0
  %4992 = vmatpush2.msra.mxu0 0.0
  %4993 = vmatprep.subr.mxu0 0.0
  %4994 = vmatpush2.msra.mxu0 0.0
  %4995 = vmatprep.subr.mxu0 0.0
  %4996 = vmatpush2.msra.mxu0 0.0
  %4997 = vmatprep.subr.mxu0 0.0
  %4998 = vmatpush2.msra.mxu0 0.0
  %4999 = vmatprep.subr.mxu0 0.0
  %5000 = vmatpush2.msra.mxu0 0.0
  %5001 = vmatprep.subr.mxu0 0.0
  %5002 = vmatpush2.msra.mxu0 0.0
  %5003 = vmatprep.subr.mxu0 0.0
  %5004 = vmatpush2.msra.mxu0 0.0
  %5005 = vmatprep.subr.mxu0 0.0
  %5006 = vmatpush2.msra.mxu0 0.0
  %5007 = vmatprep.subr.mxu0 0.0
  %5008 = vmatpush2.msra.mxu0 0.0
  %5009 = vmatprep.subr.mxu0 0.0
  %5010 = vmatpush2.msra.mxu0 0.0
  %5011 = vmatprep.subr.mxu0 0.0
  %5012 = vmatpush2.msra.mxu0 0.0
  %5013 = vmatprep.subr.mxu0 0.0
  %5014 = vmatpush2.msra.mxu0 0.0
  %5015 = vmatprep.mubr.f32.mxu0 0.0
  %v5016 = vand.u32 %v2472, 4294901760
  %v5017 = vsub.f32 %v2472, %v5016
  %5018 = vmatmul.mubr.f32.gmra.mxu0 %v5017
  %v5019 = vpop.f32.mrf.mxu0
  %v5020 = vadd.f32 %v4918, %v5019
  %v5021 = vpop.f32.mrf.mxu0
  %5022 = vmatprep.mubr.f32.mxu0 0.0
  %v5023 = vand.u32 %v2475, 4294901760
  %v5024 = vsub.f32 %v2475, %v5023
  %5025 = vmatmul.mubr.f32.gmra.mxu0 %v5024
  %v5026 = vpop.f32.mrf.mxu0
  %v5027 = vadd.f32 %v4924, %v5026
  %v5028 = vpop.f32.mrf.mxu0
  %5029 = vmatprep.mubr.f32.mxu0 0.0
  %v5030 = vand.u32 %v2478, 4294901760
  %v5031 = vsub.f32 %v2478, %v5030
  %5032 = vmatmul.mubr.f32.gmra.mxu0 %v5031
  %v5033 = vpop.f32.mrf.mxu0
  %v5034 = vadd.f32 %v4930, %v5033
  %v5035 = vpop.f32.mrf.mxu0
  %5036 = vmatprep.mubr.f32.mxu0 0.0
  %v5037 = vand.u32 %v2481, 4294901760
  %v5038 = vsub.f32 %v2481, %v5037
  %5039 = vmatmul.mubr.f32.gmra.mxu0 %v5038
  %v5040 = vpop.f32.mrf.mxu0
  %v5041 = vadd.f32 %v4936, %v5040
  %v5042 = vpop.f32.mrf.mxu0
  %5043 = vdwg.mxu0
  %5044 = vmatprep.subr.mxu0 0.0
  %5045 = vmatpush1.msra.mxu0 0.0
  %5046 = vmatprep.subr.mxu0 0.0
  %5047 = vmatpush1.msra.mxu0 0.0
  %5048 = vmatprep.subr.mxu0 0.0
  %5049 = vmatpush1.msra.mxu0 0.0
  %5050 = vmatprep.subr.mxu0 0.0
  %5051 = vmatpush1.msra.mxu0 0.0
  %5052 = vmatprep.subr.mxu0 0.0
  %5053 = vmatpush1.msra.mxu0 0.0
  %5054 = vmatprep.subr.mxu0 0.0
  %5055 = vmatpush1.msra.mxu0 0.0
  %5056 = vmatprep.subr.mxu0 0.0
  %5057 = vmatpush1.msra.mxu0 0.0
  %5058 = vmatprep.subr.mxu0 0.0
  %5059 = vmatpush1.msra.mxu0 0.0
  %5060 = vmatprep.subr.mxu0 0.0
  %5061 = vmatpush1.msra.mxu0 0.0
  %5062 = vmatprep.subr.mxu0 0.0
  %5063 = vmatpush1.msra.mxu0 0.0
  %5064 = vmatprep.subr.mxu0 0.0
  %v5065 = vand.u32 %v2441, 4294901760
  %5066 = vmatpush1.msra.mxu0 %v5065
  %5067 = vmatprep.subr.mxu0 0.0
  %v5068 = vand.u32 %v2434, 4294901760
  %5069 = vmatpush1.msra.mxu0 %v5068
  %5070 = vmatprep.subr.mxu0 0.0
  %v5071 = vand.u32 %v2329, 4294901760
  %5072 = vmatpush1.msra.mxu0 %v5071
  %5073 = vmatprep.subr.mxu0 0.0
  %v5074 = vand.u32 %v2322, 4294901760
  %5075 = vmatpush1.msra.mxu0 %v5074
  %5076 = vmatprep.subr.mxu0 0.0
  %v5077 = vand.u32 %v2385, 4294901760
  %5078 = vmatpush1.msra.mxu0 %v5077
  %5079 = vmatprep.subr.mxu0 0.0
  %v5080 = vand.u32 %v2378, 4294901760
  %5081 = vmatpush1.msra.mxu0 %v5080
  %5082 = vmatprep.subr.mxu0 0.0
  %5083 = vmatpush2.msra.mxu0 0.0
  %5084 = vmatprep.subr.mxu0 0.0
  %5085 = vmatpush2.msra.mxu0 0.0
  %5086 = vmatprep.subr.mxu0 0.0
  %5087 = vmatpush2.msra.mxu0 0.0
  %5088 = vmatprep.subr.mxu0 0.0
  %5089 = vmatpush2.msra.mxu0 0.0
  %5090 = vmatprep.subr.mxu0 0.0
  %5091 = vmatpush2.msra.mxu0 0.0
  %5092 = vmatprep.subr.mxu0 0.0
  %5093 = vmatpush2.msra.mxu0 0.0
  %5094 = vmatprep.subr.mxu0 0.0
  %5095 = vmatpush2.msra.mxu0 0.0
  %5096 = vmatprep.subr.mxu0 0.0
  %5097 = vmatpush2.msra.mxu0 0.0
  %5098 = vmatprep.subr.mxu0 0.0
  %5099 = vmatpush2.msra.mxu0 0.0
  %5100 = vmatprep.subr.mxu0 0.0
  %5101 = vmatpush2.msra.mxu0 0.0
  %5102 = vmatprep.subr.mxu0 0.0
  %5103 = vmatpush2.msra.mxu0 0.0
  %5104 = vmatprep.subr.mxu0 0.0
  %5105 = vmatpush2.msra.mxu0 0.0
  %5106 = vmatprep.subr.mxu0 0.0
  %5107 = vmatpush2.msra.mxu0 0.0
  %5108 = vmatprep.subr.mxu0 0.0
  %5109 = vmatpush2.msra.mxu0 0.0
  %5110 = vmatprep.subr.mxu0 0.0
  %5111 = vmatpush2.msra.mxu0 0.0
  %5112 = vmatprep.subr.mxu0 0.0
  %5113 = vmatpush2.msra.mxu0 0.0
  %5114 = vmatprep.mubr.f32.mxu0 0.0
  %v5115 = vand.u32 %v2472, 4294901760
  %v5116 = vsub.f32 %v2472, %v5115
  %v5117 = vand.u32 %v5116, 4294901760
  %5118 = vmatmul.mubr.f32.gmra.mxu0 %v5117
  %v5119 = vpop.f32.mrf.mxu0
  %v5120 = vadd.f32 %v5020, %v5119
  %v5121 = vpop.f32.mrf.mxu0
  %5122 = vmatprep.mubr.f32.mxu0 0.0
  %v5123 = vand.u32 %v2475, 4294901760
  %v5124 = vsub.f32 %v2475, %v5123
  %v5125 = vand.u32 %v5124, 4294901760
  %5126 = vmatmul.mubr.f32.gmra.mxu0 %v5125
  %v5127 = vpop.f32.mrf.mxu0
  %v5128 = vadd.f32 %v5027, %v5127
  %v5129 = vpop.f32.mrf.mxu0
  %5130 = vmatprep.mubr.f32.mxu0 0.0
  %v5131 = vand.u32 %v2478, 4294901760
  %v5132 = vsub.f32 %v2478, %v5131
  %v5133 = vand.u32 %v5132, 4294901760
  %5134 = vmatmul.mubr.f32.gmra.mxu0 %v5133
  %v5135 = vpop.f32.mrf.mxu0
  %v5136 = vadd.f32 %v5034, %v5135
  %v5137 = vpop.f32.mrf.mxu0
  %5138 = vmatprep.mubr.f32.mxu0 0.0
  %v5139 = vand.u32 %v2481, 4294901760
  %v5140 = vsub.f32 %v2481, %v5139
  %v5141 = vand.u32 %v5140, 4294901760
  %5142 = vmatmul.mubr.f32.gmra.mxu0 %v5141
  %v5143 = vpop.f32.mrf.mxu0
  %v5144 = vadd.f32 %v5041, %v5143
  %v5145 = vpop.f32.mrf.mxu0
  %5146 = vdwg.mxu0
  %5147 = vmatprep.subr.mxu0 0.0
  %5148 = vmatpush1.msra.mxu0 0.0
  %5149 = vmatprep.subr.mxu0 0.0
  %5150 = vmatpush1.msra.mxu0 0.0
  %5151 = vmatprep.subr.mxu0 0.0
  %5152 = vmatpush1.msra.mxu0 0.0
  %5153 = vmatprep.subr.mxu0 0.0
  %5154 = vmatpush1.msra.mxu0 0.0
  %5155 = vmatprep.subr.mxu0 0.0
  %5156 = vmatpush1.msra.mxu0 0.0
  %5157 = vmatprep.subr.mxu0 0.0
  %5158 = vmatpush1.msra.mxu0 0.0
  %5159 = vmatprep.subr.mxu0 0.0
  %5160 = vmatpush1.msra.mxu0 0.0
  %5161 = vmatprep.subr.mxu0 0.0
  %5162 = vmatpush1.msra.mxu0 0.0
  %5163 = vmatprep.subr.mxu0 0.0
  %5164 = vmatpush1.msra.mxu0 0.0
  %5165 = vmatprep.subr.mxu0 0.0
  %5166 = vmatpush1.msra.mxu0 0.0
  %5167 = vmatprep.subr.mxu0 0.0
  %v5168 = vand.u32 %v2441, 4294901760
  %v5169 = vsub.f32 %v2441, %v5168
  %v5170 = vand.u32 %v5169, 4294901760
  %5171 = vmatpush1.msra.mxu0 %v5170
  %5172 = vmatprep.subr.mxu0 0.0
  %v5173 = vand.u32 %v2434, 4294901760
  %v5174 = vsub.f32 %v2434, %v5173
  %v5175 = vand.u32 %v5174, 4294901760
  %5176 = vmatpush1.msra.mxu0 %v5175
  %5177 = vmatprep.subr.mxu0 0.0
  %v5178 = vand.u32 %v2329, 4294901760
  %v5179 = vsub.f32 %v2329, %v5178
  %v5180 = vand.u32 %v5179, 4294901760
  %5181 = vmatpush1.msra.mxu0 %v5180
  %5182 = vmatprep.subr.mxu0 0.0
  %v5183 = vand.u32 %v2322, 4294901760
  %v5184 = vsub.f32 %v2322, %v5183
  %v5185 = vand.u32 %v5184, 4294901760
  %5186 = vmatpush1.msra.mxu0 %v5185
  %5187 = vmatprep.subr.mxu0 0.0
  %v5188 = vand.u32 %v2385, 4294901760
  %v5189 = vsub.f32 %v2385, %v5188
  %v5190 = vand.u32 %v5189, 4294901760
  %5191 = vmatpush1.msra.mxu0 %v5190
  %5192 = vmatprep.subr.mxu0 0.0
  %v5193 = vand.u32 %v2378, 4294901760
  %v5194 = vsub.f32 %v2378, %v5193
  %v5195 = vand.u32 %v5194, 4294901760
  %5196 = vmatpush1.msra.mxu0 %v5195
  %5197 = vmatprep.subr.mxu0 0.0
  %5198 = vmatpush2.msra.mxu0 0.0
  %5199 = vmatprep.subr.mxu0 0.0
  %5200 = vmatpush2.msra.mxu0 0.0
  %5201 = vmatprep.subr.mxu0 0.0
  %5202 = vmatpush2.msra.mxu0 0.0
  %5203 = vmatprep.subr.mxu0 0.0
  %5204 = vmatpush2.msra.mxu0 0.0
  %5205 = vmatprep.subr.mxu0 0.0
  %5206 = vmatpush2.msra.mxu0 0.0
  %5207 = vmatprep.subr.mxu0 0.0
  %5208 = vmatpush2.msra.mxu0 0.0
  %5209 = vmatprep.subr.mxu0 0.0
  %5210 = vmatpush2.msra.mxu0 0.0
  %5211 = vmatprep.subr.mxu0 0.0
  %5212 = vmatpush2.msra.mxu0 0.0
  %5213 = vmatprep.subr.mxu0 0.0
  %5214 = vmatpush2.msra.mxu0 0.0
  %5215 = vmatprep.subr.mxu0 0.0
  %5216 = vmatpush2.msra.mxu0 0.0
  %5217 = vmatprep.subr.mxu0 0.0
  %5218 = vmatpush2.msra.mxu0 0.0
  %5219 = vmatprep.subr.mxu0 0.0
  %5220 = vmatpush2.msra.mxu0 0.0
  %5221 = vmatprep.subr.mxu0 0.0
  %5222 = vmatpush2.msra.mxu0 0.0
  %5223 = vmatprep.subr.mxu0 0.0
  %5224 = vmatpush2.msra.mxu0 0.0
  %5225 = vmatprep.subr.mxu0 0.0
  %5226 = vmatpush2.msra.mxu0 0.0
  %5227 = vmatprep.subr.mxu0 0.0
  %5228 = vmatpush2.msra.mxu0 0.0
  %5229 = vmatprep.mubr.f32.mxu0 0.0
  %v5230 = vand.u32 %v2472, 4294901760
  %5231 = vmatmul.mubr.f32.gmra.mxu0 %v5230
  %v5232 = vpop.f32.mrf.mxu0
  %v5233 = vadd.f32 %v5120, %v5232
  %v5234 = vpop.f32.mrf.mxu0
  %5235 = vmatprep.mubr.f32.mxu0 0.0
  %v5236 = vand.u32 %v2475, 4294901760
  %5237 = vmatmul.mubr.f32.gmra.mxu0 %v5236
  %v5238 = vpop.f32.mrf.mxu0
  %v5239 = vadd.f32 %v5128, %v5238
  %v5240 = vpop.f32.mrf.mxu0
  %5241 = vmatprep.mubr.f32.mxu0 0.0
  %v5242 = vand.u32 %v2478, 4294901760
  %5243 = vmatmul.mubr.f32.gmra.mxu0 %v5242
  %v5244 = vpop.f32.mrf.mxu0
  %v5245 = vadd.f32 %v5136, %v5244
  %v5246 = vpop.f32.mrf.mxu0
  %5247 = vmatprep.mubr.f32.mxu0 0.0
  %v5248 = vand.u32 %v2481, 4294901760
  %5249 = vmatmul.mubr.f32.gmra.mxu0 %v5248
  %v5250 = vpop.f32.mrf.mxu0
  %v5251 = vadd.f32 %v5144, %v5250
  %v5252 = vpop.f32.mrf.mxu0
  %5253 = vdwg.mxu0
  %5254 = vmatprep.subr.mxu0 0.0
  %5255 = vmatpush1.msra.mxu0 0.0
  %5256 = vmatprep.subr.mxu0 0.0
  %5257 = vmatpush1.msra.mxu0 0.0
  %5258 = vmatprep.subr.mxu0 0.0
  %5259 = vmatpush1.msra.mxu0 0.0
  %5260 = vmatprep.subr.mxu0 0.0
  %5261 = vmatpush1.msra.mxu0 0.0
  %5262 = vmatprep.subr.mxu0 0.0
  %5263 = vmatpush1.msra.mxu0 0.0
  %5264 = vmatprep.subr.mxu0 0.0
  %5265 = vmatpush1.msra.mxu0 0.0
  %5266 = vmatprep.subr.mxu0 0.0
  %5267 = vmatpush1.msra.mxu0 0.0
  %5268 = vmatprep.subr.mxu0 0.0
  %5269 = vmatpush1.msra.mxu0 0.0
  %5270 = vmatprep.subr.mxu0 0.0
  %5271 = vmatpush1.msra.mxu0 0.0
  %5272 = vmatprep.subr.mxu0 0.0
  %5273 = vmatpush1.msra.mxu0 0.0
  %5274 = vmatprep.subr.mxu0 0.0
  %v5275 = vand.u32 %v2441, 4294901760
  %5276 = vmatpush1.msra.mxu0 %v5275
  %5277 = vmatprep.subr.mxu0 0.0
  %v5278 = vand.u32 %v2434, 4294901760
  %5279 = vmatpush1.msra.mxu0 %v5278
  %5280 = vmatprep.subr.mxu0 0.0
  %v5281 = vand.u32 %v2329, 4294901760
  %5282 = vmatpush1.msra.mxu0 %v5281
  %5283 = vmatprep.subr.mxu0 0.0
  %v5284 = vand.u32 %v2322, 4294901760
  %5285 = vmatpush1.msra.mxu0 %v5284
  %5286 = vmatprep.subr.mxu0 0.0
  %v5287 = vand.u32 %v2385, 4294901760
  %5288 = vmatpush1.msra.mxu0 %v5287
  %5289 = vmatprep.subr.mxu0 0.0
  %v5290 = vand.u32 %v2378, 4294901760
  %5291 = vmatpush1.msra.mxu0 %v5290
  %5292 = vmatprep.subr.mxu0 0.0
  %5293 = vmatpush2.msra.mxu0 0.0
  %5294 = vmatprep.subr.mxu0 0.0
  %5295 = vmatpush2.msra.mxu0 0.0
  %5296 = vmatprep.subr.mxu0 0.0
  %5297 = vmatpush2.msra.mxu0 0.0
  %5298 = vmatprep.subr.mxu0 0.0
  %5299 = vmatpush2.msra.mxu0 0.0
  %5300 = vmatprep.subr.mxu0 0.0
  %5301 = vmatpush2.msra.mxu0 0.0
  %5302 = vmatprep.subr.mxu0 0.0
  %5303 = vmatpush2.msra.mxu0 0.0
  %5304 = vmatprep.subr.mxu0 0.0
  %5305 = vmatpush2.msra.mxu0 0.0
  %5306 = vmatprep.subr.mxu0 0.0
  %5307 = vmatpush2.msra.mxu0 0.0
  %5308 = vmatprep.subr.mxu0 0.0
  %5309 = vmatpush2.msra.mxu0 0.0
  %5310 = vmatprep.subr.mxu0 0.0
  %5311 = vmatpush2.msra.mxu0 0.0
  %5312 = vmatprep.subr.mxu0 0.0
  %5313 = vmatpush2.msra.mxu0 0.0
  %5314 = vmatprep.subr.mxu0 0.0
  %5315 = vmatpush2.msra.mxu0 0.0
  %5316 = vmatprep.subr.mxu0 0.0
  %5317 = vmatpush2.msra.mxu0 0.0
  %5318 = vmatprep.subr.mxu0 0.0
  %5319 = vmatpush2.msra.mxu0 0.0
  %5320 = vmatprep.subr.mxu0 0.0
  %5321 = vmatpush2.msra.mxu0 0.0
  %5322 = vmatprep.subr.mxu0 0.0
  %5323 = vmatpush2.msra.mxu0 0.0
  %5324 = vmatprep.mubr.f32.mxu0 0.0
  %v5325 = vand.u32 %v2472, 4294901760
  %5326 = vmatmul.mubr.f32.gmra.mxu0 %v5325
  %v5327 = vpop.f32.mrf.mxu0
  %v5328 = vadd.f32 %v5233, %v5327
  %v5329 = vpop.f32.mrf.mxu0
  %5330 = vmatprep.mubr.f32.mxu0 0.0
  %v5331 = vand.u32 %v2475, 4294901760
  %5332 = vmatmul.mubr.f32.gmra.mxu0 %v5331
  %v5333 = vpop.f32.mrf.mxu0
  %v5334 = vadd.f32 %v5239, %v5333
  %v5335 = vpop.f32.mrf.mxu0
  %5336 = vmatprep.mubr.f32.mxu0 0.0
  %v5337 = vand.u32 %v2478, 4294901760
  %5338 = vmatmul.mubr.f32.gmra.mxu0 %v5337
  %v5339 = vpop.f32.mrf.mxu0
  %v5340 = vadd.f32 %v5245, %v5339
  %v5341 = vpop.f32.mrf.mxu0
  %5342 = vmatprep.mubr.f32.mxu0 0.0
  %v5343 = vand.u32 %v2481, 4294901760
  %5344 = vmatmul.mubr.f32.gmra.mxu0 %v5343
  %v5345 = vpop.f32.mrf.mxu0
  %v5346 = vadd.f32 %v5251, %v5345
  %v5347 = vpop.f32.mrf.mxu0
  %5348 = vdwg.mxu0
  %v5349 = vmax.f32 %v3200, 0.0
  %v5350 = vmax.f32 %v3202, 0.0
  %v5351 = vmax.f32 %v3942, 0.0
  %v5352 = vmax.f32 %v3944, 0.0
  %v5353 = vmax.f32 %v4684, 0.0
  %v5354 = vmax.f32 %v4686, 0.0
  %v5355 = vmax.f32 %v5328, 0.0
  %v5356 = vmax.f32 %v3207, 0.0
  %v5357 = vmax.f32 %v3209, 0.0
  %v5358 = vmax.f32 %v3949, 0.0
  %v5359 = vmax.f32 %v3951, 0.0
  %v5360 = vmax.f32 %v4691, 0.0
  %v5361 = vmax.f32 %v4693, 0.0
  %v5362 = vmax.f32 %v5334, 0.0
  %v5363 = vmax.f32 %v3214, 0.0
  %v5364 = vmax.f32 %v3216, 0.0
  %v5365 = vmax.f32 %v3956, 0.0
  %v5366 = vmax.f32 %v3958, 0.0
  %v5367 = vmax.f32 %v4698, 0.0
  %v5368 = vmax.f32 %v4700, 0.0
  %v5369 = vmax.f32 %v5340, 0.0
  %v5370 = vmax.f32 %v3221, 0.0
  %v5371 = vmax.f32 %v3223, 0.0
  %v5372 = vmax.f32 %v3963, 0.0
  %v5373 = vmax.f32 %v3965, 0.0
  %v5374 = vmax.f32 %v4705, 0.0
  %v5375 = vmax.f32 %v4707, 0.0
  %v5376 = vmax.f32 %v5346, 0.0
  %v5377 = vld [vmem:[%s7] sm:$0x1]
  %vm5378 = vcmask 261120
  %v5380 = vsel %vm5378, %v5377, 0
  %5382 = vmatprep.subr.mxu0 0.0
  %5383 = vmatpush1.msra.mxu0 0.0
  %5384 = vmatprep.subr.mxu0 0.0
  %5385 = vmatpush1.msra.mxu0 0.0
  %5386 = vmatprep.subr.mxu0 0.0
  %5387 = vmatpush1.msra.mxu0 0.0
  %5388 = vmatprep.subr.mxu0 0.0
  %5389 = vmatpush1.msra.mxu0 0.0
  %5390 = vmatprep.subr.mxu0 0.0
  %5391 = vmatpush1.msra.mxu0 0.0
  %5392 = vmatprep.subr.mxu0 0.0
  %5393 = vmatpush1.msra.mxu0 0.0
  %5394 = vmatprep.subr.mxu0 0.0
  %5395 = vmatpush1.msra.mxu0 0.0
  %5396 = vmatprep.subr.mxu0 0.0
  %5397 = vmatpush1.msra.mxu0 0.0
  %5398 = vmatprep.subr.mxu0 0.0
  %5399 = vmatpush1.msra.mxu0 0.0
  %5400 = vmatprep.subr.mxu0 0.0
  %5401 = vmatpush1.msra.mxu0 0.0
  %5402 = vmatprep.subr.mxu0 0.0
  %5403 = vmatpush1.msra.mxu0 0.0
  %5404 = vmatprep.subr.mxu0 0.0
  %5405 = vmatpush1.msra.mxu0 0.0
  %v5406 = vand.u32 %v5371, 4294901760
  %5407 = vmatprep.subr.mxu0 %v5406
  %v5408 = vand.u32 %v5370, 4294901760
  %5409 = vmatpush1.msra.mxu0 %v5408
  %v5410 = vand.u32 %v5364, 4294901760
  %5411 = vmatprep.subr.mxu0 %v5410
  %v5412 = vand.u32 %v5363, 4294901760
  %5413 = vmatpush1.msra.mxu0 %v5412
  %v5414 = vand.u32 %v5357, 4294901760
  %5415 = vmatprep.subr.mxu0 %v5414
  %v5416 = vand.u32 %v5356, 4294901760
  %5417 = vmatpush1.msra.mxu0 %v5416
  %v5418 = vand.u32 %v5350, 4294901760
  %5419 = vmatprep.subr.mxu0 %v5418
  %v5420 = vand.u32 %v5349, 4294901760
  %5421 = vmatpush1.msra.mxu0 %v5420
  %5422 = vmatprep.subr.mxu0 0.0
  %5423 = vmatpush2.msra.mxu0 0.0
  %5424 = vmatprep.subr.mxu0 0.0
  %5425 = vmatpush2.msra.mxu0 0.0
  %5426 = vmatprep.subr.mxu0 0.0
  %5427 = vmatpush2.msra.mxu0 0.0
  %5428 = vmatprep.subr.mxu0 0.0
  %5429 = vmatpush2.msra.mxu0 0.0
  %5430 = vmatprep.subr.mxu0 0.0
  %5431 = vmatpush2.msra.mxu0 0.0
  %5432 = vmatprep.subr.mxu0 0.0
  %5433 = vmatpush2.msra.mxu0 0.0
  %5434 = vmatprep.subr.mxu0 0.0
  %5435 = vmatpush2.msra.mxu0 0.0
  %5436 = vmatprep.subr.mxu0 0.0
  %5437 = vmatpush2.msra.mxu0 0.0
  %5438 = vmatprep.subr.mxu0 0.0
  %5439 = vmatpush2.msra.mxu0 0.0
  %5440 = vmatprep.subr.mxu0 0.0
  %5441 = vmatpush2.msra.mxu0 0.0
  %5442 = vmatprep.subr.mxu0 0.0
  %5443 = vmatpush2.msra.mxu0 0.0
  %5444 = vmatprep.subr.mxu0 0.0
  %5445 = vmatpush2.msra.mxu0 0.0
  %5446 = vmatprep.subr.mxu0 0.0
  %5447 = vmatpush2.msra.mxu0 0.0
  %5448 = vmatprep.subr.mxu0 0.0
  %5449 = vmatpush2.msra.mxu0 0.0
  %5450 = vmatprep.subr.mxu0 0.0
  %5451 = vmatpush2.msra.mxu0 0.0
  %5452 = vmatprep.subr.mxu0 0.0
  %5453 = vmatpush2.msra.mxu0 0.0
  %5454 = vmatprep.mubr.f32.mxu0 0.0
  %v5455 = vand.u32 %v5380, 4294901760
  %v5456 = vsub.f32 %v5380, %v5455
  %v5457 = vand.u32 %v5456, 4294901760
  %v5458 = vsub.f32 %v5456, %v5457
  %v5459 = vand.u32 %v5458, 4294901760
  %5460 = vmatmul.mubr.f32.gmra.mxu0 %v5459
  %v5461 = vpop.f32.mrf.mxu0
  %v5462 = vadd.f32 0.0, %v5461
  %v5463 = vpop.f32.mrf.mxu0
  %v5464 = vadd.f32 0.0, %v5463
  %5465 = vdwg.mxu0
  %5466 = vmatprep.subr.mxu0 0.0
  %5467 = vmatpush1.msra.mxu0 0.0
  %5468 = vmatprep.subr.mxu0 0.0
  %5469 = vmatpush1.msra.mxu0 0.0
  %5470 = vmatprep.subr.mxu0 0.0
  %5471 = vmatpush1.msra.mxu0 0.0
  %5472 = vmatprep.subr.mxu0 0.0
  %5473 = vmatpush1.msra.mxu0 0.0
  %5474 = vmatprep.subr.mxu0 0.0
  %5475 = vmatpush1.msra.mxu0 0.0
  %5476 = vmatprep.subr.mxu0 0.0
  %5477 = vmatpush1.msra.mxu0 0.0
  %5478 = vmatprep.subr.mxu0 0.0
  %5479 = vmatpush1.msra.mxu0 0.0
  %5480 = vmatprep.subr.mxu0 0.0
  %5481 = vmatpush1.msra.mxu0 0.0
  %5482 = vmatprep.subr.mxu0 0.0
  %5483 = vmatpush1.msra.mxu0 0.0
  %5484 = vmatprep.subr.mxu0 0.0
  %5485 = vmatpush1.msra.mxu0 0.0
  %5486 = vmatprep.subr.mxu0 0.0
  %5487 = vmatpush1.msra.mxu0 0.0
  %5488 = vmatprep.subr.mxu0 0.0
  %5489 = vmatpush1.msra.mxu0 0.0
  %v5490 = vand.u32 %v5371, 4294901760
  %v5491 = vsub.f32 %v5371, %v5490
  %v5492 = vand.u32 %v5491, 4294901760
  %v5493 = vsub.f32 %v5491, %v5492
  %v5494 = vand.u32 %v5493, 4294901760
  %5495 = vmatprep.subr.mxu0 %v5494
  %v5496 = vand.u32 %v5370, 4294901760
  %v5497 = vsub.f32 %v5370, %v5496
  %v5498 = vand.u32 %v5497, 4294901760
  %v5499 = vsub.f32 %v5497, %v5498
  %v5500 = vand.u32 %v5499, 4294901760
  %5501 = vmatpush1.msra.mxu0 %v5500
  %v5502 = vand.u32 %v5364, 4294901760
  %v5503 = vsub.f32 %v5364, %v5502
  %v5504 = vand.u32 %v5503, 4294901760
  %v5505 = vsub.f32 %v5503, %v5504
  %v5506 = vand.u32 %v5505, 4294901760
  %5507 = vmatprep.subr.mxu0 %v5506
  %v5508 = vand.u32 %v5363, 4294901760
  %v5509 = vsub.f32 %v5363, %v5508
  %v5510 = vand.u32 %v5509, 4294901760
  %v5511 = vsub.f32 %v5509, %v5510
  %v5512 = vand.u32 %v5511, 4294901760
  %5513 = vmatpush1.msra.mxu0 %v5512
  %v5514 = vand.u32 %v5357, 4294901760
  %v5515 = vsub.f32 %v5357, %v5514
  %v5516 = vand.u32 %v5515, 4294901760
  %v5517 = vsub.f32 %v5515, %v5516
  %v5518 = vand.u32 %v5517, 4294901760
  %5519 = vmatprep.subr.mxu0 %v5518
  %v5520 = vand.u32 %v5356, 4294901760
  %v5521 = vsub.f32 %v5356, %v5520
  %v5522 = vand.u32 %v5521, 4294901760
  %v5523 = vsub.f32 %v5521, %v5522
  %v5524 = vand.u32 %v5523, 4294901760
  %5525 = vmatpush1.msra.mxu0 %v5524
  %v5526 = vand.u32 %v5350, 4294901760
  %v5527 = vsub.f32 %v5350, %v5526
  %v5528 = vand.u32 %v5527, 4294901760
  %v5529 = vsub.f32 %v5527, %v5528
  %v5530 = vand.u32 %v5529, 4294901760
  %5531 = vmatprep.subr.mxu0 %v5530
  %v5532 = vand.u32 %v5349, 4294901760
  %v5533 = vsub.f32 %v5349, %v5532
  %v5534 = vand.u32 %v5533, 4294901760
  %v5535 = vsub.f32 %v5533, %v5534
  %v5536 = vand.u32 %v5535, 4294901760
  %5537 = vmatpush1.msra.mxu0 %v5536
  %5538 = vmatprep.subr.mxu0 0.0
  %5539 = vmatpush2.msra.mxu0 0.0
  %5540 = vmatprep.subr.mxu0 0.0
  %5541 = vmatpush2.msra.mxu0 0.0
  %5542 = vmatprep.subr.mxu0 0.0
  %5543 = vmatpush2.msra.mxu0 0.0
  %5544 = vmatprep.subr.mxu0 0.0
  %5545 = vmatpush2.msra.mxu0 0.0
  %5546 = vmatprep.subr.mxu0 0.0
  %5547 = vmatpush2.msra.mxu0 0.0
  %5548 = vmatprep.subr.mxu0 0.0
  %5549 = vmatpush2.msra.mxu0 0.0
  %5550 = vmatprep.subr.mxu0 0.0
  %5551 = vmatpush2.msra.mxu0 0.0
  %5552 = vmatprep.subr.mxu0 0.0
  %5553 = vmatpush2.msra.mxu0 0.0
  %5554 = vmatprep.subr.mxu0 0.0
  %5555 = vmatpush2.msra.mxu0 0.0
  %5556 = vmatprep.subr.mxu0 0.0
  %5557 = vmatpush2.msra.mxu0 0.0
  %5558 = vmatprep.subr.mxu0 0.0
  %5559 = vmatpush2.msra.mxu0 0.0
  %5560 = vmatprep.subr.mxu0 0.0
  %5561 = vmatpush2.msra.mxu0 0.0
  %5562 = vmatprep.subr.mxu0 0.0
  %5563 = vmatpush2.msra.mxu0 0.0
  %5564 = vmatprep.subr.mxu0 0.0
  %5565 = vmatpush2.msra.mxu0 0.0
  %5566 = vmatprep.subr.mxu0 0.0
  %5567 = vmatpush2.msra.mxu0 0.0
  %5568 = vmatprep.subr.mxu0 0.0
  %5569 = vmatpush2.msra.mxu0 0.0
  %5570 = vmatprep.mubr.f32.mxu0 0.0
  %v5571 = vand.u32 %v5380, 4294901760
  %5572 = vmatmul.mubr.f32.gmra.mxu0 %v5571
  %v5573 = vpop.f32.mrf.mxu0
  %v5574 = vadd.f32 %v5462, %v5573
  %v5575 = vpop.f32.mrf.mxu0
  %v5576 = vadd.f32 %v5464, %v5575
  %5577 = vdwg.mxu0
  %5578 = vmatprep.subr.mxu0 0.0
  %5579 = vmatpush1.msra.mxu0 0.0
  %5580 = vmatprep.subr.mxu0 0.0
  %5581 = vmatpush1.msra.mxu0 0.0
  %5582 = vmatprep.subr.mxu0 0.0
  %5583 = vmatpush1.msra.mxu0 0.0
  %5584 = vmatprep.subr.mxu0 0.0
  %5585 = vmatpush1.msra.mxu0 0.0
  %5586 = vmatprep.subr.mxu0 0.0
  %5587 = vmatpush1.msra.mxu0 0.0
  %5588 = vmatprep.subr.mxu0 0.0
  %5589 = vmatpush1.msra.mxu0 0.0
  %5590 = vmatprep.subr.mxu0 0.0
  %5591 = vmatpush1.msra.mxu0 0.0
  %5592 = vmatprep.subr.mxu0 0.0
  %5593 = vmatpush1.msra.mxu0 0.0
  %5594 = vmatprep.subr.mxu0 0.0
  %5595 = vmatpush1.msra.mxu0 0.0
  %5596 = vmatprep.subr.mxu0 0.0
  %5597 = vmatpush1.msra.mxu0 0.0
  %5598 = vmatprep.subr.mxu0 0.0
  %5599 = vmatpush1.msra.mxu0 0.0
  %5600 = vmatprep.subr.mxu0 0.0
  %5601 = vmatpush1.msra.mxu0 0.0
  %v5602 = vand.u32 %v5371, 4294901760
  %v5603 = vsub.f32 %v5371, %v5602
  %5604 = vmatprep.subr.mxu0 %v5603
  %v5605 = vand.u32 %v5370, 4294901760
  %v5606 = vsub.f32 %v5370, %v5605
  %5607 = vmatpush1.msra.mxu0 %v5606
  %v5608 = vand.u32 %v5364, 4294901760
  %v5609 = vsub.f32 %v5364, %v5608
  %5610 = vmatprep.subr.mxu0 %v5609
  %v5611 = vand.u32 %v5363, 4294901760
  %v5612 = vsub.f32 %v5363, %v5611
  %5613 = vmatpush1.msra.mxu0 %v5612
  %v5614 = vand.u32 %v5357, 4294901760
  %v5615 = vsub.f32 %v5357, %v5614
  %5616 = vmatprep.subr.mxu0 %v5615
  %v5617 = vand.u32 %v5356, 4294901760
  %v5618 = vsub.f32 %v5356, %v5617
  %5619 = vmatpush1.msra.mxu0 %v5618
  %v5620 = vand.u32 %v5350, 4294901760
  %v5621 = vsub.f32 %v5350, %v5620
  %5622 = vmatprep.subr.mxu0 %v5621
  %v5623 = vand.u32 %v5349, 4294901760
  %v5624 = vsub.f32 %v5349, %v5623
  %5625 = vmatpush1.msra.mxu0 %v5624
  %5626 = vmatprep.subr.mxu0 0.0
  %5627 = vmatpush2.msra.mxu0 0.0
  %5628 = vmatprep.subr.mxu0 0.0
  %5629 = vmatpush2.msra.mxu0 0.0
  %5630 = vmatprep.subr.mxu0 0.0
  %5631 = vmatpush2.msra.mxu0 0.0
  %5632 = vmatprep.subr.mxu0 0.0
  %5633 = vmatpush2.msra.mxu0 0.0
  %5634 = vmatprep.subr.mxu0 0.0
  %5635 = vmatpush2.msra.mxu0 0.0
  %5636 = vmatprep.subr.mxu0 0.0
  %5637 = vmatpush2.msra.mxu0 0.0
  %5638 = vmatprep.subr.mxu0 0.0
  %5639 = vmatpush2.msra.mxu0 0.0
  %5640 = vmatprep.subr.mxu0 0.0
  %5641 = vmatpush2.msra.mxu0 0.0
  %5642 = vmatprep.subr.mxu0 0.0
  %5643 = vmatpush2.msra.mxu0 0.0
  %5644 = vmatprep.subr.mxu0 0.0
  %5645 = vmatpush2.msra.mxu0 0.0
  %5646 = vmatprep.subr.mxu0 0.0
  %5647 = vmatpush2.msra.mxu0 0.0
  %5648 = vmatprep.subr.mxu0 0.0
  %5649 = vmatpush2.msra.mxu0 0.0
  %5650 = vmatprep.subr.mxu0 0.0
  %5651 = vmatpush2.msra.mxu0 0.0
  %5652 = vmatprep.subr.mxu0 0.0
  %5653 = vmatpush2.msra.mxu0 0.0
  %5654 = vmatprep.subr.mxu0 0.0
  %5655 = vmatpush2.msra.mxu0 0.0
  %5656 = vmatprep.subr.mxu0 0.0
  %5657 = vmatpush2.msra.mxu0 0.0
  %5658 = vmatprep.mubr.f32.mxu0 0.0
  %v5659 = vand.u32 %v5380, 4294901760
  %v5660 = vsub.f32 %v5380, %v5659
  %5661 = vmatmul.mubr.f32.gmra.mxu0 %v5660
  %v5662 = vpop.f32.mrf.mxu0
  %v5663 = vadd.f32 %v5574, %v5662
  %v5664 = vpop.f32.mrf.mxu0
  %v5665 = vadd.f32 %v5576, %v5664
  %5666 = vdwg.mxu0
  %5667 = vmatprep.subr.mxu0 0.0
  %5668 = vmatpush1.msra.mxu0 0.0
  %5669 = vmatprep.subr.mxu0 0.0
  %5670 = vmatpush1.msra.mxu0 0.0
  %5671 = vmatprep.subr.mxu0 0.0
  %5672 = vmatpush1.msra.mxu0 0.0
  %5673 = vmatprep.subr.mxu0 0.0
  %5674 = vmatpush1.msra.mxu0 0.0
  %5675 = vmatprep.subr.mxu0 0.0
  %5676 = vmatpush1.msra.mxu0 0.0
  %5677 = vmatprep.subr.mxu0 0.0
  %5678 = vmatpush1.msra.mxu0 0.0
  %5679 = vmatprep.subr.mxu0 0.0
  %5680 = vmatpush1.msra.mxu0 0.0
  %5681 = vmatprep.subr.mxu0 0.0
  %5682 = vmatpush1.msra.mxu0 0.0
  %5683 = vmatprep.subr.mxu0 0.0
  %5684 = vmatpush1.msra.mxu0 0.0
  %5685 = vmatprep.subr.mxu0 0.0
  %5686 = vmatpush1.msra.mxu0 0.0
  %5687 = vmatprep.subr.mxu0 0.0
  %5688 = vmatpush1.msra.mxu0 0.0
  %5689 = vmatprep.subr.mxu0 0.0
  %5690 = vmatpush1.msra.mxu0 0.0
  %v5691 = vand.u32 %v5371, 4294901760
  %5692 = vmatprep.subr.mxu0 %v5691
  %v5693 = vand.u32 %v5370, 4294901760
  %5694 = vmatpush1.msra.mxu0 %v5693
  %v5695 = vand.u32 %v5364, 4294901760
  %5696 = vmatprep.subr.mxu0 %v5695
  %v5697 = vand.u32 %v5363, 4294901760
  %5698 = vmatpush1.msra.mxu0 %v5697
  %v5699 = vand.u32 %v5357, 4294901760
  %5700 = vmatprep.subr.mxu0 %v5699
  %v5701 = vand.u32 %v5356, 4294901760
  %5702 = vmatpush1.msra.mxu0 %v5701
  %v5703 = vand.u32 %v5350, 4294901760
  %5704 = vmatprep.subr.mxu0 %v5703
  %v5705 = vand.u32 %v5349, 4294901760
  %5706 = vmatpush1.msra.mxu0 %v5705
  %5707 = vmatprep.subr.mxu0 0.0
  %5708 = vmatpush2.msra.mxu0 0.0
  %5709 = vmatprep.subr.mxu0 0.0
  %5710 = vmatpush2.msra.mxu0 0.0
  %5711 = vmatprep.subr.mxu0 0.0
  %5712 = vmatpush2.msra.mxu0 0.0
  %5713 = vmatprep.subr.mxu0 0.0
  %5714 = vmatpush2.msra.mxu0 0.0
  %5715 = vmatprep.subr.mxu0 0.0
  %5716 = vmatpush2.msra.mxu0 0.0
  %5717 = vmatprep.subr.mxu0 0.0
  %5718 = vmatpush2.msra.mxu0 0.0
  %5719 = vmatprep.subr.mxu0 0.0
  %5720 = vmatpush2.msra.mxu0 0.0
  %5721 = vmatprep.subr.mxu0 0.0
  %5722 = vmatpush2.msra.mxu0 0.0
  %5723 = vmatprep.subr.mxu0 0.0
  %5724 = vmatpush2.msra.mxu0 0.0
  %5725 = vmatprep.subr.mxu0 0.0
  %5726 = vmatpush2.msra.mxu0 0.0
  %5727 = vmatprep.subr.mxu0 0.0
  %5728 = vmatpush2.msra.mxu0 0.0
  %5729 = vmatprep.subr.mxu0 0.0
  %5730 = vmatpush2.msra.mxu0 0.0
  %5731 = vmatprep.subr.mxu0 0.0
  %5732 = vmatpush2.msra.mxu0 0.0
  %5733 = vmatprep.subr.mxu0 0.0
  %5734 = vmatpush2.msra.mxu0 0.0
  %5735 = vmatprep.subr.mxu0 0.0
  %5736 = vmatpush2.msra.mxu0 0.0
  %5737 = vmatprep.subr.mxu0 0.0
  %5738 = vmatpush2.msra.mxu0 0.0
  %5739 = vmatprep.mubr.f32.mxu0 0.0
  %v5740 = vand.u32 %v5380, 4294901760
  %v5741 = vsub.f32 %v5380, %v5740
  %v5742 = vand.u32 %v5741, 4294901760
  %5743 = vmatmul.mubr.f32.gmra.mxu0 %v5742
  %v5744 = vpop.f32.mrf.mxu0
  %v5745 = vadd.f32 %v5663, %v5744
  %v5746 = vpop.f32.mrf.mxu0
  %v5747 = vadd.f32 %v5665, %v5746
  %5748 = vdwg.mxu0
  %5749 = vmatprep.subr.mxu0 0.0
  %5750 = vmatpush1.msra.mxu0 0.0
  %5751 = vmatprep.subr.mxu0 0.0
  %5752 = vmatpush1.msra.mxu0 0.0
  %5753 = vmatprep.subr.mxu0 0.0
  %5754 = vmatpush1.msra.mxu0 0.0
  %5755 = vmatprep.subr.mxu0 0.0
  %5756 = vmatpush1.msra.mxu0 0.0
  %5757 = vmatprep.subr.mxu0 0.0
  %5758 = vmatpush1.msra.mxu0 0.0
  %5759 = vmatprep.subr.mxu0 0.0
  %5760 = vmatpush1.msra.mxu0 0.0
  %5761 = vmatprep.subr.mxu0 0.0
  %5762 = vmatpush1.msra.mxu0 0.0
  %5763 = vmatprep.subr.mxu0 0.0
  %5764 = vmatpush1.msra.mxu0 0.0
  %5765 = vmatprep.subr.mxu0 0.0
  %5766 = vmatpush1.msra.mxu0 0.0
  %5767 = vmatprep.subr.mxu0 0.0
  %5768 = vmatpush1.msra.mxu0 0.0
  %5769 = vmatprep.subr.mxu0 0.0
  %5770 = vmatpush1.msra.mxu0 0.0
  %5771 = vmatprep.subr.mxu0 0.0
  %5772 = vmatpush1.msra.mxu0 0.0
  %v5773 = vand.u32 %v5371, 4294901760
  %v5774 = vsub.f32 %v5371, %v5773
  %v5775 = vand.u32 %v5774, 4294901760
  %5776 = vmatprep.subr.mxu0 %v5775
  %v5777 = vand.u32 %v5370, 4294901760
  %v5778 = vsub.f32 %v5370, %v5777
  %v5779 = vand.u32 %v5778, 4294901760
  %5780 = vmatpush1.msra.mxu0 %v5779
  %v5781 = vand.u32 %v5364, 4294901760
  %v5782 = vsub.f32 %v5364, %v5781
  %v5783 = vand.u32 %v5782, 4294901760
  %5784 = vmatprep.subr.mxu0 %v5783
  %v5785 = vand.u32 %v5363, 4294901760
  %v5786 = vsub.f32 %v5363, %v5785
  %v5787 = vand.u32 %v5786, 4294901760
  %5788 = vmatpush1.msra.mxu0 %v5787
  %v5789 = vand.u32 %v5357, 4294901760
  %v5790 = vsub.f32 %v5357, %v5789
  %v5791 = vand.u32 %v5790, 4294901760
  %5792 = vmatprep.subr.mxu0 %v5791
  %v5793 = vand.u32 %v5356, 4294901760
  %v5794 = vsub.f32 %v5356, %v5793
  %v5795 = vand.u32 %v5794, 4294901760
  %5796 = vmatpush1.msra.mxu0 %v5795
  %v5797 = vand.u32 %v5350, 4294901760
  %v5798 = vsub.f32 %v5350, %v5797
  %v5799 = vand.u32 %v5798, 4294901760
  %5800 = vmatprep.subr.mxu0 %v5799
  %v5801 = vand.u32 %v5349, 4294901760
  %v5802 = vsub.f32 %v5349, %v5801
  %v5803 = vand.u32 %v5802, 4294901760
  %5804 = vmatpush1.msra.mxu0 %v5803
  %5805 = vmatprep.subr.mxu0 0.0
  %5806 = vmatpush2.msra.mxu0 0.0
  %5807 = vmatprep.subr.mxu0 0.0
  %5808 = vmatpush2.msra.mxu0 0.0
  %5809 = vmatprep.subr.mxu0 0.0
  %5810 = vmatpush2.msra.mxu0 0.0
  %5811 = vmatprep.subr.mxu0 0.0
  %5812 = vmatpush2.msra.mxu0 0.0
  %5813 = vmatprep.subr.mxu0 0.0
  %5814 = vmatpush2.msra.mxu0 0.0
  %5815 = vmatprep.subr.mxu0 0.0
  %5816 = vmatpush2.msra.mxu0 0.0
  %5817 = vmatprep.subr.mxu0 0.0
  %5818 = vmatpush2.msra.mxu0 0.0
  %5819 = vmatprep.subr.mxu0 0.0
  %5820 = vmatpush2.msra.mxu0 0.0
  %5821 = vmatprep.subr.mxu0 0.0
  %5822 = vmatpush2.msra.mxu0 0.0
  %5823 = vmatprep.subr.mxu0 0.0
  %5824 = vmatpush2.msra.mxu0 0.0
  %5825 = vmatprep.subr.mxu0 0.0
  %5826 = vmatpush2.msra.mxu0 0.0
  %5827 = vmatprep.subr.mxu0 0.0
  %5828 = vmatpush2.msra.mxu0 0.0
  %5829 = vmatprep.subr.mxu0 0.0
  %5830 = vmatpush2.msra.mxu0 0.0
  %5831 = vmatprep.subr.mxu0 0.0
  %5832 = vmatpush2.msra.mxu0 0.0
  %5833 = vmatprep.subr.mxu0 0.0
  %5834 = vmatpush2.msra.mxu0 0.0
  %5835 = vmatprep.subr.mxu0 0.0
  %5836 = vmatpush2.msra.mxu0 0.0
  %5837 = vmatprep.mubr.f32.mxu0 0.0
  %v5838 = vand.u32 %v5380, 4294901760
  %5839 = vmatmul.mubr.f32.gmra.mxu0 %v5838
  %v5840 = vpop.f32.mrf.mxu0
  %v5841 = vadd.f32 %v5745, %v5840
  %v5842 = vpop.f32.mrf.mxu0
  %v5843 = vadd.f32 %v5747, %v5842
  %5844 = vdwg.mxu0
  %5845 = vmatprep.subr.mxu0 0.0
  %5846 = vmatpush1.msra.mxu0 0.0
  %5847 = vmatprep.subr.mxu0 0.0
  %5848 = vmatpush1.msra.mxu0 0.0
  %5849 = vmatprep.subr.mxu0 0.0
  %5850 = vmatpush1.msra.mxu0 0.0
  %5851 = vmatprep.subr.mxu0 0.0
  %5852 = vmatpush1.msra.mxu0 0.0
  %5853 = vmatprep.subr.mxu0 0.0
  %5854 = vmatpush1.msra.mxu0 0.0
  %5855 = vmatprep.subr.mxu0 0.0
  %5856 = vmatpush1.msra.mxu0 0.0
  %5857 = vmatprep.subr.mxu0 0.0
  %5858 = vmatpush1.msra.mxu0 0.0
  %5859 = vmatprep.subr.mxu0 0.0
  %5860 = vmatpush1.msra.mxu0 0.0
  %5861 = vmatprep.subr.mxu0 0.0
  %5862 = vmatpush1.msra.mxu0 0.0
  %5863 = vmatprep.subr.mxu0 0.0
  %5864 = vmatpush1.msra.mxu0 0.0
  %5865 = vmatprep.subr.mxu0 0.0
  %5866 = vmatpush1.msra.mxu0 0.0
  %5867 = vmatprep.subr.mxu0 0.0
  %5868 = vmatpush1.msra.mxu0 0.0
  %v5869 = vand.u32 %v5371, 4294901760
  %5870 = vmatprep.subr.mxu0 %v5869
  %v5871 = vand.u32 %v5370, 4294901760
  %5872 = vmatpush1.msra.mxu0 %v5871
  %v5873 = vand.u32 %v5364, 4294901760
  %5874 = vmatprep.subr.mxu0 %v5873
  %v5875 = vand.u32 %v5363, 4294901760
  %5876 = vmatpush1.msra.mxu0 %v5875
  %v5877 = vand.u32 %v5357, 4294901760
  %5878 = vmatprep.subr.mxu0 %v5877
  %v5879 = vand.u32 %v5356, 4294901760
  %5880 = vmatpush1.msra.mxu0 %v5879
  %v5881 = vand.u32 %v5350, 4294901760
  %5882 = vmatprep.subr.mxu0 %v5881
  %v5883 = vand.u32 %v5349, 4294901760
  %5884 = vmatpush1.msra.mxu0 %v5883
  %5885 = vmatprep.subr.mxu0 0.0
  %5886 = vmatpush2.msra.mxu0 0.0
  %5887 = vmatprep.subr.mxu0 0.0
  %5888 = vmatpush2.msra.mxu0 0.0
  %5889 = vmatprep.subr.mxu0 0.0
  %5890 = vmatpush2.msra.mxu0 0.0
  %5891 = vmatprep.subr.mxu0 0.0
  %5892 = vmatpush2.msra.mxu0 0.0
  %5893 = vmatprep.subr.mxu0 0.0
  %5894 = vmatpush2.msra.mxu0 0.0
  %5895 = vmatprep.subr.mxu0 0.0
  %5896 = vmatpush2.msra.mxu0 0.0
  %5897 = vmatprep.subr.mxu0 0.0
  %5898 = vmatpush2.msra.mxu0 0.0
  %5899 = vmatprep.subr.mxu0 0.0
  %5900 = vmatpush2.msra.mxu0 0.0
  %5901 = vmatprep.subr.mxu0 0.0
  %5902 = vmatpush2.msra.mxu0 0.0
  %5903 = vmatprep.subr.mxu0 0.0
  %5904 = vmatpush2.msra.mxu0 0.0
  %5905 = vmatprep.subr.mxu0 0.0
  %5906 = vmatpush2.msra.mxu0 0.0
  %5907 = vmatprep.subr.mxu0 0.0
  %5908 = vmatpush2.msra.mxu0 0.0
  %5909 = vmatprep.subr.mxu0 0.0
  %5910 = vmatpush2.msra.mxu0 0.0
  %5911 = vmatprep.subr.mxu0 0.0
  %5912 = vmatpush2.msra.mxu0 0.0
  %5913 = vmatprep.subr.mxu0 0.0
  %5914 = vmatpush2.msra.mxu0 0.0
  %5915 = vmatprep.subr.mxu0 0.0
  %5916 = vmatpush2.msra.mxu0 0.0
  %5917 = vmatprep.mubr.f32.mxu0 0.0
  %v5918 = vand.u32 %v5380, 4294901760
  %5919 = vmatmul.mubr.f32.gmra.mxu0 %v5918
  %v5920 = vpop.f32.mrf.mxu0
  %v5921 = vadd.f32 %v5841, %v5920
  %v5922 = vpop.f32.mrf.mxu0
  %v5923 = vadd.f32 %v5843, %v5922
  %5924 = vdwg.mxu0
  %5925 = vmatprep.subr.mxu0 0.0
  %5926 = vmatpush1.msra.mxu0 0.0
  %5927 = vmatprep.subr.mxu0 0.0
  %5928 = vmatpush1.msra.mxu0 0.0
  %5929 = vmatprep.subr.mxu0 0.0
  %5930 = vmatpush1.msra.mxu0 0.0
  %5931 = vmatprep.subr.mxu0 0.0
  %5932 = vmatpush1.msra.mxu0 0.0
  %5933 = vmatprep.subr.mxu0 0.0
  %5934 = vmatpush1.msra.mxu0 0.0
  %5935 = vmatprep.subr.mxu0 0.0
  %5936 = vmatpush1.msra.mxu0 0.0
  %5937 = vmatprep.subr.mxu0 0.0
  %5938 = vmatpush1.msra.mxu0 0.0
  %5939 = vmatprep.subr.mxu0 0.0
  %5940 = vmatpush1.msra.mxu0 0.0
  %5941 = vmatprep.subr.mxu0 0.0
  %5942 = vmatpush1.msra.mxu0 0.0
  %5943 = vmatprep.subr.mxu0 0.0
  %5944 = vmatpush1.msra.mxu0 0.0
  %5945 = vmatprep.subr.mxu0 0.0
  %5946 = vmatpush1.msra.mxu0 0.0
  %5947 = vmatprep.subr.mxu0 0.0
  %5948 = vmatpush1.msra.mxu0 0.0
  %v5949 = vand.u32 %v5373, 4294901760
  %5950 = vmatprep.subr.mxu0 %v5949
  %v5951 = vand.u32 %v5372, 4294901760
  %5952 = vmatpush1.msra.mxu0 %v5951
  %v5953 = vand.u32 %v5366, 4294901760
  %5954 = vmatprep.subr.mxu0 %v5953
  %v5955 = vand.u32 %v5365, 4294901760
  %5956 = vmatpush1.msra.mxu0 %v5955
  %v5957 = vand.u32 %v5359, 4294901760
  %5958 = vmatprep.subr.mxu0 %v5957
  %v5959 = vand.u32 %v5358, 4294901760
  %5960 = vmatpush1.msra.mxu0 %v5959
  %v5961 = vand.u32 %v5352, 4294901760
  %5962 = vmatprep.subr.mxu0 %v5961
  %v5963 = vand.u32 %v5351, 4294901760
  %5964 = vmatpush1.msra.mxu0 %v5963
  %5965 = vmatprep.subr.mxu0 0.0
  %5966 = vmatpush2.msra.mxu0 0.0
  %5967 = vmatprep.subr.mxu0 0.0
  %5968 = vmatpush2.msra.mxu0 0.0
  %5969 = vmatprep.subr.mxu0 0.0
  %5970 = vmatpush2.msra.mxu0 0.0
  %5971 = vmatprep.subr.mxu0 0.0
  %5972 = vmatpush2.msra.mxu0 0.0
  %5973 = vmatprep.subr.mxu0 0.0
  %5974 = vmatpush2.msra.mxu0 0.0
  %5975 = vmatprep.subr.mxu0 0.0
  %5976 = vmatpush2.msra.mxu0 0.0
  %5977 = vmatprep.subr.mxu0 0.0
  %5978 = vmatpush2.msra.mxu0 0.0
  %5979 = vmatprep.subr.mxu0 0.0
  %5980 = vmatpush2.msra.mxu0 0.0
  %5981 = vmatprep.subr.mxu0 0.0
  %5982 = vmatpush2.msra.mxu0 0.0
  %5983 = vmatprep.subr.mxu0 0.0
  %5984 = vmatpush2.msra.mxu0 0.0
  %5985 = vmatprep.subr.mxu0 0.0
  %5986 = vmatpush2.msra.mxu0 0.0
  %5987 = vmatprep.subr.mxu0 0.0
  %5988 = vmatpush2.msra.mxu0 0.0
  %5989 = vmatprep.subr.mxu0 0.0
  %5990 = vmatpush2.msra.mxu0 0.0
  %5991 = vmatprep.subr.mxu0 0.0
  %5992 = vmatpush2.msra.mxu0 0.0
  %5993 = vmatprep.subr.mxu0 0.0
  %5994 = vmatpush2.msra.mxu0 0.0
  %5995 = vmatprep.subr.mxu0 0.0
  %5996 = vmatpush2.msra.mxu0 0.0
  %5997 = vmatprep.mubr.f32.mxu0 0.0
  %v5998 = vand.u32 %v5380, 4294901760
  %v5999 = vsub.f32 %v5380, %v5998
  %v6000 = vand.u32 %v5999, 4294901760
  %v6001 = vsub.f32 %v5999, %v6000
  %v6002 = vand.u32 %v6001, 4294901760
  %6003 = vmatmul.mubr.f32.gmra.mxu0 %v6002
  %v6004 = vpop.f32.mrf.mxu0
  %v6005 = vadd.f32 0.0, %v6004
  %v6006 = vpop.f32.mrf.mxu0
  %v6007 = vadd.f32 0.0, %v6006
  %6008 = vdwg.mxu0
  %6009 = vmatprep.subr.mxu0 0.0
  %6010 = vmatpush1.msra.mxu0 0.0
  %6011 = vmatprep.subr.mxu0 0.0
  %6012 = vmatpush1.msra.mxu0 0.0
  %6013 = vmatprep.subr.mxu0 0.0
  %6014 = vmatpush1.msra.mxu0 0.0
  %6015 = vmatprep.subr.mxu0 0.0
  %6016 = vmatpush1.msra.mxu0 0.0
  %6017 = vmatprep.subr.mxu0 0.0
  %6018 = vmatpush1.msra.mxu0 0.0
  %6019 = vmatprep.subr.mxu0 0.0
  %6020 = vmatpush1.msra.mxu0 0.0
  %6021 = vmatprep.subr.mxu0 0.0
  %6022 = vmatpush1.msra.mxu0 0.0
  %6023 = vmatprep.subr.mxu0 0.0
  %6024 = vmatpush1.msra.mxu0 0.0
  %6025 = vmatprep.subr.mxu0 0.0
  %6026 = vmatpush1.msra.mxu0 0.0
  %6027 = vmatprep.subr.mxu0 0.0
  %6028 = vmatpush1.msra.mxu0 0.0
  %6029 = vmatprep.subr.mxu0 0.0
  %6030 = vmatpush1.msra.mxu0 0.0
  %6031 = vmatprep.subr.mxu0 0.0
  %6032 = vmatpush1.msra.mxu0 0.0
  %v6033 = vand.u32 %v5373, 4294901760
  %v6034 = vsub.f32 %v5373, %v6033
  %v6035 = vand.u32 %v6034, 4294901760
  %v6036 = vsub.f32 %v6034, %v6035
  %v6037 = vand.u32 %v6036, 4294901760
  %6038 = vmatprep.subr.mxu0 %v6037
  %v6039 = vand.u32 %v5372, 4294901760
  %v6040 = vsub.f32 %v5372, %v6039
  %v6041 = vand.u32 %v6040, 4294901760
  %v6042 = vsub.f32 %v6040, %v6041
  %v6043 = vand.u32 %v6042, 4294901760
  %6044 = vmatpush1.msra.mxu0 %v6043
  %v6045 = vand.u32 %v5366, 4294901760
  %v6046 = vsub.f32 %v5366, %v6045
  %v6047 = vand.u32 %v6046, 4294901760
  %v6048 = vsub.f32 %v6046, %v6047
  %v6049 = vand.u32 %v6048, 4294901760
  %6050 = vmatprep.subr.mxu0 %v6049
  %v6051 = vand.u32 %v5365, 4294901760
  %v6052 = vsub.f32 %v5365, %v6051
  %v6053 = vand.u32 %v6052, 4294901760
  %v6054 = vsub.f32 %v6052, %v6053
  %v6055 = vand.u32 %v6054, 4294901760
  %6056 = vmatpush1.msra.mxu0 %v6055
  %v6057 = vand.u32 %v5359, 4294901760
  %v6058 = vsub.f32 %v5359, %v6057
  %v6059 = vand.u32 %v6058, 4294901760
  %v6060 = vsub.f32 %v6058, %v6059
  %v6061 = vand.u32 %v6060, 4294901760
  %6062 = vmatprep.subr.mxu0 %v6061
  %v6063 = vand.u32 %v5358, 4294901760
  %v6064 = vsub.f32 %v5358, %v6063
  %v6065 = vand.u32 %v6064, 4294901760
  %v6066 = vsub.f32 %v6064, %v6065
  %v6067 = vand.u32 %v6066, 4294901760
  %6068 = vmatpush1.msra.mxu0 %v6067
  %v6069 = vand.u32 %v5352, 4294901760
  %v6070 = vsub.f32 %v5352, %v6069
  %v6071 = vand.u32 %v6070, 4294901760
  %v6072 = vsub.f32 %v6070, %v6071
  %v6073 = vand.u32 %v6072, 4294901760
  %6074 = vmatprep.subr.mxu0 %v6073
  %v6075 = vand.u32 %v5351, 4294901760
  %v6076 = vsub.f32 %v5351, %v6075
  %v6077 = vand.u32 %v6076, 4294901760
  %v6078 = vsub.f32 %v6076, %v6077
  %v6079 = vand.u32 %v6078, 4294901760
  %6080 = vmatpush1.msra.mxu0 %v6079
  %6081 = vmatprep.subr.mxu0 0.0
  %6082 = vmatpush2.msra.mxu0 0.0
  %6083 = vmatprep.subr.mxu0 0.0
  %6084 = vmatpush2.msra.mxu0 0.0
  %6085 = vmatprep.subr.mxu0 0.0
  %6086 = vmatpush2.msra.mxu0 0.0
  %6087 = vmatprep.subr.mxu0 0.0
  %6088 = vmatpush2.msra.mxu0 0.0
  %6089 = vmatprep.subr.mxu0 0.0
  %6090 = vmatpush2.msra.mxu0 0.0
  %6091 = vmatprep.subr.mxu0 0.0
  %6092 = vmatpush2.msra.mxu0 0.0
  %6093 = vmatprep.subr.mxu0 0.0
  %6094 = vmatpush2.msra.mxu0 0.0
  %6095 = vmatprep.subr.mxu0 0.0
  %6096 = vmatpush2.msra.mxu0 0.0
  %6097 = vmatprep.subr.mxu0 0.0
  %6098 = vmatpush2.msra.mxu0 0.0
  %6099 = vmatprep.subr.mxu0 0.0
  %6100 = vmatpush2.msra.mxu0 0.0
  %6101 = vmatprep.subr.mxu0 0.0
  %6102 = vmatpush2.msra.mxu0 0.0
  %6103 = vmatprep.subr.mxu0 0.0
  %6104 = vmatpush2.msra.mxu0 0.0
  %6105 = vmatprep.subr.mxu0 0.0
  %6106 = vmatpush2.msra.mxu0 0.0
  %6107 = vmatprep.subr.mxu0 0.0
  %6108 = vmatpush2.msra.mxu0 0.0
  %6109 = vmatprep.subr.mxu0 0.0
  %6110 = vmatpush2.msra.mxu0 0.0
  %6111 = vmatprep.subr.mxu0 0.0
  %6112 = vmatpush2.msra.mxu0 0.0
  %6113 = vmatprep.mubr.f32.mxu0 0.0
  %v6114 = vand.u32 %v5380, 4294901760
  %6115 = vmatmul.mubr.f32.gmra.mxu0 %v6114
  %v6116 = vpop.f32.mrf.mxu0
  %v6117 = vadd.f32 %v6005, %v6116
  %v6118 = vpop.f32.mrf.mxu0
  %v6119 = vadd.f32 %v6007, %v6118
  %6120 = vdwg.mxu0
  %6121 = vmatprep.subr.mxu0 0.0
  %6122 = vmatpush1.msra.mxu0 0.0
  %6123 = vmatprep.subr.mxu0 0.0
  %6124 = vmatpush1.msra.mxu0 0.0
  %6125 = vmatprep.subr.mxu0 0.0
  %6126 = vmatpush1.msra.mxu0 0.0
  %6127 = vmatprep.subr.mxu0 0.0
  %6128 = vmatpush1.msra.mxu0 0.0
  %6129 = vmatprep.subr.mxu0 0.0
  %6130 = vmatpush1.msra.mxu0 0.0
  %6131 = vmatprep.subr.mxu0 0.0
  %6132 = vmatpush1.msra.mxu0 0.0
  %6133 = vmatprep.subr.mxu0 0.0
  %6134 = vmatpush1.msra.mxu0 0.0
  %6135 = vmatprep.subr.mxu0 0.0
  %6136 = vmatpush1.msra.mxu0 0.0
  %6137 = vmatprep.subr.mxu0 0.0
  %6138 = vmatpush1.msra.mxu0 0.0
  %6139 = vmatprep.subr.mxu0 0.0
  %6140 = vmatpush1.msra.mxu0 0.0
  %6141 = vmatprep.subr.mxu0 0.0
  %6142 = vmatpush1.msra.mxu0 0.0
  %6143 = vmatprep.subr.mxu0 0.0
  %6144 = vmatpush1.msra.mxu0 0.0
  %v6145 = vand.u32 %v5373, 4294901760
  %v6146 = vsub.f32 %v5373, %v6145
  %6147 = vmatprep.subr.mxu0 %v6146
  %v6148 = vand.u32 %v5372, 4294901760
  %v6149 = vsub.f32 %v5372, %v6148
  %6150 = vmatpush1.msra.mxu0 %v6149
  %v6151 = vand.u32 %v5366, 4294901760
  %v6152 = vsub.f32 %v5366, %v6151
  %6153 = vmatprep.subr.mxu0 %v6152
  %v6154 = vand.u32 %v5365, 4294901760
  %v6155 = vsub.f32 %v5365, %v6154
  %6156 = vmatpush1.msra.mxu0 %v6155
  %v6157 = vand.u32 %v5359, 4294901760
  %v6158 = vsub.f32 %v5359, %v6157
  %6159 = vmatprep.subr.mxu0 %v6158
  %v6160 = vand.u32 %v5358, 4294901760
  %v6161 = vsub.f32 %v5358, %v6160
  %6162 = vmatpush1.msra.mxu0 %v6161
  %v6163 = vand.u32 %v5352, 4294901760
  %v6164 = vsub.f32 %v5352, %v6163
  %6165 = vmatprep.subr.mxu0 %v6164
  %v6166 = vand.u32 %v5351, 4294901760
  %v6167 = vsub.f32 %v5351, %v6166
  %6168 = vmatpush1.msra.mxu0 %v6167
  %6169 = vmatprep.subr.mxu0 0.0
  %6170 = vmatpush2.msra.mxu0 0.0
  %6171 = vmatprep.subr.mxu0 0.0
  %6172 = vmatpush2.msra.mxu0 0.0
  %6173 = vmatprep.subr.mxu0 0.0
  %6174 = vmatpush2.msra.mxu0 0.0
  %6175 = vmatprep.subr.mxu0 0.0
  %6176 = vmatpush2.msra.mxu0 0.0
  %6177 = vmatprep.subr.mxu0 0.0
  %6178 = vmatpush2.msra.mxu0 0.0
  %6179 = vmatprep.subr.mxu0 0.0
  %6180 = vmatpush2.msra.mxu0 0.0
  %6181 = vmatprep.subr.mxu0 0.0
  %6182 = vmatpush2.msra.mxu0 0.0
  %6183 = vmatprep.subr.mxu0 0.0
  %6184 = vmatpush2.msra.mxu0 0.0
  %6185 = vmatprep.subr.mxu0 0.0
  %6186 = vmatpush2.msra.mxu0 0.0
  %6187 = vmatprep.subr.mxu0 0.0
  %6188 = vmatpush2.msra.mxu0 0.0
  %6189 = vmatprep.subr.mxu0 0.0
  %6190 = vmatpush2.msra.mxu0 0.0
  %6191 = vmatprep.subr.mxu0 0.0
  %6192 = vmatpush2.msra.mxu0 0.0
  %6193 = vmatprep.subr.mxu0 0.0
  %6194 = vmatpush2.msra.mxu0 0.0
  %6195 = vmatprep.subr.mxu0 0.0
  %6196 = vmatpush2.msra.mxu0 0.0
  %6197 = vmatprep.subr.mxu0 0.0
  %6198 = vmatpush2.msra.mxu0 0.0
  %6199 = vmatprep.subr.mxu0 0.0
  %6200 = vmatpush2.msra.mxu0 0.0
  %6201 = vmatprep.mubr.f32.mxu0 0.0
  %v6202 = vand.u32 %v5380, 4294901760
  %v6203 = vsub.f32 %v5380, %v6202
  %6204 = vmatmul.mubr.f32.gmra.mxu0 %v6203
  %v6205 = vpop.f32.mrf.mxu0
  %v6206 = vadd.f32 %v6117, %v6205
  %v6207 = vpop.f32.mrf.mxu0
  %v6208 = vadd.f32 %v6119, %v6207
  %6209 = vdwg.mxu0
  %6210 = vmatprep.subr.mxu0 0.0
  %6211 = vmatpush1.msra.mxu0 0.0
  %6212 = vmatprep.subr.mxu0 0.0
  %6213 = vmatpush1.msra.mxu0 0.0
  %6214 = vmatprep.subr.mxu0 0.0
  %6215 = vmatpush1.msra.mxu0 0.0
  %6216 = vmatprep.subr.mxu0 0.0
  %6217 = vmatpush1.msra.mxu0 0.0
  %6218 = vmatprep.subr.mxu0 0.0
  %6219 = vmatpush1.msra.mxu0 0.0
  %6220 = vmatprep.subr.mxu0 0.0
  %6221 = vmatpush1.msra.mxu0 0.0
  %6222 = vmatprep.subr.mxu0 0.0
  %6223 = vmatpush1.msra.mxu0 0.0
  %6224 = vmatprep.subr.mxu0 0.0
  %6225 = vmatpush1.msra.mxu0 0.0
  %6226 = vmatprep.subr.mxu0 0.0
  %6227 = vmatpush1.msra.mxu0 0.0
  %6228 = vmatprep.subr.mxu0 0.0
  %6229 = vmatpush1.msra.mxu0 0.0
  %6230 = vmatprep.subr.mxu0 0.0
  %6231 = vmatpush1.msra.mxu0 0.0
  %6232 = vmatprep.subr.mxu0 0.0
  %6233 = vmatpush1.msra.mxu0 0.0
  %v6234 = vand.u32 %v5373, 4294901760
  %6235 = vmatprep.subr.mxu0 %v6234
  %v6236 = vand.u32 %v5372, 4294901760
  %6237 = vmatpush1.msra.mxu0 %v6236
  %v6238 = vand.u32 %v5366, 4294901760
  %6239 = vmatprep.subr.mxu0 %v6238
  %v6240 = vand.u32 %v5365, 4294901760
  %6241 = vmatpush1.msra.mxu0 %v6240
  %v6242 = vand.u32 %v5359, 4294901760
  %6243 = vmatprep.subr.mxu0 %v6242
  %v6244 = vand.u32 %v5358, 4294901760
  %6245 = vmatpush1.msra.mxu0 %v6244
  %v6246 = vand.u32 %v5352, 4294901760
  %6247 = vmatprep.subr.mxu0 %v6246
  %v6248 = vand.u32 %v5351, 4294901760
  %6249 = vmatpush1.msra.mxu0 %v6248
  %6250 = vmatprep.subr.mxu0 0.0
  %6251 = vmatpush2.msra.mxu0 0.0
  %6252 = vmatprep.subr.mxu0 0.0
  %6253 = vmatpush2.msra.mxu0 0.0
  %6254 = vmatprep.subr.mxu0 0.0
  %6255 = vmatpush2.msra.mxu0 0.0
  %6256 = vmatprep.subr.mxu0 0.0
  %6257 = vmatpush2.msra.mxu0 0.0
  %6258 = vmatprep.subr.mxu0 0.0
  %6259 = vmatpush2.msra.mxu0 0.0
  %6260 = vmatprep.subr.mxu0 0.0
  %6261 = vmatpush2.msra.mxu0 0.0
  %6262 = vmatprep.subr.mxu0 0.0
  %6263 = vmatpush2.msra.mxu0 0.0
  %6264 = vmatprep.subr.mxu0 0.0
  %6265 = vmatpush2.msra.mxu0 0.0
  %6266 = vmatprep.subr.mxu0 0.0
  %6267 = vmatpush2.msra.mxu0 0.0
  %6268 = vmatprep.subr.mxu0 0.0
  %6269 = vmatpush2.msra.mxu0 0.0
  %6270 = vmatprep.subr.mxu0 0.0
  %6271 = vmatpush2.msra.mxu0 0.0
  %6272 = vmatprep.subr.mxu0 0.0
  %6273 = vmatpush2.msra.mxu0 0.0
  %6274 = vmatprep.subr.mxu0 0.0
  %6275 = vmatpush2.msra.mxu0 0.0
  %6276 = vmatprep.subr.mxu0 0.0
  %6277 = vmatpush2.msra.mxu0 0.0
  %6278 = vmatprep.subr.mxu0 0.0
  %6279 = vmatpush2.msra.mxu0 0.0
  %6280 = vmatprep.subr.mxu0 0.0
  %6281 = vmatpush2.msra.mxu0 0.0
  %6282 = vmatprep.mubr.f32.mxu0 0.0
  %v6283 = vand.u32 %v5380, 4294901760
  %v6284 = vsub.f32 %v5380, %v6283
  %v6285 = vand.u32 %v6284, 4294901760
  %6286 = vmatmul.mubr.f32.gmra.mxu0 %v6285
  %v6287 = vpop.f32.mrf.mxu0
  %v6288 = vadd.f32 %v6206, %v6287
  %v6289 = vpop.f32.mrf.mxu0
  %v6290 = vadd.f32 %v6208, %v6289
  %6291 = vdwg.mxu0
  %6292 = vmatprep.subr.mxu0 0.0
  %6293 = vmatpush1.msra.mxu0 0.0
  %6294 = vmatprep.subr.mxu0 0.0
  %6295 = vmatpush1.msra.mxu0 0.0
  %6296 = vmatprep.subr.mxu0 0.0
  %6297 = vmatpush1.msra.mxu0 0.0
  %6298 = vmatprep.subr.mxu0 0.0
  %6299 = vmatpush1.msra.mxu0 0.0
  %6300 = vmatprep.subr.mxu0 0.0
  %6301 = vmatpush1.msra.mxu0 0.0
  %6302 = vmatprep.subr.mxu0 0.0
  %6303 = vmatpush1.msra.mxu0 0.0
  %6304 = vmatprep.subr.mxu0 0.0
  %6305 = vmatpush1.msra.mxu0 0.0
  %6306 = vmatprep.subr.mxu0 0.0
  %6307 = vmatpush1.msra.mxu0 0.0
  %6308 = vmatprep.subr.mxu0 0.0
  %6309 = vmatpush1.msra.mxu0 0.0
  %6310 = vmatprep.subr.mxu0 0.0
  %6311 = vmatpush1.msra.mxu0 0.0
  %6312 = vmatprep.subr.mxu0 0.0
  %6313 = vmatpush1.msra.mxu0 0.0
  %6314 = vmatprep.subr.mxu0 0.0
  %6315 = vmatpush1.msra.mxu0 0.0
  %v6316 = vand.u32 %v5373, 4294901760
  %v6317 = vsub.f32 %v5373, %v6316
  %v6318 = vand.u32 %v6317, 4294901760
  %6319 = vmatprep.subr.mxu0 %v6318
  %v6320 = vand.u32 %v5372, 4294901760
  %v6321 = vsub.f32 %v5372, %v6320
  %v6322 = vand.u32 %v6321, 4294901760
  %6323 = vmatpush1.msra.mxu0 %v6322
  %v6324 = vand.u32 %v5366, 4294901760
  %v6325 = vsub.f32 %v5366, %v6324
  %v6326 = vand.u32 %v6325, 4294901760
  %6327 = vmatprep.subr.mxu0 %v6326
  %v6328 = vand.u32 %v5365, 4294901760
  %v6329 = vsub.f32 %v5365, %v6328
  %v6330 = vand.u32 %v6329, 4294901760
  %6331 = vmatpush1.msra.mxu0 %v6330
  %v6332 = vand.u32 %v5359, 4294901760
  %v6333 = vsub.f32 %v5359, %v6332
  %v6334 = vand.u32 %v6333, 4294901760
  %6335 = vmatprep.subr.mxu0 %v6334
  %v6336 = vand.u32 %v5358, 4294901760
  %v6337 = vsub.f32 %v5358, %v6336
  %v6338 = vand.u32 %v6337, 4294901760
  %6339 = vmatpush1.msra.mxu0 %v6338
  %v6340 = vand.u32 %v5352, 4294901760
  %v6341 = vsub.f32 %v5352, %v6340
  %v6342 = vand.u32 %v6341, 4294901760
  %6343 = vmatprep.subr.mxu0 %v6342
  %v6344 = vand.u32 %v5351, 4294901760
  %v6345 = vsub.f32 %v5351, %v6344
  %v6346 = vand.u32 %v6345, 4294901760
  %6347 = vmatpush1.msra.mxu0 %v6346
  %6348 = vmatprep.subr.mxu0 0.0
  %6349 = vmatpush2.msra.mxu0 0.0
  %6350 = vmatprep.subr.mxu0 0.0
  %6351 = vmatpush2.msra.mxu0 0.0
  %6352 = vmatprep.subr.mxu0 0.0
  %6353 = vmatpush2.msra.mxu0 0.0
  %6354 = vmatprep.subr.mxu0 0.0
  %6355 = vmatpush2.msra.mxu0 0.0
  %6356 = vmatprep.subr.mxu0 0.0
  %6357 = vmatpush2.msra.mxu0 0.0
  %6358 = vmatprep.subr.mxu0 0.0
  %6359 = vmatpush2.msra.mxu0 0.0
  %6360 = vmatprep.subr.mxu0 0.0
  %6361 = vmatpush2.msra.mxu0 0.0
  %6362 = vmatprep.subr.mxu0 0.0
  %6363 = vmatpush2.msra.mxu0 0.0
  %6364 = vmatprep.subr.mxu0 0.0
  %6365 = vmatpush2.msra.mxu0 0.0
  %6366 = vmatprep.subr.mxu0 0.0
  %6367 = vmatpush2.msra.mxu0 0.0
  %6368 = vmatprep.subr.mxu0 0.0
  %6369 = vmatpush2.msra.mxu0 0.0
  %6370 = vmatprep.subr.mxu0 0.0
  %6371 = vmatpush2.msra.mxu0 0.0
  %6372 = vmatprep.subr.mxu0 0.0
  %6373 = vmatpush2.msra.mxu0 0.0
  %6374 = vmatprep.subr.mxu0 0.0
  %6375 = vmatpush2.msra.mxu0 0.0
  %6376 = vmatprep.subr.mxu0 0.0
  %6377 = vmatpush2.msra.mxu0 0.0
  %6378 = vmatprep.subr.mxu0 0.0
  %6379 = vmatpush2.msra.mxu0 0.0
  %6380 = vmatprep.mubr.f32.mxu0 0.0
  %v6381 = vand.u32 %v5380, 4294901760
  %6382 = vmatmul.mubr.f32.gmra.mxu0 %v6381
  %v6383 = vpop.f32.mrf.mxu0
  %v6384 = vadd.f32 %v6288, %v6383
  %v6385 = vpop.f32.mrf.mxu0
  %v6386 = vadd.f32 %v6290, %v6385
  %6387 = vdwg.mxu0
  %6388 = vmatprep.subr.mxu0 0.0
  %6389 = vmatpush1.msra.mxu0 0.0
  %6390 = vmatprep.subr.mxu0 0.0
  %6391 = vmatpush1.msra.mxu0 0.0
  %6392 = vmatprep.subr.mxu0 0.0
  %6393 = vmatpush1.msra.mxu0 0.0
  %6394 = vmatprep.subr.mxu0 0.0
  %6395 = vmatpush1.msra.mxu0 0.0
  %6396 = vmatprep.subr.mxu0 0.0
  %6397 = vmatpush1.msra.mxu0 0.0
  %6398 = vmatprep.subr.mxu0 0.0
  %6399 = vmatpush1.msra.mxu0 0.0
  %6400 = vmatprep.subr.mxu0 0.0
  %6401 = vmatpush1.msra.mxu0 0.0
  %6402 = vmatprep.subr.mxu0 0.0
  %6403 = vmatpush1.msra.mxu0 0.0
  %6404 = vmatprep.subr.mxu0 0.0
  %6405 = vmatpush1.msra.mxu0 0.0
  %6406 = vmatprep.subr.mxu0 0.0
  %6407 = vmatpush1.msra.mxu0 0.0
  %6408 = vmatprep.subr.mxu0 0.0
  %6409 = vmatpush1.msra.mxu0 0.0
  %6410 = vmatprep.subr.mxu0 0.0
  %6411 = vmatpush1.msra.mxu0 0.0
  %v6412 = vand.u32 %v5373, 4294901760
  %6413 = vmatprep.subr.mxu0 %v6412
  %v6414 = vand.u32 %v5372, 4294901760
  %6415 = vmatpush1.msra.mxu0 %v6414
  %v6416 = vand.u32 %v5366, 4294901760
  %6417 = vmatprep.subr.mxu0 %v6416
  %v6418 = vand.u32 %v5365, 4294901760
  %6419 = vmatpush1.msra.mxu0 %v6418
  %v6420 = vand.u32 %v5359, 4294901760
  %6421 = vmatprep.subr.mxu0 %v6420
  %v6422 = vand.u32 %v5358, 4294901760
  %6423 = vmatpush1.msra.mxu0 %v6422
  %v6424 = vand.u32 %v5352, 4294901760
  %6425 = vmatprep.subr.mxu0 %v6424
  %v6426 = vand.u32 %v5351, 4294901760
  %6427 = vmatpush1.msra.mxu0 %v6426
  %6428 = vmatprep.subr.mxu0 0.0
  %6429 = vmatpush2.msra.mxu0 0.0
  %6430 = vmatprep.subr.mxu0 0.0
  %6431 = vmatpush2.msra.mxu0 0.0
  %6432 = vmatprep.subr.mxu0 0.0
  %6433 = vmatpush2.msra.mxu0 0.0
  %6434 = vmatprep.subr.mxu0 0.0
  %6435 = vmatpush2.msra.mxu0 0.0
  %6436 = vmatprep.subr.mxu0 0.0
  %6437 = vmatpush2.msra.mxu0 0.0
  %6438 = vmatprep.subr.mxu0 0.0
  %6439 = vmatpush2.msra.mxu0 0.0
  %6440 = vmatprep.subr.mxu0 0.0
  %6441 = vmatpush2.msra.mxu0 0.0
  %6442 = vmatprep.subr.mxu0 0.0
  %6443 = vmatpush2.msra.mxu0 0.0
  %6444 = vmatprep.subr.mxu0 0.0
  %6445 = vmatpush2.msra.mxu0 0.0
  %6446 = vmatprep.subr.mxu0 0.0
  %6447 = vmatpush2.msra.mxu0 0.0
  %6448 = vmatprep.subr.mxu0 0.0
  %6449 = vmatpush2.msra.mxu0 0.0
  %6450 = vmatprep.subr.mxu0 0.0
  %6451 = vmatpush2.msra.mxu0 0.0
  %6452 = vmatprep.subr.mxu0 0.0
  %6453 = vmatpush2.msra.mxu0 0.0
  %6454 = vmatprep.subr.mxu0 0.0
  %6455 = vmatpush2.msra.mxu0 0.0
  %6456 = vmatprep.subr.mxu0 0.0
  %6457 = vmatpush2.msra.mxu0 0.0
  %6458 = vmatprep.subr.mxu0 0.0
  %6459 = vmatpush2.msra.mxu0 0.0
  %6460 = vmatprep.mubr.f32.mxu0 0.0
  %v6461 = vand.u32 %v5380, 4294901760
  %6462 = vmatmul.mubr.f32.gmra.mxu0 %v6461
  %v6463 = vpop.f32.mrf.mxu0
  %v6464 = vadd.f32 %v6384, %v6463
  %v6465 = vpop.f32.mrf.mxu0
  %v6466 = vadd.f32 %v6386, %v6465
  %6467 = vdwg.mxu0
  %6468 = vmatprep.subr.mxu0 0.0
  %6469 = vmatpush1.msra.mxu0 0.0
  %6470 = vmatprep.subr.mxu0 0.0
  %6471 = vmatpush1.msra.mxu0 0.0
  %6472 = vmatprep.subr.mxu0 0.0
  %6473 = vmatpush1.msra.mxu0 0.0
  %6474 = vmatprep.subr.mxu0 0.0
  %6475 = vmatpush1.msra.mxu0 0.0
  %6476 = vmatprep.subr.mxu0 0.0
  %6477 = vmatpush1.msra.mxu0 0.0
  %6478 = vmatprep.subr.mxu0 0.0
  %6479 = vmatpush1.msra.mxu0 0.0
  %6480 = vmatprep.subr.mxu0 0.0
  %6481 = vmatpush1.msra.mxu0 0.0
  %6482 = vmatprep.subr.mxu0 0.0
  %6483 = vmatpush1.msra.mxu0 0.0
  %6484 = vmatprep.subr.mxu0 0.0
  %6485 = vmatpush1.msra.mxu0 0.0
  %6486 = vmatprep.subr.mxu0 0.0
  %6487 = vmatpush1.msra.mxu0 0.0
  %6488 = vmatprep.subr.mxu0 0.0
  %6489 = vmatpush1.msra.mxu0 0.0
  %6490 = vmatprep.subr.mxu0 0.0
  %6491 = vmatpush1.msra.mxu0 0.0
  %v6492 = vand.u32 %v5375, 4294901760
  %6493 = vmatprep.subr.mxu0 %v6492
  %v6494 = vand.u32 %v5374, 4294901760
  %6495 = vmatpush1.msra.mxu0 %v6494
  %v6496 = vand.u32 %v5368, 4294901760
  %6497 = vmatprep.subr.mxu0 %v6496
  %v6498 = vand.u32 %v5367, 4294901760
  %6499 = vmatpush1.msra.mxu0 %v6498
  %v6500 = vand.u32 %v5361, 4294901760
  %6501 = vmatprep.subr.mxu0 %v6500
  %v6502 = vand.u32 %v5360, 4294901760
  %6503 = vmatpush1.msra.mxu0 %v6502
  %v6504 = vand.u32 %v5354, 4294901760
  %6505 = vmatprep.subr.mxu0 %v6504
  %v6506 = vand.u32 %v5353, 4294901760
  %6507 = vmatpush1.msra.mxu0 %v6506
  %6508 = vmatprep.subr.mxu0 0.0
  %6509 = vmatpush2.msra.mxu0 0.0
  %6510 = vmatprep.subr.mxu0 0.0
  %6511 = vmatpush2.msra.mxu0 0.0
  %6512 = vmatprep.subr.mxu0 0.0
  %6513 = vmatpush2.msra.mxu0 0.0
  %6514 = vmatprep.subr.mxu0 0.0
  %6515 = vmatpush2.msra.mxu0 0.0
  %6516 = vmatprep.subr.mxu0 0.0
  %6517 = vmatpush2.msra.mxu0 0.0
  %6518 = vmatprep.subr.mxu0 0.0
  %6519 = vmatpush2.msra.mxu0 0.0
  %6520 = vmatprep.subr.mxu0 0.0
  %6521 = vmatpush2.msra.mxu0 0.0
  %6522 = vmatprep.subr.mxu0 0.0
  %6523 = vmatpush2.msra.mxu0 0.0
  %6524 = vmatprep.subr.mxu0 0.0
  %6525 = vmatpush2.msra.mxu0 0.0
  %6526 = vmatprep.subr.mxu0 0.0
  %6527 = vmatpush2.msra.mxu0 0.0
  %6528 = vmatprep.subr.mxu0 0.0
  %6529 = vmatpush2.msra.mxu0 0.0
  %6530 = vmatprep.subr.mxu0 0.0
  %6531 = vmatpush2.msra.mxu0 0.0
  %6532 = vmatprep.subr.mxu0 0.0
  %6533 = vmatpush2.msra.mxu0 0.0
  %6534 = vmatprep.subr.mxu0 0.0
  %6535 = vmatpush2.msra.mxu0 0.0
  %6536 = vmatprep.subr.mxu0 0.0
  %6537 = vmatpush2.msra.mxu0 0.0
  %6538 = vmatprep.subr.mxu0 0.0
  %6539 = vmatpush2.msra.mxu0 0.0
  %6540 = vmatprep.mubr.f32.mxu0 0.0
  %v6541 = vand.u32 %v5380, 4294901760
  %v6542 = vsub.f32 %v5380, %v6541
  %v6543 = vand.u32 %v6542, 4294901760
  %v6544 = vsub.f32 %v6542, %v6543
  %v6545 = vand.u32 %v6544, 4294901760
  %6546 = vmatmul.mubr.f32.gmra.mxu0 %v6545
  %v6547 = vpop.f32.mrf.mxu0
  %v6548 = vadd.f32 0.0, %v6547
  %v6549 = vpop.f32.mrf.mxu0
  %v6550 = vadd.f32 0.0, %v6549
  %6551 = vdwg.mxu0
  %6552 = vmatprep.subr.mxu0 0.0
  %6553 = vmatpush1.msra.mxu0 0.0
  %6554 = vmatprep.subr.mxu0 0.0
  %6555 = vmatpush1.msra.mxu0 0.0
  %6556 = vmatprep.subr.mxu0 0.0
  %6557 = vmatpush1.msra.mxu0 0.0
  %6558 = vmatprep.subr.mxu0 0.0
  %6559 = vmatpush1.msra.mxu0 0.0
  %6560 = vmatprep.subr.mxu0 0.0
  %6561 = vmatpush1.msra.mxu0 0.0
  %6562 = vmatprep.subr.mxu0 0.0
  %6563 = vmatpush1.msra.mxu0 0.0
  %6564 = vmatprep.subr.mxu0 0.0
  %6565 = vmatpush1.msra.mxu0 0.0
  %6566 = vmatprep.subr.mxu0 0.0
  %6567 = vmatpush1.msra.mxu0 0.0
  %6568 = vmatprep.subr.mxu0 0.0
  %6569 = vmatpush1.msra.mxu0 0.0
  %6570 = vmatprep.subr.mxu0 0.0
  %6571 = vmatpush1.msra.mxu0 0.0
  %6572 = vmatprep.subr.mxu0 0.0
  %6573 = vmatpush1.msra.mxu0 0.0
  %6574 = vmatprep.subr.mxu0 0.0
  %6575 = vmatpush1.msra.mxu0 0.0
  %v6576 = vand.u32 %v5375, 4294901760
  %v6577 = vsub.f32 %v5375, %v6576
  %v6578 = vand.u32 %v6577, 4294901760
  %v6579 = vsub.f32 %v6577, %v6578
  %v6580 = vand.u32 %v6579, 4294901760
  %6581 = vmatprep.subr.mxu0 %v6580
  %v6582 = vand.u32 %v5374, 4294901760
  %v6583 = vsub.f32 %v5374, %v6582
  %v6584 = vand.u32 %v6583, 4294901760
  %v6585 = vsub.f32 %v6583, %v6584
  %v6586 = vand.u32 %v6585, 4294901760
  %6587 = vmatpush1.msra.mxu0 %v6586
  %v6588 = vand.u32 %v5368, 4294901760
  %v6589 = vsub.f32 %v5368, %v6588
  %v6590 = vand.u32 %v6589, 4294901760
  %v6591 = vsub.f32 %v6589, %v6590
  %v6592 = vand.u32 %v6591, 4294901760
  %6593 = vmatprep.subr.mxu0 %v6592
  %v6594 = vand.u32 %v5367, 4294901760
  %v6595 = vsub.f32 %v5367, %v6594
  %v6596 = vand.u32 %v6595, 4294901760
  %v6597 = vsub.f32 %v6595, %v6596
  %v6598 = vand.u32 %v6597, 4294901760
  %6599 = vmatpush1.msra.mxu0 %v6598
  %v6600 = vand.u32 %v5361, 4294901760
  %v6601 = vsub.f32 %v5361, %v6600
  %v6602 = vand.u32 %v6601, 4294901760
  %v6603 = vsub.f32 %v6601, %v6602
  %v6604 = vand.u32 %v6603, 4294901760
  %6605 = vmatprep.subr.mxu0 %v6604
  %v6606 = vand.u32 %v5360, 4294901760
  %v6607 = vsub.f32 %v5360, %v6606
  %v6608 = vand.u32 %v6607, 4294901760
  %v6609 = vsub.f32 %v6607, %v6608
  %v6610 = vand.u32 %v6609, 4294901760
  %6611 = vmatpush1.msra.mxu0 %v6610
  %v6612 = vand.u32 %v5354, 4294901760
  %v6613 = vsub.f32 %v5354, %v6612
  %v6614 = vand.u32 %v6613, 4294901760
  %v6615 = vsub.f32 %v6613, %v6614
  %v6616 = vand.u32 %v6615, 4294901760
  %6617 = vmatprep.subr.mxu0 %v6616
  %v6618 = vand.u32 %v5353, 4294901760
  %v6619 = vsub.f32 %v5353, %v6618
  %v6620 = vand.u32 %v6619, 4294901760
  %v6621 = vsub.f32 %v6619, %v6620
  %v6622 = vand.u32 %v6621, 4294901760
  %6623 = vmatpush1.msra.mxu0 %v6622
  %6624 = vmatprep.subr.mxu0 0.0
  %6625 = vmatpush2.msra.mxu0 0.0
  %6626 = vmatprep.subr.mxu0 0.0
  %6627 = vmatpush2.msra.mxu0 0.0
  %6628 = vmatprep.subr.mxu0 0.0
  %6629 = vmatpush2.msra.mxu0 0.0
  %6630 = vmatprep.subr.mxu0 0.0
  %6631 = vmatpush2.msra.mxu0 0.0
  %6632 = vmatprep.subr.mxu0 0.0
  %6633 = vmatpush2.msra.mxu0 0.0
  %6634 = vmatprep.subr.mxu0 0.0
  %6635 = vmatpush2.msra.mxu0 0.0
  %6636 = vmatprep.subr.mxu0 0.0
  %6637 = vmatpush2.msra.mxu0 0.0
  %6638 = vmatprep.subr.mxu0 0.0
  %6639 = vmatpush2.msra.mxu0 0.0
  %6640 = vmatprep.subr.mxu0 0.0
  %6641 = vmatpush2.msra.mxu0 0.0
  %6642 = vmatprep.subr.mxu0 0.0
  %6643 = vmatpush2.msra.mxu0 0.0
  %6644 = vmatprep.subr.mxu0 0.0
  %6645 = vmatpush2.msra.mxu0 0.0
  %6646 = vmatprep.subr.mxu0 0.0
  %6647 = vmatpush2.msra.mxu0 0.0
  %6648 = vmatprep.subr.mxu0 0.0
  %6649 = vmatpush2.msra.mxu0 0.0
  %6650 = vmatprep.subr.mxu0 0.0
  %6651 = vmatpush2.msra.mxu0 0.0
  %6652 = vmatprep.subr.mxu0 0.0
  %6653 = vmatpush2.msra.mxu0 0.0
  %6654 = vmatprep.subr.mxu0 0.0
  %6655 = vmatpush2.msra.mxu0 0.0
  %6656 = vmatprep.mubr.f32.mxu0 0.0
  %v6657 = vand.u32 %v5380, 4294901760
  %6658 = vmatmul.mubr.f32.gmra.mxu0 %v6657
  %v6659 = vpop.f32.mrf.mxu0
  %v6660 = vadd.f32 %v6548, %v6659
  %v6661 = vpop.f32.mrf.mxu0
  %v6662 = vadd.f32 %v6550, %v6661
  %6663 = vdwg.mxu0
  %6664 = vmatprep.subr.mxu0 0.0
  %6665 = vmatpush1.msra.mxu0 0.0
  %6666 = vmatprep.subr.mxu0 0.0
  %6667 = vmatpush1.msra.mxu0 0.0
  %6668 = vmatprep.subr.mxu0 0.0
  %6669 = vmatpush1.msra.mxu0 0.0
  %6670 = vmatprep.subr.mxu0 0.0
  %6671 = vmatpush1.msra.mxu0 0.0
  %6672 = vmatprep.subr.mxu0 0.0
  %6673 = vmatpush1.msra.mxu0 0.0
  %6674 = vmatprep.subr.mxu0 0.0
  %6675 = vmatpush1.msra.mxu0 0.0
  %6676 = vmatprep.subr.mxu0 0.0
  %6677 = vmatpush1.msra.mxu0 0.0
  %6678 = vmatprep.subr.mxu0 0.0
  %6679 = vmatpush1.msra.mxu0 0.0
  %6680 = vmatprep.subr.mxu0 0.0
  %6681 = vmatpush1.msra.mxu0 0.0
  %6682 = vmatprep.subr.mxu0 0.0
  %6683 = vmatpush1.msra.mxu0 0.0
  %6684 = vmatprep.subr.mxu0 0.0
  %6685 = vmatpush1.msra.mxu0 0.0
  %6686 = vmatprep.subr.mxu0 0.0
  %6687 = vmatpush1.msra.mxu0 0.0
  %v6688 = vand.u32 %v5375, 4294901760
  %v6689 = vsub.f32 %v5375, %v6688
  %6690 = vmatprep.subr.mxu0 %v6689
  %v6691 = vand.u32 %v5374, 4294901760
  %v6692 = vsub.f32 %v5374, %v6691
  %6693 = vmatpush1.msra.mxu0 %v6692
  %v6694 = vand.u32 %v5368, 4294901760
  %v6695 = vsub.f32 %v5368, %v6694
  %6696 = vmatprep.subr.mxu0 %v6695
  %v6697 = vand.u32 %v5367, 4294901760
  %v6698 = vsub.f32 %v5367, %v6697
  %6699 = vmatpush1.msra.mxu0 %v6698
  %v6700 = vand.u32 %v5361, 4294901760
  %v6701 = vsub.f32 %v5361, %v6700
  %6702 = vmatprep.subr.mxu0 %v6701
  %v6703 = vand.u32 %v5360, 4294901760
  %v6704 = vsub.f32 %v5360, %v6703
  %6705 = vmatpush1.msra.mxu0 %v6704
  %v6706 = vand.u32 %v5354, 4294901760
  %v6707 = vsub.f32 %v5354, %v6706
  %6708 = vmatprep.subr.mxu0 %v6707
  %v6709 = vand.u32 %v5353, 4294901760
  %v6710 = vsub.f32 %v5353, %v6709
  %6711 = vmatpush1.msra.mxu0 %v6710
  %6712 = vmatprep.subr.mxu0 0.0
  %6713 = vmatpush2.msra.mxu0 0.0
  %6714 = vmatprep.subr.mxu0 0.0
  %6715 = vmatpush2.msra.mxu0 0.0
  %6716 = vmatprep.subr.mxu0 0.0
  %6717 = vmatpush2.msra.mxu0 0.0
  %6718 = vmatprep.subr.mxu0 0.0
  %6719 = vmatpush2.msra.mxu0 0.0
  %6720 = vmatprep.subr.mxu0 0.0
  %6721 = vmatpush2.msra.mxu0 0.0
  %6722 = vmatprep.subr.mxu0 0.0
  %6723 = vmatpush2.msra.mxu0 0.0
  %6724 = vmatprep.subr.mxu0 0.0
  %6725 = vmatpush2.msra.mxu0 0.0
  %6726 = vmatprep.subr.mxu0 0.0
  %6727 = vmatpush2.msra.mxu0 0.0
  %6728 = vmatprep.subr.mxu0 0.0
  %6729 = vmatpush2.msra.mxu0 0.0
  %6730 = vmatprep.subr.mxu0 0.0
  %6731 = vmatpush2.msra.mxu0 0.0
  %6732 = vmatprep.subr.mxu0 0.0
  %6733 = vmatpush2.msra.mxu0 0.0
  %6734 = vmatprep.subr.mxu0 0.0
  %6735 = vmatpush2.msra.mxu0 0.0
  %6736 = vmatprep.subr.mxu0 0.0
  %6737 = vmatpush2.msra.mxu0 0.0
  %6738 = vmatprep.subr.mxu0 0.0
  %6739 = vmatpush2.msra.mxu0 0.0
  %6740 = vmatprep.subr.mxu0 0.0
  %6741 = vmatpush2.msra.mxu0 0.0
  %6742 = vmatprep.subr.mxu0 0.0
  %6743 = vmatpush2.msra.mxu0 0.0
  %6744 = vmatprep.mubr.f32.mxu0 0.0
  %v6745 = vand.u32 %v5380, 4294901760
  %v6746 = vsub.f32 %v5380, %v6745
  %6747 = vmatmul.mubr.f32.gmra.mxu0 %v6746
  %v6748 = vpop.f32.mrf.mxu0
  %v6749 = vadd.f32 %v6660, %v6748
  %v6750 = vpop.f32.mrf.mxu0
  %v6751 = vadd.f32 %v6662, %v6750
  %6752 = vdwg.mxu0
  %6753 = vmatprep.subr.mxu0 0.0
  %6754 = vmatpush1.msra.mxu0 0.0
  %6755 = vmatprep.subr.mxu0 0.0
  %6756 = vmatpush1.msra.mxu0 0.0
  %6757 = vmatprep.subr.mxu0 0.0
  %6758 = vmatpush1.msra.mxu0 0.0
  %6759 = vmatprep.subr.mxu0 0.0
  %6760 = vmatpush1.msra.mxu0 0.0
  %6761 = vmatprep.subr.mxu0 0.0
  %6762 = vmatpush1.msra.mxu0 0.0
  %6763 = vmatprep.subr.mxu0 0.0
  %6764 = vmatpush1.msra.mxu0 0.0
  %6765 = vmatprep.subr.mxu0 0.0
  %6766 = vmatpush1.msra.mxu0 0.0
  %6767 = vmatprep.subr.mxu0 0.0
  %6768 = vmatpush1.msra.mxu0 0.0
  %6769 = vmatprep.subr.mxu0 0.0
  %6770 = vmatpush1.msra.mxu0 0.0
  %6771 = vmatprep.subr.mxu0 0.0
  %6772 = vmatpush1.msra.mxu0 0.0
  %6773 = vmatprep.subr.mxu0 0.0
  %6774 = vmatpush1.msra.mxu0 0.0
  %6775 = vmatprep.subr.mxu0 0.0
  %6776 = vmatpush1.msra.mxu0 0.0
  %v6777 = vand.u32 %v5375, 4294901760
  %6778 = vmatprep.subr.mxu0 %v6777
  %v6779 = vand.u32 %v5374, 4294901760
  %6780 = vmatpush1.msra.mxu0 %v6779
  %v6781 = vand.u32 %v5368, 4294901760
  %6782 = vmatprep.subr.mxu0 %v6781
  %v6783 = vand.u32 %v5367, 4294901760
  %6784 = vmatpush1.msra.mxu0 %v6783
  %v6785 = vand.u32 %v5361, 4294901760
  %6786 = vmatprep.subr.mxu0 %v6785
  %v6787 = vand.u32 %v5360, 4294901760
  %6788 = vmatpush1.msra.mxu0 %v6787
  %v6789 = vand.u32 %v5354, 4294901760
  %6790 = vmatprep.subr.mxu0 %v6789
  %v6791 = vand.u32 %v5353, 4294901760
  %6792 = vmatpush1.msra.mxu0 %v6791
  %6793 = vmatprep.subr.mxu0 0.0
  %6794 = vmatpush2.msra.mxu0 0.0
  %6795 = vmatprep.subr.mxu0 0.0
  %6796 = vmatpush2.msra.mxu0 0.0
  %6797 = vmatprep.subr.mxu0 0.0
  %6798 = vmatpush2.msra.mxu0 0.0
  %6799 = vmatprep.subr.mxu0 0.0
  %6800 = vmatpush2.msra.mxu0 0.0
  %6801 = vmatprep.subr.mxu0 0.0
  %6802 = vmatpush2.msra.mxu0 0.0
  %6803 = vmatprep.subr.mxu0 0.0
  %6804 = vmatpush2.msra.mxu0 0.0
  %6805 = vmatprep.subr.mxu0 0.0
  %6806 = vmatpush2.msra.mxu0 0.0
  %6807 = vmatprep.subr.mxu0 0.0
  %6808 = vmatpush2.msra.mxu0 0.0
  %6809 = vmatprep.subr.mxu0 0.0
  %6810 = vmatpush2.msra.mxu0 0.0
  %6811 = vmatprep.subr.mxu0 0.0
  %6812 = vmatpush2.msra.mxu0 0.0
  %6813 = vmatprep.subr.mxu0 0.0
  %6814 = vmatpush2.msra.mxu0 0.0
  %6815 = vmatprep.subr.mxu0 0.0
  %6816 = vmatpush2.msra.mxu0 0.0
  %6817 = vmatprep.subr.mxu0 0.0
  %6818 = vmatpush2.msra.mxu0 0.0
  %6819 = vmatprep.subr.mxu0 0.0
  %6820 = vmatpush2.msra.mxu0 0.0
  %6821 = vmatprep.subr.mxu0 0.0
  %6822 = vmatpush2.msra.mxu0 0.0
  %6823 = vmatprep.subr.mxu0 0.0
  %6824 = vmatpush2.msra.mxu0 0.0
  %6825 = vmatprep.mubr.f32.mxu0 0.0
  %v6826 = vand.u32 %v5380, 4294901760
  %v6827 = vsub.f32 %v5380, %v6826
  %v6828 = vand.u32 %v6827, 4294901760
  %6829 = vmatmul.mubr.f32.gmra.mxu0 %v6828
  %v6830 = vpop.f32.mrf.mxu0
  %v6831 = vadd.f32 %v6749, %v6830
  %v6832 = vpop.f32.mrf.mxu0
  %v6833 = vadd.f32 %v6751, %v6832
  %6834 = vdwg.mxu0
  %6835 = vmatprep.subr.mxu0 0.0
  %6836 = vmatpush1.msra.mxu0 0.0
  %6837 = vmatprep.subr.mxu0 0.0
  %6838 = vmatpush1.msra.mxu0 0.0
  %6839 = vmatprep.subr.mxu0 0.0
  %6840 = vmatpush1.msra.mxu0 0.0
  %6841 = vmatprep.subr.mxu0 0.0
  %6842 = vmatpush1.msra.mxu0 0.0
  %6843 = vmatprep.subr.mxu0 0.0
  %6844 = vmatpush1.msra.mxu0 0.0
  %6845 = vmatprep.subr.mxu0 0.0
  %6846 = vmatpush1.msra.mxu0 0.0
  %6847 = vmatprep.subr.mxu0 0.0
  %6848 = vmatpush1.msra.mxu0 0.0
  %6849 = vmatprep.subr.mxu0 0.0
  %6850 = vmatpush1.msra.mxu0 0.0
  %6851 = vmatprep.subr.mxu0 0.0
  %6852 = vmatpush1.msra.mxu0 0.0
  %6853 = vmatprep.subr.mxu0 0.0
  %6854 = vmatpush1.msra.mxu0 0.0
  %6855 = vmatprep.subr.mxu0 0.0
  %6856 = vmatpush1.msra.mxu0 0.0
  %6857 = vmatprep.subr.mxu0 0.0
  %6858 = vmatpush1.msra.mxu0 0.0
  %v6859 = vand.u32 %v5375, 4294901760
  %v6860 = vsub.f32 %v5375, %v6859
  %v6861 = vand.u32 %v6860, 4294901760
  %6862 = vmatprep.subr.mxu0 %v6861
  %v6863 = vand.u32 %v5374, 4294901760
  %v6864 = vsub.f32 %v5374, %v6863
  %v6865 = vand.u32 %v6864, 4294901760
  %6866 = vmatpush1.msra.mxu0 %v6865
  %v6867 = vand.u32 %v5368, 4294901760
  %v6868 = vsub.f32 %v5368, %v6867
  %v6869 = vand.u32 %v6868, 4294901760
  %6870 = vmatprep.subr.mxu0 %v6869
  %v6871 = vand.u32 %v5367, 4294901760
  %v6872 = vsub.f32 %v5367, %v6871
  %v6873 = vand.u32 %v6872, 4294901760
  %6874 = vmatpush1.msra.mxu0 %v6873
  %v6875 = vand.u32 %v5361, 4294901760
  %v6876 = vsub.f32 %v5361, %v6875
  %v6877 = vand.u32 %v6876, 4294901760
  %6878 = vmatprep.subr.mxu0 %v6877
  %v6879 = vand.u32 %v5360, 4294901760
  %v6880 = vsub.f32 %v5360, %v6879
  %v6881 = vand.u32 %v6880, 4294901760
  %6882 = vmatpush1.msra.mxu0 %v6881
  %v6883 = vand.u32 %v5354, 4294901760
  %v6884 = vsub.f32 %v5354, %v6883
  %v6885 = vand.u32 %v6884, 4294901760
  %6886 = vmatprep.subr.mxu0 %v6885
  %v6887 = vand.u32 %v5353, 4294901760
  %v6888 = vsub.f32 %v5353, %v6887
  %v6889 = vand.u32 %v6888, 4294901760
  %6890 = vmatpush1.msra.mxu0 %v6889
  %6891 = vmatprep.subr.mxu0 0.0
  %6892 = vmatpush2.msra.mxu0 0.0
  %6893 = vmatprep.subr.mxu0 0.0
  %6894 = vmatpush2.msra.mxu0 0.0
  %6895 = vmatprep.subr.mxu0 0.0
  %6896 = vmatpush2.msra.mxu0 0.0
  %6897 = vmatprep.subr.mxu0 0.0
  %6898 = vmatpush2.msra.mxu0 0.0
  %6899 = vmatprep.subr.mxu0 0.0
  %6900 = vmatpush2.msra.mxu0 0.0
  %6901 = vmatprep.subr.mxu0 0.0
  %6902 = vmatpush2.msra.mxu0 0.0
  %6903 = vmatprep.subr.mxu0 0.0
  %6904 = vmatpush2.msra.mxu0 0.0
  %6905 = vmatprep.subr.mxu0 0.0
  %6906 = vmatpush2.msra.mxu0 0.0
  %6907 = vmatprep.subr.mxu0 0.0
  %6908 = vmatpush2.msra.mxu0 0.0
  %6909 = vmatprep.subr.mxu0 0.0
  %6910 = vmatpush2.msra.mxu0 0.0
  %6911 = vmatprep.subr.mxu0 0.0
  %6912 = vmatpush2.msra.mxu0 0.0
  %6913 = vmatprep.subr.mxu0 0.0
  %6914 = vmatpush2.msra.mxu0 0.0
  %6915 = vmatprep.subr.mxu0 0.0
  %6916 = vmatpush2.msra.mxu0 0.0
  %6917 = vmatprep.subr.mxu0 0.0
  %6918 = vmatpush2.msra.mxu0 0.0
  %6919 = vmatprep.subr.mxu0 0.0
  %6920 = vmatpush2.msra.mxu0 0.0
  %6921 = vmatprep.subr.mxu0 0.0
  %6922 = vmatpush2.msra.mxu0 0.0
  %6923 = vmatprep.mubr.f32.mxu0 0.0
  %v6924 = vand.u32 %v5380, 4294901760
  %6925 = vmatmul.mubr.f32.gmra.mxu0 %v6924
  %v6926 = vpop.f32.mrf.mxu0
  %v6927 = vadd.f32 %v6831, %v6926
  %v6928 = vpop.f32.mrf.mxu0
  %v6929 = vadd.f32 %v6833, %v6928
  %6930 = vdwg.mxu0
  %6931 = vmatprep.subr.mxu0 0.0
  %6932 = vmatpush1.msra.mxu0 0.0
  %6933 = vmatprep.subr.mxu0 0.0
  %6934 = vmatpush1.msra.mxu0 0.0
  %6935 = vmatprep.subr.mxu0 0.0
  %6936 = vmatpush1.msra.mxu0 0.0
  %6937 = vmatprep.subr.mxu0 0.0
  %6938 = vmatpush1.msra.mxu0 0.0
  %6939 = vmatprep.subr.mxu0 0.0
  %6940 = vmatpush1.msra.mxu0 0.0
  %6941 = vmatprep.subr.mxu0 0.0
  %6942 = vmatpush1.msra.mxu0 0.0
  %6943 = vmatprep.subr.mxu0 0.0
  %6944 = vmatpush1.msra.mxu0 0.0
  %6945 = vmatprep.subr.mxu0 0.0
  %6946 = vmatpush1.msra.mxu0 0.0
  %6947 = vmatprep.subr.mxu0 0.0
  %6948 = vmatpush1.msra.mxu0 0.0
  %6949 = vmatprep.subr.mxu0 0.0
  %6950 = vmatpush1.msra.mxu0 0.0
  %6951 = vmatprep.subr.mxu0 0.0
  %6952 = vmatpush1.msra.mxu0 0.0
  %6953 = vmatprep.subr.mxu0 0.0
  %6954 = vmatpush1.msra.mxu0 0.0
  %v6955 = vand.u32 %v5375, 4294901760
  %6956 = vmatprep.subr.mxu0 %v6955
  %v6957 = vand.u32 %v5374, 4294901760
  %6958 = vmatpush1.msra.mxu0 %v6957
  %v6959 = vand.u32 %v5368, 4294901760
  %6960 = vmatprep.subr.mxu0 %v6959
  %v6961 = vand.u32 %v5367, 4294901760
  %6962 = vmatpush1.msra.mxu0 %v6961
  %v6963 = vand.u32 %v5361, 4294901760
  %6964 = vmatprep.subr.mxu0 %v6963
  %v6965 = vand.u32 %v5360, 4294901760
  %6966 = vmatpush1.msra.mxu0 %v6965
  %v6967 = vand.u32 %v5354, 4294901760
  %6968 = vmatprep.subr.mxu0 %v6967
  %v6969 = vand.u32 %v5353, 4294901760
  %6970 = vmatpush1.msra.mxu0 %v6969
  %6971 = vmatprep.subr.mxu0 0.0
  %6972 = vmatpush2.msra.mxu0 0.0
  %6973 = vmatprep.subr.mxu0 0.0
  %6974 = vmatpush2.msra.mxu0 0.0
  %6975 = vmatprep.subr.mxu0 0.0
  %6976 = vmatpush2.msra.mxu0 0.0
  %6977 = vmatprep.subr.mxu0 0.0
  %6978 = vmatpush2.msra.mxu0 0.0
  %6979 = vmatprep.subr.mxu0 0.0
  %6980 = vmatpush2.msra.mxu0 0.0
  %6981 = vmatprep.subr.mxu0 0.0
  %6982 = vmatpush2.msra.mxu0 0.0
  %6983 = vmatprep.subr.mxu0 0.0
  %6984 = vmatpush2.msra.mxu0 0.0
  %6985 = vmatprep.subr.mxu0 0.0
  %6986 = vmatpush2.msra.mxu0 0.0
  %6987 = vmatprep.subr.mxu0 0.0
  %6988 = vmatpush2.msra.mxu0 0.0
  %6989 = vmatprep.subr.mxu0 0.0
  %6990 = vmatpush2.msra.mxu0 0.0
  %6991 = vmatprep.subr.mxu0 0.0
  %6992 = vmatpush2.msra.mxu0 0.0
  %6993 = vmatprep.subr.mxu0 0.0
  %6994 = vmatpush2.msra.mxu0 0.0
  %6995 = vmatprep.subr.mxu0 0.0
  %6996 = vmatpush2.msra.mxu0 0.0
  %6997 = vmatprep.subr.mxu0 0.0
  %6998 = vmatpush2.msra.mxu0 0.0
  %6999 = vmatprep.subr.mxu0 0.0
  %7000 = vmatpush2.msra.mxu0 0.0
  %7001 = vmatprep.subr.mxu0 0.0
  %7002 = vmatpush2.msra.mxu0 0.0
  %7003 = vmatprep.mubr.f32.mxu0 0.0
  %v7004 = vand.u32 %v5380, 4294901760
  %7005 = vmatmul.mubr.f32.gmra.mxu0 %v7004
  %v7006 = vpop.f32.mrf.mxu0
  %v7007 = vadd.f32 %v6927, %v7006
  %v7008 = vpop.f32.mrf.mxu0
  %v7009 = vadd.f32 %v6929, %v7008
  %7010 = vdwg.mxu0
  %7011 = vmatprep.subr.mxu0 0.0
  %7012 = vmatpush1.msra.mxu0 0.0
  %7013 = vmatprep.subr.mxu0 0.0
  %7014 = vmatpush1.msra.mxu0 0.0
  %7015 = vmatprep.subr.mxu0 0.0
  %7016 = vmatpush1.msra.mxu0 0.0
  %7017 = vmatprep.subr.mxu0 0.0
  %7018 = vmatpush1.msra.mxu0 0.0
  %7019 = vmatprep.subr.mxu0 0.0
  %7020 = vmatpush1.msra.mxu0 0.0
  %7021 = vmatprep.subr.mxu0 0.0
  %7022 = vmatpush1.msra.mxu0 0.0
  %7023 = vmatprep.subr.mxu0 0.0
  %7024 = vmatpush1.msra.mxu0 0.0
  %7025 = vmatprep.subr.mxu0 0.0
  %7026 = vmatpush1.msra.mxu0 0.0
  %7027 = vmatprep.subr.mxu0 0.0
  %7028 = vmatpush1.msra.mxu0 0.0
  %7029 = vmatprep.subr.mxu0 0.0
  %7030 = vmatpush1.msra.mxu0 0.0
  %7031 = vmatprep.subr.mxu0 0.0
  %7032 = vmatpush1.msra.mxu0 0.0
  %7033 = vmatprep.subr.mxu0 0.0
  %7034 = vmatpush1.msra.mxu0 0.0
  %7035 = vmatprep.subr.mxu0 0.0
  %v7036 = vand.u32 %v5376, 4294901760
  %7037 = vmatpush1.msra.mxu0 %v7036
  %7038 = vmatprep.subr.mxu0 0.0
  %v7039 = vand.u32 %v5369, 4294901760
  %7040 = vmatpush1.msra.mxu0 %v7039
  %7041 = vmatprep.subr.mxu0 0.0
  %v7042 = vand.u32 %v5362, 4294901760
  %7043 = vmatpush1.msra.mxu0 %v7042
  %7044 = vmatprep.subr.mxu0 0.0
  %v7045 = vand.u32 %v5355, 4294901760
  %7046 = vmatpush1.msra.mxu0 %v7045
  %7047 = vmatprep.subr.mxu0 0.0
  %7048 = vmatpush2.msra.mxu0 0.0
  %7049 = vmatprep.subr.mxu0 0.0
  %7050 = vmatpush2.msra.mxu0 0.0
  %7051 = vmatprep.subr.mxu0 0.0
  %7052 = vmatpush2.msra.mxu0 0.0
  %7053 = vmatprep.subr.mxu0 0.0
  %7054 = vmatpush2.msra.mxu0 0.0
  %7055 = vmatprep.subr.mxu0 0.0
  %7056 = vmatpush2.msra.mxu0 0.0
  %7057 = vmatprep.subr.mxu0 0.0
  %7058 = vmatpush2.msra.mxu0 0.0
  %7059 = vmatprep.subr.mxu0 0.0
  %7060 = vmatpush2.msra.mxu0 0.0
  %7061 = vmatprep.subr.mxu0 0.0
  %7062 = vmatpush2.msra.mxu0 0.0
  %7063 = vmatprep.subr.mxu0 0.0
  %7064 = vmatpush2.msra.mxu0 0.0
  %7065 = vmatprep.subr.mxu0 0.0
  %7066 = vmatpush2.msra.mxu0 0.0
  %7067 = vmatprep.subr.mxu0 0.0
  %7068 = vmatpush2.msra.mxu0 0.0
  %7069 = vmatprep.subr.mxu0 0.0
  %7070 = vmatpush2.msra.mxu0 0.0
  %7071 = vmatprep.subr.mxu0 0.0
  %7072 = vmatpush2.msra.mxu0 0.0
  %7073 = vmatprep.subr.mxu0 0.0
  %7074 = vmatpush2.msra.mxu0 0.0
  %7075 = vmatprep.subr.mxu0 0.0
  %7076 = vmatpush2.msra.mxu0 0.0
  %7077 = vmatprep.subr.mxu0 0.0
  %7078 = vmatpush2.msra.mxu0 0.0
  %7079 = vmatprep.mubr.f32.mxu0 0.0
  %v7080 = vand.u32 %v5380, 4294901760
  %v7081 = vsub.f32 %v5380, %v7080
  %v7082 = vand.u32 %v7081, 4294901760
  %v7083 = vsub.f32 %v7081, %v7082
  %v7084 = vand.u32 %v7083, 4294901760
  %7085 = vmatmul.mubr.f32.gmra.mxu0 %v7084
  %v7086 = vpop.f32.mrf.mxu0
  %v7087 = vadd.f32 0.0, %v7086
  %v7088 = vpop.f32.mrf.mxu0
  %7089 = vdwg.mxu0
  %7090 = vmatprep.subr.mxu0 0.0
  %7091 = vmatpush1.msra.mxu0 0.0
  %7092 = vmatprep.subr.mxu0 0.0
  %7093 = vmatpush1.msra.mxu0 0.0
  %7094 = vmatprep.subr.mxu0 0.0
  %7095 = vmatpush1.msra.mxu0 0.0
  %7096 = vmatprep.subr.mxu0 0.0
  %7097 = vmatpush1.msra.mxu0 0.0
  %7098 = vmatprep.subr.mxu0 0.0
  %7099 = vmatpush1.msra.mxu0 0.0
  %7100 = vmatprep.subr.mxu0 0.0
  %7101 = vmatpush1.msra.mxu0 0.0
  %7102 = vmatprep.subr.mxu0 0.0
  %7103 = vmatpush1.msra.mxu0 0.0
  %7104 = vmatprep.subr.mxu0 0.0
  %7105 = vmatpush1.msra.mxu0 0.0
  %7106 = vmatprep.subr.mxu0 0.0
  %7107 = vmatpush1.msra.mxu0 0.0
  %7108 = vmatprep.subr.mxu0 0.0
  %7109 = vmatpush1.msra.mxu0 0.0
  %7110 = vmatprep.subr.mxu0 0.0
  %7111 = vmatpush1.msra.mxu0 0.0
  %7112 = vmatprep.subr.mxu0 0.0
  %7113 = vmatpush1.msra.mxu0 0.0
  %7114 = vmatprep.subr.mxu0 0.0
  %v7115 = vand.u32 %v5376, 4294901760
  %v7116 = vsub.f32 %v5376, %v7115
  %v7117 = vand.u32 %v7116, 4294901760
  %v7118 = vsub.f32 %v7116, %v7117
  %v7119 = vand.u32 %v7118, 4294901760
  %7120 = vmatpush1.msra.mxu0 %v7119
  %7121 = vmatprep.subr.mxu0 0.0
  %v7122 = vand.u32 %v5369, 4294901760
  %v7123 = vsub.f32 %v5369, %v7122
  %v7124 = vand.u32 %v7123, 4294901760
  %v7125 = vsub.f32 %v7123, %v7124
  %v7126 = vand.u32 %v7125, 4294901760
  %7127 = vmatpush1.msra.mxu0 %v7126
  %7128 = vmatprep.subr.mxu0 0.0
  %v7129 = vand.u32 %v5362, 4294901760
  %v7130 = vsub.f32 %v5362, %v7129
  %v7131 = vand.u32 %v7130, 4294901760
  %v7132 = vsub.f32 %v7130, %v7131
  %v7133 = vand.u32 %v7132, 4294901760
  %7134 = vmatpush1.msra.mxu0 %v7133
  %7135 = vmatprep.subr.mxu0 0.0
  %v7136 = vand.u32 %v5355, 4294901760
  %v7137 = vsub.f32 %v5355, %v7136
  %v7138 = vand.u32 %v7137, 4294901760
  %v7139 = vsub.f32 %v7137, %v7138
  %v7140 = vand.u32 %v7139, 4294901760
  %7141 = vmatpush1.msra.mxu0 %v7140
  %7142 = vmatprep.subr.mxu0 0.0
  %7143 = vmatpush2.msra.mxu0 0.0
  %7144 = vmatprep.subr.mxu0 0.0
  %7145 = vmatpush2.msra.mxu0 0.0
  %7146 = vmatprep.subr.mxu0 0.0
  %7147 = vmatpush2.msra.mxu0 0.0
  %7148 = vmatprep.subr.mxu0 0.0
  %7149 = vmatpush2.msra.mxu0 0.0
  %7150 = vmatprep.subr.mxu0 0.0
  %7151 = vmatpush2.msra.mxu0 0.0
  %7152 = vmatprep.subr.mxu0 0.0
  %7153 = vmatpush2.msra.mxu0 0.0
  %7154 = vmatprep.subr.mxu0 0.0
  %7155 = vmatpush2.msra.mxu0 0.0
  %7156 = vmatprep.subr.mxu0 0.0
  %7157 = vmatpush2.msra.mxu0 0.0
  %7158 = vmatprep.subr.mxu0 0.0
  %7159 = vmatpush2.msra.mxu0 0.0
  %7160 = vmatprep.subr.mxu0 0.0
  %7161 = vmatpush2.msra.mxu0 0.0
  %7162 = vmatprep.subr.mxu0 0.0
  %7163 = vmatpush2.msra.mxu0 0.0
  %7164 = vmatprep.subr.mxu0 0.0
  %7165 = vmatpush2.msra.mxu0 0.0
  %7166 = vmatprep.subr.mxu0 0.0
  %7167 = vmatpush2.msra.mxu0 0.0
  %7168 = vmatprep.subr.mxu0 0.0
  %7169 = vmatpush2.msra.mxu0 0.0
  %7170 = vmatprep.subr.mxu0 0.0
  %7171 = vmatpush2.msra.mxu0 0.0
  %7172 = vmatprep.subr.mxu0 0.0
  %7173 = vmatpush2.msra.mxu0 0.0
  %7174 = vmatprep.mubr.f32.mxu0 0.0
  %v7175 = vand.u32 %v5380, 4294901760
  %7176 = vmatmul.mubr.f32.gmra.mxu0 %v7175
  %v7177 = vpop.f32.mrf.mxu0
  %v7178 = vadd.f32 %v7087, %v7177
  %v7179 = vpop.f32.mrf.mxu0
  %7180 = vdwg.mxu0
  %7181 = vmatprep.subr.mxu0 0.0
  %7182 = vmatpush1.msra.mxu0 0.0
  %7183 = vmatprep.subr.mxu0 0.0
  %7184 = vmatpush1.msra.mxu0 0.0
  %7185 = vmatprep.subr.mxu0 0.0
  %7186 = vmatpush1.msra.mxu0 0.0
  %7187 = vmatprep.subr.mxu0 0.0
  %7188 = vmatpush1.msra.mxu0 0.0
  %7189 = vmatprep.subr.mxu0 0.0
  %7190 = vmatpush1.msra.mxu0 0.0
  %7191 = vmatprep.subr.mxu0 0.0
  %7192 = vmatpush1.msra.mxu0 0.0
  %7193 = vmatprep.subr.mxu0 0.0
  %7194 = vmatpush1.msra.mxu0 0.0
  %7195 = vmatprep.subr.mxu0 0.0
  %7196 = vmatpush1.msra.mxu0 0.0
  %7197 = vmatprep.subr.mxu0 0.0
  %7198 = vmatpush1.msra.mxu0 0.0
  %7199 = vmatprep.subr.mxu0 0.0
  %7200 = vmatpush1.msra.mxu0 0.0
  %7201 = vmatprep.subr.mxu0 0.0
  %7202 = vmatpush1.msra.mxu0 0.0
  %7203 = vmatprep.subr.mxu0 0.0
  %7204 = vmatpush1.msra.mxu0 0.0
  %7205 = vmatprep.subr.mxu0 0.0
  %v7206 = vand.u32 %v5376, 4294901760
  %v7207 = vsub.f32 %v5376, %v7206
  %7208 = vmatpush1.msra.mxu0 %v7207
  %7209 = vmatprep.subr.mxu0 0.0
  %v7210 = vand.u32 %v5369, 4294901760
  %v7211 = vsub.f32 %v5369, %v7210
  %7212 = vmatpush1.msra.mxu0 %v7211
  %7213 = vmatprep.subr.mxu0 0.0
  %v7214 = vand.u32 %v5362, 4294901760
  %v7215 = vsub.f32 %v5362, %v7214
  %7216 = vmatpush1.msra.mxu0 %v7215
  %7217 = vmatprep.subr.mxu0 0.0
  %v7218 = vand.u32 %v5355, 4294901760
  %v7219 = vsub.f32 %v5355, %v7218
  %7220 = vmatpush1.msra.mxu0 %v7219
  %7221 = vmatprep.subr.mxu0 0.0
  %7222 = vmatpush2.msra.mxu0 0.0
  %7223 = vmatprep.subr.mxu0 0.0
  %7224 = vmatpush2.msra.mxu0 0.0
  %7225 = vmatprep.subr.mxu0 0.0
  %7226 = vmatpush2.msra.mxu0 0.0
  %7227 = vmatprep.subr.mxu0 0.0
  %7228 = vmatpush2.msra.mxu0 0.0
  %7229 = vmatprep.subr.mxu0 0.0
  %7230 = vmatpush2.msra.mxu0 0.0
  %7231 = vmatprep.subr.mxu0 0.0
  %7232 = vmatpush2.msra.mxu0 0.0
  %7233 = vmatprep.subr.mxu0 0.0
  %7234 = vmatpush2.msra.mxu0 0.0
  %7235 = vmatprep.subr.mxu0 0.0
  %7236 = vmatpush2.msra.mxu0 0.0
  %7237 = vmatprep.subr.mxu0 0.0
  %7238 = vmatpush2.msra.mxu0 0.0
  %7239 = vmatprep.subr.mxu0 0.0
  %7240 = vmatpush2.msra.mxu0 0.0
  %7241 = vmatprep.subr.mxu0 0.0
  %7242 = vmatpush2.msra.mxu0 0.0
  %7243 = vmatprep.subr.mxu0 0.0
  %7244 = vmatpush2.msra.mxu0 0.0
  %7245 = vmatprep.subr.mxu0 0.0
  %7246 = vmatpush2.msra.mxu0 0.0
  %7247 = vmatprep.subr.mxu0 0.0
  %7248 = vmatpush2.msra.mxu0 0.0
  %7249 = vmatprep.subr.mxu0 0.0
  %7250 = vmatpush2.msra.mxu0 0.0
  %7251 = vmatprep.subr.mxu0 0.0
  %7252 = vmatpush2.msra.mxu0 0.0
  %7253 = vmatprep.mubr.f32.mxu0 0.0
  %v7254 = vand.u32 %v5380, 4294901760
  %v7255 = vsub.f32 %v5380, %v7254
  %7256 = vmatmul.mubr.f32.gmra.mxu0 %v7255
  %v7257 = vpop.f32.mrf.mxu0
  %v7258 = vadd.f32 %v7178, %v7257
  %v7259 = vpop.f32.mrf.mxu0
  %7260 = vdwg.mxu0
  %7261 = vmatprep.subr.mxu0 0.0
  %7262 = vmatpush1.msra.mxu0 0.0
  %7263 = vmatprep.subr.mxu0 0.0
  %7264 = vmatpush1.msra.mxu0 0.0
  %7265 = vmatprep.subr.mxu0 0.0
  %7266 = vmatpush1.msra.mxu0 0.0
  %7267 = vmatprep.subr.mxu0 0.0
  %7268 = vmatpush1.msra.mxu0 0.0
  %7269 = vmatprep.subr.mxu0 0.0
  %7270 = vmatpush1.msra.mxu0 0.0
  %7271 = vmatprep.subr.mxu0 0.0
  %7272 = vmatpush1.msra.mxu0 0.0
  %7273 = vmatprep.subr.mxu0 0.0
  %7274 = vmatpush1.msra.mxu0 0.0
  %7275 = vmatprep.subr.mxu0 0.0
  %7276 = vmatpush1.msra.mxu0 0.0
  %7277 = vmatprep.subr.mxu0 0.0
  %7278 = vmatpush1.msra.mxu0 0.0
  %7279 = vmatprep.subr.mxu0 0.0
  %7280 = vmatpush1.msra.mxu0 0.0
  %7281 = vmatprep.subr.mxu0 0.0
  %7282 = vmatpush1.msra.mxu0 0.0
  %7283 = vmatprep.subr.mxu0 0.0
  %7284 = vmatpush1.msra.mxu0 0.0
  %7285 = vmatprep.subr.mxu0 0.0
  %v7286 = vand.u32 %v5376, 4294901760
  %7287 = vmatpush1.msra.mxu0 %v7286
  %7288 = vmatprep.subr.mxu0 0.0
  %v7289 = vand.u32 %v5369, 4294901760
  %7290 = vmatpush1.msra.mxu0 %v7289
  %7291 = vmatprep.subr.mxu0 0.0
  %v7292 = vand.u32 %v5362, 4294901760
  %7293 = vmatpush1.msra.mxu0 %v7292
  %7294 = vmatprep.subr.mxu0 0.0
  %v7295 = vand.u32 %v5355, 4294901760
  %7296 = vmatpush1.msra.mxu0 %v7295
  %7297 = vmatprep.subr.mxu0 0.0
  %7298 = vmatpush2.msra.mxu0 0.0
  %7299 = vmatprep.subr.mxu0 0.0
  %7300 = vmatpush2.msra.mxu0 0.0
  %7301 = vmatprep.subr.mxu0 0.0
  %7302 = vmatpush2.msra.mxu0 0.0
  %7303 = vmatprep.subr.mxu0 0.0
  %7304 = vmatpush2.msra.mxu0 0.0
  %7305 = vmatprep.subr.mxu0 0.0
  %7306 = vmatpush2.msra.mxu0 0.0
  %7307 = vmatprep.subr.mxu0 0.0
  %7308 = vmatpush2.msra.mxu0 0.0
  %7309 = vmatprep.subr.mxu0 0.0
  %7310 = vmatpush2.msra.mxu0 0.0
  %7311 = vmatprep.subr.mxu0 0.0
  %7312 = vmatpush2.msra.mxu0 0.0
  %7313 = vmatprep.subr.mxu0 0.0
  %7314 = vmatpush2.msra.mxu0 0.0
  %7315 = vmatprep.subr.mxu0 0.0
  %7316 = vmatpush2.msra.mxu0 0.0
  %7317 = vmatprep.subr.mxu0 0.0
  %7318 = vmatpush2.msra.mxu0 0.0
  %7319 = vmatprep.subr.mxu0 0.0
  %7320 = vmatpush2.msra.mxu0 0.0
  %7321 = vmatprep.subr.mxu0 0.0
  %7322 = vmatpush2.msra.mxu0 0.0
  %7323 = vmatprep.subr.mxu0 0.0
  %7324 = vmatpush2.msra.mxu0 0.0
  %7325 = vmatprep.subr.mxu0 0.0
  %7326 = vmatpush2.msra.mxu0 0.0
  %7327 = vmatprep.subr.mxu0 0.0
  %7328 = vmatpush2.msra.mxu0 0.0
  %7329 = vmatprep.mubr.f32.mxu0 0.0
  %v7330 = vand.u32 %v5380, 4294901760
  %v7331 = vsub.f32 %v5380, %v7330
  %v7332 = vand.u32 %v7331, 4294901760
  %7333 = vmatmul.mubr.f32.gmra.mxu0 %v7332
  %v7334 = vpop.f32.mrf.mxu0
  %v7335 = vadd.f32 %v7258, %v7334
  %v7336 = vpop.f32.mrf.mxu0
  %7337 = vdwg.mxu0
  %7338 = vmatprep.subr.mxu0 0.0
  %7339 = vmatpush1.msra.mxu0 0.0
  %7340 = vmatprep.subr.mxu0 0.0
  %7341 = vmatpush1.msra.mxu0 0.0
  %7342 = vmatprep.subr.mxu0 0.0
  %7343 = vmatpush1.msra.mxu0 0.0
  %7344 = vmatprep.subr.mxu0 0.0
  %7345 = vmatpush1.msra.mxu0 0.0
  %7346 = vmatprep.subr.mxu0 0.0
  %7347 = vmatpush1.msra.mxu0 0.0
  %7348 = vmatprep.subr.mxu0 0.0
  %7349 = vmatpush1.msra.mxu0 0.0
  %7350 = vmatprep.subr.mxu0 0.0
  %7351 = vmatpush1.msra.mxu0 0.0
  %7352 = vmatprep.subr.mxu0 0.0
  %7353 = vmatpush1.msra.mxu0 0.0
  %7354 = vmatprep.subr.mxu0 0.0
  %7355 = vmatpush1.msra.mxu0 0.0
  %7356 = vmatprep.subr.mxu0 0.0
  %7357 = vmatpush1.msra.mxu0 0.0
  %7358 = vmatprep.subr.mxu0 0.0
  %7359 = vmatpush1.msra.mxu0 0.0
  %7360 = vmatprep.subr.mxu0 0.0
  %7361 = vmatpush1.msra.mxu0 0.0
  %7362 = vmatprep.subr.mxu0 0.0
  %v7363 = vand.u32 %v5376, 4294901760
  %v7364 = vsub.f32 %v5376, %v7363
  %v7365 = vand.u32 %v7364, 4294901760
  %7366 = vmatpush1.msra.mxu0 %v7365
  %7367 = vmatprep.subr.mxu0 0.0
  %v7368 = vand.u32 %v5369, 4294901760
  %v7369 = vsub.f32 %v5369, %v7368
  %v7370 = vand.u32 %v7369, 4294901760
  %7371 = vmatpush1.msra.mxu0 %v7370
  %7372 = vmatprep.subr.mxu0 0.0
  %v7373 = vand.u32 %v5362, 4294901760
  %v7374 = vsub.f32 %v5362, %v7373
  %v7375 = vand.u32 %v7374, 4294901760
  %7376 = vmatpush1.msra.mxu0 %v7375
  %7377 = vmatprep.subr.mxu0 0.0
  %v7378 = vand.u32 %v5355, 4294901760
  %v7379 = vsub.f32 %v5355, %v7378
  %v7380 = vand.u32 %v7379, 4294901760
  %7381 = vmatpush1.msra.mxu0 %v7380
  %7382 = vmatprep.subr.mxu0 0.0
  %7383 = vmatpush2.msra.mxu0 0.0
  %7384 = vmatprep.subr.mxu0 0.0
  %7385 = vmatpush2.msra.mxu0 0.0
  %7386 = vmatprep.subr.mxu0 0.0
  %7387 = vmatpush2.msra.mxu0 0.0
  %7388 = vmatprep.subr.mxu0 0.0
  %7389 = vmatpush2.msra.mxu0 0.0
  %7390 = vmatprep.subr.mxu0 0.0
  %7391 = vmatpush2.msra.mxu0 0.0
  %7392 = vmatprep.subr.mxu0 0.0
  %7393 = vmatpush2.msra.mxu0 0.0
  %7394 = vmatprep.subr.mxu0 0.0
  %7395 = vmatpush2.msra.mxu0 0.0
  %7396 = vmatprep.subr.mxu0 0.0
  %7397 = vmatpush2.msra.mxu0 0.0
  %7398 = vmatprep.subr.mxu0 0.0
  %7399 = vmatpush2.msra.mxu0 0.0
  %7400 = vmatprep.subr.mxu0 0.0
  %7401 = vmatpush2.msra.mxu0 0.0
  %7402 = vmatprep.subr.mxu0 0.0
  %7403 = vmatpush2.msra.mxu0 0.0
  %7404 = vmatprep.subr.mxu0 0.0
  %7405 = vmatpush2.msra.mxu0 0.0
  %7406 = vmatprep.subr.mxu0 0.0
  %7407 = vmatpush2.msra.mxu0 0.0
  %7408 = vmatprep.subr.mxu0 0.0
  %7409 = vmatpush2.msra.mxu0 0.0
  %7410 = vmatprep.subr.mxu0 0.0
  %7411 = vmatpush2.msra.mxu0 0.0
  %7412 = vmatprep.subr.mxu0 0.0
  %7413 = vmatpush2.msra.mxu0 0.0
  %7414 = vmatprep.mubr.f32.mxu0 0.0
  %v7415 = vand.u32 %v5380, 4294901760
  %7416 = vmatmul.mubr.f32.gmra.mxu0 %v7415
  %v7417 = vpop.f32.mrf.mxu0
  %v7418 = vadd.f32 %v7335, %v7417
  %v7419 = vpop.f32.mrf.mxu0
  %7420 = vdwg.mxu0
  %7421 = vmatprep.subr.mxu0 0.0
  %7422 = vmatpush1.msra.mxu0 0.0
  %7423 = vmatprep.subr.mxu0 0.0
  %7424 = vmatpush1.msra.mxu0 0.0
  %7425 = vmatprep.subr.mxu0 0.0
  %7426 = vmatpush1.msra.mxu0 0.0
  %7427 = vmatprep.subr.mxu0 0.0
  %7428 = vmatpush1.msra.mxu0 0.0
  %7429 = vmatprep.subr.mxu0 0.0
  %7430 = vmatpush1.msra.mxu0 0.0
  %7431 = vmatprep.subr.mxu0 0.0
  %7432 = vmatpush1.msra.mxu0 0.0
  %7433 = vmatprep.subr.mxu0 0.0
  %7434 = vmatpush1.msra.mxu0 0.0
  %7435 = vmatprep.subr.mxu0 0.0
  %7436 = vmatpush1.msra.mxu0 0.0
  %7437 = vmatprep.subr.mxu0 0.0
  %7438 = vmatpush1.msra.mxu0 0.0
  %7439 = vmatprep.subr.mxu0 0.0
  %7440 = vmatpush1.msra.mxu0 0.0
  %7441 = vmatprep.subr.mxu0 0.0
  %7442 = vmatpush1.msra.mxu0 0.0
  %7443 = vmatprep.subr.mxu0 0.0
  %7444 = vmatpush1.msra.mxu0 0.0
  %7445 = vmatprep.subr.mxu0 0.0
  %v7446 = vand.u32 %v5376, 4294901760
  %7447 = vmatpush1.msra.mxu0 %v7446
  %7448 = vmatprep.subr.mxu0 0.0
  %v7449 = vand.u32 %v5369, 4294901760
  %7450 = vmatpush1.msra.mxu0 %v7449
  %7451 = vmatprep.subr.mxu0 0.0
  %v7452 = vand.u32 %v5362, 4294901760
  %7453 = vmatpush1.msra.mxu0 %v7452
  %7454 = vmatprep.subr.mxu0 0.0
  %v7455 = vand.u32 %v5355, 4294901760
  %7456 = vmatpush1.msra.mxu0 %v7455
  %7457 = vmatprep.subr.mxu0 0.0
  %7458 = vmatpush2.msra.mxu0 0.0
  %7459 = vmatprep.subr.mxu0 0.0
  %7460 = vmatpush2.msra.mxu0 0.0
  %7461 = vmatprep.subr.mxu0 0.0
  %7462 = vmatpush2.msra.mxu0 0.0
  %7463 = vmatprep.subr.mxu0 0.0
  %7464 = vmatpush2.msra.mxu0 0.0
  %7465 = vmatprep.subr.mxu0 0.0
  %7466 = vmatpush2.msra.mxu0 0.0
  %7467 = vmatprep.subr.mxu0 0.0
  %7468 = vmatpush2.msra.mxu0 0.0
  %7469 = vmatprep.subr.mxu0 0.0
  %7470 = vmatpush2.msra.mxu0 0.0
  %7471 = vmatprep.subr.mxu0 0.0
  %7472 = vmatpush2.msra.mxu0 0.0
  %7473 = vmatprep.subr.mxu0 0.0
  %7474 = vmatpush2.msra.mxu0 0.0
  %7475 = vmatprep.subr.mxu0 0.0
  %7476 = vmatpush2.msra.mxu0 0.0
  %7477 = vmatprep.subr.mxu0 0.0
  %7478 = vmatpush2.msra.mxu0 0.0
  %7479 = vmatprep.subr.mxu0 0.0
  %7480 = vmatpush2.msra.mxu0 0.0
  %7481 = vmatprep.subr.mxu0 0.0
  %7482 = vmatpush2.msra.mxu0 0.0
  %7483 = vmatprep.subr.mxu0 0.0
  %7484 = vmatpush2.msra.mxu0 0.0
  %7485 = vmatprep.subr.mxu0 0.0
  %7486 = vmatpush2.msra.mxu0 0.0
  %7487 = vmatprep.subr.mxu0 0.0
  %7488 = vmatpush2.msra.mxu0 0.0
  %7489 = vmatprep.mubr.f32.mxu0 0.0
  %v7490 = vand.u32 %v5380, 4294901760
  %7491 = vmatmul.mubr.f32.gmra.mxu0 %v7490
  %v7492 = vpop.f32.mrf.mxu0
  %v7493 = vadd.f32 %v7418, %v7492
  %v7494 = vpop.f32.mrf.mxu0
  %7495 = vdwg.mxu0
  %7496 = vrot.lane.b32.xlu0 %v5921, 127
  %v7497 = vpop.permute.xlu0 %7496
  %7498 = vrot.lane.b32.xlu0 %v5923, 127
  %v7499 = vpop.permute.xlu0 %7498
  %7500 = vrot.lane.b32.xlu0 %v6464, 127
  %v7501 = vpop.permute.xlu0 %7500
  %7502 = vrot.lane.b32.xlu0 %v6466, 127
  %v7503 = vpop.permute.xlu0 %7502
  %7504 = vrot.lane.b32.xlu0 %v7007, 127
  %v7505 = vpop.permute.xlu0 %7504
  %7506 = vrot.lane.b32.xlu0 %v7009, 127
  %v7507 = vpop.permute.xlu0 %7506
  %7508 = vrot.lane.b32.xlu0 %v7493, 127
  %v7509 = vpop.permute.xlu0 %7508
  %v7510 = vsel %vm154, %v7507, %v7509
  %v7511 = vsel %vm154, %v7505, %v7507
  %v7512 = vsel %vm154, %v7503, %v7505
  %v7513 = vsel %vm154, %v7501, %v7503
  %v7514 = vsel %vm154, %v7499, %v7501
  %v7515 = vsel %vm154, %v7497, %v7499
  %v7516 = vsel %vm154, %v7509, %v7497
  %v7517 = vadd.f32 %v5921, %v7515
  %v7518 = vadd.f32 %v5923, %v7514
  %v7519 = vadd.f32 %v6464, %v7513
  %v7520 = vadd.f32 %v6466, %v7512
  %v7521 = vadd.f32 %v7007, %v7511
  %v7522 = vadd.f32 %v7009, %v7510
  %v7523 = vadd.f32 %v7493, %v7516
  %7524 = vrot.lane.b32.xlu0 %v7517, 126
  %v7525 = vpop.permute.xlu0 %7524
  %7526 = vrot.lane.b32.xlu0 %v7518, 126
  %v7527 = vpop.permute.xlu0 %7526
  %7528 = vrot.lane.b32.xlu0 %v7519, 126
  %v7529 = vpop.permute.xlu0 %7528
  %7530 = vrot.lane.b32.xlu0 %v7520, 126
  %v7531 = vpop.permute.xlu0 %7530
  %7532 = vrot.lane.b32.xlu0 %v7521, 126
  %v7533 = vpop.permute.xlu0 %7532
  %7534 = vrot.lane.b32.xlu0 %v7522, 126
  %v7535 = vpop.permute.xlu0 %7534
  %7536 = vrot.lane.b32.xlu0 %v7523, 126
  %v7537 = vpop.permute.xlu0 %7536
  %vm7538 = vcmp.lt.s32.totalorder %v88, 126
  %v7539 = vsel %vm7538, %v7535, %v7537
  %v7540 = vsel %vm7538, %v7533, %v7535
  %v7541 = vsel %vm7538, %v7531, %v7533
  %v7542 = vsel %vm7538, %v7529, %v7531
  %v7543 = vsel %vm7538, %v7527, %v7529
  %v7544 = vsel %vm7538, %v7525, %v7527
  %v7545 = vsel %vm7538, %v7537, %v7525
  %v7546 = vadd.f32 %v7517, %v7544
  %v7547 = vadd.f32 %v7518, %v7543
  %v7548 = vadd.f32 %v7519, %v7542
  %v7549 = vadd.f32 %v7520, %v7541
  %v7550 = vadd.f32 %v7521, %v7540
  %v7551 = vadd.f32 %v7522, %v7539
  %v7552 = vadd.f32 %v7523, %v7545
  %7553 = vrot.lane.b32.xlu0 %v7546, 124
  %v7554 = vpop.permute.xlu0 %7553
  %7555 = vrot.lane.b32.xlu0 %v7547, 124
  %v7556 = vpop.permute.xlu0 %7555
  %7557 = vrot.lane.b32.xlu0 %v7548, 124
  %v7558 = vpop.permute.xlu0 %7557
  %7559 = vrot.lane.b32.xlu0 %v7549, 124
  %v7560 = vpop.permute.xlu0 %7559
  %7561 = vrot.lane.b32.xlu0 %v7550, 124
  %v7562 = vpop.permute.xlu0 %7561
  %7563 = vrot.lane.b32.xlu0 %v7551, 124
  %v7564 = vpop.permute.xlu0 %7563
  %7565 = vrot.lane.b32.xlu0 %v7552, 124
  %v7566 = vpop.permute.xlu0 %7565
  %vm7567 = vcmp.lt.s32.totalorder %v88, 124
  %v7568 = vsel %vm7567, %v7564, %v7566
  %v7569 = vsel %vm7567, %v7562, %v7564
  %v7570 = vsel %vm7567, %v7560, %v7562
  %v7571 = vsel %vm7567, %v7558, %v7560
  %v7572 = vsel %vm7567, %v7556, %v7558
  %v7573 = vsel %vm7567, %v7554, %v7556
  %v7574 = vsel %vm7567, %v7566, %v7554
  %v7575 = vadd.f32 %v7546, %v7573
  %v7576 = vadd.f32 %v7547, %v7572
  %v7577 = vadd.f32 %v7548, %v7571
  %v7578 = vadd.f32 %v7549, %v7570
  %v7579 = vadd.f32 %v7550, %v7569
  %v7580 = vadd.f32 %v7551, %v7568
  %v7581 = vadd.f32 %v7552, %v7574
  %7582 = vrot.lane.b32.xlu0 %v7546, 120
  %v7583 = vpop.permute.xlu0 %7582
  %7584 = vrot.lane.b32.xlu0 %v7547, 120
  %v7585 = vpop.permute.xlu0 %7584
  %7586 = vrot.lane.b32.xlu0 %v7548, 120
  %v7587 = vpop.permute.xlu0 %7586
  %7588 = vrot.lane.b32.xlu0 %v7549, 120
  %v7589 = vpop.permute.xlu0 %7588
  %7590 = vrot.lane.b32.xlu0 %v7550, 120
  %v7591 = vpop.permute.xlu0 %7590
  %7592 = vrot.lane.b32.xlu0 %v7551, 120
  %v7593 = vpop.permute.xlu0 %7592
  %7594 = vrot.lane.b32.xlu0 %v7552, 120
  %v7595 = vpop.permute.xlu0 %7594
  %vm7596 = vcmp.lt.s32.totalorder %v88, 120
  %v7597 = vsel %vm7596, %v7593, %v7595
  %v7598 = vsel %vm7596, %v7591, %v7593
  %v7599 = vsel %vm7596, %v7589, %v7591
  %v7600 = vsel %vm7596, %v7587, %v7589
  %v7601 = vsel %vm7596, %v7585, %v7587
  %v7602 = vsel %vm7596, %v7583, %v7585
  %v7603 = vsel %vm7596, %v7595, %v7583
  %v7604 = vadd.f32 %v7575, %v7602
  %v7605 = vadd.f32 %v7576, %v7601
  %v7606 = vadd.f32 %v7577, %v7600
  %v7607 = vadd.f32 %v7578, %v7599
  %v7608 = vadd.f32 %v7579, %v7598
  %v7609 = vadd.f32 %v7580, %v7597
  %v7610 = vadd.f32 %v7581, %v7603
  %7611 = vrot.lane.b32.xlu0 %v7517, 116
  %v7612 = vpop.permute.xlu0 %7611
  %7613 = vrot.lane.b32.xlu0 %v7518, 116
  %v7614 = vpop.permute.xlu0 %7613
  %7615 = vrot.lane.b32.xlu0 %v7519, 116
  %v7616 = vpop.permute.xlu0 %7615
  %7617 = vrot.lane.b32.xlu0 %v7520, 116
  %v7618 = vpop.permute.xlu0 %7617
  %7619 = vrot.lane.b32.xlu0 %v7521, 116
  %v7620 = vpop.permute.xlu0 %7619
  %7621 = vrot.lane.b32.xlu0 %v7522, 116
  %v7622 = vpop.permute.xlu0 %7621
  %7623 = vrot.lane.b32.xlu0 %v7523, 116
  %v7624 = vpop.permute.xlu0 %7623
  %vm7625 = vcmp.lt.s32.totalorder %v88, 116
  %v7626 = vsel %vm7625, %v7622, %v7624
  %v7627 = vsel %vm7625, %v7620, %v7622
  %v7628 = vsel %vm7625, %v7618, %v7620
  %v7629 = vsel %vm7625, %v7616, %v7618
  %v7630 = vsel %vm7625, %v7614, %v7616
  %v7631 = vsel %vm7625, %v7612, %v7614
  %v7632 = vsel %vm7625, %v7624, %v7612
  %v7633 = vadd.f32 %v7604, %v7631
  %v7634 = vadd.f32 %v7605, %v7630
  %v7635 = vadd.f32 %v7606, %v7629
  %v7636 = vadd.f32 %v7607, %v7628
  %v7637 = vadd.f32 %v7608, %v7627
  %v7638 = vadd.f32 %v7609, %v7626
  %v7639 = vadd.f32 %v7610, %v7632
  %v7640 = vmul.f32 %v7633, 0.071428575
  %v7641 = vmul.f32 %v7634, 0.071428575
  %v7642 = vmul.f32 %v7635, 0.071428575
  %v7643 = vmul.f32 %v7636, 0.071428575
  %v7644 = vmul.f32 %v7637, 0.071428575
  %v7645 = vmul.f32 %v7638, 0.071428575
  %v7646 = vmul.f32 %v7639, 0.071428575
  %v7647 = vld [vmem:[#allocation2] sm:$0x1]
  %7649 = vset.pattern.permute.xlu0 0
  %7650 = vperm.xlu0 %7649, %v7647
  %v7651 = vpop.permute.xlu0 %7650
  %v7653 = vlaneseq
  %v7654 = vshrl.u32 %v7653, 7
  %v7655 = vsub.s32 0, %v7654
  %v7656 = vrot.slane %v7651, %v7655
  %v7657 = vadd.f32 %v7640, %v7656
  %v7658 = vadd.f32 %v7641, %v7656
  %v7659 = vadd.f32 %v7642, %v7656
  %v7660 = vadd.f32 %v7643, %v7656
  %v7661 = vadd.f32 %v7644, %v7656
  %v7662 = vadd.f32 %v7645, %v7656
  %v7663 = vadd.f32 %v7646, %v7656
  %v7664 = vsub.f32 0.0, %v7657
  %v7665 = vsub.f32 0.0, %v7658
  %v7666 = vsub.f32 0.0, %v7659
  %v7667 = vsub.f32 0.0, %v7660
  %v7668 = vsub.f32 0.0, %v7661
  %v7669 = vsub.f32 0.0, %v7662
  %v7670 = vsub.f32 0.0, %v7663
  %v7671 = vmul.f32 %v7664, 1.442695
  %v7672 = vpow.pop %v7671
  %v7673 = vmul.f32 %v7665, 1.442695
  %v7674 = vpow.pop %v7673
  %v7675 = vmul.f32 %v7666, 1.442695
  %v7676 = vpow.pop %v7675
  %v7677 = vmul.f32 %v7667, 1.442695
  %v7678 = vpow.pop %v7677
  %v7679 = vmul.f32 %v7668, 1.442695
  %v7680 = vpow.pop %v7679
  %v7681 = vmul.f32 %v7669, 1.442695
  %v7682 = vpow.pop %v7681
  %v7683 = vmul.f32 %v7670, 1.442695
  %v7684 = vpow.pop %v7683
  %v7685 = vadd.f32 %v7672, 1.0
  %v7686 = vadd.f32 %v7674, 1.0
  %v7687 = vadd.f32 %v7676, 1.0
  %v7688 = vadd.f32 %v7678, 1.0
  %v7689 = vadd.f32 %v7680, 1.0
  %v7690 = vadd.f32 %v7682, 1.0
  %v7691 = vadd.f32 %v7684, 1.0
  %v7692 = vrcp.pop %v7685
  %v7693 = vrcp.pop %v7686
  %v7694 = vrcp.pop %v7687
  %v7695 = vrcp.pop %v7688
  %v7696 = vrcp.pop %v7689
  %v7697 = vrcp.pop %v7690
  %v7698 = vrcp.pop %v7691
  %v7706 = vcombine.low %v7692, %v7693
  %v7707 = vcombine.low %v7694, %v7695
  %v7708 = vcombine.low %v7696, %v7697
  %v7710 = vunpack.c.l.s4 1966171168
  %v7711 = vunpack.c.0.s8 %v7710
  %v7712 = vlaneseq
  %v7713 = vshrl.u32 %v7712, 7
  %v7714 = vsub.s32 %v7711, %v7713
  %v7715 = vrot.slane %v7706, %v7714
  %v7717 = vunpack.c.l.s4 1966171168
  %v7718 = vunpack.c.0.s8 %v7717
  %v7719 = vlaneseq
  %v7720 = vshrl.u32 %v7719, 7
  %v7721 = vsub.s32 %v7718, %v7720
  %v7722 = vrot.slane %v7707, %v7721
  %v7724 = vunpack.c.l.s4 1966171168
  %v7725 = vunpack.c.0.s8 %v7724
  %v7726 = vlaneseq
  %v7727 = vshrl.u32 %v7726, 7
  %v7728 = vsub.s32 %v7725, %v7727
  %v7729 = vrot.slane %v7708, %v7728
  %v7731 = vunpack.c.l.s4 1966171168
  %v7732 = vunpack.c.0.s8 %v7731
  %v7733 = vlaneseq
  %v7734 = vshrl.u32 %v7733, 7
  %v7735 = vsub.s32 %v7732, %v7734
  %v7736 = vrot.slane %v7698, %v7735
  %v7737 = vcombine.low %v7715, %v7722
  %v7738 = vcombine.low %v7729, %v7736
  %v7740 = vunpack.c.l.s4 1966171168
  %v7741 = vunpack.c.0.s8 %v7740
  %v7742 = vlaneseq
  %v7743 = vshrl.u32 %v7742, 7
  %v7744 = vsub.s32 %v7741, %v7743
  %v7745 = vrot.slane %v7737, %v7744
  %v7747 = vunpack.c.l.s4 1966171168
  %v7748 = vunpack.c.0.s8 %v7747
  %v7749 = vlaneseq
  %v7750 = vshrl.u32 %v7749, 7
  %v7751 = vsub.s32 %v7748, %v7750
  %v7752 = vrot.slane %v7738, %v7751
  %v7753 = vcombine.low %v7745, %v7752
  %v7755 = vlaneseq
  %vm7756 = vcmp.ge.s32.totalorder %v7755, 0
  %vm7757 = vcmp.lt.s32.totalorder %v7755, 896
  %vm7758 = vmand %vm7756, %vm7757
  %7759 = vst.msk [vmem:[%s9] sm:$0x7f] %vm7758, %v7753
  // Predicated region
  $region38: #{cnn1d_forward.1} parent=0 // pred_check
    _
  $region39: #{cnn1d_forward.1} parent=0 // pred_check_branch
    %7761 = sbr.rel (0) target = $region41
  $region40: #{cnn1d_forward.1} parent=0 // pred_region
    _
  $region41: #{cnn1d_forward.1} parent=0 // pred_fallthru
    _
  // Predicated region
  $region42: #{cnn1d_forward.1} parent=0 // pred_check
    _
  $region43: #{cnn1d_forward.1} parent=0 // pred_check_branch
    %7763 = sbr.rel (0) target = $region45
  $region44: #{cnn1d_forward.1} parent=0 // pred_region
    _
  $region45: #{cnn1d_forward.1} parent=0 // pred_fallthru
    _

</llo_original>
